<compile_context>
chip_gen: v6e
topology: v6e:2x2x1
jax: 0.10.0
libtpu: 0.0.40
codegen_flags: <defaults>
</compile_context>

<pallas_src>
import functools

import jax
import jax.numpy as jnp
from jax.experimental import pallas as pl
from jax.experimental.pallas import tpu as pltpu


_VMEM_LIMIT = 32 * 1024 * 1024      # <= half of v7x's 64 MiB physical VMEM; fine on v5e/v6e
_K_PACK = [True]                    # flipped to False if K-packed concat fails to lower


# ---------------------------------------------------------------------------
# Padded-flat activation layout helpers
#
# A (N, H, W, C) activation is kept as (N, Lp, C) with Lp = Z + (H+3)*(W+2):
#   Z leading zero rows make the first interior row 16-sublane aligned, then the usual
#   zero-padded image (top=1, bottom=2, left/right=1) flattened row-major.  A 3x3
#   stride-1 conv then becomes 9 (or 3 K-packed) row-shifted matmuls on this buffer.
# ---------------------------------------------------------------------------
def _z_offset(W):
    return (-(W + 3)) % 16          # (Z + Wp + 1) % 16 == 0  ->  aligned interior stores


def _to_padded_flat(x):
    N, H, W, C = x.shape
    Wp = W + 2
    Z = _z_offset(W)
    xp = jnp.pad(x.astype(jnp.bfloat16), ((0, 0), (1, 2), (1, 1), (0, 0)))
    xf = xp.reshape(N, (H + 3) * Wp, C)
    if Z:
        xf = jnp.pad(xf, ((0, 0), (Z, 0), (0, 0)))
    return xf


def _from_padded_flat(xpad, H, W):
    N, Lp, C = xpad.shape
    Wp = W + 2
    Z = _z_offset(W)
    img = xpad[:, Z:, :].reshape(N, H + 3, Wp, C)
    return img[:, 1:H + 1, 1:W + 1, :]


def _interior_mask(H, W):
    """(1, Lp, 1) f32 mask: 1.0 on valid image pixels of the padded-flat layout, else 0."""
    Wp = W + 2
    Z = _z_offset(W)
    Lp = Z + (H + 3) * Wp
    q = jnp.arange(Lp) - (Z + Wp + 1)
    m = (q >= 0) & (q < H * Wp) & ((q % Wp) < W)
    return m.astype(jnp.float32).reshape(1, Lp, 1)


# ---------------------------------------------------------------------------
# Fused 3x3 stride-1 convolution kernel
#   - optional prologue: relu(x*scale+shift) of the *previous* BN, interior-masked,
#     written once to a VMEM scratch (fuses bn1-apply into conv2).
#   - 3 K-packed matmuls (K = 3*Cin) per M-chunk, f32 accumulation.
#   - fused per-channel sum / sum-of-squares outputs (BN statistics of this conv).
#   - output stored lane-dense, aligned, directly in padded-flat layout (halo zeroed).
# ---------------------------------------------------------------------------
def _conv3x3_s1_kernel(*refs, H, W, Cin, Z, k_pack, has_prologue, tile_m, tile_p):
    if has_prologue:
        (x_ref, w_ref, mask_ref, s_ref, b_ref,
         o_ref, sum_ref, ssq_ref, post_scr) = refs
    else:
        x_ref, w_ref, mask_ref, o_ref, sum_ref, ssq_ref = refs
        s_ref = b_ref = post_scr = None

    Wp = W + 2
    mflat = H * Wp
    Lp = Z + (H + 3) * Wp
    Cout = o_ref.shape[-1]
    base = Z + Wp + 1                     # first interior row (16-aligned by construction)

    if has_prologue:
        sv = s_ref[...]                   # (1, Cin) f32
        bv = b_ref[...]
        for p0 in range(0, Lp, tile_p):
            plen = min(tile_p, Lp - p0)
            xv = x_ref[0, p0:p0 + plen, :].astype(jnp.float32)
            y = jnp.maximum(xv * sv + bv, 0.0) * mask_ref[0, p0:p0 + plen, :]
            post_scr[p0:p0 + plen, :] = y.astype(post_scr.dtype)

        def src(lo, n):
            return post_scr[lo:lo + n, :]
    else:
        def src(lo, n):
            return x_ref[0, lo:lo + n, :]

    # Zero halo prefix / suffix of the padded-layout output (tiny, so its consumer
    # needs no jnp.pad at all).
    o_ref[0, 0:base, :] = jnp.zeros((base, Cout), o_ref.dtype)
    tail = Lp - base - mflat
    o_ref[0, base + mflat:Lp, :] = jnp.zeros((tail, Cout), o_ref.dtype)

    s_tot = jnp.zeros((1, Cout), jnp.float32)
    ss_tot = jnp.zeros((1, Cout), jnp.float32)
    for m0 in range(0, mflat, tile_m):                       # M-chunking: small f32 acc
        mlen = min(tile_m, mflat - m0)
        acc = None
        for dy in range(3):
            lo = Z + dy * Wp + m0
            if k_pack:
                # K-packing: the 3 dx taps are consecutive flat rows -> one K=3*Cin matmul.
                a = jnp.concatenate([src(lo + dx, mlen) for dx in range(3)], axis=-1)
                part = jnp.dot(a, w_ref[dy * 3 * Cin:(dy + 1) * 3 * Cin, :],
                               preferred_element_type=jnp.float32)
                acc = part if acc is None else acc + part
            else:
                for dx in range(3):
                    wk = w_ref[(dy * 3 + dx) * Cin:(dy * 3 + dx + 1) * Cin, :]
                    part = jnp.dot(src(lo + dx, mlen), wk,
                                   preferred_element_type=jnp.float32)
                    acc = part if acc is None else acc + part
        # Zero wrap rows (right-pad / next-row-left-pad positions): makes the stored slab
        # a valid padded image for the next conv AND keeps the BN statistics exact.
        acc = acc * mask_ref[0, base + m0:base + m0 + mlen, :]
        s_tot = s_tot + jnp.sum(acc, axis=0, keepdims=True)
        ss_tot = ss_tot + jnp.sum(acc * acc, axis=0, keepdims=True)
        o_ref[0, base + m0:base + m0 + mlen, :] = acc.astype(o_ref.dtype)

    sum_ref[0] = s_tot
    ssq_ref[0] = ss_tot


def conv3x3_s1_fused(xpad, w_mat, mask, H, W, scale=None, shift=None,
                     tile_m=128, tile_p=256):
    """xpad: (N, Lp, Cin) padded-flat bf16; w_mat: (9*Cin, Cout) bf16 (dy, dx, cin order).
    Returns (out_pad (N, Lp, Cout) bf16, channel_sum (Cout,), channel_sumsq (Cout,))."""
    N, Lp, Cin = xpad.shape
    Cout = w_mat.shape[1]
    Z = _z_offset(W)
    assert Lp == Z + (H + 3) * (W + 2)
    has_prologue = scale is not None

    def call(k_pack):
        kern = functools.partial(_conv3x3_s1_kernel, H=H, W=W, Cin=Cin, Z=Z,
                                 k_pack=k_pack, has_prologue=has_prologue,
                                 tile_m=tile_m, tile_p=tile_p)
        in_specs = [pl.BlockSpec((1, Lp, Cin), lambda n: (n, 0, 0)),
                    pl.BlockSpec((9 * Cin, Cout), lambda n: (0, 0)),
                    pl.BlockSpec((1, Lp, 1), lambda n: (0, 0, 0))]
        args = [xpad, w_mat, mask]
        if has_prologue:
            in_specs += [pl.BlockSpec((1, Cin), lambda n: (0, 0)),
                         pl.BlockSpec((1, Cin), lambda n: (0, 0))]
            args += [scale.reshape(1, Cin).astype(jnp.float32),
                     shift.reshape(1, Cin).astype(jnp.float32)]
        scratch = [pltpu.VMEM((Lp, Cin), jnp.bfloat16)] if has_prologue else []
        return pl.pallas_call(
            kern,
            out_shape=(jax.ShapeDtypeStruct((N, Lp, Cout), jnp.bfloat16),
                       jax.ShapeDtypeStruct((N, 1, Cout), jnp.float32),
                       jax.ShapeDtypeStruct((N, 1, Cout), jnp.float32)),
            grid=(N,),
            in_specs=in_specs,
            out_specs=(pl.BlockSpec((1, Lp, Cout), lambda n: (n, 0, 0)),
                       pl.BlockSpec((1, 1, Cout), lambda n: (n, 0, 0)),
                       pl.BlockSpec((1, 1, Cout), lambda n: (n, 0, 0))),
            scratch_shapes=scratch,
            compiler_params=pltpu.CompilerParams(
                dimension_semantics=("parallel",),
                vmem_limit_bytes=_VMEM_LIMIT),
        )(*args)

    if _K_PACK[0]:
        try:
            out, s, ss = call(True)
        except Exception:                         # Mosaic concat lowering fallback
            _K_PACK[0] = False
            out, s, ss = call(False)
    else:
        out, s, ss = call(False)
    return out, jnp.sum(s, axis=(0, 1)), jnp.sum(ss, axis=(0, 1))


# ---------------------------------------------------------------------------
# Tiled matmul with fused per-channel BN statistics
# (stride-2 3x3 conv via im2col, and the 1x1 downsample conv)
# ---------------------------------------------------------------------------
def _matmul_stats_kernel(a_ref, b_ref, o_ref, sum_ref, ssq_ref):
    acc = jnp.dot(a_ref[...], b_ref[...], preferred_element_type=jnp.float32)
    o_ref[...] = acc.astype(o_ref.dtype)
    sum_ref[0] = jnp.sum(acc, axis=0, keepdims=True)
    ssq_ref[0] = jnp.sum(acc * acc, axis=0, keepdims=True)


def _pick_m_tile(m, cap=256):
    cap = min(cap, m)
    if 16 <= m <= 256:
        cap = min(cap, max(8, m // 2))    # >= 2 parallel grid steps for v7x's two cores
    for t in range(cap, 0, -1):
        if m % t == 0 and (t % 8 == 0 or t == m):
            return t
    return None


def matmul_with_stats(a, b, out_dtype=jnp.bfloat16):
    a = a.astype(jnp.bfloat16)
    b = b.astype(jnp.bfloat16)
    M, K = a.shape
    Nc = b.shape[1]
    tm = _pick_m_tile(M)
    Mp = M
    if tm is None:                        # rare: pad rows (zero rows don't perturb stats)
        tm = 128
        Mp = pl.cdiv(M, tm) * tm
        a = jnp.pad(a, ((0, Mp - M), (0, 0)))
    nmt = Mp // tm
    out, s, ss = pl.pallas_call(
        _matmul_stats_kernel,
        out_shape=(jax.ShapeDtypeStruct((Mp, Nc), out_dtype),
                   jax.ShapeDtypeStruct((nmt, 1, Nc), jnp.float32),
                   jax.ShapeDtypeStruct((nmt, 1, Nc), jnp.float32)),
        grid=(nmt,),
        in_specs=[pl.BlockSpec((tm, K), lambda i: (i, 0)),
                  pl.BlockSpec((K, Nc), lambda i: (0, 0))],
        out_specs=(pl.BlockSpec((tm, Nc), lambda i: (i, 0)),
                   pl.BlockSpec((1, 1, Nc), lambda i: (i, 0, 0)),
                   pl.BlockSpec((1, 1, Nc), lambda i: (i, 0, 0))),
        compiler_params=pltpu.CompilerParams(
            dimension_semantics=("parallel",),
            vmem_limit_bytes=_VMEM_LIMIT),
    )(a, b)
    if Mp != M:
        out = out[:M]
    return out, jnp.sum(s, axis=(0, 1)), jnp.sum(ss, axis=(0, 1))


def _im2col(x, k, stride, pad):
    N, H, W, C = x.shape
    Ho = (H + 2 * pad - k) // stride + 1
    Wo = (W + 2 * pad - k) // stride + 1
    xp = jnp.pad(x, ((0, 0), (pad, pad), (pad, pad), (0, 0)))
    cols = []
    for dy in range(k):
        for dx in range(k):
            cols.append(xp[:, dy:dy + stride * Ho:stride, dx:dx + stride * Wo:stride, :])
    patches = jnp.concatenate(cols, axis=-1)       # (N, Ho, Wo, k*k*C), order (dy, dx, c)
    return patches.reshape(N * Ho * Wo, k * k * C), (N, Ho, Wo)


# ---------------------------------------------------------------------------
# bn2-apply + residual add (+ fused downsample-BN apply) + ReLU, in padded-flat layout
# ---------------------------------------------------------------------------
def _bn_add_relu_kernel(x_ref, mask_ref, sx_ref, bx_ref, r_ref, sr_ref, br_ref, o_ref,
                        *, tile):
    Lp = x_ref.shape[1]
    for p0 in range(0, Lp, tile):
        plen = min(tile, Lp - p0)
        xv = x_ref[0, p0:p0 + plen, :].astype(jnp.float32)
        rv = r_ref[0, p0:p0 + plen, :].astype(jnp.float32)
        y = xv * sx_ref[...] + bx_ref[...] + rv * sr_ref[...] + br_ref[...]
        y = jnp.maximum(y, 0.0) * mask_ref[0, p0:p0 + plen, :]
        o_ref[0, p0:p0 + plen, :] = y.astype(o_ref.dtype)


def bn_add_relu_padded(x_pad, mask, sx, bx, r_pad, sr, br, tile=512):
    N, Lp, C = x_pad.shape
    vec = lambda v: v.reshape(1, C).astype(jnp.float32)
    return pl.pallas_call(
        functools.partial(_bn_add_relu_kernel, tile=tile),
        out_shape=jax.ShapeDtypeStruct((N, Lp, C), jnp.bfloat16),
        grid=(N,),
        in_specs=[pl.BlockSpec((1, Lp, C), lambda n: (n, 0, 0)),
                  pl.BlockSpec((1, Lp, 1), lambda n: (0, 0, 0)),
                  pl.BlockSpec((1, C), lambda n: (0, 0)),
                  pl.BlockSpec((1, C), lambda n: (0, 0)),
                  pl.BlockSpec((1, Lp, C), lambda n: (n, 0, 0)),
                  pl.BlockSpec((1, C), lambda n: (0, 0)),
                  pl.BlockSpec((1, C), lambda n: (0, 0))],
        out_specs=pl.BlockSpec((1, Lp, C), lambda n: (n, 0, 0)),
        compiler_params=pltpu.CompilerParams(
            dimension_semantics=("parallel",),
            vmem_limit_bytes=_VMEM_LIMIT),
    )(x_pad, mask, vec(sx), vec(bx), r_pad, vec(sr), vec(br))


# ---------------------------------------------------------------------------
# BN (training-mode forward, biased variance) scale/shift finalization (O(C) glue)
# ---------------------------------------------------------------------------
def _finalize_bn(s, ss, count, gamma, beta, eps=1e-5):
    mean = s / count
    var = jnp.maximum(ss / count - mean * mean, 0.0)
    scale = gamma * jax.lax.rsqrt(var + eps)
    shift = beta - mean * scale
    return scale, shift


# ---------------------------------------------------------------------------
# BasicBlock parameters (matches the PyTorch module's structure) and forward pass
# ---------------------------------------------------------------------------
def _kaiming_conv(key, cout, cin, k):
    fan_out = cout * k * k
    std = (2.0 / fan_out) ** 0.5
    return jax.random.normal(key, (cout, cin, k, k), jnp.float32) * std


def _to_mat3x3(w):                         # (Cout, Cin, 3, 3) -> (9*Cin, Cout) bf16
    return jnp.transpose(w, (2, 3, 1, 0)).reshape(-1, w.shape[0]).astype(jnp.bfloat16)


def init_basic_block(key, inplanes, planes, stride=1):
    k1, k2, k3 = jax.random.split(key, 3)
    w1 = _kaiming_conv(k1, planes, inplanes, 3)
    w2 = _kaiming_conv(k2, planes, planes, 3)
    blk = {
        "stride": stride,
        "w1": w1, "w2": w2,
        "w1_mat": _to_mat3x3(w1), "w2_mat": _to_mat3x3(w2),
        "bn1_g": jnp.ones((planes,), jnp.float32), "bn1_b": jnp.zeros((planes,), jnp.float32),
        "bn2_g": jnp.ones((planes,), jnp.float32), "bn2_b": jnp.zeros((planes,), jnp.float32),
    }
    if stride != 1 or inplanes != planes:          # downsample = 1x1 conv + BN
        wd = _kaiming_conv(k3, planes, inplanes, 1)
        blk["wd"] = wd
        blk["wd_mat"] = wd.reshape(planes, inplanes).T.astype(jnp.bfloat16)
        blk["down_g"] = jnp.ones((planes,), jnp.float32)
        blk["down_b"] = jnp.zeros((planes,), jnp.float32)
    return blk


def basic_block_forward(x, blk):
    """x: (N, H, W, Cin) NHWC (f32 or bf16). Returns (N, Ho, Wo, planes) bf16."""
    stride = blk["stride"]
    planes = blk["bn1_g"].shape[0]
    N, H, W, Cin = x.shape
    Ho, Wo = H // stride, W // stride
    mask_out = _interior_mask(Ho, Wo)
    cnt = N * Ho * Wo

    # --- conv1 (+ fused BN1 batch statistics) -------------------------------------
    xpad = None
    if stride == 1:
        xpad = _to_padded_flat(x)
        out1_pad, s_sum, s_ssq = conv3x3_s1_fused(xpad, blk["w1_mat"], mask_out, H, W)
    else:
        # TODO(synk): stride-2 3x3 conv still materializes a jnp im2col before the
        # fused matmul+stats kernel; a phase-decomposed fused kernel would remove it.
        cols, _ = _im2col(x.astype(jnp.bfloat16), 3, stride, 1)
        out1, s_sum, s_ssq = matmul_with_stats(cols, blk["w1_mat"])
        out1_pad = _to_padded_flat(out1.reshape(N, Ho, Wo, planes))
    s1, b1 = _finalize_bn(s_sum, s_ssq, cnt, blk["bn1_g"], blk["bn1_b"])

    # --- conv2 with bn1-apply + ReLU fused into its input prologue (+ BN2 stats) ---
    out2_pad, s2_sum, s2_ssq = conv3x3_s1_fused(out1_pad, blk["w2_mat"], mask_out,
                                                Ho, Wo, scale=s1, shift=b1)
    s2, b2 = _finalize_bn(s2_sum, s2_ssq, cnt, blk["bn2_g"], blk["bn2_b"])

    # --- residual branch ------------------------------------------------------------
    if "wd_mat" in blk:
        # TODO(synk): the stride-2 subsample is a jnp strided slice; it could be folded
        # into the matmul's index_map instead.
        xs = x[:, ::stride, ::stride, :] if stride > 1 else x
        idn, d_sum, d_ssq = matmul_with_stats(
            xs.astype(jnp.bfloat16).reshape(N * Ho * Wo, Cin), blk["wd_mat"])
        sd, bd = _finalize_bn(d_sum, d_ssq, cnt, blk["down_g"], blk["down_b"])
        res_pad = _to_padded_flat(idn.reshape(N, Ho, Wo, planes))
    else:
        res_pad = xpad                      # identity residual, already in padded layout
        sd = jnp.ones((planes,), jnp.float32)
        bd = jnp.zeros((planes,), jnp.float32)

    # --- bn2-apply + residual add (+ fused downsample BN) + ReLU --------------------
    y_pad = bn_add_relu_padded(out2_pad, mask_out, s2, b2, res_pad, sd, bd)
    return _from_padded_flat(y_pad, Ho, Wo)


# ---------------------------------------------------------------------------
# Pure-jnp f32 reference (loose numerical sanity check; Pallas path runs bf16)
# ---------------------------------------------------------------------------
def _ref_conv(x, w, stride, pad):
    return jax.lax.conv_general_dilated(
        x, jnp.transpose(w, (2, 3, 1, 0)),
        window_strides=(stride, stride), padding=[(pad, pad), (pad, pad)],
        dimension_numbers=("NHWC", "HWIO", "NHWC"))


def _ref_bn(x, gamma, beta, eps=1e-5):
    mean = x.mean(axis=(0, 1, 2))
    var = ((x - mean) ** 2).mean(axis=(0, 1, 2))
    return (x - mean) / jnp.sqrt(var + eps) * gamma + beta


def ref_basic_block(x, blk):
    out = _ref_conv(x, blk["w1"], blk["stride"], 1)
    out = jax.nn.relu(_ref_bn(out, blk["bn1_g"], blk["bn1_b"]))
    out = _ref_conv(out, blk["w2"], 1, 1)
    out = _ref_bn(out, blk["bn2_g"], blk["bn2_b"])
    if "wd" in blk:
        idn = _ref_conv(x, blk["wd"], blk["stride"], 0)
        idn = _ref_bn(idn, blk["down_g"], blk["down_b"])
    else:
        idn = x
    return jax.nn.relu(out + idn)


# ---------------------------------------------------------------------------
if __name__ == "__main__":
    key = jax.random.PRNGKey(0)
    kx, kb1, kb2 = jax.random.split(key, 3)

    # PyTorch-style NCHW input at small shapes; compute in NHWC.
    x_nchw = jax.random.normal(kx, (2, 64, 16, 16), jnp.float32)
    x = jnp.transpose(x_nchw, (0, 2, 3, 1))

    # Block 1: identity residual (inplanes == planes, stride 1).
    blk1 = init_basic_block(kb1, 64, 64, stride=1)
    # Block 2: stride-2 + channel expansion -> 1x1-conv downsample residual.
    blk2 = init_basic_block(kb2, 64, 128, stride=2)

    y1 = basic_block_forward(x, blk1)
    y2 = basic_block_forward(y1, blk2)
    y1 = jax.block_until_ready(y1.astype(jnp.float32))
    y2 = jax.block_until_ready(y2.astype(jnp.float32))

    assert y1.shape == (2, 16, 16, 64), y1.shape
    assert y2.shape == (2, 8, 8, 128), y2.shape
    assert bool(jnp.all(jnp.isfinite(y1))) and bool(jnp.all(jnp.isfinite(y2)))

    # Loose check against an f32 reference (Pallas path runs bf16 activations/matmuls).
    r1 = jax.block_until_ready(ref_basic_block(x, blk1))
    r2 = jax.block_until_ready(ref_basic_block(y1, blk2))
    err1 = float(jnp.max(jnp.abs(y1 - r1)))
    err2 = float(jnp.max(jnp.abs(y2 - r2)))
    assert err1 < 0.25, f"block1 max abs error too large: {err1}"
    assert err2 < 0.25, f"block2 max abs error too large: {err2}"

    print("KERNEL_OK")
</pallas_src>

<mosaic_0001>
module attributes {stable_mosaic.version = 11 : i64} {
  func.func @_conv3x3_s1_kernel(%arg0: i32, %arg1: memref<1x355x64xbf16, #tpu.memory_space<vmem>>, %arg2: memref<576x64xbf16, #tpu.memory_space<vmem>>, %arg3: memref<1x355x1xf32, #tpu.memory_space<vmem>>, %arg4: memref<1x355x64xbf16, #tpu.memory_space<vmem>>, %arg5: memref<1x1x64xf32, #tpu.memory_space<vmem>>, %arg6: memref<1x1x64xf32, #tpu.memory_space<vmem>>) attributes {dimension_semantics = [#tpu.dimension_semantics<parallel>], iteration_bounds = array<i64: 2>, scalar_prefetch = 0 : i64, scratch_operands = 0 : i64, tpu.core_type = #tpu.core_type<tc>, window_params = [{transform_indices = @transform_0, window_bounds = array<i64: 1, 355, 64>}, {pipeline_mode = #tpu.pipeline_mode<synchronous>, transform_indices = @transform_1, window_bounds = array<i64: 576, 64>}, {pipeline_mode = #tpu.pipeline_mode<synchronous>, transform_indices = @transform_2, window_bounds = array<i64: 1, 355, 1>}, {transform_indices = @transform_3, window_bounds = array<i64: 1, 355, 64>}, {transform_indices = @transform_4, window_bounds = array<i64: 1, 1, 64>}, {transform_indices = @transform_5, window_bounds = array<i64: 1, 1, 64>}]} {
    %cst = arith.constant 0.000000e+00 : bf16
    %0 = vector.broadcast %cst : bf16 to vector<32x64xbf16>
    %c0 = arith.constant 0 : index
    %c0_0 = arith.constant 0 : index
    %c0_1 = arith.constant 0 : index
    %1 = vector.load %arg4[%c0, %c0_0, %c0_1] : memref<1x355x64xbf16, #tpu.memory_space<vmem>>, vector<1x32x64xbf16>
    %2 = vector.shape_cast %1 : vector<1x32x64xbf16> to vector<32x64xbf16>
    %3 = vector.shape_cast %0 : vector<32x64xbf16> to vector<1x32x64xbf16>
    tpu.vector_store %arg4[%c0, %c0_0, %c0_1], %3 {strides = array<i32>} : memref<1x355x64xbf16, #tpu.memory_space<vmem>>, vector<1x32x64xbf16>,
    %cst_2 = arith.constant 0.000000e+00 : bf16
    %4 = vector.broadcast %cst_2 : bf16 to vector<35x64xbf16>
    %c0_3 = arith.constant 0 : index
    %c320 = arith.constant 320 : index
    %c0_4 = arith.constant 0 : index
    %5 = vector.load %arg4[%c0_3, %c320, %c0_4] : memref<1x355x64xbf16, #tpu.memory_space<vmem>>, vector<1x35x64xbf16>
    %6 = vector.shape_cast %5 : vector<1x35x64xbf16> to vector<35x64xbf16>
    %7 = vector.shape_cast %4 : vector<35x64xbf16> to vector<1x35x64xbf16>
    tpu.vector_store %arg4[%c0_3, %c320, %c0_4], %7 {strides = array<i32>} : memref<1x355x64xbf16, #tpu.memory_space<vmem>>, vector<1x35x64xbf16>,
    %cst_5 = arith.constant 0.000000e+00 : f32
    %8 = vector.broadcast %cst_5 : f32 to vector<1x64xf32>
    %cst_6 = arith.constant 0.000000e+00 : f32
    %9 = vector.broadcast %cst_6 : f32 to vector<1x64xf32>
    %c0_7 = arith.constant 0 : index
    %c13 = arith.constant 13 : index
    %c0_8 = arith.constant 0 : index
    %10 = vector.load %arg1[%c0_7, %c13, %c0_8] : memref<1x355x64xbf16, #tpu.memory_space<vmem>>, vector<1x128x64xbf16>
    %11 = vector.shape_cast %10 : vector<1x128x64xbf16> to vector<128x64xbf16>
    %c0_9 = arith.constant 0 : index
    %c14 = arith.constant 14 : index
    %c0_10 = arith.constant 0 : index
    %12 = vector.load %arg1[%c0_9, %c14, %c0_10] : memref<1x355x64xbf16, #tpu.memory_space<vmem>>, vector<1x128x64xbf16>
    %13 = vector.shape_cast %12 : vector<1x128x64xbf16> to vector<128x64xbf16>
    %c0_11 = arith.constant 0 : index
    %c15 = arith.constant 15 : index
    %c0_12 = arith.constant 0 : index
    %14 = vector.load %arg1[%c0_11, %c15, %c0_12] : memref<1x355x64xbf16, #tpu.memory_space<vmem>>, vector<1x128x64xbf16>
    %15 = vector.shape_cast %14 : vector<1x128x64xbf16> to vector<128x64xbf16>
    %16 = tpu.concatenate %11, %13, %15 in 1 : vector<128x64xbf16>, vector<128x64xbf16>, vector<128x64xbf16> -> vector<128x192xbf16>
    %c0_13 = arith.constant 0 : index
    %c0_14 = arith.constant 0 : index
    %17 = vector.load %arg2[%c0_13, %c0_14] : memref<576x64xbf16, #tpu.memory_space<vmem>>, vector<192x64xbf16>
    %cst_15 = arith.constant dense<0.000000e+00> : vector<128x64xf32>
    %18 = tpu.matmul %16, %17, %cst_15 {dimension_numbers = #tpu.dot_dimension_numbers<[1], [0], [0], [1], [0, 0, 1, 1], [], []>} : vector<128x192xbf16>, vector<192x64xbf16>, vector<128x64xf32> -> vector<128x64xf32>
    %c0_16 = arith.constant 0 : index
    %c31 = arith.constant 31 : index
    %c0_17 = arith.constant 0 : index
    %19 = vector.load %arg1[%c0_16, %c31, %c0_17] : memref<1x355x64xbf16, #tpu.memory_space<vmem>>, vector<1x128x64xbf16>
    %20 = vector.shape_cast %19 : vector<1x128x64xbf16> to vector<128x64xbf16>
    %c0_18 = arith.constant 0 : index
    %c32 = arith.constant 32 : index
    %c0_19 = arith.constant 0 : index
    %21 = vector.load %arg1[%c0_18, %c32, %c0_19] : memref<1x355x64xbf16, #tpu.memory_space<vmem>>, vector<1x128x64xbf16>
    %22 = vector.shape_cast %21 : vector<1x128x64xbf16> to vector<128x64xbf16>
    %c0_20 = arith.constant 0 : index
    %c33 = arith.constant 33 : index
    %c0_21 = arith.constant 0 : index
    %23 = vector.load %arg1[%c0_20, %c33, %c0_21] : memref<1x355x64xbf16, #tpu.memory_space<vmem>>, vector<1x128x64xbf16>
    %24 = vector.shape_cast %23 : vector<1x128x64xbf16> to vector<128x64xbf16>
    %25 = tpu.concatenate %20, %22, %24 in 1 : vector<128x64xbf16>, vector<128x64xbf16>, vector<128x64xbf16> -> vector<128x192xbf16>
    %c192 = arith.constant 192 : index
    %c0_22 = arith.constant 0 : index
    %26 = vector.load %arg2[%c192, %c0_22] : memref<576x64xbf16, #tpu.memory_space<vmem>>, vector<192x64xbf16>
    %cst_23 = arith.constant dense<0.000000e+00> : vector<128x64xf32>
    %27 = tpu.matmul %25, %26, %cst_23 {dimension_numbers = #tpu.dot_dimension_numbers<[1], [0], [0], [1], [0, 0, 1, 1], [], []>} : vector<128x192xbf16>, vector<192x64xbf16>, vector<128x64xf32> -> vector<128x64xf32>
    %28 = arith.addf %18, %27 : vector<128x64xf32>
    %c0_24 = arith.constant 0 : index
    %c49 = arith.constant 49 : index
    %c0_25 = arith.constant 0 : index
    %29 = vector.load %arg1[%c0_24, %c49, %c0_25] : memref<1x355x64xbf16, #tpu.memory_space<vmem>>, vector<1x128x64xbf16>
    %30 = vector.shape_cast %29 : vector<1x128x64xbf16> to vector<128x64xbf16>
    %c0_26 = arith.constant 0 : index
    %c50 = arith.constant 50 : index
    %c0_27 = arith.constant 0 : index
    %31 = vector.load %arg1[%c0_26, %c50, %c0_27] : memref<1x355x64xbf16, #tpu.memory_space<vmem>>, vector<1x128x64xbf16>
    %32 = vector.shape_cast %31 : vector<1x128x64xbf16> to vector<128x64xbf16>
    %c0_28 = arith.constant 0 : index
    %c51 = arith.constant 51 : index
    %c0_29 = arith.constant 0 : index
    %33 = vector.load %arg1[%c0_28, %c51, %c0_29] : memref<1x355x64xbf16, #tpu.memory_space<vmem>>, vector<1x128x64xbf16>
    %34 = vector.shape_cast %33 : vector<1x128x64xbf16> to vector<128x64xbf16>
    %35 = tpu.concatenate %30, %32, %34 in 1 : vector<128x64xbf16>, vector<128x64xbf16>, vector<128x64xbf16> -> vector<128x192xbf16>
    %c384 = arith.constant 384 : index
    %c0_30 = arith.constant 0 : index
    %36 = vector.load %arg2[%c384, %c0_30] : memref<576x64xbf16, #tpu.memory_space<vmem>>, vector<192x64xbf16>
    %cst_31 = arith.constant dense<0.000000e+00> : vector<128x64xf32>
    %37 = tpu.matmul %35, %36, %cst_31 {dimension_numbers = #tpu.dot_dimension_numbers<[1], [0], [0], [1], [0, 0, 1, 1], [], []>} : vector<128x192xbf16>, vector<192x64xbf16>, vector<128x64xf32> -> vector<128x64xf32>
    %38 = arith.addf %28, %37 : vector<128x64xf32>
    %c0_32 = arith.constant 0 : index
    %c32_33 = arith.constant 32 : index
    %c0_34 = arith.constant 0 : index
    %39 = vector.load %arg3[%c0_32, %c32_33, %c0_34] : memref<1x355x1xf32, #tpu.memory_space<vmem>>, vector<1x128x1xf32>
    %40 = vector.shape_cast %39 : vector<1x128x1xf32> to vector<128x1xf32>
    %41 = vector.broadcast %40 : vector<128x1xf32> to vector<128x64xf32>
    %42 = arith.mulf %38, %41 : vector<128x64xf32>
    %cst_35 = arith.constant dense<0.000000e+00> : vector<64xf32>
    %43 = vector.multi_reduction <add>, %42, %cst_35 [0] : vector<128x64xf32> to vector<64xf32>
    %44 = vector.shape_cast %43 : vector<64xf32> to vector<1x64xf32>
    %45 = arith.addf %8, %44 : vector<1x64xf32>
    %46 = arith.mulf %42, %42 : vector<128x64xf32>
    %cst_36 = arith.constant dense<0.000000e+00> : vector<64xf32>
    %47 = vector.multi_reduction <add>, %46, %cst_36 [0] : vector<128x64xf32> to vector<64xf32>
    %48 = vector.shape_cast %47 : vector<64xf32> to vector<1x64xf32>
    %49 = arith.addf %9, %48 : vector<1x64xf32>
    %50 = arith.truncf %42 : vector<128x64xf32> to vector<128x64xbf16>
    %c0_37 = arith.constant 0 : index
    %c32_38 = arith.constant 32 : index
    %c0_39 = arith.constant 0 : index
    %51 = vector.load %arg4[%c0_37, %c32_38, %c0_39] : memref<1x355x64xbf16, #tpu.memory_space<vmem>>, vector<1x128x64xbf16>
    %52 = vector.shape_cast %51 : vector<1x128x64xbf16> to vector<128x64xbf16>
    %53 = vector.shape_cast %50 : vector<128x64xbf16> to vector<1x128x64xbf16>
    tpu.vector_store %arg4[%c0_37, %c32_38, %c0_39], %53 {strides = array<i32>} : memref<1x355x64xbf16, #tpu.memory_space<vmem>>, vector<1x128x64xbf16>,
    %c0_40 = arith.constant 0 : index
    %c141 = arith.constant 141 : index
    %c0_41 = arith.constant 0 : index
    %54 = vector.load %arg1[%c0_40, %c141, %c0_41] : memref<1x355x64xbf16, #tpu.memory_space<vmem>>, vector<1x128x64xbf16>
    %55 = vector.shape_cast %54 : vector<1x128x64xbf16> to vector<128x64xbf16>
    %c0_42 = arith.constant 0 : index
    %c142 = arith.constant 142 : index
    %c0_43 = arith.constant 0 : index
    %56 = vector.load %arg1[%c0_42, %c142, %c0_43] : memref<1x355x64xbf16, #tpu.memory_space<vmem>>, vector<1x128x64xbf16>
    %57 = vector.shape_cast %56 : vector<1x128x64xbf16> to vector<128x64xbf16>
    %c0_44 = arith.constant 0 : index
    %c143 = arith.constant 143 : index
    %c0_45 = arith.constant 0 : index
    %58 = vector.load %arg1[%c0_44, %c143, %c0_45] : memref<1x355x64xbf16, #tpu.memory_space<vmem>>, vector<1x128x64xbf16>
    %59 = vector.shape_cast %58 : vector<1x128x64xbf16> to vector<128x64xbf16>
    %60 = tpu.concatenate %55, %57, %59 in 1 : vector<128x64xbf16>, vector<128x64xbf16>, vector<128x64xbf16> -> vector<128x192xbf16>
    %c0_46 = arith.constant 0 : index
    %c0_47 = arith.constant 0 : index
    %61 = vector.load %arg2[%c0_46, %c0_47] : memref<576x64xbf16, #tpu.memory_space<vmem>>, vector<192x64xbf16>
    %cst_48 = arith.constant dense<0.000000e+00> : vector<128x64xf32>
    %62 = tpu.matmul %60, %61, %cst_48 {dimension_numbers = #tpu.dot_dimension_numbers<[1], [0], [0], [1], [0, 0, 1, 1], [], []>} : vector<128x192xbf16>, vector<192x64xbf16>, vector<128x64xf32> -> vector<128x64xf32>
    %c0_49 = arith.constant 0 : index
    %c159 = arith.constant 159 : index
    %c0_50 = arith.constant 0 : index
    %63 = vector.load %arg1[%c0_49, %c159, %c0_50] : memref<1x355x64xbf16, #tpu.memory_space<vmem>>, vector<1x128x64xbf16>
    %64 = vector.shape_cast %63 : vector<1x128x64xbf16> to vector<128x64xbf16>
    %c0_51 = arith.constant 0 : index
    %c160 = arith.constant 160 : index
    %c0_52 = arith.constant 0 : index
    %65 = vector.load %arg1[%c0_51, %c160, %c0_52] : memref<1x355x64xbf16, #tpu.memory_space<vmem>>, vector<1x128x64xbf16>
    %66 = vector.shape_cast %65 : vector<1x128x64xbf16> to vector<128x64xbf16>
    %c0_53 = arith.constant 0 : index
    %c161 = arith.constant 161 : index
    %c0_54 = arith.constant 0 : index
    %67 = vector.load %arg1[%c0_53, %c161, %c0_54] : memref<1x355x64xbf16, #tpu.memory_space<vmem>>, vector<1x128x64xbf16>
    %68 = vector.shape_cast %67 : vector<1x128x64xbf16> to vector<128x64xbf16>
    %69 = tpu.concatenate %64, %66, %68 in 1 : vector<128x64xbf16>, vector<128x64xbf16>, vector<128x64xbf16> -> vector<128x192xbf16>
    %c192_55 = arith.constant 192 : index
    %c0_56 = arith.constant 0 : index
    %70 = vector.load %arg2[%c192_55, %c0_56] : memref<576x64xbf16, #tpu.memory_space<vmem>>, vector<192x64xbf16>
    %cst_57 = arith.constant dense<0.000000e+00> : vector<128x64xf32>
    %71 = tpu.matmul %69, %70, %cst_57 {dimension_numbers = #tpu.dot_dimension_numbers<[1], [0], [0], [1], [0, 0, 1, 1], [], []>} : vector<128x192xbf16>, vector<192x64xbf16>, vector<128x64xf32> -> vector<128x64xf32>
    %72 = arith.addf %62, %71 : vector<128x64xf32>
    %c0_58 = arith.constant 0 : index
    %c177 = arith.constant 177 : index
    %c0_59 = arith.constant 0 : index
    %73 = vector.load %arg1[%c0_58, %c177, %c0_59] : memref<1x355x64xbf16, #tpu.memory_space<vmem>>, vector<1x128x64xbf16>
    %74 = vector.shape_cast %73 : vector<1x128x64xbf16> to vector<128x64xbf16>
    %c0_60 = arith.constant 0 : index
    %c178 = arith.constant 178 : index
    %c0_61 = arith.constant 0 : index
    %75 = vector.load %arg1[%c0_60, %c178, %c0_61] : memref<1x355x64xbf16, #tpu.memory_space<vmem>>, vector<1x128x64xbf16>
    %76 = vector.shape_cast %75 : vector<1x128x64xbf16> to vector<128x64xbf16>
    %c0_62 = arith.constant 0 : index
    %c179 = arith.constant 179 : index
    %c0_63 = arith.constant 0 : index
    %77 = vector.load %arg1[%c0_62, %c179, %c0_63] : memref<1x355x64xbf16, #tpu.memory_space<vmem>>, vector<1x128x64xbf16>
    %78 = vector.shape_cast %77 : vector<1x128x64xbf16> to vector<128x64xbf16>
    %79 = tpu.concatenate %74, %76, %78 in 1 : vector<128x64xbf16>, vector<128x64xbf16>, vector<128x64xbf16> -> vector<128x192xbf16>
    %c384_64 = arith.constant 384 : index
    %c0_65 = arith.constant 0 : index
    %80 = vector.load %arg2[%c384_64, %c0_65] : memref<576x64xbf16, #tpu.memory_space<vmem>>, vector<192x64xbf16>
    %cst_66 = arith.constant dense<0.000000e+00> : vector<128x64xf32>
    %81 = tpu.matmul %79, %80, %cst_66 {dimension_numbers = #tpu.dot_dimension_numbers<[1], [0], [0], [1], [0, 0, 1, 1], [], []>} : vector<128x192xbf16>, vector<192x64xbf16>, vector<128x64xf32> -> vector<128x64xf32>
    %82 = arith.addf %72, %81 : vector<128x64xf32>
    %c0_67 = arith.constant 0 : index
    %c160_68 = arith.constant 160 : index
    %c0_69 = arith.constant 0 : index
    %83 = vector.load %arg3[%c0_67, %c160_68, %c0_69] : memref<1x355x1xf32, #tpu.memory_space<vmem>>, vector<1x128x1xf32>
    %84 = vector.shape_cast %83 : vector<1x128x1xf32> to vector<128x1xf32>
    %85 = vector.broadcast %84 : vector<128x1xf32> to vector<128x64xf32>
    %86 = arith.mulf %82, %85 : vector<128x64xf32>
    %cst_70 = arith.constant dense<0.000000e+00> : vector<64xf32>
    %87 = vector.multi_reduction <add>, %86, %cst_70 [0] : vector<128x64xf32> to vector<64xf32>
    %88 = vector.shape_cast %87 : vector<64xf32> to vector<1x64xf32>
    %89 = arith.addf %45, %88 : vector<1x64xf32>
    %90 = arith.mulf %86, %86 : vector<128x64xf32>
    %cst_71 = arith.constant dense<0.000000e+00> : vector<64xf32>
    %91 = vector.multi_reduction <add>, %90, %cst_71 [0] : vector<128x64xf32> to vector<64xf32>
    %92 = vector.shape_cast %91 : vector<64xf32> to vector<1x64xf32>
    %93 = arith.addf %49, %92 : vector<1x64xf32>
    %94 = arith.truncf %86 : vector<128x64xf32> to vector<128x64xbf16>
    %c0_72 = arith.constant 0 : index
    %c160_73 = arith.constant 160 : index
    %c0_74 = arith.constant 0 : index
    %95 = vector.load %arg4[%c0_72, %c160_73, %c0_74] : memref<1x355x64xbf16, #tpu.memory_space<vmem>>, vector<1x128x64xbf16>
    %96 = vector.shape_cast %95 : vector<1x128x64xbf16> to vector<128x64xbf16>
    %97 = vector.shape_cast %94 : vector<128x64xbf16> to vector<1x128x64xbf16>
    tpu.vector_store %arg4[%c0_72, %c160_73, %c0_74], %97 {strides = array<i32>} : memref<1x355x64xbf16, #tpu.memory_space<vmem>>, vector<1x128x64xbf16>,
    %c0_75 = arith.constant 0 : index
    %c269 = arith.constant 269 : index
    %c0_76 = arith.constant 0 : index
    %98 = vector.load %arg1[%c0_75, %c269, %c0_76] : memref<1x355x64xbf16, #tpu.memory_space<vmem>>, vector<1x32x64xbf16>
    %99 = vector.shape_cast %98 : vector<1x32x64xbf16> to vector<32x64xbf16>
    %c0_77 = arith.constant 0 : index
    %c270 = arith.constant 270 : index
    %c0_78 = arith.constant 0 : index
    %100 = vector.load %arg1[%c0_77, %c270, %c0_78] : memref<1x355x64xbf16, #tpu.memory_space<vmem>>, vector<1x32x64xbf16>
    %101 = vector.shape_cast %100 : vector<1x32x64xbf16> to vector<32x64xbf16>
    %c0_79 = arith.constant 0 : index
    %c271 = arith.constant 271 : index
    %c0_80 = arith.constant 0 : index
    %102 = vector.load %arg1[%c0_79, %c271, %c0_80] : memref<1x355x64xbf16, #tpu.memory_space<vmem>>, vector<1x32x64xbf16>
    %103 = vector.shape_cast %102 : vector<1x32x64xbf16> to vector<32x64xbf16>
    %104 = tpu.concatenate %99, %101, %103 in 1 : vector<32x64xbf16>, vector<32x64xbf16>, vector<32x64xbf16> -> vector<32x192xbf16>
    %c0_81 = arith.constant 0 : index
    %c0_82 = arith.constant 0 : index
    %105 = vector.load %arg2[%c0_81, %c0_82] : memref<576x64xbf16, #tpu.memory_space<vmem>>, vector<192x64xbf16>
    %cst_83 = arith.constant dense<0.000000e+00> : vector<32x64xf32>
    %106 = tpu.matmul %104, %105, %cst_83 {dimension_numbers = #tpu.dot_dimension_numbers<[1], [0], [0], [1], [0, 0, 1, 1], [], []>} : vector<32x192xbf16>, vector<192x64xbf16>, vector<32x64xf32> -> vector<32x64xf32>
    %c0_84 = arith.constant 0 : index
    %c287 = arith.constant 287 : index
    %c0_85 = arith.constant 0 : index
    %107 = vector.load %arg1[%c0_84, %c287, %c0_85] : memref<1x355x64xbf16, #tpu.memory_space<vmem>>, vector<1x32x64xbf16>
    %108 = vector.shape_cast %107 : vector<1x32x64xbf16> to vector<32x64xbf16>
    %c0_86 = arith.constant 0 : index
    %c288 = arith.constant 288 : index
    %c0_87 = arith.constant 0 : index
    %109 = vector.load %arg1[%c0_86, %c288, %c0_87] : memref<1x355x64xbf16, #tpu.memory_space<vmem>>, vector<1x32x64xbf16>
    %110 = vector.shape_cast %109 : vector<1x32x64xbf16> to vector<32x64xbf16>
    %c0_88 = arith.constant 0 : index
    %c289 = arith.constant 289 : index
    %c0_89 = arith.constant 0 : index
    %111 = vector.load %arg1[%c0_88, %c289, %c0_89] : memref<1x355x64xbf16, #tpu.memory_space<vmem>>, vector<1x32x64xbf16>
    %112 = vector.shape_cast %111 : vector<1x32x64xbf16> to vector<32x64xbf16>
    %113 = tpu.concatenate %108, %110, %112 in 1 : vector<32x64xbf16>, vector<32x64xbf16>, vector<32x64xbf16> -> vector<32x192xbf16>
    %c192_90 = arith.constant 192 : index
    %c0_91 = arith.constant 0 : index
    %114 = vector.load %arg2[%c192_90, %c0_91] : memref<576x64xbf16, #tpu.memory_space<vmem>>, vector<192x64xbf16>
    %cst_92 = arith.constant dense<0.000000e+00> : vector<32x64xf32>
    %115 = tpu.matmul %113, %114, %cst_92 {dimension_numbers = #tpu.dot_dimension_numbers<[1], [0], [0], [1], [0, 0, 1, 1], [], []>} : vector<32x192xbf16>, vector<192x64xbf16>, vector<32x64xf32> -> vector<32x64xf32>
    %116 = arith.addf %106, %115 : vector<32x64xf32>
    %c0_93 = arith.constant 0 : index
    %c305 = arith.constant 305 : index
    %c0_94 = arith.constant 0 : index
    %117 = vector.load %arg1[%c0_93, %c305, %c0_94] : memref<1x355x64xbf16, #tpu.memory_space<vmem>>, vector<1x32x64xbf16>
    %118 = vector.shape_cast %117 : vector<1x32x64xbf16> to vector<32x64xbf16>
    %c0_95 = arith.constant 0 : index
    %c306 = arith.constant 306 : index
    %c0_96 = arith.constant 0 : index
    %119 = vector.load %arg1[%c0_95, %c306, %c0_96] : memref<1x355x64xbf16, #tpu.memory_space<vmem>>, vector<1x32x64xbf16>
    %120 = vector.shape_cast %119 : vector<1x32x64xbf16> to vector<32x64xbf16>
    %c0_97 = arith.constant 0 : index
    %c307 = arith.constant 307 : index
    %c0_98 = arith.constant 0 : index
    %121 = vector.load %arg1[%c0_97, %c307, %c0_98] : memref<1x355x64xbf16, #tpu.memory_space<vmem>>, vector<1x32x64xbf16>
    %122 = vector.shape_cast %121 : vector<1x32x64xbf16> to vector<32x64xbf16>
    %123 = tpu.concatenate %118, %120, %122 in 1 : vector<32x64xbf16>, vector<32x64xbf16>, vector<32x64xbf16> -> vector<32x192xbf16>
    %c384_99 = arith.constant 384 : index
    %c0_100 = arith.constant 0 : index
    %124 = vector.load %arg2[%c384_99, %c0_100] : memref<576x64xbf16, #tpu.memory_space<vmem>>, vector<192x64xbf16>
    %cst_101 = arith.constant dense<0.000000e+00> : vector<32x64xf32>
    %125 = tpu.matmul %123, %124, %cst_101 {dimension_numbers = #tpu.dot_dimension_numbers<[1], [0], [0], [1], [0, 0, 1, 1], [], []>} : vector<32x192xbf16>, vector<192x64xbf16>, vector<32x64xf32> -> vector<32x64xf32>
    %126 = arith.addf %116, %125 : vector<32x64xf32>
    %c0_102 = arith.constant 0 : index
    %c288_103 = arith.constant 288 : index
    %c0_104 = arith.constant 0 : index
    %127 = vector.load %arg3[%c0_102, %c288_103, %c0_104] : memref<1x355x1xf32, #tpu.memory_space<vmem>>, vector<1x32x1xf32>
    %128 = vector.shape_cast %127 : vector<1x32x1xf32> to vector<32x1xf32>
    %129 = vector.broadcast %128 : vector<32x1xf32> to vector<32x64xf32>
    %130 = arith.mulf %126, %129 : vector<32x64xf32>
    %cst_105 = arith.constant dense<0.000000e+00> : vector<64xf32>
    %131 = vector.multi_reduction <add>, %130, %cst_105 [0] : vector<32x64xf32> to vector<64xf32>
    %132 = vector.shape_cast %131 : vector<64xf32> to vector<1x64xf32>
    %133 = arith.addf %89, %132 : vector<1x64xf32>
    %134 = arith.mulf %130, %130 : vector<32x64xf32>
    %cst_106 = arith.constant dense<0.000000e+00> : vector<64xf32>
    %135 = vector.multi_reduction <add>, %134, %cst_106 [0] : vector<32x64xf32> to vector<64xf32>
    %136 = vector.shape_cast %135 : vector<64xf32> to vector<1x64xf32>
    %137 = arith.addf %93, %136 : vector<1x64xf32>
    %138 = arith.truncf %130 : vector<32x64xf32> to vector<32x64xbf16>
    %c0_107 = arith.constant 0 : index
    %c288_108 = arith.constant 288 : index
    %c0_109 = arith.constant 0 : index
    %139 = vector.load %arg4[%c0_107, %c288_108, %c0_109] : memref<1x355x64xbf16, #tpu.memory_space<vmem>>, vector<1x32x64xbf16>
    %140 = vector.shape_cast %139 : vector<1x32x64xbf16> to vector<32x64xbf16>
    %141 = vector.shape_cast %138 : vector<32x64xbf16> to vector<1x32x64xbf16>
    tpu.vector_store %arg4[%c0_107, %c288_108, %c0_109], %141 {strides = array<i32>} : memref<1x355x64xbf16, #tpu.memory_space<vmem>>, vector<1x32x64xbf16>,
    %c0_110 = arith.constant 0 : index
    %c0_111 = arith.constant 0 : index
    %c0_112 = arith.constant 0 : index
    %142 = vector.load %arg5[%c0_110, %c0_111, %c0_112] : memref<1x1x64xf32, #tpu.memory_space<vmem>>, vector<1x1x64xf32>
    %143 = vector.shape_cast %142 : vector<1x1x64xf32> to vector<1x64xf32>
    %144 = vector.shape_cast %133 : vector<1x64xf32> to vector<1x1x64xf32>
    tpu.vector_store %arg5[%c0_110, %c0_111, %c0_112], %144 {strides = array<i32>} : memref<1x1x64xf32, #tpu.memory_space<vmem>>, vector<1x1x64xf32>,
    %c0_113 = arith.constant 0 : index
    %c0_114 = arith.constant 0 : index
    %c0_115 = arith.constant 0 : index
    %145 = vector.load %arg6[%c0_113, %c0_114, %c0_115] : memref<1x1x64xf32, #tpu.memory_space<vmem>>, vector<1x1x64xf32>
    %146 = vector.shape_cast %145 : vector<1x1x64xf32> to vector<1x64xf32>
    %147 = vector.shape_cast %137 : vector<1x64xf32> to vector<1x1x64xf32>
    tpu.vector_store %arg6[%c0_113, %c0_114, %c0_115], %147 {strides = array<i32>} : memref<1x1x64xf32, #tpu.memory_space<vmem>>, vector<1x1x64xf32>,
    return
  }
  func.func @transform_0(%arg0: i32) -> (i32, i32, i32) {
    %c0_i32 = arith.constant 0 : i32
    %c0_i32_0 = arith.constant 0 : i32
    %c0_i32_1 = arith.constant 0 : i32
    return %arg0, %c0_i32, %c0_i32_0 : i32, i32, i32
  }
  func.func @transform_1(%arg0: i32) -> (i32, i32) {
    %c0_i32 = arith.constant 0 : i32
    %c0_i32_0 = arith.constant 0 : i32
    %c0_i32_1 = arith.constant 0 : i32
    return %c0_i32, %c0_i32_0 : i32, i32
  }
  func.func @transform_2(%arg0: i32) -> (i32, i32, i32) {
    %c0_i32 = arith.constant 0 : i32
    %c0_i32_0 = arith.constant 0 : i32
    %c0_i32_1 = arith.constant 0 : i32
    %c0_i32_2 = arith.constant 0 : i32
    return %c0_i32, %c0_i32_0, %c0_i32_1 : i32, i32, i32
  }
  func.func @transform_3(%arg0: i32) -> (i32, i32, i32) {
    %c0_i32 = arith.constant 0 : i32
    %c0_i32_0 = arith.constant 0 : i32
    %c0_i32_1 = arith.constant 0 : i32
    return %arg0, %c0_i32, %c0_i32_0 : i32, i32, i32
  }
  func.func @transform_4(%arg0: i32) -> (i32, i32, i32) {
    %c0_i32 = arith.constant 0 : i32
    %c0_i32_0 = arith.constant 0 : i32
    %c0_i32_1 = arith.constant 0 : i32
    return %arg0, %c0_i32, %c0_i32_0 : i32, i32, i32
  }
  func.func @transform_5(%arg0: i32) -> (i32, i32, i32) {
    %c0_i32 = arith.constant 0 : i32
    %c0_i32_0 = arith.constant 0 : i32
    %c0_i32_1 = arith.constant 0 : i32
    return %arg0, %c0_i32, %c0_i32_0 : i32, i32, i32
  }
}

module attributes {stable_mosaic.version = 11 : i64} {
  func.func @_conv3x3_s1_kernel(%arg0: i32, %arg1: memref<1x355x64xbf16, #tpu.memory_space<vmem>>, %arg2: memref<576x64xbf16, #tpu.memory_space<vmem>>, %arg3: memref<1x355x1xf32, #tpu.memory_space<vmem>>, %arg4: memref<1x355x64xbf16, #tpu.memory_space<vmem>>, %arg5: memref<1x1x64xf32, #tpu.memory_space<vmem>>, %arg6: memref<1x1x64xf32, #tpu.memory_space<vmem>>) attributes {dimension_semantics = [#tpu.dimension_semantics<parallel>], iteration_bounds = array<i64: 2>, scalar_prefetch = 0 : i64, scratch_operands = 0 : i64, tpu.core_type = #tpu.core_type<tc>, window_params = [{transform_indices = @transform_0, window_bounds = array<i64: 1, 355, 64>}, {pipeline_mode = #tpu.pipeline_mode<synchronous>, transform_indices = @transform_1, window_bounds = array<i64: 576, 64>}, {pipeline_mode = #tpu.pipeline_mode<synchronous>, transform_indices = @transform_2, window_bounds = array<i64: 1, 355, 1>}, {transform_indices = @transform_3, window_bounds = array<i64: 1, 355, 64>}, {transform_indices = @transform_4, window_bounds = array<i64: 1, 1, 64>}, {transform_indices = @transform_5, window_bounds = array<i64: 1, 1, 64>}]} {
    %cst = arith.constant 0.000000e+00 : bf16
    %0 = vector.broadcast %cst : bf16 to vector<32x64xbf16>
    %c0 = arith.constant 0 : index
    %c0_0 = arith.constant 0 : index
    %c0_1 = arith.constant 0 : index
    %1 = vector.load %arg4[%c0, %c0_0, %c0_1] : memref<1x355x64xbf16, #tpu.memory_space<vmem>>, vector<1x32x64xbf16>
    %2 = vector.shape_cast %1 : vector<1x32x64xbf16> to vector<32x64xbf16>
    %3 = vector.shape_cast %0 : vector<32x64xbf16> to vector<1x32x64xbf16>
    tpu.vector_store %arg4[%c0, %c0_0, %c0_1], %3 {strides = array<i32>} : memref<1x355x64xbf16, #tpu.memory_space<vmem>>, vector<1x32x64xbf16>,
    %cst_2 = arith.constant 0.000000e+00 : bf16
    %4 = vector.broadcast %cst_2 : bf16 to vector<35x64xbf16>
    %c0_3 = arith.constant 0 : index
    %c320 = arith.constant 320 : index
    %c0_4 = arith.constant 0 : index
    %5 = vector.load %arg4[%c0_3, %c320, %c0_4] : memref<1x355x64xbf16, #tpu.memory_space<vmem>>, vector<1x35x64xbf16>
    %6 = vector.shape_cast %5 : vector<1x35x64xbf16> to vector<35x64xbf16>
    %7 = vector.shape_cast %4 : vector<35x64xbf16> to vector<1x35x64xbf16>
    tpu.vector_store %arg4[%c0_3, %c320, %c0_4], %7 {strides = array<i32>} : memref<1x355x64xbf16, #tpu.memory_space<vmem>>, vector<1x35x64xbf16>,
    %cst_5 = arith.constant 0.000000e+00 : f32
    %8 = vector.broadcast %cst_5 : f32 to vector<1x64xf32>
    %cst_6 = arith.constant 0.000000e+00 : f32
    %9 = vector.broadcast %cst_6 : f32 to vector<1x64xf32>
    %c0_7 = arith.constant 0 : index
    %c0_8 = arith.constant 0 : index
    %10 = vector.load %arg2[%c0_7, %c0_8] : memref<576x64xbf16, #tpu.memory_space<vmem>>, vector<64x64xbf16>
    %c0_9 = arith.constant 0 : index
    %c13 = arith.constant 13 : index
    %c0_10 = arith.constant 0 : index
    %11 = vector.load %arg1[%c0_9, %c13, %c0_10] : memref<1x355x64xbf16, #tpu.memory_space<vmem>>, vector<1x128x64xbf16>
    %12 = vector.shape_cast %11 : vector<1x128x64xbf16> to vector<128x64xbf16>
    %cst_11 = arith.constant dense<0.000000e+00> : vector<128x64xf32>
    %13 = tpu.matmul %12, %10, %cst_11 {dimension_numbers = #tpu.dot_dimension_numbers<[1], [0], [0], [1], [0, 0, 1, 1], [], []>} : vector<128x64xbf16>, vector<64x64xbf16>, vector<128x64xf32> -> vector<128x64xf32>
    %c64 = arith.constant 64 : index
    %c0_12 = arith.constant 0 : index
    %14 = vector.load %arg2[%c64, %c0_12] : memref<576x64xbf16, #tpu.memory_space<vmem>>, vector<64x64xbf16>
    %c0_13 = arith.constant 0 : index
    %c14 = arith.constant 14 : index
    %c0_14 = arith.constant 0 : index
    %15 = vector.load %arg1[%c0_13, %c14, %c0_14] : memref<1x355x64xbf16, #tpu.memory_space<vmem>>, vector<1x128x64xbf16>
    %16 = vector.shape_cast %15 : vector<1x128x64xbf16> to vector<128x64xbf16>
    %cst_15 = arith.constant dense<0.000000e+00> : vector<128x64xf32>
    %17 = tpu.matmul %16, %14, %cst_15 {dimension_numbers = #tpu.dot_dimension_numbers<[1], [0], [0], [1], [0, 0, 1, 1], [], []>} : vector<128x64xbf16>, vector<64x64xbf16>, vector<128x64xf32> -> vector<128x64xf32>
    %18 = arith.addf %13, %17 : vector<128x64xf32>
    %c128 = arith.constant 128 : index
    %c0_16 = arith.constant 0 : index
    %19 = vector.load %arg2[%c128, %c0_16] : memref<576x64xbf16, #tpu.memory_space<vmem>>, vector<64x64xbf16>
    %c0_17 = arith.constant 0 : index
    %c15 = arith.constant 15 : index
    %c0_18 = arith.constant 0 : index
    %20 = vector.load %arg1[%c0_17, %c15, %c0_18] : memref<1x355x64xbf16, #tpu.memory_space<vmem>>, vector<1x128x64xbf16>
    %21 = vector.shape_cast %20 : vector<1x128x64xbf16> to vector<128x64xbf16>
    %cst_19 = arith.constant dense<0.000000e+00> : vector<128x64xf32>
    %22 = tpu.matmul %21, %19, %cst_19 {dimension_numbers = #tpu.dot_dimension_numbers<[1], [0], [0], [1], [0, 0, 1, 1], [], []>} : vector<128x64xbf16>, vector<64x64xbf16>, vector<128x64xf32> -> vector<128x64xf32>
    %23 = arith.addf %18, %22 : vector<128x64xf32>
    %c192 = arith.constant 192 : index
    %c0_20 = arith.constant 0 : index
    %24 = vector.load %arg2[%c192, %c0_20] : memref<576x64xbf16, #tpu.memory_space<vmem>>, vector<64x64xbf16>
    %c0_21 = arith.constant 0 : index
    %c31 = arith.constant 31 : index
    %c0_22 = arith.constant 0 : index
    %25 = vector.load %arg1[%c0_21, %c31, %c0_22] : memref<1x355x64xbf16, #tpu.memory_space<vmem>>, vector<1x128x64xbf16>
    %26 = vector.shape_cast %25 : vector<1x128x64xbf16> to vector<128x64xbf16>
    %cst_23 = arith.constant dense<0.000000e+00> : vector<128x64xf32>
    %27 = tpu.matmul %26, %24, %cst_23 {dimension_numbers = #tpu.dot_dimension_numbers<[1], [0], [0], [1], [0, 0, 1, 1], [], []>} : vector<128x64xbf16>, vector<64x64xbf16>, vector<128x64xf32> -> vector<128x64xf32>
    %28 = arith.addf %23, %27 : vector<128x64xf32>
    %c256 = arith.constant 256 : index
    %c0_24 = arith.constant 0 : index
    %29 = vector.load %arg2[%c256, %c0_24] : memref<576x64xbf16, #tpu.memory_space<vmem>>, vector<64x64xbf16>
    %c0_25 = arith.constant 0 : index
    %c32 = arith.constant 32 : index
    %c0_26 = arith.constant 0 : index
    %30 = vector.load %arg1[%c0_25, %c32, %c0_26] : memref<1x355x64xbf16, #tpu.memory_space<vmem>>, vector<1x128x64xbf16>
    %31 = vector.shape_cast %30 : vector<1x128x64xbf16> to vector<128x64xbf16>
    %cst_27 = arith.constant dense<0.000000e+00> : vector<128x64xf32>
    %32 = tpu.matmul %31, %29, %cst_27 {dimension_numbers = #tpu.dot_dimension_numbers<[1], [0], [0], [1], [0, 0, 1, 1], [], []>} : vector<128x64xbf16>, vector<64x64xbf16>, vector<128x64xf32> -> vector<128x64xf32>
    %33 = arith.addf %28, %32 : vector<128x64xf32>
    %c320_28 = arith.constant 320 : index
    %c0_29 = arith.constant 0 : index
    %34 = vector.load %arg2[%c320_28, %c0_29] : memref<576x64xbf16, #tpu.memory_space<vmem>>, vector<64x64xbf16>
    %c0_30 = arith.constant 0 : index
    %c33 = arith.constant 33 : index
    %c0_31 = arith.constant 0 : index
    %35 = vector.load %arg1[%c0_30, %c33, %c0_31] : memref<1x355x64xbf16, #tpu.memory_space<vmem>>, vector<1x128x64xbf16>
    %36 = vector.shape_cast %35 : vector<1x128x64xbf16> to vector<128x64xbf16>
    %cst_32 = arith.constant dense<0.000000e+00> : vector<128x64xf32>
    %37 = tpu.matmul %36, %34, %cst_32 {dimension_numbers = #tpu.dot_dimension_numbers<[1], [0], [0], [1], [0, 0, 1, 1], [], []>} : vector<128x64xbf16>, vector<64x64xbf16>, vector<128x64xf32> -> vector<128x64xf32>
    %38 = arith.addf %33, %37 : vector<128x64xf32>
    %c384 = arith.constant 384 : index
    %c0_33 = arith.constant 0 : index
    %39 = vector.load %arg2[%c384, %c0_33] : memref<576x64xbf16, #tpu.memory_space<vmem>>, vector<64x64xbf16>
    %c0_34 = arith.constant 0 : index
    %c49 = arith.constant 49 : index
    %c0_35 = arith.constant 0 : index
    %40 = vector.load %arg1[%c0_34, %c49, %c0_35] : memref<1x355x64xbf16, #tpu.memory_space<vmem>>, vector<1x128x64xbf16>
    %41 = vector.shape_cast %40 : vector<1x128x64xbf16> to vector<128x64xbf16>
    %cst_36 = arith.constant dense<0.000000e+00> : vector<128x64xf32>
    %42 = tpu.matmul %41, %39, %cst_36 {dimension_numbers = #tpu.dot_dimension_numbers<[1], [0], [0], [1], [0, 0, 1, 1], [], []>} : vector<128x64xbf16>, vector<64x64xbf16>, vector<128x64xf32> -> vector<128x64xf32>
    %43 = arith.addf %38, %42 : vector<128x64xf32>
    %c448 = arith.constant 448 : index
    %c0_37 = arith.constant 0 : index
    %44 = vector.load %arg2[%c448, %c0_37] : memref<576x64xbf16, #tpu.memory_space<vmem>>, vector<64x64xbf16>
    %c0_38 = arith.constant 0 : index
    %c50 = arith.constant 50 : index
    %c0_39 = arith.constant 0 : index
    %45 = vector.load %arg1[%c0_38, %c50, %c0_39] : memref<1x355x64xbf16, #tpu.memory_space<vmem>>, vector<1x128x64xbf16>
    %46 = vector.shape_cast %45 : vector<1x128x64xbf16> to vector<128x64xbf16>
    %cst_40 = arith.constant dense<0.000000e+00> : vector<128x64xf32>
    %47 = tpu.matmul %46, %44, %cst_40 {dimension_numbers = #tpu.dot_dimension_numbers<[1], [0], [0], [1], [0, 0, 1, 1], [], []>} : vector<128x64xbf16>, vector<64x64xbf16>, vector<128x64xf32> -> vector<128x64xf32>
    %48 = arith.addf %43, %47 : vector<128x64xf32>
    %c512 = arith.constant 512 : index
    %c0_41 = arith.constant 0 : index
    %49 = vector.load %arg2[%c512, %c0_41] : memref<576x64xbf16, #tpu.memory_space<vmem>>, vector<64x64xbf16>
    %c0_42 = arith.constant 0 : index
    %c51 = arith.constant 51 : index
    %c0_43 = arith.constant 0 : index
    %50 = vector.load %arg1[%c0_42, %c51, %c0_43] : memref<1x355x64xbf16, #tpu.memory_space<vmem>>, vector<1x128x64xbf16>
    %51 = vector.shape_cast %50 : vector<1x128x64xbf16> to vector<128x64xbf16>
    %cst_44 = arith.constant dense<0.000000e+00> : vector<128x64xf32>
    %52 = tpu.matmul %51, %49, %cst_44 {dimension_numbers = #tpu.dot_dimension_numbers<[1], [0], [0], [1], [0, 0, 1, 1], [], []>} : vector<128x64xbf16>, vector<64x64xbf16>, vector<128x64xf32> -> vector<128x64xf32>
    %53 = arith.addf %48, %52 : vector<128x64xf32>
    %c0_45 = arith.constant 0 : index
    %c32_46 = arith.constant 32 : index
    %c0_47 = arith.constant 0 : index
    %54 = vector.load %arg3[%c0_45, %c32_46, %c0_47] : memref<1x355x1xf32, #tpu.memory_space<vmem>>, vector<1x128x1xf32>
    %55 = vector.shape_cast %54 : vector<1x128x1xf32> to vector<128x1xf32>
    %56 = vector.broadcast %55 : vector<128x1xf32> to vector<128x64xf32>
    %57 = arith.mulf %53, %56 : vector<128x64xf32>
    %cst_48 = arith.constant dense<0.000000e+00> : vector<64xf32>
    %58 = vector.multi_reduction <add>, %57, %cst_48 [0] : vector<128x64xf32> to vector<64xf32>
    %59 = vector.shape_cast %58 : vector<64xf32> to vector<1x64xf32>
    %60 = arith.addf %8, %59 : vector<1x64xf32>
    %61 = arith.mulf %57, %57 : vector<128x64xf32>
    %cst_49 = arith.constant dense<0.000000e+00> : vector<64xf32>
    %62 = vector.multi_reduction <add>, %61, %cst_49 [0] : vector<128x64xf32> to vector<64xf32>
    %63 = vector.shape_cast %62 : vector<64xf32> to vector<1x64xf32>
    %64 = arith.addf %9, %63 : vector<1x64xf32>
    %65 = arith.truncf %57 : vector<128x64xf32> to vector<128x64xbf16>
    %c0_50 = arith.constant 0 : index
    %c32_51 = arith.constant 32 : index
    %c0_52 = arith.constant 0 : index
    %66 = vector.load %arg4[%c0_50, %c32_51, %c0_52] : memref<1x355x64xbf16, #tpu.memory_space<vmem>>, vector<1x128x64xbf16>
    %67 = vector.shape_cast %66 : vector<1x128x64xbf16> to vector<128x64xbf16>
    %68 = vector.shape_cast %65 : vector<128x64xbf16> to vector<1x128x64xbf16>
    tpu.vector_store %arg4[%c0_50, %c32_51, %c0_52], %68 {strides = array<i32>} : memref<1x355x64xbf16, #tpu.memory_space<vmem>>, vector<1x128x64xbf16>,
    %c0_53 = arith.constant 0 : index
    %c0_54 = arith.constant 0 : index
    %69 = vector.load %arg2[%c0_53, %c0_54] : memref<576x64xbf16, #tpu.memory_space<vmem>>, vector<64x64xbf16>
    %c0_55 = arith.constant 0 : index
    %c141 = arith.constant 141 : index
    %c0_56 = arith.constant 0 : index
    %70 = vector.load %arg1[%c0_55, %c141, %c0_56] : memref<1x355x64xbf16, #tpu.memory_space<vmem>>, vector<1x128x64xbf16>
    %71 = vector.shape_cast %70 : vector<1x128x64xbf16> to vector<128x64xbf16>
    %cst_57 = arith.constant dense<0.000000e+00> : vector<128x64xf32>
    %72 = tpu.matmul %71, %69, %cst_57 {dimension_numbers = #tpu.dot_dimension_numbers<[1], [0], [0], [1], [0, 0, 1, 1], [], []>} : vector<128x64xbf16>, vector<64x64xbf16>, vector<128x64xf32> -> vector<128x64xf32>
    %c64_58 = arith.constant 64 : index
    %c0_59 = arith.constant 0 : index
    %73 = vector.load %arg2[%c64_58, %c0_59] : memref<576x64xbf16, #tpu.memory_space<vmem>>, vector<64x64xbf16>
    %c0_60 = arith.constant 0 : index
    %c142 = arith.constant 142 : index
    %c0_61 = arith.constant 0 : index
    %74 = vector.load %arg1[%c0_60, %c142, %c0_61] : memref<1x355x64xbf16, #tpu.memory_space<vmem>>, vector<1x128x64xbf16>
    %75 = vector.shape_cast %74 : vector<1x128x64xbf16> to vector<128x64xbf16>
    %cst_62 = arith.constant dense<0.000000e+00> : vector<128x64xf32>
    %76 = tpu.matmul %75, %73, %cst_62 {dimension_numbers = #tpu.dot_dimension_numbers<[1], [0], [0], [1], [0, 0, 1, 1], [], []>} : vector<128x64xbf16>, vector<64x64xbf16>, vector<128x64xf32> -> vector<128x64xf32>
    %77 = arith.addf %72, %76 : vector<128x64xf32>
    %c128_63 = arith.constant 128 : index
    %c0_64 = arith.constant 0 : index
    %78 = vector.load %arg2[%c128_63, %c0_64] : memref<576x64xbf16, #tpu.memory_space<vmem>>, vector<64x64xbf16>
    %c0_65 = arith.constant 0 : index
    %c143 = arith.constant 143 : index
    %c0_66 = arith.constant 0 : index
    %79 = vector.load %arg1[%c0_65, %c143, %c0_66] : memref<1x355x64xbf16, #tpu.memory_space<vmem>>, vector<1x128x64xbf16>
    %80 = vector.shape_cast %79 : vector<1x128x64xbf16> to vector<128x64xbf16>
    %cst_67 = arith.constant dense<0.000000e+00> : vector<128x64xf32>
    %81 = tpu.matmul %80, %78, %cst_67 {dimension_numbers = #tpu.dot_dimension_numbers<[1], [0], [0], [1], [0, 0, 1, 1], [], []>} : vector<128x64xbf16>, vector<64x64xbf16>, vector<128x64xf32> -> vector<128x64xf32>
    %82 = arith.addf %77, %81 : vector<128x64xf32>
    %c192_68 = arith.constant 192 : index
    %c0_69 = arith.constant 0 : index
    %83 = vector.load %arg2[%c192_68, %c0_69] : memref<576x64xbf16, #tpu.memory_space<vmem>>, vector<64x64xbf16>
    %c0_70 = arith.constant 0 : index
    %c159 = arith.constant 159 : index
    %c0_71 = arith.constant 0 : index
    %84 = vector.load %arg1[%c0_70, %c159, %c0_71] : memref<1x355x64xbf16, #tpu.memory_space<vmem>>, vector<1x128x64xbf16>
    %85 = vector.shape_cast %84 : vector<1x128x64xbf16> to vector<128x64xbf16>
    %cst_72 = arith.constant dense<0.000000e+00> : vector<128x64xf32>
    %86 = tpu.matmul %85, %83, %cst_72 {dimension_numbers = #tpu.dot_dimension_numbers<[1], [0], [0], [1], [0, 0, 1, 1], [], []>} : vector<128x64xbf16>, vector<64x64xbf16>, vector<128x64xf32> -> vector<128x64xf32>
    %87 = arith.addf %82, %86 : vector<128x64xf32>
    %c256_73 = arith.constant 256 : index
    %c0_74 = arith.constant 0 : index
    %88 = vector.load %arg2[%c256_73, %c0_74] : memref<576x64xbf16, #tpu.memory_space<vmem>>, vector<64x64xbf16>
    %c0_75 = arith.constant 0 : index
    %c160 = arith.constant 160 : index
    %c0_76 = arith.constant 0 : index
    %89 = vector.load %arg1[%c0_75, %c160, %c0_76] : memref<1x355x64xbf16, #tpu.memory_space<vmem>>, vector<1x128x64xbf16>
    %90 = vector.shape_cast %89 : vector<1x128x64xbf16> to vector<128x64xbf16>
    %cst_77 = arith.constant dense<0.000000e+00> : vector<128x64xf32>
    %91 = tpu.matmul %90, %88, %cst_77 {dimension_numbers = #tpu.dot_dimension_numbers<[1], [0], [0], [1], [0, 0, 1, 1], [], []>} : vector<128x64xbf16>, vector<64x64xbf16>, vector<128x64xf32> -> vector<128x64xf32>
    %92 = arith.addf %87, %91 : vector<128x64xf32>
    %c320_78 = arith.constant 320 : index
    %c0_79 = arith.constant 0 : index
    %93 = vector.load %arg2[%c320_78, %c0_79] : memref<576x64xbf16, #tpu.memory_space<vmem>>, vector<64x64xbf16>
    %c0_80 = arith.constant 0 : index
    %c161 = arith.constant 161 : index
    %c0_81 = arith.constant 0 : index
    %94 = vector.load %arg1[%c0_80, %c161, %c0_81] : memref<1x355x64xbf16, #tpu.memory_space<vmem>>, vector<1x128x64xbf16>
    %95 = vector.shape_cast %94 : vector<1x128x64xbf16> to vector<128x64xbf16>
    %cst_82 = arith.constant dense<0.000000e+00> : vector<128x64xf32>
    %96 = tpu.matmul %95, %93, %cst_82 {dimension_numbers = #tpu.dot_dimension_numbers<[1], [0], [0], [1], [0, 0, 1, 1], [], []>} : vector<128x64xbf16>, vector<64x64xbf16>, vector<128x64xf32> -> vector<128x64xf32>
    %97 = arith.addf %92, %96 : vector<128x64xf32>
    %c384_83 = arith.constant 384 : index
    %c0_84 = arith.constant 0 : index
    %98 = vector.load %arg2[%c384_83, %c0_84] : memref<576x64xbf16, #tpu.memory_space<vmem>>, vector<64x64xbf16>
    %c0_85 = arith.constant 0 : index
    %c177 = arith.constant 177 : index
    %c0_86 = arith.constant 0 : index
    %99 = vector.load %arg1[%c0_85, %c177, %c0_86] : memref<1x355x64xbf16, #tpu.memory_space<vmem>>, vector<1x128x64xbf16>
    %100 = vector.shape_cast %99 : vector<1x128x64xbf16> to vector<128x64xbf16>
    %cst_87 = arith.constant dense<0.000000e+00> : vector<128x64xf32>
    %101 = tpu.matmul %100, %98, %cst_87 {dimension_numbers = #tpu.dot_dimension_numbers<[1], [0], [0], [1], [0, 0, 1, 1], [], []>} : vector<128x64xbf16>, vector<64x64xbf16>, vector<128x64xf32> -> vector<128x64xf32>
    %102 = arith.addf %97, %101 : vector<128x64xf32>
    %c448_88 = arith.constant 448 : index
    %c0_89 = arith.constant 0 : index
    %103 = vector.load %arg2[%c448_88, %c0_89] : memref<576x64xbf16, #tpu.memory_space<vmem>>, vector<64x64xbf16>
    %c0_90 = arith.constant 0 : index
    %c178 = arith.constant 178 : index
    %c0_91 = arith.constant 0 : index
    %104 = vector.load %arg1[%c0_90, %c178, %c0_91] : memref<1x355x64xbf16, #tpu.memory_space<vmem>>, vector<1x128x64xbf16>
    %105 = vector.shape_cast %104 : vector<1x128x64xbf16> to vector<128x64xbf16>
    %cst_92 = arith.constant dense<0.000000e+00> : vector<128x64xf32>
    %106 = tpu.matmul %105, %103, %cst_92 {dimension_numbers = #tpu.dot_dimension_numbers<[1], [0], [0], [1], [0, 0, 1, 1], [], []>} : vector<128x64xbf16>, vector<64x64xbf16>, vector<128x64xf32> -> vector<128x64xf32>
    %107 = arith.addf %102, %106 : vector<128x64xf32>
    %c512_93 = arith.constant 512 : index
    %c0_94 = arith.constant 0 : index
    %108 = vector.load %arg2[%c512_93, %c0_94] : memref<576x64xbf16, #tpu.memory_space<vmem>>, vector<64x64xbf16>
    %c0_95 = arith.constant 0 : index
    %c179 = arith.constant 179 : index
    %c0_96 = arith.constant 0 : index
    %109 = vector.load %arg1[%c0_95, %c179, %c0_96] : memref<1x355x64xbf16, #tpu.memory_space<vmem>>, vector<1x128x64xbf16>
    %110 = vector.shape_cast %109 : vector<1x128x64xbf16> to vector<128x64xbf16>
    %cst_97 = arith.constant dense<0.000000e+00> : vector<128x64xf32>
    %111 = tpu.matmul %110, %108, %cst_97 {dimension_numbers = #tpu.dot_dimension_numbers<[1], [0], [0], [1], [0, 0, 1, 1], [], []>} : vector<128x64xbf16>, vector<64x64xbf16>, vector<128x64xf32> -> vector<128x64xf32>
    %112 = arith.addf %107, %111 : vector<128x64xf32>
    %c0_98 = arith.constant 0 : index
    %c160_99 = arith.constant 160 : index
    %c0_100 = arith.constant 0 : index
    %113 = vector.load %arg3[%c0_98, %c160_99, %c0_100] : memref<1x355x1xf32, #tpu.memory_space<vmem>>, vector<1x128x1xf32>
    %114 = vector.shape_cast %113 : vector<1x128x1xf32> to vector<128x1xf32>
    %115 = vector.broadcast %114 : vector<128x1xf32> to vector<128x64xf32>
    %116 = arith.mulf %112, %115 : vector<128x64xf32>
    %cst_101 = arith.constant dense<0.000000e+00> : vector<64xf32>
    %117 = vector.multi_reduction <add>, %116, %cst_101 [0] : vector<128x64xf32> to vector<64xf32>
    %118 = vector.shape_cast %117 : vector<64xf32> to vector<1x64xf32>
    %119 = arith.addf %60, %118 : vector<1x64xf32>
    %120 = arith.mulf %116, %116 : vector<128x64xf32>
    %cst_102 = arith.constant dense<0.000000e+00> : vector<64xf32>
    %121 = vector.multi_reduction <add>, %120, %cst_102 [0] : vector<128x64xf32> to vector<64xf32>
    %122 = vector.shape_cast %121 : vector<64xf32> to vector<1x64xf32>
    %123 = arith.addf %64, %122 : vector<1x64xf32>
    %124 = arith.truncf %116 : vector<128x64xf32> to vector<128x64xbf16>
    %c0_103 = arith.constant 0 : index
    %c160_104 = arith.constant 160 : index
    %c0_105 = arith.constant 0 : index
    %125 = vector.load %arg4[%c0_103, %c160_104, %c0_105] : memref<1x355x64xbf16, #tpu.memory_space<vmem>>, vector<1x128x64xbf16>
    %126 = vector.shape_cast %125 : vector<1x128x64xbf16> to vector<128x64xbf16>
    %127 = vector.shape_cast %124 : vector<128x64xbf16> to vector<1x128x64xbf16>
    tpu.vector_store %arg4[%c0_103, %c160_104, %c0_105], %127 {strides = array<i32>} : memref<1x355x64xbf16, #tpu.memory_space<vmem>>, vector<1x128x64xbf16>,
    %c0_106 = arith.constant 0 : index
    %c0_107 = arith.constant 0 : index
    %128 = vector.load %arg2[%c0_106, %c0_107] : memref<576x64xbf16, #tpu.memory_space<vmem>>, vector<64x64xbf16>
    %c0_108 = arith.constant 0 : index
    %c269 = arith.constant 269 : index
    %c0_109 = arith.constant 0 : index
    %129 = vector.load %arg1[%c0_108, %c269, %c0_109] : memref<1x355x64xbf16, #tpu.memory_space<vmem>>, vector<1x32x64xbf16>
    %130 = vector.shape_cast %129 : vector<1x32x64xbf16> to vector<32x64xbf16>
    %cst_110 = arith.constant dense<0.000000e+00> : vector<32x64xf32>
    %131 = tpu.matmul %130, %128, %cst_110 {dimension_numbers = #tpu.dot_dimension_numbers<[1], [0], [0], [1], [0, 0, 1, 1], [], []>} : vector<32x64xbf16>, vector<64x64xbf16>, vector<32x64xf32> -> vector<32x64xf32>
    %c64_111 = arith.constant 64 : index
    %c0_112 = arith.constant 0 : index
    %132 = vector.load %arg2[%c64_111, %c0_112] : memref<576x64xbf16, #tpu.memory_space<vmem>>, vector<64x64xbf16>
    %c0_113 = arith.constant 0 : index
    %c270 = arith.constant 270 : index
    %c0_114 = arith.constant 0 : index
    %133 = vector.load %arg1[%c0_113, %c270, %c0_114] : memref<1x355x64xbf16, #tpu.memory_space<vmem>>, vector<1x32x64xbf16>
    %134 = vector.shape_cast %133 : vector<1x32x64xbf16> to vector<32x64xbf16>
    %cst_115 = arith.constant dense<0.000000e+00> : vector<32x64xf32>
    %135 = tpu.matmul %134, %132, %cst_115 {dimension_numbers = #tpu.dot_dimension_numbers<[1], [0], [0], [1], [0, 0, 1, 1], [], []>} : vector<32x64xbf16>, vector<64x64xbf16>, vector<32x64xf32> -> vector<32x64xf32>
    %136 = arith.addf %131, %135 : vector<32x64xf32>
    %c128_116 = arith.constant 128 : index
    %c0_117 = arith.constant 0 : index
    %137 = vector.load %arg2[%c128_116, %c0_117] : memref<576x64xbf16, #tpu.memory_space<vmem>>, vector<64x64xbf16>
    %c0_118 = arith.constant 0 : index
    %c271 = arith.constant 271 : index
    %c0_119 = arith.constant 0 : index
    %138 = vector.load %arg1[%c0_118, %c271, %c0_119] : memref<1x355x64xbf16, #tpu.memory_space<vmem>>, vector<1x32x64xbf16>
    %139 = vector.shape_cast %138 : vector<1x32x64xbf16> to vector<32x64xbf16>
    %cst_120 = arith.constant dense<0.000000e+00> : vector<32x64xf32>
    %140 = tpu.matmul %139, %137, %cst_120 {dimension_numbers = #tpu.dot_dimension_numbers<[1], [0], [0], [1], [0, 0, 1, 1], [], []>} : vector<32x64xbf16>, vector<64x64xbf16>, vector<32x64xf32> -> vector<32x64xf32>
    %141 = arith.addf %136, %140 : vector<32x64xf32>
    %c192_121 = arith.constant 192 : index
    %c0_122 = arith.constant 0 : index
    %142 = vector.load %arg2[%c192_121, %c0_122] : memref<576x64xbf16, #tpu.memory_space<vmem>>, vector<64x64xbf16>
    %c0_123 = arith.constant 0 : index
    %c287 = arith.constant 287 : index
    %c0_124 = arith.constant 0 : index
    %143 = vector.load %arg1[%c0_123, %c287, %c0_124] : memref<1x355x64xbf16, #tpu.memory_space<vmem>>, vector<1x32x64xbf16>
    %144 = vector.shape_cast %143 : vector<1x32x64xbf16> to vector<32x64xbf16>
    %cst_125 = arith.constant dense<0.000000e+00> : vector<32x64xf32>
    %145 = tpu.matmul %144, %142, %cst_125 {dimension_numbers = #tpu.dot_dimension_numbers<[1], [0], [0], [1], [0, 0, 1, 1], [], []>} : vector<32x64xbf16>, vector<64x64xbf16>, vector<32x64xf32> -> vector<32x64xf32>
    %146 = arith.addf %141, %145 : vector<32x64xf32>
    %c256_126 = arith.constant 256 : index
    %c0_127 = arith.constant 0 : index
    %147 = vector.load %arg2[%c256_126, %c0_127] : memref<576x64xbf16, #tpu.memory_space<vmem>>, vector<64x64xbf16>
    %c0_128 = arith.constant 0 : index
    %c288 = arith.constant 288 : index
    %c0_129 = arith.constant 0 : index
    %148 = vector.load %arg1[%c0_128, %c288, %c0_129] : memref<1x355x64xbf16, #tpu.memory_space<vmem>>, vector<1x32x64xbf16>
    %149 = vector.shape_cast %148 : vector<1x32x64xbf16> to vector<32x64xbf16>
    %cst_130 = arith.constant dense<0.000000e+00> : vector<32x64xf32>
    %150 = tpu.matmul %149, %147, %cst_130 {dimension_numbers = #tpu.dot_dimension_numbers<[1], [0], [0], [1], [0, 0, 1, 1], [], []>} : vector<32x64xbf16>, vector<64x64xbf16>, vector<32x64xf32> -> vector<32x64xf32>
    %151 = arith.addf %146, %150 : vector<32x64xf32>
    %c320_131 = arith.constant 320 : index
    %c0_132 = arith.constant 0 : index
    %152 = vector.load %arg2[%c320_131, %c0_132] : memref<576x64xbf16, #tpu.memory_space<vmem>>, vector<64x64xbf16>
    %c0_133 = arith.constant 0 : index
    %c289 = arith.constant 289 : index
    %c0_134 = arith.constant 0 : index
    %153 = vector.load %arg1[%c0_133, %c289, %c0_134] : memref<1x355x64xbf16, #tpu.memory_space<vmem>>, vector<1x32x64xbf16>
    %154 = vector.shape_cast %153 : vector<1x32x64xbf16> to vector<32x64xbf16>
    %cst_135 = arith.constant dense<0.000000e+00> : vector<32x64xf32>
    %155 = tpu.matmul %154, %152, %cst_135 {dimension_numbers = #tpu.dot_dimension_numbers<[1], [0], [0], [1], [0, 0, 1, 1], [], []>} : vector<32x64xbf16>, vector<64x64xbf16>, vector<32x64xf32> -> vector<32x64xf32>
    %156 = arith.addf %151, %155 : vector<32x64xf32>
    %c384_136 = arith.constant 384 : index
    %c0_137 = arith.constant 0 : index
    %157 = vector.load %arg2[%c384_136, %c0_137] : memref<576x64xbf16, #tpu.memory_space<vmem>>, vector<64x64xbf16>
    %c0_138 = arith.constant 0 : index
    %c305 = arith.constant 305 : index
    %c0_139 = arith.constant 0 : index
    %158 = vector.load %arg1[%c0_138, %c305, %c0_139] : memref<1x355x64xbf16, #tpu.memory_space<vmem>>, vector<1x32x64xbf16>
    %159 = vector.shape_cast %158 : vector<1x32x64xbf16> to vector<32x64xbf16>
    %cst_140 = arith.constant dense<0.000000e+00> : vector<32x64xf32>
    %160 = tpu.matmul %159, %157, %cst_140 {dimension_numbers = #tpu.dot_dimension_numbers<[1], [0], [0], [1], [0, 0, 1, 1], [], []>} : vector<32x64xbf16>, vector<64x64xbf16>, vector<32x64xf32> -> vector<32x64xf32>
    %161 = arith.addf %156, %160 : vector<32x64xf32>
    %c448_141 = arith.constant 448 : index
    %c0_142 = arith.constant 0 : index
    %162 = vector.load %arg2[%c448_141, %c0_142] : memref<576x64xbf16, #tpu.memory_space<vmem>>, vector<64x64xbf16>
    %c0_143 = arith.constant 0 : index
    %c306 = arith.constant 306 : index
    %c0_144 = arith.constant 0 : index
    %163 = vector.load %arg1[%c0_143, %c306, %c0_144] : memref<1x355x64xbf16, #tpu.memory_space<vmem>>, vector<1x32x64xbf16>
    %164 = vector.shape_cast %163 : vector<1x32x64xbf16> to vector<32x64xbf16>
    %cst_145 = arith.constant dense<0.000000e+00> : vector<32x64xf32>
    %165 = tpu.matmul %164, %162, %cst_145 {dimension_numbers = #tpu.dot_dimension_numbers<[1], [0], [0], [1], [0, 0, 1, 1], [], []>} : vector<32x64xbf16>, vector<64x64xbf16>, vector<32x64xf32> -> vector<32x64xf32>
    %166 = arith.addf %161, %165 : vector<32x64xf32>
    %c512_146 = arith.constant 512 : index
    %c0_147 = arith.constant 0 : index
    %167 = vector.load %arg2[%c512_146, %c0_147] : memref<576x64xbf16, #tpu.memory_space<vmem>>, vector<64x64xbf16>
    %c0_148 = arith.constant 0 : index
    %c307 = arith.constant 307 : index
    %c0_149 = arith.constant 0 : index
    %168 = vector.load %arg1[%c0_148, %c307, %c0_149] : memref<1x355x64xbf16, #tpu.memory_space<vmem>>, vector<1x32x64xbf16>
    %169 = vector.shape_cast %168 : vector<1x32x64xbf16> to vector<32x64xbf16>
    %cst_150 = arith.constant dense<0.000000e+00> : vector<32x64xf32>
    %170 = tpu.matmul %169, %167, %cst_150 {dimension_numbers = #tpu.dot_dimension_numbers<[1], [0], [0], [1], [0, 0, 1, 1], [], []>} : vector<32x64xbf16>, vector<64x64xbf16>, vector<32x64xf32> -> vector<32x64xf32>
    %171 = arith.addf %166, %170 : vector<32x64xf32>
    %c0_151 = arith.constant 0 : index
    %c288_152 = arith.constant 288 : index
    %c0_153 = arith.constant 0 : index
    %172 = vector.load %arg3[%c0_151, %c288_152, %c0_153] : memref<1x355x1xf32, #tpu.memory_space<vmem>>, vector<1x32x1xf32>
    %173 = vector.shape_cast %172 : vector<1x32x1xf32> to vector<32x1xf32>
    %174 = vector.broadcast %173 : vector<32x1xf32> to vector<32x64xf32>
    %175 = arith.mulf %171, %174 : vector<32x64xf32>
    %cst_154 = arith.constant dense<0.000000e+00> : vector<64xf32>
    %176 = vector.multi_reduction <add>, %175, %cst_154 [0] : vector<32x64xf32> to vector<64xf32>
    %177 = vector.shape_cast %176 : vector<64xf32> to vector<1x64xf32>
    %178 = arith.addf %119, %177 : vector<1x64xf32>
    %179 = arith.mulf %175, %175 : vector<32x64xf32>
    %cst_155 = arith.constant dense<0.000000e+00> : vector<64xf32>
    %180 = vector.multi_reduction <add>, %179, %cst_155 [0] : vector<32x64xf32> to vector<64xf32>
    %181 = vector.shape_cast %180 : vector<64xf32> to vector<1x64xf32>
    %182 = arith.addf %123, %181 : vector<1x64xf32>
    %183 = arith.truncf %175 : vector<32x64xf32> to vector<32x64xbf16>
    %c0_156 = arith.constant 0 : index
    %c288_157 = arith.constant 288 : index
    %c0_158 = arith.constant 0 : index
    %184 = vector.load %arg4[%c0_156, %c288_157, %c0_158] : memref<1x355x64xbf16, #tpu.memory_space<vmem>>, vector<1x32x64xbf16>
    %185 = vector.shape_cast %184 : vector<1x32x64xbf16> to vector<32x64xbf16>
    %186 = vector.shape_cast %183 : vector<32x64xbf16> to vector<1x32x64xbf16>
    tpu.vector_store %arg4[%c0_156, %c288_157, %c0_158], %186 {strides = array<i32>} : memref<1x355x64xbf16, #tpu.memory_space<vmem>>, vector<1x32x64xbf16>,
    %c0_159 = arith.constant 0 : index
    %c0_160 = arith.constant 0 : index
    %c0_161 = arith.constant 0 : index
    %187 = vector.load %arg5[%c0_159, %c0_160, %c0_161] : memref<1x1x64xf32, #tpu.memory_space<vmem>>, vector<1x1x64xf32>
    %188 = vector.shape_cast %187 : vector<1x1x64xf32> to vector<1x64xf32>
    %189 = vector.shape_cast %178 : vector<1x64xf32> to vector<1x1x64xf32>
    tpu.vector_store %arg5[%c0_159, %c0_160, %c0_161], %189 {strides = array<i32>} : memref<1x1x64xf32, #tpu.memory_space<vmem>>, vector<1x1x64xf32>,
    %c0_162 = arith.constant 0 : index
    %c0_163 = arith.constant 0 : index
    %c0_164 = arith.constant 0 : index
    %190 = vector.load %arg6[%c0_162, %c0_163, %c0_164] : memref<1x1x64xf32, #tpu.memory_space<vmem>>, vector<1x1x64xf32>
    %191 = vector.shape_cast %190 : vector<1x1x64xf32> to vector<1x64xf32>
    %192 = vector.shape_cast %182 : vector<1x64xf32> to vector<1x1x64xf32>
    tpu.vector_store %arg6[%c0_162, %c0_163, %c0_164], %192 {strides = array<i32>} : memref<1x1x64xf32, #tpu.memory_space<vmem>>, vector<1x1x64xf32>,
    return
  }
  func.func @transform_0(%arg0: i32) -> (i32, i32, i32) {
    %c0_i32 = arith.constant 0 : i32
    %c0_i32_0 = arith.constant 0 : i32
    %c0_i32_1 = arith.constant 0 : i32
    return %arg0, %c0_i32, %c0_i32_0 : i32, i32, i32
  }
  func.func @transform_1(%arg0: i32) -> (i32, i32) {
    %c0_i32 = arith.constant 0 : i32
    %c0_i32_0 = arith.constant 0 : i32
    %c0_i32_1 = arith.constant 0 : i32
    return %c0_i32, %c0_i32_0 : i32, i32
  }
  func.func @transform_2(%arg0: i32) -> (i32, i32, i32) {
    %c0_i32 = arith.constant 0 : i32
    %c0_i32_0 = arith.constant 0 : i32
    %c0_i32_1 = arith.constant 0 : i32
    %c0_i32_2 = arith.constant 0 : i32
    return %c0_i32, %c0_i32_0, %c0_i32_1 : i32, i32, i32
  }
  func.func @transform_3(%arg0: i32) -> (i32, i32, i32) {
    %c0_i32 = arith.constant 0 : i32
    %c0_i32_0 = arith.constant 0 : i32
    %c0_i32_1 = arith.constant 0 : i32
    return %arg0, %c0_i32, %c0_i32_0 : i32, i32, i32
  }
  func.func @transform_4(%arg0: i32) -> (i32, i32, i32) {
    %c0_i32 = arith.constant 0 : i32
    %c0_i32_0 = arith.constant 0 : i32
    %c0_i32_1 = arith.constant 0 : i32
    return %arg0, %c0_i32, %c0_i32_0 : i32, i32, i32
  }
  func.func @transform_5(%arg0: i32) -> (i32, i32, i32) {
    %c0_i32 = arith.constant 0 : i32
    %c0_i32_0 = arith.constant 0 : i32
    %c0_i32_1 = arith.constant 0 : i32
    return %arg0, %c0_i32, %c0_i32_0 : i32, i32, i32
  }
}

</mosaic_0001>

<llo_original>
// kernel: tpu_custom_call.1
$region0: #{tpu_custom_call.1}
  #allocation0 [shape = 'u32[]', space=smem, size = 0x4, offset = 0x4, fixed_abs, tag = 'smem constant byte address 0x4 - core index']
  #allocation1 [shape = 'u32[144,128]{1,0:T(1,128)}', space=vmem, size = 0x12000, scoped, tag = 'internal scratch']
  %s0 = inlined_call_operand.vmem [shape: bf16[2,355,64], index: 0, kind: input, shape index: {}]
  %s1 = inlined_call_operand.vmem [shape: bf16[576,64], index: 1, kind: input, shape index: {}]
  %s2 = inlined_call_operand.vmem [shape: f32[1,355,1], index: 2, kind: input, shape index: {}]
  %s3 = inlined_call_operand.vmem [shape: bf16[2,355,64], index: 3, kind: output, shape index: {0}]
  %s4 = inlined_call_operand.hbm [shape: f32[2,1,64], index: 4, kind: output, shape index: {1}]
  %s5 = inlined_call_operand.hbm [shape: f32[2,1,64], index: 5, kind: output, shape index: {2}]
  %6 = xla_tuple %s3, %s4, %s5
  %s7 = sld [smem:[#allocation0]]
  $region61: #{tpu_custom_call.1} parent=0
    _
  %s9 = ssub.s32 1, %s7
  %s10 = scalar_select 0, %s9, %s7
  $region1: #{tpu_custom_call.1} parent=0
    #allocation2 [shape = 'u8[1024]{0}', space=vmem, size = 0x400, scoped, tag = 'output window, operand 1']
    #allocation3 [shape = 's32[2]{0}', space=sflag, size = 0x8, scoped, tag = 'scoped memory for tpu_custom_call.1']
    #allocation4 [shape = 'u8[1024]{0}', space=vmem, size = 0x400, scoped, tag = 'output window, operand 2']
    #allocation5 [shape = 's32[2]{0}', space=sflag, size = 0x8, scoped, tag = 'scoped memory for tpu_custom_call.1']
    %11 = vsyncpa [#allocation3], 0
    %s12 = scalar_lea.sflag [#allocation3], 1
    %13 = vsyncpa %s12, 0
    %14 = vsyncpa [#allocation5], 0
    %s15 = scalar_lea.sflag [#allocation5], 1
    %16 = vsyncpa %s15, 0
    loop: start=0, step=1, limit=4
    $region2: #{tpu_custom_call.1} parent=1 // loop_pre_header
      _
    $region3: #{tpu_custom_call.1} parent=1 // loop_header
      %s18 = sphi 0, %s22
      %p19 = scmp.ge.s32.totalorder %s18, 4
      %s28 = sphi 0, %s30
      %s31 = sphi 0, %s28
      %s32 = sphi 0, %s31
      %s48 = sphi 0, %s32
      %s52 = sphi 0, %s52
      %s54 = sphi 0, %s52
      %s55 = sphi 0, %s54
      %s69 = sphi 0, %s55
      %s73 = sphi 0, %s73
      %s75 = sphi 0, %s73
      %s76 = sphi 0, %s75
      %s90 = sphi 0, %s76
      %s96 = sphi 0, %s98
      %s99 = sphi 0, %s96
      %s100 = sphi 0, %s99
      %s116 = sphi 0, %s100
      %s122 = sphi 0, %s124
      %s125 = sphi 0, %s122
      %s126 = sphi 0, %s125
      %s142 = sphi 0, %s126
      %s148 = sphi 0, %s150
      %s151 = sphi 0, %s148
      %s152 = sphi 0, %s151
      %s168 = sphi 0, %s152
    $region4: #{tpu_custom_call.1} parent=1 // loop_header_branch
      %21 = sbr.rel (%p19) target = $region8
    $region5: #{tpu_custom_call.1} parent=1 // loop_body
      %s23 = ssub.s32 %s18, 1
      %s24 = ssub.s32 %s18, 2
      %s25 = sadd.s32 %s18, 1
      %s26 = ssub.s32 %s18, %s25
      %p27 = scmp.eq.s32.totalorder %s26, 0
      %s29 = sadd.s32 %s28, 1
      %s30 = scalar_select %p27, %s28, %s29
      %p33 = pneg %p27
      %p34 = scmp.eq.s32.totalorder %s18, 1
      %p35 = por %p33, %p34
      %p36 = scmp.ne.s32.totalorder %s28, %s31
      %p37 = scmp.eq.s32.totalorder %s18, 0
      %p38 = por %p36, %p37
      %p39 = scmp.ne.s32.totalorder %s28, %s31
      %p40 = scmp.eq.s32.totalorder %s23, 1
      %p41 = por %p39, %p40
      %p42 = scmp.ne.s32.totalorder %s31, %s32
      %p43 = scmp.eq.s32.totalorder %s23, 0
      %p44 = por %p42, %p43
      %p45 = scmp.ne.s32.totalorder %s31, %s32
      %p46 = scmp.eq.s32.totalorder %s24, 1
      %p47 = por %p45, %p46
      %p49 = scmp.ne.s32.totalorder %s32, %s48
      %p50 = scmp.eq.s32.totalorder %s24, 0
      %p51 = por %p49, %p50
      %s53 = sadd.s32 %s52, 1
      %p56 = scmp.eq.s32.totalorder %s18, 1
      %p57 = scmp.ne.s32.totalorder %s52, %s54
      %p58 = scmp.eq.s32.totalorder %s18, 0
      %p59 = por %p57, %p58
      %p60 = scmp.ne.s32.totalorder %s52, %s54
      %p61 = scmp.eq.s32.totalorder %s23, 1
      %p62 = por %p60, %p61
      %p63 = scmp.ne.s32.totalorder %s54, %s55
      %p64 = scmp.eq.s32.totalorder %s23, 0
      %p65 = por %p63, %p64
      %p66 = scmp.ne.s32.totalorder %s54, %s55
      %p67 = scmp.eq.s32.totalorder %s24, 1
      %p68 = por %p66, %p67
      %p70 = scmp.ne.s32.totalorder %s55, %s69
      %p71 = scmp.eq.s32.totalorder %s24, 0
      %p72 = por %p70, %p71
      %s74 = sadd.s32 %s73, 1
      %p77 = scmp.eq.s32.totalorder %s18, 1
      %p78 = scmp.ne.s32.totalorder %s73, %s75
      %p79 = scmp.eq.s32.totalorder %s18, 0
      %p80 = por %p78, %p79
      %p81 = scmp.ne.s32.totalorder %s73, %s75
      %p82 = scmp.eq.s32.totalorder %s23, 1
      %p83 = por %p81, %p82
      %p84 = scmp.ne.s32.totalorder %s75, %s76
      %p85 = scmp.eq.s32.totalorder %s23, 0
      %p86 = por %p84, %p85
      %p87 = scmp.ne.s32.totalorder %s75, %s76
      %p88 = scmp.eq.s32.totalorder %s24, 1
      %p89 = por %p87, %p88
      %p91 = scmp.ne.s32.totalorder %s76, %s90
      %p92 = scmp.eq.s32.totalorder %s24, 0
      %p93 = por %p91, %p92
      %s94 = ssub.s32 %s18, %s25
      %p95 = scmp.eq.s32.totalorder %s94, 0
      %s97 = sadd.s32 %s96, 1
      %s98 = scalar_select %p95, %s96, %s97
      %p101 = pneg %p95
      %p102 = scmp.eq.s32.totalorder %s18, 1
      %p103 = por %p101, %p102
      %p104 = scmp.ne.s32.totalorder %s96, %s99
      %p105 = scmp.eq.s32.totalorder %s18, 0
      %p106 = por %p104, %p105
      %p107 = scmp.ne.s32.totalorder %s96, %s99
      %p108 = scmp.eq.s32.totalorder %s23, 1
      %p109 = por %p107, %p108
      %p110 = scmp.ne.s32.totalorder %s99, %s100
      %p111 = scmp.eq.s32.totalorder %s23, 0
      %p112 = por %p110, %p111
      %p113 = scmp.ne.s32.totalorder %s99, %s100
      %p114 = scmp.eq.s32.totalorder %s24, 1
      %p115 = por %p113, %p114
      %p117 = scmp.ne.s32.totalorder %s100, %s116
      %p118 = scmp.eq.s32.totalorder %s24, 0
      %p119 = por %p117, %p118
      %s120 = ssub.s32 %s18, %s25
      %p121 = scmp.eq.s32.totalorder %s120, 0
      %s123 = sadd.s32 %s122, 1
      %s124 = scalar_select %p121, %s122, %s123
      %p127 = pneg %p121
      %p128 = scmp.eq.s32.totalorder %s18, 1
      %p129 = por %p127, %p128
      %p130 = scmp.ne.s32.totalorder %s122, %s125
      %p131 = scmp.eq.s32.totalorder %s18, 0
      %p132 = por %p130, %p131
      %p133 = scmp.ne.s32.totalorder %s122, %s125
      %p134 = scmp.eq.s32.totalorder %s23, 1
      %p135 = por %p133, %p134
      %p136 = scmp.ne.s32.totalorder %s125, %s126
      %p137 = scmp.eq.s32.totalorder %s23, 0
      %p138 = por %p136, %p137
      %p139 = scmp.ne.s32.totalorder %s125, %s126
      %p140 = scmp.eq.s32.totalorder %s24, 1
      %p141 = por %p139, %p140
      %p143 = scmp.ne.s32.totalorder %s126, %s142
      %p144 = scmp.eq.s32.totalorder %s24, 0
      %p145 = por %p143, %p144
      %s146 = ssub.s32 %s18, %s25
      %p147 = scmp.eq.s32.totalorder %s146, 0
      %s149 = sadd.s32 %s148, 1
      %s150 = scalar_select %p147, %s148, %s149
      %p153 = pneg %p147
      %p154 = scmp.eq.s32.totalorder %s18, 1
      %p155 = por %p153, %p154
      %p156 = scmp.ne.s32.totalorder %s148, %s151
      %p157 = scmp.eq.s32.totalorder %s18, 0
      %p158 = por %p156, %p157
      %p159 = scmp.ne.s32.totalorder %s148, %s151
      %p160 = scmp.eq.s32.totalorder %s23, 1
      %p161 = por %p159, %p160
      %p162 = scmp.ne.s32.totalorder %s151, %s152
      %p163 = scmp.eq.s32.totalorder %s23, 0
      %p164 = por %p162, %p163
      %p165 = scmp.ne.s32.totalorder %s151, %s152
      %p166 = scmp.eq.s32.totalorder %s24, 1
      %p167 = por %p165, %p166
      %p169 = scmp.ne.s32.totalorder %s152, %s168
      %p170 = scmp.eq.s32.totalorder %s24, 0
      %p171 = por %p169, %p170
      %p172 = scmp.le.s32.totalorder 1, %s18
      %p173 = scmp.lt.s32.totalorder %s18, 3
      %p174 = pnand %p172, %p173
      %p175 = pneg %p174
      // Predicated region
      $region9: #{tpu_custom_call.1} parent=5 // pred_check
        _
      $region10: #{tpu_custom_call.1} parent=5 // pred_check_branch
        %177 = sbr.rel (%p174) target = $region12
      $region11: #{tpu_custom_call.1} parent=5 // pred_region
        %s178 = ssub.s32 %s18, 1
        // Predicated region
        $region13: #{tpu_custom_call.1} parent=11 // pred_check
          %p179 = pneg %p65
        $region14: #{tpu_custom_call.1} parent=11 // pred_check_branch
          %181 = sbr.rel (%p179) target = $region16
        $region15: #{tpu_custom_call.1} parent=11 // pred_region
          _
        $region16: #{tpu_custom_call.1} parent=11 // pred_fallthru
          _
        // Predicated region
        $region17: #{tpu_custom_call.1} parent=11 // pred_check
          %p182 = pneg %p86
        $region18: #{tpu_custom_call.1} parent=11 // pred_check_branch
          %184 = sbr.rel (%p182) target = $region20
        $region19: #{tpu_custom_call.1} parent=11 // pred_region
          _
        $region20: #{tpu_custom_call.1} parent=11 // pred_fallthru
          _
      $region12: #{tpu_custom_call.1} parent=5 // pred_fallthru
        _
      %p185 = scmp.lt.s32.totalorder %s18, 2
      // Predicated region
      $region21: #{tpu_custom_call.1} parent=5 // pred_check
        %p186 = pneg %p185
      $region22: #{tpu_custom_call.1} parent=5 // pred_check_branch
        %188 = sbr.rel (%p186) target = $region24
      $region23: #{tpu_custom_call.1} parent=5 // pred_region
        // Predicated region
        $region25: #{tpu_custom_call.1} parent=23 // pred_check
          %p189 = pneg %p38
        $region26: #{tpu_custom_call.1} parent=23 // pred_check_branch
          %191 = sbr.rel (%p189) target = $region28
        $region27: #{tpu_custom_call.1} parent=23 // pred_region
          %p192 = scmp.lt.s32.totalorder %s18, 1
          %s193 = scalar_select %p192, %s18, 1
          %s194 = smul.addr %s193, 45
          %s195 = smul.addr %s194, 4
          %s196 = scalar_lea.vmem %s0, %s195
        $region28: #{tpu_custom_call.1} parent=23 // pred_fallthru
          _
      $region24: #{tpu_custom_call.1} parent=5 // pred_fallthru
        _
      %p197 = scmp.le.s32.totalorder 1, %s18
      %p198 = scmp.lt.s32.totalorder %s18, 3
      %p199 = pnand %p197, %p198
      %p200 = pneg %p199
      // Predicated region
      $region29: #{tpu_custom_call.1} parent=5 // pred_check
        _
      $region30: #{tpu_custom_call.1} parent=5 // pred_check_branch
        %202 = sbr.rel (%p199) target = $region32
      $region31: #{tpu_custom_call.1} parent=5 // pred_region
        %s203 = ssub.s32 %s18, 1
        %p204 = scmp.lt.s32.totalorder %s23, 1
        %s205 = scalar_select %p204, %s23, 1
        %s206 = smul.addr %s205, 45
        %s207 = smul.addr %s206, 4
        %s208 = scalar_lea.vmem %s0, %s207
        %p209 = pneg %p44
        %p210 = pneg %p41
        %p211 = pneg %p65
        %p212 = pneg %p62
        %p213 = pneg %p86
        %p214 = pneg %p83
        %p215 = pneg %p112
        %p216 = pneg %p109
        %p217 = scmp.lt.s32.totalorder %s23, 1
        %s218 = scalar_select %p217, %s23, 1
        %s219 = smul.addr %s218, 45
        %s220 = smul.addr %s219, 4
        %s221 = scalar_lea.vmem %s3, %s220
        %p222 = pneg %p138
        %p223 = pneg %p135
        %s224 = sand.u32 %s125, 1
        %s225 = scalar_lea.sflag [#allocation3], %s224
        %s226 = sand.u32 %s125, 1
        %s227 = scalar_lea.vmem [#allocation2], %s226
        %p228 = pneg %p164
        %p229 = pneg %p161
        %s230 = sand.u32 %s151, 1
        %s231 = scalar_lea.sflag [#allocation5], %s230
        %s232 = sand.u32 %s151, 1
        %s233 = scalar_lea.vmem [#allocation4], %s232
        %p234 = scmp.lt.s32.totalorder %s23, 1
        %s235 = scalar_select %p234, %s23, 1
        %s236 = smul.addr %s235, 45
        %s237 = smul.addr %s236, 4
        %s238 = scalar_lea.vmem %s0, %s237
        %p239 = scmp.lt.s32.totalorder %s23, 1
        %s240 = scalar_select %p239, %s23, 1
        %s241 = smul.addr %s240, 45
        %s242 = smul.addr %s241, 4
        %s243 = scalar_lea.vmem %s3, %s242
        %vm245 = vcmask 519168
        %246 = vst.msk [vmem:[%s243] sm:$0xf] %vm245, 0
        %247 = vst.msk [vmem:[%s243 + $0x4] sm:$0xf] %vm245, 0
        %248 = vst.msk [vmem:[%s243 + $0x8] sm:$0xf] %vm245, 0
        %249 = vst.msk [vmem:[%s243 + $0xc] sm:$0xf] %vm245, 0
        %250 = vst.msk [vmem:[%s243 + $0xa0] sm:$0xf] %vm245, 0
        %251 = vst.msk [vmem:[%s243 + $0xa4] sm:$0xf] %vm245, 0
        %252 = vst.msk [vmem:[%s243 + $0xa8] sm:$0xf] %vm245, 0
        %253 = vst.msk [vmem:[%s243 + $0xac] sm:$0xf] %vm245, 0
        %vm254 = vcmask 517120
        %vm255 = vsmask.f32 1280
        %vm256 = vmand %vm254, %vm255
        %v257 = vld [vmem:[%s243 + $0xb0] sm:$0x3]
        %v258 = vsel %vm256, 0, %v257
        %259 = vst [vmem:[%s243 + $0xb0] sm:$0x3] %v258
        %v260 = vld [vmem:[%s238 + $0x4] sm:$0xc]
        %v261 = vld [vmem:[%s238 + $0x8] sm:$0xf]
        %v262 = vld [vmem:[%s238 + $0xc] sm:$0xf]
        %v263 = vld [vmem:[%s238 + $0x10] sm:$0xf]
        %v264 = vld [vmem:[%s238 + $0x14] sm:$0xf]
        %v265 = vld [vmem:[%s238 + $0x18] sm:$0xf]
        %v266 = vld [vmem:[%s238 + $0x1c] sm:$0xf]
        %v267 = vld [vmem:[%s238 + $0x20] sm:$0xf]
        %v268 = vld [vmem:[%s238 + $0x24] sm:$0xf]
        %v269 = vld [vmem:[%s238 + $0x28] sm:$0xf]
        %v270 = vld [vmem:[%s238 + $0x2c] sm:$0xf]
        %v271 = vld [vmem:[%s238 + $0x30] sm:$0xf]
        %v272 = vld [vmem:[%s238 + $0x34] sm:$0xf]
        %v273 = vld [vmem:[%s238 + $0x38] sm:$0xf]
        %v274 = vld [vmem:[%s238 + $0x3c] sm:$0xf]
        %v275 = vld [vmem:[%s238 + $0x40] sm:$0xf]
        %v276 = vld [vmem:[%s238 + $0x44] sm:$0x7]
        %v277 = vld [vmem:[%s238 + $0x4] sm:$0x8]
        %v278 = vld [vmem:[%s238 + $0x44] sm:$0xf]
        %v296 = vunpack.c.l.b16 %v260
        %v297 = vunpack.c.l.b16 %v261
        %v298 = vunpack.c.l.b16 %v262
        %v299 = vunpack.c.l.b16 %v263
        %v300 = vunpack.c.l.b16 %v264
        %v301 = vunpack.c.l.b16 %v265
        %v302 = vunpack.c.l.b16 %v266
        %v303 = vunpack.c.l.b16 %v267
        %v304 = vunpack.c.l.b16 %v268
        %v305 = vunpack.c.l.b16 %v269
        %v306 = vunpack.c.l.b16 %v270
        %v307 = vunpack.c.l.b16 %v271
        %v308 = vunpack.c.l.b16 %v272
        %v309 = vunpack.c.l.b16 %v273
        %v310 = vunpack.c.l.b16 %v274
        %v311 = vunpack.c.l.b16 %v275
        %v312 = vunpack.c.l.b16 %v276
        %v313 = vpack.c.b16 %v297, %v296
        %v314 = vpack.c.b16 %v299, %v298
        %v315 = vpack.c.b16 %v301, %v300
        %v316 = vpack.c.b16 %v303, %v302
        %v317 = vpack.c.b16 %v305, %v304
        %v318 = vpack.c.b16 %v307, %v306
        %v319 = vpack.c.b16 %v309, %v308
        %v320 = vpack.c.b16 %v311, %v310
        %v321 = vpack.c.b16 %v312, %v312
        %v323 = vunpack.c.l.b16 %v277
        %v324 = vpack.c.b16 %v297, %v323
        %vm325 = vsmask.f32 7424
        %v327 = vshrl.u32 %v324, 16
        %v329 = vshll.u32 %v324, 16
        %v331 = vrot.slane %v329, 1
        %v332 = vor.u32 %v327, %v331
        %v334 = vshll.u32 %v314, 16
        %v336 = vrot.slane %v334, 1
        %v337 = vsel %vm325, %v332, %v336
        %v338 = vshrl.u32 %v314, 16
        %v340 = vor.u32 %v338, %v336
        %v342 = vshll.u32 %v315, 16
        %v344 = vrot.slane %v342, 1
        %v345 = vsel %vm325, %v340, %v344
        %v346 = vshrl.u32 %v315, 16
        %v348 = vor.u32 %v346, %v344
        %v350 = vshll.u32 %v316, 16
        %v352 = vrot.slane %v350, 1
        %v353 = vsel %vm325, %v348, %v352
        %v354 = vshrl.u32 %v316, 16
        %v356 = vor.u32 %v354, %v352
        %v358 = vshll.u32 %v317, 16
        %v360 = vrot.slane %v358, 1
        %v361 = vsel %vm325, %v356, %v360
        %v362 = vshrl.u32 %v317, 16
        %v364 = vor.u32 %v362, %v360
        %v366 = vshll.u32 %v318, 16
        %v368 = vrot.slane %v366, 1
        %v369 = vsel %vm325, %v364, %v368
        %v370 = vshrl.u32 %v318, 16
        %v372 = vor.u32 %v370, %v368
        %v374 = vshll.u32 %v319, 16
        %v376 = vrot.slane %v374, 1
        %v377 = vsel %vm325, %v372, %v376
        %v378 = vshrl.u32 %v319, 16
        %v380 = vor.u32 %v378, %v376
        %v382 = vshll.u32 %v320, 16
        %v384 = vrot.slane %v382, 1
        %v385 = vsel %vm325, %v380, %v384
        %v386 = vshrl.u32 %v320, 16
        %v388 = vor.u32 %v386, %v384
        %v390 = vshll.u32 %v321, 16
        %v392 = vrot.slane %v390, 1
        %v393 = vsel %vm325, %v388, %v392
        %v394 = vshrl.u32 %v321, 16
        %v396 = vor.u32 %v394, %v392
        %397 = vrot.lane.b32.xlu0 %v337, 64
        %v398 = vpop.permute.xlu0 %397
        %399 = vrot.lane.b32.xlu0 %v345, 64
        %v400 = vpop.permute.xlu0 %399
        %401 = vrot.lane.b32.xlu0 %v353, 64
        %v402 = vpop.permute.xlu0 %401
        %403 = vrot.lane.b32.xlu0 %v361, 64
        %v404 = vpop.permute.xlu0 %403
        %405 = vrot.lane.b32.xlu0 %v369, 64
        %v406 = vpop.permute.xlu0 %405
        %407 = vrot.lane.b32.xlu0 %v377, 64
        %v408 = vpop.permute.xlu0 %407
        %409 = vrot.lane.b32.xlu0 %v385, 64
        %v410 = vpop.permute.xlu0 %409
        %411 = vrot.lane.b32.xlu0 %v393, 64
        %v412 = vpop.permute.xlu0 %411
        %413 = vrot.lane.b32.xlu0 %v396, 64
        %v414 = vpop.permute.xlu0 %413
        %v416 = vunpack.c.l.b16 %v278
        %v417 = vpack.c.b16 %v416, %v416
        %vm418 = vcmask 1046528
        %v419 = vrot.slane %v324, 1
        %v420 = vrot.slane %v314, 1
        %v421 = vsel %vm418, %v419, %v420
        %v422 = vrot.slane %v315, 1
        %v423 = vsel %vm418, %v420, %v422
        %v424 = vrot.slane %v316, 1
        %v425 = vsel %vm418, %v422, %v424
        %v426 = vrot.slane %v317, 1
        %v427 = vsel %vm418, %v424, %v426
        %v428 = vrot.slane %v318, 1
        %v429 = vsel %vm418, %v426, %v428
        %v430 = vrot.slane %v319, 1
        %v431 = vsel %vm418, %v428, %v430
        %v432 = vrot.slane %v320, 1
        %v433 = vsel %vm418, %v430, %v432
        %v434 = vrot.slane %v417, 1
        %v435 = vsel %vm418, %v432, %v434
        %vm436 = vcmask 523264
        %v439 = vsel %vm436, %v313, %v398
        %v441 = vsel %vm436, %v314, %v400
        %v443 = vsel %vm436, %v315, %v402
        %v445 = vsel %vm436, %v316, %v404
        %v447 = vsel %vm436, %v317, %v406
        %v449 = vsel %vm436, %v318, %v408
        %v451 = vsel %vm436, %v319, %v410
        %v453 = vsel %vm436, %v320, %v412
        %v455 = vsel %vm436, %v321, %v414
        %v456 = vld [vmem:[%s1] sm:$0xf]
        %v457 = vld [vmem:[%s1 + $0x4] sm:$0xf]
        %v458 = vld [vmem:[%s1 + $0x8] sm:$0xf]
        %v459 = vld [vmem:[%s1 + $0xc] sm:$0xf]
        %v460 = vld [vmem:[%s1 + $0x10] sm:$0xf]
        %v461 = vld [vmem:[%s1 + $0x14] sm:$0xf]
        %v462 = vld [vmem:[%s1 + $0x18] sm:$0xf]
        %v463 = vld [vmem:[%s1 + $0x1c] sm:$0xf]
        %v464 = vld [vmem:[%s1 + $0x20] sm:$0xf]
        %v465 = vld [vmem:[%s1 + $0x24] sm:$0xf]
        %v466 = vld [vmem:[%s1 + $0x28] sm:$0xf]
        %v467 = vld [vmem:[%s1 + $0x2c] sm:$0xf]
        %v468 = vld [vmem:[%s1 + $0x30] sm:$0xf]
        %v469 = vld [vmem:[%s1 + $0x34] sm:$0xf]
        %v470 = vld [vmem:[%s1 + $0x38] sm:$0xf]
        %v471 = vld [vmem:[%s1 + $0x3c] sm:$0xf]
        %v472 = vld [vmem:[%s1 + $0x40] sm:$0xf]
        %v473 = vld [vmem:[%s1 + $0x44] sm:$0xf]
        %v474 = vld [vmem:[%s1 + $0x48] sm:$0xf]
        %v475 = vld [vmem:[%s1 + $0x4c] sm:$0xf]
        %v476 = vld [vmem:[%s1 + $0x50] sm:$0xf]
        %v477 = vld [vmem:[%s1 + $0x54] sm:$0xf]
        %v478 = vld [vmem:[%s1 + $0x58] sm:$0xf]
        %v479 = vld [vmem:[%s1 + $0x5c] sm:$0xf]
        %v480 = vld [vmem:[%s238 + $0xc] sm:$0x8]
        %v481 = vld [vmem:[%s238 + $0x48] sm:$0xf]
        %v482 = vld [vmem:[%s238 + $0x4c] sm:$0xf]
        %v483 = vld [vmem:[%s238 + $0x50] sm:$0x1]
        %v487 = vunpack.c.l.b16 %v480
        %v488 = vunpack.c.l.b16 %v481
        %v489 = vunpack.c.l.b16 %v482
        %v490 = vpack.c.b16 %v299, %v487
        %v491 = vpack.c.b16 %v488, %v416
        %v492 = vpack.c.b16 %v489, %v489
        %v493 = vpack.c.b16 %v300, %v299
        %v494 = vpack.c.b16 %v302, %v301
        %v495 = vpack.c.b16 %v304, %v303
        %v496 = vpack.c.b16 %v306, %v305
        %v497 = vpack.c.b16 %v308, %v307
        %v498 = vpack.c.b16 %v310, %v309
        %v499 = vpack.c.b16 %v416, %v311
        %v500 = vpack.c.b16 %v489, %v488
        %vm501 = vsmask.f32 3328
        %v503 = vshrl.u32 %v493, 16
        %v505 = vrot.slane %v503, 4
        %v506 = vshll.u32 %v493, 16
        %v508 = vrot.slane %v506, 5
        %v509 = vor.u32 %v505, %v508
        %v511 = vshrl.u32 %v494, 16
        %v513 = vrot.slane %v511, 4
        %v514 = vshll.u32 %v494, 16
        %v516 = vrot.slane %v514, 5
        %v517 = vor.u32 %v513, %v516
        %v518 = vsel %vm501, %v509, %v517
        %v520 = vshrl.u32 %v495, 16
        %v522 = vrot.slane %v520, 4
        %v523 = vshll.u32 %v495, 16
        %v525 = vrot.slane %v523, 5
        %v526 = vor.u32 %v522, %v525
        %v527 = vsel %vm501, %v517, %v526
        %v529 = vshrl.u32 %v496, 16
        %v531 = vrot.slane %v529, 4
        %v532 = vshll.u32 %v496, 16
        %v534 = vrot.slane %v532, 5
        %v535 = vor.u32 %v531, %v534
        %v536 = vsel %vm501, %v526, %v535
        %v538 = vshrl.u32 %v497, 16
        %v540 = vrot.slane %v538, 4
        %v541 = vshll.u32 %v497, 16
        %v543 = vrot.slane %v541, 5
        %v544 = vor.u32 %v540, %v543
        %v545 = vsel %vm501, %v535, %v544
        %v547 = vshrl.u32 %v498, 16
        %v549 = vrot.slane %v547, 4
        %v550 = vshll.u32 %v498, 16
        %v552 = vrot.slane %v550, 5
        %v553 = vor.u32 %v549, %v552
        %v554 = vsel %vm501, %v544, %v553
        %v556 = vshrl.u32 %v499, 16
        %v558 = vrot.slane %v556, 4
        %v559 = vshll.u32 %v499, 16
        %v561 = vrot.slane %v559, 5
        %v562 = vor.u32 %v558, %v561
        %v563 = vsel %vm501, %v553, %v562
        %v565 = vshrl.u32 %v500, 16
        %v567 = vrot.slane %v565, 4
        %v568 = vshll.u32 %v500, 16
        %v570 = vrot.slane %v568, 5
        %v571 = vor.u32 %v567, %v570
        %v572 = vsel %vm501, %v562, %v571
        %573 = vrot.lane.b32.xlu0 %v509, 64
        %v574 = vpop.permute.xlu0 %573
        %575 = vrot.lane.b32.xlu0 %v518, 64
        %v576 = vpop.permute.xlu0 %575
        %577 = vrot.lane.b32.xlu0 %v527, 64
        %v578 = vpop.permute.xlu0 %577
        %579 = vrot.lane.b32.xlu0 %v536, 64
        %v580 = vpop.permute.xlu0 %579
        %581 = vrot.lane.b32.xlu0 %v545, 64
        %v582 = vpop.permute.xlu0 %581
        %583 = vrot.lane.b32.xlu0 %v554, 64
        %v584 = vpop.permute.xlu0 %583
        %585 = vrot.lane.b32.xlu0 %v563, 64
        %v586 = vpop.permute.xlu0 %585
        %587 = vrot.lane.b32.xlu0 %v572, 64
        %v588 = vpop.permute.xlu0 %587
        %589 = vrot.lane.b32.xlu0 %v571, 64
        %v590 = vpop.permute.xlu0 %589
        %v592 = vunpack.c.l.b16 %v483
        %v593 = vpack.c.b16 %v592, %v592
        %vm594 = vcmask 1042432
        %v595 = vrot.slane %v493, 5
        %v596 = vrot.slane %v494, 5
        %v597 = vsel %vm594, %v595, %v596
        %v598 = vrot.slane %v495, 5
        %v599 = vsel %vm594, %v596, %v598
        %v600 = vrot.slane %v496, 5
        %v601 = vsel %vm594, %v598, %v600
        %v602 = vrot.slane %v497, 5
        %v603 = vsel %vm594, %v600, %v602
        %v604 = vrot.slane %v498, 5
        %v605 = vsel %vm594, %v602, %v604
        %v606 = vrot.slane %v499, 5
        %v607 = vsel %vm594, %v604, %v606
        %v608 = vrot.slane %v500, 5
        %v609 = vsel %vm594, %v606, %v608
        %v610 = vrot.slane %v593, 5
        %v611 = vsel %vm594, %v608, %v610
        %v614 = vsel %vm436, %v490, %v574
        %v616 = vsel %vm436, %v315, %v576
        %v618 = vsel %vm436, %v316, %v578
        %v620 = vsel %vm436, %v317, %v580
        %v622 = vsel %vm436, %v318, %v582
        %v624 = vsel %vm436, %v319, %v584
        %v626 = vsel %vm436, %v320, %v586
        %v629 = vsel %vm436, %v491, %v588
        %v632 = vsel %vm436, %v492, %v590
        %v633 = vld [vmem:[%s1 + $0x60] sm:$0xf]
        %v634 = vld [vmem:[%s1 + $0x64] sm:$0xf]
        %v635 = vld [vmem:[%s1 + $0x68] sm:$0xf]
        %v636 = vld [vmem:[%s1 + $0x6c] sm:$0xf]
        %v637 = vld [vmem:[%s1 + $0x70] sm:$0xf]
        %v638 = vld [vmem:[%s1 + $0x74] sm:$0xf]
        %v639 = vld [vmem:[%s1 + $0x78] sm:$0xf]
        %v640 = vld [vmem:[%s1 + $0x7c] sm:$0xf]
        %v641 = vld [vmem:[%s1 + $0x80] sm:$0xf]
        %v642 = vld [vmem:[%s1 + $0x84] sm:$0xf]
        %v643 = vld [vmem:[%s1 + $0x88] sm:$0xf]
        %v644 = vld [vmem:[%s1 + $0x8c] sm:$0xf]
        %v645 = vld [vmem:[%s1 + $0x90] sm:$0xf]
        %v646 = vld [vmem:[%s1 + $0x94] sm:$0xf]
        %v647 = vld [vmem:[%s1 + $0x98] sm:$0xf]
        %v648 = vld [vmem:[%s1 + $0x9c] sm:$0xf]
        %v649 = vld [vmem:[%s1 + $0xa0] sm:$0xf]
        %v650 = vld [vmem:[%s1 + $0xa4] sm:$0xf]
        %v651 = vld [vmem:[%s1 + $0xa8] sm:$0xf]
        %v652 = vld [vmem:[%s1 + $0xac] sm:$0xf]
        %v653 = vld [vmem:[%s1 + $0xb0] sm:$0xf]
        %v654 = vld [vmem:[%s1 + $0xb4] sm:$0xf]
        %v655 = vld [vmem:[%s1 + $0xb8] sm:$0xf]
        %v656 = vld [vmem:[%s1 + $0xbc] sm:$0xf]
        %vm657 = vsmask.f32 4352
        %v658 = vshrl.u32 %v614, 16
        %v660 = vrot.slane %v658, 3
        %v661 = vshll.u32 %v614, 16
        %v663 = vrot.slane %v661, 4
        %v664 = vor.u32 %v660, %v663
        %v665 = vshrl.u32 %v616, 16
        %v667 = vrot.slane %v665, 3
        %v668 = vshll.u32 %v616, 16
        %v670 = vrot.slane %v668, 4
        %v671 = vor.u32 %v667, %v670
        %v672 = vsel %vm657, %v664, %v671
        %v674 = vshrl.u32 %v595, 16
        %v676 = vrot.slane %v674, 3
        %v677 = vshll.u32 %v595, 16
        %v679 = vrot.slane %v677, 4
        %v680 = vor.u32 %v676, %v679
        %v682 = vshrl.u32 %v597, 16
        %v684 = vrot.slane %v682, 3
        %v685 = vshll.u32 %v597, 16
        %v687 = vrot.slane %v685, 4
        %v688 = vor.u32 %v684, %v687
        %v689 = vsel %vm657, %v680, %v688
        %v690 = vshrl.u32 %v618, 16
        %v692 = vrot.slane %v690, 3
        %v693 = vshll.u32 %v618, 16
        %v695 = vrot.slane %v693, 4
        %v696 = vor.u32 %v692, %v695
        %v697 = vsel %vm657, %v671, %v696
        %v699 = vshrl.u32 %v599, 16
        %v701 = vrot.slane %v699, 3
        %v702 = vshll.u32 %v599, 16
        %v704 = vrot.slane %v702, 4
        %v705 = vor.u32 %v701, %v704
        %v706 = vsel %vm657, %v688, %v705
        %v707 = vshrl.u32 %v620, 16
        %v709 = vrot.slane %v707, 3
        %v710 = vshll.u32 %v620, 16
        %v712 = vrot.slane %v710, 4
        %v713 = vor.u32 %v709, %v712
        %v714 = vsel %vm657, %v696, %v713
        %v716 = vshrl.u32 %v601, 16
        %v718 = vrot.slane %v716, 3
        %v719 = vshll.u32 %v601, 16
        %v721 = vrot.slane %v719, 4
        %v722 = vor.u32 %v718, %v721
        %v723 = vsel %vm657, %v705, %v722
        %v724 = vshrl.u32 %v622, 16
        %v726 = vrot.slane %v724, 3
        %v727 = vshll.u32 %v622, 16
        %v729 = vrot.slane %v727, 4
        %v730 = vor.u32 %v726, %v729
        %v731 = vsel %vm657, %v713, %v730
        %v733 = vshrl.u32 %v603, 16
        %v735 = vrot.slane %v733, 3
        %v736 = vshll.u32 %v603, 16
        %v738 = vrot.slane %v736, 4
        %v739 = vor.u32 %v735, %v738
        %v740 = vsel %vm657, %v722, %v739
        %v741 = vshrl.u32 %v624, 16
        %v743 = vrot.slane %v741, 3
        %v744 = vshll.u32 %v624, 16
        %v746 = vrot.slane %v744, 4
        %v747 = vor.u32 %v743, %v746
        %v748 = vsel %vm657, %v730, %v747
        %v750 = vshrl.u32 %v605, 16
        %v752 = vrot.slane %v750, 3
        %v753 = vshll.u32 %v605, 16
        %v755 = vrot.slane %v753, 4
        %v756 = vor.u32 %v752, %v755
        %v757 = vsel %vm657, %v739, %v756
        %v758 = vshrl.u32 %v626, 16
        %v760 = vrot.slane %v758, 3
        %v761 = vshll.u32 %v626, 16
        %v763 = vrot.slane %v761, 4
        %v764 = vor.u32 %v760, %v763
        %v765 = vsel %vm657, %v747, %v764
        %v767 = vshrl.u32 %v607, 16
        %v769 = vrot.slane %v767, 3
        %v770 = vshll.u32 %v607, 16
        %v772 = vrot.slane %v770, 4
        %v773 = vor.u32 %v769, %v772
        %v774 = vsel %vm657, %v756, %v773
        %v775 = vshrl.u32 %v629, 16
        %v777 = vrot.slane %v775, 3
        %v778 = vshll.u32 %v629, 16
        %v780 = vrot.slane %v778, 4
        %v781 = vor.u32 %v777, %v780
        %v782 = vsel %vm657, %v764, %v781
        %v784 = vshrl.u32 %v609, 16
        %v786 = vrot.slane %v784, 3
        %v787 = vshll.u32 %v609, 16
        %v789 = vrot.slane %v787, 4
        %v790 = vor.u32 %v786, %v789
        %v791 = vsel %vm657, %v773, %v790
        %v792 = vshrl.u32 %v632, 16
        %v794 = vrot.slane %v792, 3
        %v795 = vshll.u32 %v632, 16
        %v797 = vrot.slane %v795, 4
        %v798 = vor.u32 %v794, %v797
        %v799 = vsel %vm657, %v781, %v798
        %v801 = vshrl.u32 %v611, 16
        %v803 = vrot.slane %v801, 3
        %v804 = vshll.u32 %v611, 16
        %v806 = vrot.slane %v804, 4
        %v807 = vor.u32 %v803, %v806
        %v808 = vsel %vm657, %v790, %v807
        %v841 = vunpack.c.l.b16 %v633
        %v842 = vunpack.c.l.b16 %v634
        %v843 = vunpack.c.l.b16 %v635
        %v844 = vunpack.c.l.b16 %v636
        %v845 = vunpack.c.l.b16 %v637
        %v846 = vunpack.c.l.b16 %v638
        %v847 = vunpack.c.l.b16 %v639
        %v848 = vunpack.c.l.b16 %v640
        %v849 = vunpack.c.l.b16 %v641
        %v850 = vunpack.c.l.b16 %v642
        %v851 = vunpack.c.l.b16 %v643
        %v852 = vunpack.c.l.b16 %v644
        %v853 = vunpack.c.l.b16 %v645
        %v854 = vunpack.c.l.b16 %v646
        %v855 = vunpack.c.l.b16 %v647
        %v856 = vunpack.c.l.b16 %v648
        %v857 = vunpack.c.l.b16 %v649
        %v858 = vunpack.c.l.b16 %v650
        %v859 = vunpack.c.l.b16 %v651
        %v860 = vunpack.c.l.b16 %v652
        %v861 = vunpack.c.l.b16 %v653
        %v862 = vunpack.c.l.b16 %v654
        %v863 = vunpack.c.l.b16 %v655
        %v864 = vunpack.c.l.b16 %v656
        %v865 = vpack.c.b16 %v842, %v841
        %v866 = vpack.c.b16 %v844, %v843
        %v867 = vpack.c.b16 %v846, %v845
        %v868 = vpack.c.b16 %v848, %v847
        %v869 = vpack.c.b16 %v850, %v849
        %v870 = vpack.c.b16 %v852, %v851
        %v871 = vpack.c.b16 %v854, %v853
        %v872 = vpack.c.b16 %v856, %v855
        %v873 = vpack.c.b16 %v858, %v857
        %v874 = vpack.c.b16 %v860, %v859
        %v875 = vpack.c.b16 %v862, %v861
        %v876 = vpack.c.b16 %v864, %v863
        %v890 = vsel %vm436, %v689, 0
        %v893 = vsel %vm436, %v706, 0
        %v896 = vsel %vm436, %v723, 0
        %v899 = vsel %vm436, %v740, 0
        %v902 = vsel %vm436, %v757, 0
        %v905 = vsel %vm436, %v774, 0
        %v908 = vsel %vm436, %v791, 0
        %v911 = vsel %vm436, %v808, 0
        %913 = vmatprep.subr.bf16.mxu0 0
        %914 = vmatpush1.bf16.msra.mxu0 %v872
        %915 = vmatprep.subr.bf16.mxu0 0
        %916 = vmatpush1.bf16.msra.mxu0 %v871
        %917 = vmatprep.subr.bf16.mxu0 0
        %918 = vmatpush1.bf16.msra.mxu0 %v870
        %919 = vmatprep.subr.bf16.mxu0 0
        %920 = vmatpush1.bf16.msra.mxu0 %v869
        %921 = vmatprep.subr.bf16.mxu0 0
        %922 = vmatpush1.bf16.msra.mxu0 %v868
        %923 = vmatprep.subr.bf16.mxu0 0
        %924 = vmatpush1.bf16.msra.mxu0 %v867
        %925 = vmatprep.subr.bf16.mxu0 0
        %926 = vmatpush1.bf16.msra.mxu0 %v866
        %927 = vmatprep.subr.bf16.mxu0 0
        %928 = vmatpush1.bf16.msra.mxu0 %v865
        %929 = vmatprep.subr.bf16.mxu0 0
        %930 = vmatpush2.bf16.msra.mxu0 0
        %931 = vmatprep.subr.bf16.mxu0 0
        %932 = vmatpush2.bf16.msra.mxu0 0
        %933 = vmatprep.subr.bf16.mxu0 0
        %934 = vmatpush2.bf16.msra.mxu0 0
        %935 = vmatprep.subr.bf16.mxu0 0
        %936 = vmatpush2.bf16.msra.mxu0 0
        %937 = vmatprep.subr.bf16.mxu0 0
        %938 = vmatpush2.bf16.msra.mxu0 %v876
        %939 = vmatprep.subr.bf16.mxu0 0
        %940 = vmatpush2.bf16.msra.mxu0 %v875
        %941 = vmatprep.subr.bf16.mxu0 0
        %942 = vmatpush2.bf16.msra.mxu0 %v874
        %943 = vmatprep.subr.bf16.mxu0 0
        %944 = vmatpush2.bf16.msra.mxu0 %v873
        %945 = vmatprep.mubr.bf16.mxu0 %v890
        %946 = vmatmul.mubr.bf16.gmra.mxu0 %v672
        %v947 = vpop.f32.mrf.mxu0
        %v948 = vadd.f32 0.0, %v947
        %v949 = vpop.f32.mrf.mxu0
        %v950 = vpop.f32.mrf.mxu0
        %v951 = vadd.f32 0.0, %v950
        %v952 = vpop.f32.mrf.mxu0
        %953 = vmatprep.mubr.bf16.mxu0 %v893
        %954 = vmatmul.mubr.bf16.gmra.mxu0 %v697
        %v955 = vpop.f32.mrf.mxu0
        %v956 = vadd.f32 0.0, %v955
        %v957 = vpop.f32.mrf.mxu0
        %v958 = vpop.f32.mrf.mxu0
        %v959 = vadd.f32 0.0, %v958
        %v960 = vpop.f32.mrf.mxu0
        %961 = vmatprep.mubr.bf16.mxu0 %v896
        %962 = vmatmul.mubr.bf16.gmra.mxu0 %v714
        %v963 = vpop.f32.mrf.mxu0
        %v964 = vadd.f32 0.0, %v963
        %v965 = vpop.f32.mrf.mxu0
        %v966 = vpop.f32.mrf.mxu0
        %v967 = vadd.f32 0.0, %v966
        %v968 = vpop.f32.mrf.mxu0
        %969 = vmatprep.mubr.bf16.mxu0 %v899
        %970 = vmatmul.mubr.bf16.gmra.mxu0 %v731
        %v971 = vpop.f32.mrf.mxu0
        %v972 = vadd.f32 0.0, %v971
        %v973 = vpop.f32.mrf.mxu0
        %v974 = vpop.f32.mrf.mxu0
        %v975 = vadd.f32 0.0, %v974
        %v976 = vpop.f32.mrf.mxu0
        %977 = vmatprep.mubr.bf16.mxu0 %v902
        %978 = vmatmul.mubr.bf16.gmra.mxu0 %v748
        %v979 = vpop.f32.mrf.mxu0
        %v980 = vadd.f32 0.0, %v979
        %v981 = vpop.f32.mrf.mxu0
        %v982 = vpop.f32.mrf.mxu0
        %v983 = vadd.f32 0.0, %v982
        %v984 = vpop.f32.mrf.mxu0
        %985 = vmatprep.mubr.bf16.mxu0 %v905
        %986 = vmatmul.mubr.bf16.gmra.mxu0 %v765
        %v987 = vpop.f32.mrf.mxu0
        %v988 = vadd.f32 0.0, %v987
        %v989 = vpop.f32.mrf.mxu0
        %v990 = vpop.f32.mrf.mxu0
        %v991 = vadd.f32 0.0, %v990
        %v992 = vpop.f32.mrf.mxu0
        %993 = vmatprep.mubr.bf16.mxu0 %v908
        %994 = vmatmul.mubr.bf16.gmra.mxu0 %v782
        %v995 = vpop.f32.mrf.mxu0
        %v996 = vadd.f32 0.0, %v995
        %v997 = vpop.f32.mrf.mxu0
        %v998 = vpop.f32.mrf.mxu0
        %v999 = vadd.f32 0.0, %v998
        %v1000 = vpop.f32.mrf.mxu0
        %1001 = vmatprep.mubr.bf16.mxu0 %v911
        %1002 = vmatmul.mubr.bf16.gmra.mxu0 %v799
        %v1003 = vpop.f32.mrf.mxu0
        %v1004 = vadd.f32 0.0, %v1003
        %v1005 = vpop.f32.mrf.mxu0
        %v1006 = vpop.f32.mrf.mxu0
        %v1007 = vadd.f32 0.0, %v1006
        %v1008 = vpop.f32.mrf.mxu0
        %1009 = vdwg.mxu0
        %vm1010 = vsmask.f32 5376
        %v1011 = vshrl.u32 %v439, 16
        %v1013 = vrot.slane %v1011, 2
        %v1014 = vshll.u32 %v439, 16
        %v1016 = vrot.slane %v1014, 3
        %v1017 = vor.u32 %v1013, %v1016
        %v1018 = vshrl.u32 %v441, 16
        %v1020 = vrot.slane %v1018, 2
        %v1021 = vshll.u32 %v441, 16
        %v1023 = vrot.slane %v1021, 3
        %v1024 = vor.u32 %v1020, %v1023
        %v1025 = vsel %vm1010, %v1017, %v1024
        %v1027 = vshrl.u32 %v421, 16
        %v1029 = vrot.slane %v1027, 2
        %v1030 = vshll.u32 %v421, 16
        %v1032 = vrot.slane %v1030, 3
        %v1033 = vor.u32 %v1029, %v1032
        %v1035 = vshrl.u32 %v423, 16
        %v1037 = vrot.slane %v1035, 2
        %v1038 = vshll.u32 %v423, 16
        %v1040 = vrot.slane %v1038, 3
        %v1041 = vor.u32 %v1037, %v1040
        %v1042 = vsel %vm1010, %v1033, %v1041
        %v1043 = vshrl.u32 %v443, 16
        %v1045 = vrot.slane %v1043, 2
        %v1046 = vshll.u32 %v443, 16
        %v1048 = vrot.slane %v1046, 3
        %v1049 = vor.u32 %v1045, %v1048
        %v1050 = vsel %vm1010, %v1024, %v1049
        %v1052 = vshrl.u32 %v425, 16
        %v1054 = vrot.slane %v1052, 2
        %v1055 = vshll.u32 %v425, 16
        %v1057 = vrot.slane %v1055, 3
        %v1058 = vor.u32 %v1054, %v1057
        %v1059 = vsel %vm1010, %v1041, %v1058
        %v1060 = vshrl.u32 %v445, 16
        %v1062 = vrot.slane %v1060, 2
        %v1063 = vshll.u32 %v445, 16
        %v1065 = vrot.slane %v1063, 3
        %v1066 = vor.u32 %v1062, %v1065
        %v1067 = vsel %vm1010, %v1049, %v1066
        %v1069 = vshrl.u32 %v427, 16
        %v1071 = vrot.slane %v1069, 2
        %v1072 = vshll.u32 %v427, 16
        %v1074 = vrot.slane %v1072, 3
        %v1075 = vor.u32 %v1071, %v1074
        %v1076 = vsel %vm1010, %v1058, %v1075
        %v1077 = vshrl.u32 %v447, 16
        %v1079 = vrot.slane %v1077, 2
        %v1080 = vshll.u32 %v447, 16
        %v1082 = vrot.slane %v1080, 3
        %v1083 = vor.u32 %v1079, %v1082
        %v1084 = vsel %vm1010, %v1066, %v1083
        %v1086 = vshrl.u32 %v429, 16
        %v1088 = vrot.slane %v1086, 2
        %v1089 = vshll.u32 %v429, 16
        %v1091 = vrot.slane %v1089, 3
        %v1092 = vor.u32 %v1088, %v1091
        %v1093 = vsel %vm1010, %v1075, %v1092
        %v1094 = vshrl.u32 %v449, 16
        %v1096 = vrot.slane %v1094, 2
        %v1097 = vshll.u32 %v449, 16
        %v1099 = vrot.slane %v1097, 3
        %v1100 = vor.u32 %v1096, %v1099
        %v1101 = vsel %vm1010, %v1083, %v1100
        %v1103 = vshrl.u32 %v431, 16
        %v1105 = vrot.slane %v1103, 2
        %v1106 = vshll.u32 %v431, 16
        %v1108 = vrot.slane %v1106, 3
        %v1109 = vor.u32 %v1105, %v1108
        %v1110 = vsel %vm1010, %v1092, %v1109
        %v1111 = vshrl.u32 %v451, 16
        %v1113 = vrot.slane %v1111, 2
        %v1114 = vshll.u32 %v451, 16
        %v1116 = vrot.slane %v1114, 3
        %v1117 = vor.u32 %v1113, %v1116
        %v1118 = vsel %vm1010, %v1100, %v1117
        %v1120 = vshrl.u32 %v433, 16
        %v1122 = vrot.slane %v1120, 2
        %v1123 = vshll.u32 %v433, 16
        %v1125 = vrot.slane %v1123, 3
        %v1126 = vor.u32 %v1122, %v1125
        %v1127 = vsel %vm1010, %v1109, %v1126
        %v1128 = vshrl.u32 %v453, 16
        %v1130 = vrot.slane %v1128, 2
        %v1131 = vshll.u32 %v453, 16
        %v1133 = vrot.slane %v1131, 3
        %v1134 = vor.u32 %v1130, %v1133
        %v1135 = vsel %vm1010, %v1117, %v1134
        %v1137 = vshrl.u32 %v435, 16
        %v1139 = vrot.slane %v1137, 2
        %v1140 = vshll.u32 %v435, 16
        %v1142 = vrot.slane %v1140, 3
        %v1143 = vor.u32 %v1139, %v1142
        %v1144 = vsel %vm1010, %v1126, %v1143
        %v1145 = vshrl.u32 %v455, 16
        %v1147 = vrot.slane %v1145, 2
        %v1148 = vshll.u32 %v455, 16
        %v1150 = vrot.slane %v1148, 3
        %v1151 = vor.u32 %v1147, %v1150
        %v1152 = vsel %vm1010, %v1134, %v1151
        %v1154 = vshrl.u32 %v434, 16
        %v1156 = vrot.slane %v1154, 2
        %v1157 = vshll.u32 %v434, 16
        %v1159 = vrot.slane %v1157, 3
        %v1160 = vor.u32 %v1156, %v1159
        %v1161 = vsel %vm1010, %v1143, %v1160
        %v1194 = vunpack.c.l.b16 %v456
        %v1195 = vunpack.c.l.b16 %v457
        %v1196 = vunpack.c.l.b16 %v458
        %v1197 = vunpack.c.l.b16 %v459
        %v1198 = vunpack.c.l.b16 %v460
        %v1199 = vunpack.c.l.b16 %v461
        %v1200 = vunpack.c.l.b16 %v462
        %v1201 = vunpack.c.l.b16 %v463
        %v1202 = vunpack.c.l.b16 %v464
        %v1203 = vunpack.c.l.b16 %v465
        %v1204 = vunpack.c.l.b16 %v466
        %v1205 = vunpack.c.l.b16 %v467
        %v1206 = vunpack.c.l.b16 %v468
        %v1207 = vunpack.c.l.b16 %v469
        %v1208 = vunpack.c.l.b16 %v470
        %v1209 = vunpack.c.l.b16 %v471
        %v1210 = vunpack.c.l.b16 %v472
        %v1211 = vunpack.c.l.b16 %v473
        %v1212 = vunpack.c.l.b16 %v474
        %v1213 = vunpack.c.l.b16 %v475
        %v1214 = vunpack.c.l.b16 %v476
        %v1215 = vunpack.c.l.b16 %v477
        %v1216 = vunpack.c.l.b16 %v478
        %v1217 = vunpack.c.l.b16 %v479
        %v1218 = vpack.c.b16 %v1195, %v1194
        %v1219 = vpack.c.b16 %v1197, %v1196
        %v1220 = vpack.c.b16 %v1199, %v1198
        %v1221 = vpack.c.b16 %v1201, %v1200
        %v1222 = vpack.c.b16 %v1203, %v1202
        %v1223 = vpack.c.b16 %v1205, %v1204
        %v1224 = vpack.c.b16 %v1207, %v1206
        %v1225 = vpack.c.b16 %v1209, %v1208
        %v1226 = vpack.c.b16 %v1211, %v1210
        %v1227 = vpack.c.b16 %v1213, %v1212
        %v1228 = vpack.c.b16 %v1215, %v1214
        %v1229 = vpack.c.b16 %v1217, %v1216
        %v1243 = vsel %vm436, %v1042, 0
        %v1246 = vsel %vm436, %v1059, 0
        %v1249 = vsel %vm436, %v1076, 0
        %v1252 = vsel %vm436, %v1093, 0
        %v1255 = vsel %vm436, %v1110, 0
        %v1258 = vsel %vm436, %v1127, 0
        %v1261 = vsel %vm436, %v1144, 0
        %v1264 = vsel %vm436, %v1161, 0
        %1266 = vmatprep.subr.bf16.mxu0 0
        %1267 = vmatpush1.bf16.msra.mxu0 %v1225
        %1268 = vmatprep.subr.bf16.mxu0 0
        %1269 = vmatpush1.bf16.msra.mxu0 %v1224
        %1270 = vmatprep.subr.bf16.mxu0 0
        %1271 = vmatpush1.bf16.msra.mxu0 %v1223
        %1272 = vmatprep.subr.bf16.mxu0 0
        %1273 = vmatpush1.bf16.msra.mxu0 %v1222
        %1274 = vmatprep.subr.bf16.mxu0 0
        %1275 = vmatpush1.bf16.msra.mxu0 %v1221
        %1276 = vmatprep.subr.bf16.mxu0 0
        %1277 = vmatpush1.bf16.msra.mxu0 %v1220
        %1278 = vmatprep.subr.bf16.mxu0 0
        %1279 = vmatpush1.bf16.msra.mxu0 %v1219
        %1280 = vmatprep.subr.bf16.mxu0 0
        %1281 = vmatpush1.bf16.msra.mxu0 %v1218
        %1282 = vmatprep.subr.bf16.mxu0 0
        %1283 = vmatpush2.bf16.msra.mxu0 0
        %1284 = vmatprep.subr.bf16.mxu0 0
        %1285 = vmatpush2.bf16.msra.mxu0 0
        %1286 = vmatprep.subr.bf16.mxu0 0
        %1287 = vmatpush2.bf16.msra.mxu0 0
        %1288 = vmatprep.subr.bf16.mxu0 0
        %1289 = vmatpush2.bf16.msra.mxu0 0
        %1290 = vmatprep.subr.bf16.mxu0 0
        %1291 = vmatpush2.bf16.msra.mxu0 %v1229
        %1292 = vmatprep.subr.bf16.mxu0 0
        %1293 = vmatpush2.bf16.msra.mxu0 %v1228
        %1294 = vmatprep.subr.bf16.mxu0 0
        %1295 = vmatpush2.bf16.msra.mxu0 %v1227
        %1296 = vmatprep.subr.bf16.mxu0 0
        %1297 = vmatpush2.bf16.msra.mxu0 %v1226
        %1298 = vmatprep.mubr.bf16.mxu0 %v1243
        %1299 = vmatmul.mubr.bf16.gmra.mxu0 %v1025
        %v1300 = vpop.f32.mrf.mxu0
        %v1301 = vadd.f32 %v948, %v1300
        %v1302 = vpop.f32.mrf.mxu0
        %v1303 = vpop.f32.mrf.mxu0
        %v1304 = vadd.f32 %v951, %v1303
        %v1305 = vpop.f32.mrf.mxu0
        %1306 = vmatprep.mubr.bf16.mxu0 %v1246
        %1307 = vmatmul.mubr.bf16.gmra.mxu0 %v1050
        %v1308 = vpop.f32.mrf.mxu0
        %v1309 = vadd.f32 %v956, %v1308
        %v1310 = vpop.f32.mrf.mxu0
        %v1311 = vpop.f32.mrf.mxu0
        %v1312 = vadd.f32 %v959, %v1311
        %v1313 = vpop.f32.mrf.mxu0
        %1314 = vmatprep.mubr.bf16.mxu0 %v1249
        %1315 = vmatmul.mubr.bf16.gmra.mxu0 %v1067
        %v1316 = vpop.f32.mrf.mxu0
        %v1317 = vadd.f32 %v964, %v1316
        %v1318 = vpop.f32.mrf.mxu0
        %v1319 = vpop.f32.mrf.mxu0
        %v1320 = vadd.f32 %v967, %v1319
        %v1321 = vpop.f32.mrf.mxu0
        %1322 = vmatprep.mubr.bf16.mxu0 %v1252
        %1323 = vmatmul.mubr.bf16.gmra.mxu0 %v1084
        %v1324 = vpop.f32.mrf.mxu0
        %v1325 = vadd.f32 %v972, %v1324
        %v1326 = vpop.f32.mrf.mxu0
        %v1327 = vpop.f32.mrf.mxu0
        %v1328 = vadd.f32 %v975, %v1327
        %v1329 = vpop.f32.mrf.mxu0
        %1330 = vmatprep.mubr.bf16.mxu0 %v1255
        %1331 = vmatmul.mubr.bf16.gmra.mxu0 %v1101
        %v1332 = vpop.f32.mrf.mxu0
        %v1333 = vadd.f32 %v980, %v1332
        %v1334 = vpop.f32.mrf.mxu0
        %v1335 = vpop.f32.mrf.mxu0
        %v1336 = vadd.f32 %v983, %v1335
        %v1337 = vpop.f32.mrf.mxu0
        %1338 = vmatprep.mubr.bf16.mxu0 %v1258
        %1339 = vmatmul.mubr.bf16.gmra.mxu0 %v1118
        %v1340 = vpop.f32.mrf.mxu0
        %v1341 = vadd.f32 %v988, %v1340
        %v1342 = vpop.f32.mrf.mxu0
        %v1343 = vpop.f32.mrf.mxu0
        %v1344 = vadd.f32 %v991, %v1343
        %v1345 = vpop.f32.mrf.mxu0
        %1346 = vmatprep.mubr.bf16.mxu0 %v1261
        %1347 = vmatmul.mubr.bf16.gmra.mxu0 %v1135
        %v1348 = vpop.f32.mrf.mxu0
        %v1349 = vadd.f32 %v996, %v1348
        %v1350 = vpop.f32.mrf.mxu0
        %v1351 = vpop.f32.mrf.mxu0
        %v1352 = vadd.f32 %v999, %v1351
        %v1353 = vpop.f32.mrf.mxu0
        %1354 = vmatprep.mubr.bf16.mxu0 %v1264
        %1355 = vmatmul.mubr.bf16.gmra.mxu0 %v1152
        %v1356 = vpop.f32.mrf.mxu0
        %v1357 = vadd.f32 %v1004, %v1356
        %v1358 = vpop.f32.mrf.mxu0
        %v1359 = vpop.f32.mrf.mxu0
        %v1360 = vadd.f32 %v1007, %v1359
        %v1361 = vpop.f32.mrf.mxu0
        %1362 = vdwg.mxu0
        %v1363 = vld [vmem:[%s238 + $0x18] sm:$0xf]
        %v1364 = vld [vmem:[%s238 + $0x1c] sm:$0xf]
        %v1365 = vld [vmem:[%s238 + $0x20] sm:$0xf]
        %v1366 = vld [vmem:[%s238 + $0x24] sm:$0xf]
        %v1367 = vld [vmem:[%s238 + $0x28] sm:$0xf]
        %v1368 = vld [vmem:[%s238 + $0x2c] sm:$0xf]
        %v1369 = vld [vmem:[%s238 + $0x30] sm:$0xf]
        %v1370 = vld [vmem:[%s238 + $0x34] sm:$0xf]
        %v1371 = vld [vmem:[%s238 + $0x38] sm:$0xf]
        %v1372 = vld [vmem:[%s238 + $0x3c] sm:$0xf]
        %v1373 = vld [vmem:[%s238 + $0x40] sm:$0xf]
        %v1374 = vld [vmem:[%s238 + $0x44] sm:$0xf]
        %v1375 = vld [vmem:[%s238 + $0x48] sm:$0xf]
        %v1376 = vld [vmem:[%s238 + $0x4c] sm:$0xf]
        %v1377 = vld [vmem:[%s238 + $0x50] sm:$0xf]
        %v1378 = vld [vmem:[%s238 + $0x54] sm:$0xf]
        %v1379 = vld [vmem:[%s238 + $0x58] sm:$0x1]
        %v1380 = vld [vmem:[%s238 + $0x18] sm:$0xe]
        %v1381 = vld [vmem:[%s238 + $0x58] sm:$0x3]
        %v1399 = vunpack.c.l.b16 %v1363
        %v1400 = vunpack.c.l.b16 %v1364
        %v1401 = vunpack.c.l.b16 %v1365
        %v1402 = vunpack.c.l.b16 %v1366
        %v1403 = vunpack.c.l.b16 %v1367
        %v1404 = vunpack.c.l.b16 %v1368
        %v1405 = vunpack.c.l.b16 %v1369
        %v1406 = vunpack.c.l.b16 %v1370
        %v1407 = vunpack.c.l.b16 %v1371
        %v1408 = vunpack.c.l.b16 %v1372
        %v1409 = vunpack.c.l.b16 %v1373
        %v1410 = vunpack.c.l.b16 %v1374
        %v1411 = vunpack.c.l.b16 %v1375
        %v1412 = vunpack.c.l.b16 %v1376
        %v1413 = vunpack.c.l.b16 %v1377
        %v1414 = vunpack.c.l.b16 %v1378
        %v1415 = vunpack.c.l.b16 %v1379
        %v1416 = vpack.c.b16 %v1400, %v1399
        %v1417 = vpack.c.b16 %v1402, %v1401
        %v1418 = vpack.c.b16 %v1404, %v1403
        %v1419 = vpack.c.b16 %v1406, %v1405
        %v1420 = vpack.c.b16 %v1408, %v1407
        %v1421 = vpack.c.b16 %v1410, %v1409
        %v1422 = vpack.c.b16 %v1412, %v1411
        %v1423 = vpack.c.b16 %v1414, %v1413
        %v1424 = vpack.c.b16 %v1415, %v1415
        %v1426 = vunpack.c.l.b16 %v1380
        %v1427 = vpack.c.b16 %v1400, %v1426
        %v1429 = vshrl.u32 %v1427, 16
        %v1431 = vshll.u32 %v1427, 16
        %v1433 = vrot.slane %v1431, 1
        %v1434 = vor.u32 %v1429, %v1433
        %v1436 = vshll.u32 %v1417, 16
        %v1438 = vrot.slane %v1436, 1
        %v1439 = vsel %vm325, %v1434, %v1438
        %v1440 = vshrl.u32 %v1417, 16
        %v1442 = vor.u32 %v1440, %v1438
        %v1444 = vshll.u32 %v1418, 16
        %v1446 = vrot.slane %v1444, 1
        %v1447 = vsel %vm325, %v1442, %v1446
        %v1448 = vshrl.u32 %v1418, 16
        %v1450 = vor.u32 %v1448, %v1446
        %v1452 = vshll.u32 %v1419, 16
        %v1454 = vrot.slane %v1452, 1
        %v1455 = vsel %vm325, %v1450, %v1454
        %v1456 = vshrl.u32 %v1419, 16
        %v1458 = vor.u32 %v1456, %v1454
        %v1460 = vshll.u32 %v1420, 16
        %v1462 = vrot.slane %v1460, 1
        %v1463 = vsel %vm325, %v1458, %v1462
        %v1464 = vshrl.u32 %v1420, 16
        %v1466 = vor.u32 %v1464, %v1462
        %v1468 = vshll.u32 %v1421, 16
        %v1470 = vrot.slane %v1468, 1
        %v1471 = vsel %vm325, %v1466, %v1470
        %v1472 = vshrl.u32 %v1421, 16
        %v1474 = vor.u32 %v1472, %v1470
        %v1476 = vshll.u32 %v1422, 16
        %v1478 = vrot.slane %v1476, 1
        %v1479 = vsel %vm325, %v1474, %v1478
        %v1480 = vshrl.u32 %v1422, 16
        %v1482 = vor.u32 %v1480, %v1478
        %v1484 = vshll.u32 %v1423, 16
        %v1486 = vrot.slane %v1484, 1
        %v1487 = vsel %vm325, %v1482, %v1486
        %v1488 = vshrl.u32 %v1423, 16
        %v1490 = vor.u32 %v1488, %v1486
        %v1492 = vshll.u32 %v1424, 16
        %v1494 = vrot.slane %v1492, 1
        %v1495 = vsel %vm325, %v1490, %v1494
        %v1496 = vshrl.u32 %v1424, 16
        %1498 = vrot.lane.b32.xlu0 %v1439, 64
        %v1499 = vpop.permute.xlu0 %1498
        %1500 = vrot.lane.b32.xlu0 %v1447, 64
        %v1501 = vpop.permute.xlu0 %1500
        %1502 = vrot.lane.b32.xlu0 %v1455, 64
        %v1503 = vpop.permute.xlu0 %1502
        %1504 = vrot.lane.b32.xlu0 %v1463, 64
        %v1505 = vpop.permute.xlu0 %1504
        %1506 = vrot.lane.b32.xlu0 %v1471, 64
        %v1507 = vpop.permute.xlu0 %1506
        %1508 = vrot.lane.b32.xlu0 %v1479, 64
        %v1509 = vpop.permute.xlu0 %1508
        %1510 = vrot.lane.b32.xlu0 %v1487, 64
        %v1511 = vpop.permute.xlu0 %1510
        %1512 = vrot.lane.b32.xlu0 %v1495, 64
        %v1513 = vpop.permute.xlu0 %1512
        %1514 = vrot.lane.b32.xlu0 %v1496, 64
        %v1515 = vpop.permute.xlu0 %1514
        %v1517 = vunpack.c.l.b16 %v1381
        %v1518 = vpack.c.b16 %v1517, %v1517
        %v1519 = vrot.slane %v1427, 1
        %v1520 = vrot.slane %v1417, 1
        %v1521 = vsel %vm418, %v1519, %v1520
        %v1522 = vrot.slane %v1418, 1
        %v1523 = vsel %vm418, %v1520, %v1522
        %v1524 = vrot.slane %v1419, 1
        %v1525 = vsel %vm418, %v1522, %v1524
        %v1526 = vrot.slane %v1420, 1
        %v1527 = vsel %vm418, %v1524, %v1526
        %v1528 = vrot.slane %v1421, 1
        %v1529 = vsel %vm418, %v1526, %v1528
        %v1530 = vrot.slane %v1422, 1
        %v1531 = vsel %vm418, %v1528, %v1530
        %v1532 = vrot.slane %v1423, 1
        %v1533 = vsel %vm418, %v1530, %v1532
        %v1534 = vrot.slane %v1518, 1
        %v1535 = vsel %vm418, %v1532, %v1534
        %v1538 = vsel %vm436, %v1416, %v1499
        %v1540 = vsel %vm436, %v1417, %v1501
        %v1542 = vsel %vm436, %v1418, %v1503
        %v1544 = vsel %vm436, %v1419, %v1505
        %v1546 = vsel %vm436, %v1420, %v1507
        %v1548 = vsel %vm436, %v1421, %v1509
        %v1550 = vsel %vm436, %v1422, %v1511
        %v1552 = vsel %vm436, %v1423, %v1513
        %v1554 = vsel %vm436, %v1424, %v1515
        %v1555 = vld [vmem:[%s1 + $0xc0] sm:$0xf]
        %v1556 = vld [vmem:[%s1 + $0xc4] sm:$0xf]
        %v1557 = vld [vmem:[%s1 + $0xc8] sm:$0xf]
        %v1558 = vld [vmem:[%s1 + $0xcc] sm:$0xf]
        %v1559 = vld [vmem:[%s1 + $0xd0] sm:$0xf]
        %v1560 = vld [vmem:[%s1 + $0xd4] sm:$0xf]
        %v1561 = vld [vmem:[%s1 + $0xd8] sm:$0xf]
        %v1562 = vld [vmem:[%s1 + $0xdc] sm:$0xf]
        %v1563 = vld [vmem:[%s1 + $0xe0] sm:$0xf]
        %v1564 = vld [vmem:[%s1 + $0xe4] sm:$0xf]
        %v1565 = vld [vmem:[%s1 + $0xe8] sm:$0xf]
        %v1566 = vld [vmem:[%s1 + $0xec] sm:$0xf]
        %v1567 = vld [vmem:[%s1 + $0xf0] sm:$0xf]
        %v1568 = vld [vmem:[%s1 + $0xf4] sm:$0xf]
        %v1569 = vld [vmem:[%s1 + $0xf8] sm:$0xf]
        %v1570 = vld [vmem:[%s1 + $0xfc] sm:$0xf]
        %v1571 = vld [vmem:[%s1 + $0x100] sm:$0xf]
        %v1572 = vld [vmem:[%s1 + $0x104] sm:$0xf]
        %v1573 = vld [vmem:[%s1 + $0x108] sm:$0xf]
        %v1574 = vld [vmem:[%s1 + $0x10c] sm:$0xf]
        %v1575 = vld [vmem:[%s1 + $0x110] sm:$0xf]
        %v1576 = vld [vmem:[%s1 + $0x114] sm:$0xf]
        %v1577 = vld [vmem:[%s1 + $0x118] sm:$0xf]
        %v1578 = vld [vmem:[%s1 + $0x11c] sm:$0xf]
        %v1579 = vshrl.u32 %v1538, 16
        %v1581 = vshll.u32 %v1538, 16
        %v1583 = vrot.slane %v1581, 1
        %v1584 = vor.u32 %v1579, %v1583
        %v1585 = vshll.u32 %v1540, 16
        %v1587 = vrot.slane %v1585, 1
        %v1588 = vsel %vm325, %v1584, %v1587
        %v1590 = vshrl.u32 %v1521, 16
        %v1592 = vshll.u32 %v1521, 16
        %v1594 = vrot.slane %v1592, 1
        %v1595 = vor.u32 %v1590, %v1594
        %v1597 = vshll.u32 %v1523, 16
        %v1599 = vrot.slane %v1597, 1
        %v1600 = vsel %vm325, %v1595, %v1599
        %v1601 = vshrl.u32 %v1540, 16
        %v1603 = vor.u32 %v1601, %v1587
        %v1604 = vshll.u32 %v1542, 16
        %v1606 = vrot.slane %v1604, 1
        %v1607 = vsel %vm325, %v1603, %v1606
        %v1608 = vshrl.u32 %v1523, 16
        %v1610 = vor.u32 %v1608, %v1599
        %v1612 = vshll.u32 %v1525, 16
        %v1614 = vrot.slane %v1612, 1
        %v1615 = vsel %vm325, %v1610, %v1614
        %v1616 = vshrl.u32 %v1542, 16
        %v1618 = vor.u32 %v1616, %v1606
        %v1619 = vshll.u32 %v1544, 16
        %v1621 = vrot.slane %v1619, 1
        %v1622 = vsel %vm325, %v1618, %v1621
        %v1623 = vshrl.u32 %v1525, 16
        %v1625 = vor.u32 %v1623, %v1614
        %v1627 = vshll.u32 %v1527, 16
        %v1629 = vrot.slane %v1627, 1
        %v1630 = vsel %vm325, %v1625, %v1629
        %v1631 = vshrl.u32 %v1544, 16
        %v1633 = vor.u32 %v1631, %v1621
        %v1634 = vshll.u32 %v1546, 16
        %v1636 = vrot.slane %v1634, 1
        %v1637 = vsel %vm325, %v1633, %v1636
        %v1638 = vshrl.u32 %v1527, 16
        %v1640 = vor.u32 %v1638, %v1629
        %v1642 = vshll.u32 %v1529, 16
        %v1644 = vrot.slane %v1642, 1
        %v1645 = vsel %vm325, %v1640, %v1644
        %v1646 = vshrl.u32 %v1546, 16
        %v1648 = vor.u32 %v1646, %v1636
        %v1649 = vshll.u32 %v1548, 16
        %v1651 = vrot.slane %v1649, 1
        %v1652 = vsel %vm325, %v1648, %v1651
        %v1653 = vshrl.u32 %v1529, 16
        %v1655 = vor.u32 %v1653, %v1644
        %v1657 = vshll.u32 %v1531, 16
        %v1659 = vrot.slane %v1657, 1
        %v1660 = vsel %vm325, %v1655, %v1659
        %v1661 = vshrl.u32 %v1548, 16
        %v1663 = vor.u32 %v1661, %v1651
        %v1664 = vshll.u32 %v1550, 16
        %v1666 = vrot.slane %v1664, 1
        %v1667 = vsel %vm325, %v1663, %v1666
        %v1668 = vshrl.u32 %v1531, 16
        %v1670 = vor.u32 %v1668, %v1659
        %v1672 = vshll.u32 %v1533, 16
        %v1674 = vrot.slane %v1672, 1
        %v1675 = vsel %vm325, %v1670, %v1674
        %v1676 = vshrl.u32 %v1550, 16
        %v1678 = vor.u32 %v1676, %v1666
        %v1679 = vshll.u32 %v1552, 16
        %v1681 = vrot.slane %v1679, 1
        %v1682 = vsel %vm325, %v1678, %v1681
        %v1683 = vshrl.u32 %v1533, 16
        %v1685 = vor.u32 %v1683, %v1674
        %v1687 = vshll.u32 %v1535, 16
        %v1689 = vrot.slane %v1687, 1
        %v1690 = vsel %vm325, %v1685, %v1689
        %v1691 = vshrl.u32 %v1552, 16
        %v1693 = vor.u32 %v1691, %v1681
        %v1694 = vshll.u32 %v1554, 16
        %v1696 = vrot.slane %v1694, 1
        %v1697 = vsel %vm325, %v1693, %v1696
        %v1698 = vshrl.u32 %v1535, 16
        %v1700 = vor.u32 %v1698, %v1689
        %v1702 = vshll.u32 %v1534, 16
        %v1704 = vrot.slane %v1702, 1
        %v1705 = vsel %vm325, %v1700, %v1704
        %v1738 = vunpack.c.l.b16 %v1555
        %v1739 = vunpack.c.l.b16 %v1556
        %v1740 = vunpack.c.l.b16 %v1557
        %v1741 = vunpack.c.l.b16 %v1558
        %v1742 = vunpack.c.l.b16 %v1559
        %v1743 = vunpack.c.l.b16 %v1560
        %v1744 = vunpack.c.l.b16 %v1561
        %v1745 = vunpack.c.l.b16 %v1562
        %v1746 = vunpack.c.l.b16 %v1563
        %v1747 = vunpack.c.l.b16 %v1564
        %v1748 = vunpack.c.l.b16 %v1565
        %v1749 = vunpack.c.l.b16 %v1566
        %v1750 = vunpack.c.l.b16 %v1567
        %v1751 = vunpack.c.l.b16 %v1568
        %v1752 = vunpack.c.l.b16 %v1569
        %v1753 = vunpack.c.l.b16 %v1570
        %v1754 = vunpack.c.l.b16 %v1571
        %v1755 = vunpack.c.l.b16 %v1572
        %v1756 = vunpack.c.l.b16 %v1573
        %v1757 = vunpack.c.l.b16 %v1574
        %v1758 = vunpack.c.l.b16 %v1575
        %v1759 = vunpack.c.l.b16 %v1576
        %v1760 = vunpack.c.l.b16 %v1577
        %v1761 = vunpack.c.l.b16 %v1578
        %v1762 = vpack.c.b16 %v1739, %v1738
        %v1763 = vpack.c.b16 %v1741, %v1740
        %v1764 = vpack.c.b16 %v1743, %v1742
        %v1765 = vpack.c.b16 %v1745, %v1744
        %v1766 = vpack.c.b16 %v1747, %v1746
        %v1767 = vpack.c.b16 %v1749, %v1748
        %v1768 = vpack.c.b16 %v1751, %v1750
        %v1769 = vpack.c.b16 %v1753, %v1752
        %v1770 = vpack.c.b16 %v1755, %v1754
        %v1771 = vpack.c.b16 %v1757, %v1756
        %v1772 = vpack.c.b16 %v1759, %v1758
        %v1773 = vpack.c.b16 %v1761, %v1760
        %v1787 = vsel %vm436, %v1600, 0
        %v1790 = vsel %vm436, %v1615, 0
        %v1793 = vsel %vm436, %v1630, 0
        %v1796 = vsel %vm436, %v1645, 0
        %v1799 = vsel %vm436, %v1660, 0
        %v1802 = vsel %vm436, %v1675, 0
        %v1805 = vsel %vm436, %v1690, 0
        %v1808 = vsel %vm436, %v1705, 0
        %1810 = vmatprep.subr.bf16.mxu0 0
        %1811 = vmatpush1.bf16.msra.mxu0 %v1769
        %1812 = vmatprep.subr.bf16.mxu0 0
        %1813 = vmatpush1.bf16.msra.mxu0 %v1768
        %1814 = vmatprep.subr.bf16.mxu0 0
        %1815 = vmatpush1.bf16.msra.mxu0 %v1767
        %1816 = vmatprep.subr.bf16.mxu0 0
        %1817 = vmatpush1.bf16.msra.mxu0 %v1766
        %1818 = vmatprep.subr.bf16.mxu0 0
        %1819 = vmatpush1.bf16.msra.mxu0 %v1765
        %1820 = vmatprep.subr.bf16.mxu0 0
        %1821 = vmatpush1.bf16.msra.mxu0 %v1764
        %1822 = vmatprep.subr.bf16.mxu0 0
        %1823 = vmatpush1.bf16.msra.mxu0 %v1763
        %1824 = vmatprep.subr.bf16.mxu0 0
        %1825 = vmatpush1.bf16.msra.mxu0 %v1762
        %1826 = vmatprep.subr.bf16.mxu0 0
        %1827 = vmatpush2.bf16.msra.mxu0 0
        %1828 = vmatprep.subr.bf16.mxu0 0
        %1829 = vmatpush2.bf16.msra.mxu0 0
        %1830 = vmatprep.subr.bf16.mxu0 0
        %1831 = vmatpush2.bf16.msra.mxu0 0
        %1832 = vmatprep.subr.bf16.mxu0 0
        %1833 = vmatpush2.bf16.msra.mxu0 0
        %1834 = vmatprep.subr.bf16.mxu0 0
        %1835 = vmatpush2.bf16.msra.mxu0 %v1773
        %1836 = vmatprep.subr.bf16.mxu0 0
        %1837 = vmatpush2.bf16.msra.mxu0 %v1772
        %1838 = vmatprep.subr.bf16.mxu0 0
        %1839 = vmatpush2.bf16.msra.mxu0 %v1771
        %1840 = vmatprep.subr.bf16.mxu0 0
        %1841 = vmatpush2.bf16.msra.mxu0 %v1770
        %1842 = vmatprep.mubr.bf16.mxu0 %v1787
        %1843 = vmatmul.mubr.bf16.gmra.mxu0 %v1588
        %v1844 = vpop.f32.mrf.mxu0
        %v1845 = vadd.f32 0.0, %v1844
        %v1846 = vpop.f32.mrf.mxu0
        %v1847 = vpop.f32.mrf.mxu0
        %v1848 = vadd.f32 0.0, %v1847
        %v1849 = vpop.f32.mrf.mxu0
        %1850 = vmatprep.mubr.bf16.mxu0 %v1790
        %1851 = vmatmul.mubr.bf16.gmra.mxu0 %v1607
        %v1852 = vpop.f32.mrf.mxu0
        %v1853 = vadd.f32 0.0, %v1852
        %v1854 = vpop.f32.mrf.mxu0
        %v1855 = vpop.f32.mrf.mxu0
        %v1856 = vadd.f32 0.0, %v1855
        %v1857 = vpop.f32.mrf.mxu0
        %1858 = vmatprep.mubr.bf16.mxu0 %v1793
        %1859 = vmatmul.mubr.bf16.gmra.mxu0 %v1622
        %v1860 = vpop.f32.mrf.mxu0
        %v1861 = vadd.f32 0.0, %v1860
        %v1862 = vpop.f32.mrf.mxu0
        %v1863 = vpop.f32.mrf.mxu0
        %v1864 = vadd.f32 0.0, %v1863
        %v1865 = vpop.f32.mrf.mxu0
        %1866 = vmatprep.mubr.bf16.mxu0 %v1796
        %1867 = vmatmul.mubr.bf16.gmra.mxu0 %v1637
        %v1868 = vpop.f32.mrf.mxu0
        %v1869 = vadd.f32 0.0, %v1868
        %v1870 = vpop.f32.mrf.mxu0
        %v1871 = vpop.f32.mrf.mxu0
        %v1872 = vadd.f32 0.0, %v1871
        %v1873 = vpop.f32.mrf.mxu0
        %1874 = vmatprep.mubr.bf16.mxu0 %v1799
        %1875 = vmatmul.mubr.bf16.gmra.mxu0 %v1652
        %v1876 = vpop.f32.mrf.mxu0
        %v1877 = vadd.f32 0.0, %v1876
        %v1878 = vpop.f32.mrf.mxu0
        %v1879 = vpop.f32.mrf.mxu0
        %v1880 = vadd.f32 0.0, %v1879
        %v1881 = vpop.f32.mrf.mxu0
        %1882 = vmatprep.mubr.bf16.mxu0 %v1802
        %1883 = vmatmul.mubr.bf16.gmra.mxu0 %v1667
        %v1884 = vpop.f32.mrf.mxu0
        %v1885 = vadd.f32 0.0, %v1884
        %v1886 = vpop.f32.mrf.mxu0
        %v1887 = vpop.f32.mrf.mxu0
        %v1888 = vadd.f32 0.0, %v1887
        %v1889 = vpop.f32.mrf.mxu0
        %1890 = vmatprep.mubr.bf16.mxu0 %v1805
        %1891 = vmatmul.mubr.bf16.gmra.mxu0 %v1682
        %v1892 = vpop.f32.mrf.mxu0
        %v1893 = vadd.f32 0.0, %v1892
        %v1894 = vpop.f32.mrf.mxu0
        %v1895 = vpop.f32.mrf.mxu0
        %v1896 = vadd.f32 0.0, %v1895
        %v1897 = vpop.f32.mrf.mxu0
        %1898 = vmatprep.mubr.bf16.mxu0 %v1808
        %1899 = vmatmul.mubr.bf16.gmra.mxu0 %v1697
        %v1900 = vpop.f32.mrf.mxu0
        %v1901 = vadd.f32 0.0, %v1900
        %v1902 = vpop.f32.mrf.mxu0
        %v1903 = vpop.f32.mrf.mxu0
        %v1904 = vadd.f32 0.0, %v1903
        %v1905 = vpop.f32.mrf.mxu0
        %1906 = vdwg.mxu0
        %v1907 = vadd.f32 %v1301, %v1845
        %v1908 = vadd.f32 %v1304, %v1848
        %v1909 = vadd.f32 %v1309, %v1853
        %v1910 = vadd.f32 %v1312, %v1856
        %v1911 = vadd.f32 %v1317, %v1861
        %v1912 = vadd.f32 %v1320, %v1864
        %v1913 = vadd.f32 %v1325, %v1869
        %v1914 = vadd.f32 %v1328, %v1872
        %v1915 = vadd.f32 %v1333, %v1877
        %v1916 = vadd.f32 %v1336, %v1880
        %v1917 = vadd.f32 %v1341, %v1885
        %v1918 = vadd.f32 %v1344, %v1888
        %v1919 = vadd.f32 %v1349, %v1893
        %v1920 = vadd.f32 %v1352, %v1896
        %v1921 = vadd.f32 %v1357, %v1901
        %v1922 = vadd.f32 %v1360, %v1904
        %v1923 = vld [vmem:[%s2 + $0x20] sm:$0xff]
        %v1924 = vld [vmem:[%s2 + $0x28] sm:$0xff]
        %v1925 = vld [vmem:[%s2 + $0x30] sm:$0xff]
        %v1926 = vld [vmem:[%s2 + $0x38] sm:$0xff]
        %v1927 = vld [vmem:[%s2 + $0x40] sm:$0xff]
        %v1928 = vld [vmem:[%s2 + $0x48] sm:$0xff]
        %v1929 = vld [vmem:[%s2 + $0x50] sm:$0xff]
        %v1930 = vld [vmem:[%s2 + $0x58] sm:$0xff]
        %v1931 = vld [vmem:[%s2 + $0x60] sm:$0xff]
        %v1932 = vld [vmem:[%s2 + $0x68] sm:$0xff]
        %v1933 = vld [vmem:[%s2 + $0x70] sm:$0xff]
        %v1934 = vld [vmem:[%s2 + $0x78] sm:$0xff]
        %v1935 = vld [vmem:[%s2 + $0x80] sm:$0xff]
        %v1936 = vld [vmem:[%s2 + $0x88] sm:$0xff]
        %v1937 = vld [vmem:[%s2 + $0x90] sm:$0xff]
        %v1938 = vld [vmem:[%s2 + $0x98] sm:$0xff]
        %1940 = vset.pattern.permute.xlu0 0
        %1941 = vperm.xlu0 %1940, %v1923
        %v1942 = vpop.permute.xlu0 %1941
        %1945 = vset.pattern.permute.xlu0 0
        %1946 = vperm.xlu0 %1945, %v1924
        %v1947 = vpop.permute.xlu0 %1946
        %1950 = vset.pattern.permute.xlu0 0
        %1951 = vperm.xlu0 %1950, %v1925
        %v1952 = vpop.permute.xlu0 %1951
        %1955 = vset.pattern.permute.xlu0 0
        %1956 = vperm.xlu0 %1955, %v1926
        %v1957 = vpop.permute.xlu0 %1956
        %1960 = vset.pattern.permute.xlu0 0
        %1961 = vperm.xlu0 %1960, %v1927
        %v1962 = vpop.permute.xlu0 %1961
        %1965 = vset.pattern.permute.xlu0 0
        %1966 = vperm.xlu0 %1965, %v1928
        %v1967 = vpop.permute.xlu0 %1966
        %1970 = vset.pattern.permute.xlu0 0
        %1971 = vperm.xlu0 %1970, %v1929
        %v1972 = vpop.permute.xlu0 %1971
        %1975 = vset.pattern.permute.xlu0 0
        %1976 = vperm.xlu0 %1975, %v1930
        %v1977 = vpop.permute.xlu0 %1976
        %1980 = vset.pattern.permute.xlu0 0
        %1981 = vperm.xlu0 %1980, %v1931
        %v1982 = vpop.permute.xlu0 %1981
        %1985 = vset.pattern.permute.xlu0 0
        %1986 = vperm.xlu0 %1985, %v1932
        %v1987 = vpop.permute.xlu0 %1986
        %1990 = vset.pattern.permute.xlu0 0
        %1991 = vperm.xlu0 %1990, %v1933
        %v1992 = vpop.permute.xlu0 %1991
        %1995 = vset.pattern.permute.xlu0 0
        %1996 = vperm.xlu0 %1995, %v1934
        %v1997 = vpop.permute.xlu0 %1996
        %2000 = vset.pattern.permute.xlu0 0
        %2001 = vperm.xlu0 %2000, %v1935
        %v2002 = vpop.permute.xlu0 %2001
        %2005 = vset.pattern.permute.xlu0 0
        %2006 = vperm.xlu0 %2005, %v1936
        %v2007 = vpop.permute.xlu0 %2006
        %2010 = vset.pattern.permute.xlu0 0
        %2011 = vperm.xlu0 %2010, %v1937
        %v2012 = vpop.permute.xlu0 %2011
        %2015 = vset.pattern.permute.xlu0 0
        %2016 = vperm.xlu0 %2015, %v1938
        %v2017 = vpop.permute.xlu0 %2016
        %v2019 = vmul.f32 %v1907, %v1942
        %v2020 = vmul.f32 %v1908, %v1947
        %v2021 = vmul.f32 %v1909, %v1952
        %v2022 = vmul.f32 %v1910, %v1957
        %v2023 = vmul.f32 %v1911, %v1962
        %v2024 = vmul.f32 %v1912, %v1967
        %v2025 = vmul.f32 %v1913, %v1972
        %v2026 = vmul.f32 %v1914, %v1977
        %v2027 = vmul.f32 %v1915, %v1982
        %v2028 = vmul.f32 %v1916, %v1987
        %v2029 = vmul.f32 %v1917, %v1992
        %v2030 = vmul.f32 %v1918, %v1997
        %v2031 = vmul.f32 %v1919, %v2002
        %v2032 = vmul.f32 %v1920, %v2007
        %v2033 = vmul.f32 %v1921, %v2012
        %v2034 = vmul.f32 %v1922, %v2017
        %v2035 = vsel %vm436, %v2019, 0.0
        %v2036 = vsel %vm436, %v2020, 0.0
        %v2037 = vadd.f32 %v2035, %v2036
        %v2038 = vsel %vm436, %v2021, 0.0
        %v2039 = vadd.f32 %v2037, %v2038
        %v2040 = vsel %vm436, %v2022, 0.0
        %v2041 = vadd.f32 %v2039, %v2040
        %v2042 = vsel %vm436, %v2023, 0.0
        %v2043 = vadd.f32 %v2041, %v2042
        %v2044 = vsel %vm436, %v2024, 0.0
        %v2045 = vadd.f32 %v2043, %v2044
        %v2046 = vsel %vm436, %v2025, 0.0
        %v2047 = vadd.f32 %v2045, %v2046
        %v2048 = vsel %vm436, %v2026, 0.0
        %v2049 = vadd.f32 %v2047, %v2048
        %v2050 = vsel %vm436, %v2027, 0.0
        %v2051 = vadd.f32 %v2049, %v2050
        %v2052 = vsel %vm436, %v2028, 0.0
        %v2053 = vadd.f32 %v2051, %v2052
        %v2054 = vsel %vm436, %v2029, 0.0
        %v2055 = vadd.f32 %v2053, %v2054
        %v2056 = vsel %vm436, %v2030, 0.0
        %v2057 = vadd.f32 %v2055, %v2056
        %v2058 = vsel %vm436, %v2031, 0.0
        %v2059 = vadd.f32 %v2057, %v2058
        %v2060 = vsel %vm436, %v2032, 0.0
        %v2061 = vadd.f32 %v2059, %v2060
        %v2062 = vsel %vm436, %v2033, 0.0
        %v2063 = vadd.f32 %v2061, %v2062
        %v2064 = vsel %vm436, %v2034, 0.0
        %v2065 = vadd.f32 %v2063, %v2064
        %v2066 = vrot.slane %v2065, 4
        %v2067 = vadd.f32 %v2065, %v2066
        %v2068 = vrot.slane %v2067, 2
        %v2069 = vadd.f32 %v2067, %v2068
        %v2070 = vrot.slane %v2069, 1
        %v2071 = vadd.f32 %v2069, %v2070
        %v2072 = vadd.f32 %v2071, 0.0
        %v2073 = vmul.f32 %v2019, %v2019
        %v2074 = vmul.f32 %v2020, %v2020
        %v2075 = vmul.f32 %v2021, %v2021
        %v2076 = vmul.f32 %v2022, %v2022
        %v2077 = vmul.f32 %v2023, %v2023
        %v2078 = vmul.f32 %v2024, %v2024
        %v2079 = vmul.f32 %v2025, %v2025
        %v2080 = vmul.f32 %v2026, %v2026
        %v2081 = vmul.f32 %v2027, %v2027
        %v2082 = vmul.f32 %v2028, %v2028
        %v2083 = vmul.f32 %v2029, %v2029
        %v2084 = vmul.f32 %v2030, %v2030
        %v2085 = vmul.f32 %v2031, %v2031
        %v2086 = vmul.f32 %v2032, %v2032
        %v2087 = vmul.f32 %v2033, %v2033
        %v2088 = vmul.f32 %v2034, %v2034
        %v2089 = vsel %vm436, %v2073, 0.0
        %v2090 = vsel %vm436, %v2074, 0.0
        %v2091 = vadd.f32 %v2089, %v2090
        %v2092 = vsel %vm436, %v2075, 0.0
        %v2093 = vadd.f32 %v2091, %v2092
        %v2094 = vsel %vm436, %v2076, 0.0
        %v2095 = vadd.f32 %v2093, %v2094
        %v2096 = vsel %vm436, %v2077, 0.0
        %v2097 = vadd.f32 %v2095, %v2096
        %v2098 = vsel %vm436, %v2078, 0.0
        %v2099 = vadd.f32 %v2097, %v2098
        %v2100 = vsel %vm436, %v2079, 0.0
        %v2101 = vadd.f32 %v2099, %v2100
        %v2102 = vsel %vm436, %v2080, 0.0
        %v2103 = vadd.f32 %v2101, %v2102
        %v2104 = vsel %vm436, %v2081, 0.0
        %v2105 = vadd.f32 %v2103, %v2104
        %v2106 = vsel %vm436, %v2082, 0.0
        %v2107 = vadd.f32 %v2105, %v2106
        %v2108 = vsel %vm436, %v2083, 0.0
        %v2109 = vadd.f32 %v2107, %v2108
        %v2110 = vsel %vm436, %v2084, 0.0
        %v2111 = vadd.f32 %v2109, %v2110
        %v2112 = vsel %vm436, %v2085, 0.0
        %v2113 = vadd.f32 %v2111, %v2112
        %v2114 = vsel %vm436, %v2086, 0.0
        %v2115 = vadd.f32 %v2113, %v2114
        %v2116 = vsel %vm436, %v2087, 0.0
        %v2117 = vadd.f32 %v2115, %v2116
        %v2118 = vsel %vm436, %v2088, 0.0
        %v2119 = vadd.f32 %v2117, %v2118
        %v2120 = vrot.slane %v2119, 4
        %v2121 = vadd.f32 %v2119, %v2120
        %v2122 = vrot.slane %v2121, 2
        %v2123 = vadd.f32 %v2121, %v2122
        %v2124 = vrot.slane %v2123, 1
        %v2125 = vadd.f32 %v2123, %v2124
        %v2126 = vadd.f32 %v2125, 0.0
        %v2127 = vpack.c.bf16 %v2020, %v2019
        %v2128 = vpack.c.bf16 %v2022, %v2021
        %v2129 = vpack.c.bf16 %v2024, %v2023
        %v2130 = vpack.c.bf16 %v2026, %v2025
        %v2131 = vpack.c.bf16 %v2028, %v2027
        %v2132 = vpack.c.bf16 %v2030, %v2029
        %v2133 = vpack.c.bf16 %v2032, %v2031
        %v2134 = vpack.c.bf16 %v2034, %v2033
        %v2143 = vunpack.c.l.b16 %v2127
        %v2144 = vunpack.c.h.b16 %v2127
        %v2145 = vunpack.c.l.b16 %v2128
        %v2146 = vunpack.c.h.b16 %v2128
        %v2147 = vunpack.c.l.b16 %v2129
        %v2148 = vunpack.c.h.b16 %v2129
        %v2149 = vunpack.c.l.b16 %v2130
        %v2150 = vunpack.c.h.b16 %v2130
        %v2151 = vunpack.c.l.b16 %v2131
        %v2152 = vunpack.c.h.b16 %v2131
        %v2153 = vunpack.c.l.b16 %v2132
        %v2154 = vunpack.c.h.b16 %v2132
        %v2155 = vunpack.c.l.b16 %v2133
        %v2156 = vunpack.c.h.b16 %v2133
        %v2157 = vunpack.c.l.b16 %v2134
        %v2158 = vunpack.c.h.b16 %v2134
        %v2159 = vpack.c.b16 %v2143, %v2143
        %v2160 = vpack.c.b16 %v2144, %v2144
        %v2161 = vpack.c.b16 %v2145, %v2145
        %v2162 = vpack.c.b16 %v2146, %v2146
        %v2163 = vpack.c.b16 %v2147, %v2147
        %v2164 = vpack.c.b16 %v2148, %v2148
        %v2165 = vpack.c.b16 %v2149, %v2149
        %v2166 = vpack.c.b16 %v2150, %v2150
        %v2167 = vpack.c.b16 %v2151, %v2151
        %v2168 = vpack.c.b16 %v2152, %v2152
        %v2169 = vpack.c.b16 %v2153, %v2153
        %v2170 = vpack.c.b16 %v2154, %v2154
        %v2171 = vpack.c.b16 %v2155, %v2155
        %v2172 = vpack.c.b16 %v2156, %v2156
        %v2173 = vpack.c.b16 %v2157, %v2157
        %v2174 = vpack.c.b16 %v2158, %v2158
        %2191 = vst.msk [vmem:[%s243 + $0x10] sm:$0xf] %vm245, %v2159
        %2192 = vst.msk [vmem:[%s243 + $0x14] sm:$0xf] %vm245, %v2160
        %2193 = vst.msk [vmem:[%s243 + $0x18] sm:$0xf] %vm245, %v2161
        %2194 = vst.msk [vmem:[%s243 + $0x1c] sm:$0xf] %vm245, %v2162
        %2195 = vst.msk [vmem:[%s243 + $0x20] sm:$0xf] %vm245, %v2163
        %2196 = vst.msk [vmem:[%s243 + $0x24] sm:$0xf] %vm245, %v2164
        %2197 = vst.msk [vmem:[%s243 + $0x28] sm:$0xf] %vm245, %v2165
        %2198 = vst.msk [vmem:[%s243 + $0x2c] sm:$0xf] %vm245, %v2166
        %2199 = vst.msk [vmem:[%s243 + $0x30] sm:$0xf] %vm245, %v2167
        %2200 = vst.msk [vmem:[%s243 + $0x34] sm:$0xf] %vm245, %v2168
        %2201 = vst.msk [vmem:[%s243 + $0x38] sm:$0xf] %vm245, %v2169
        %2202 = vst.msk [vmem:[%s243 + $0x3c] sm:$0xf] %vm245, %v2170
        %2203 = vst.msk [vmem:[%s243 + $0x40] sm:$0xf] %vm245, %v2171
        %2204 = vst.msk [vmem:[%s243 + $0x44] sm:$0xf] %vm245, %v2172
        %2205 = vst.msk [vmem:[%s243 + $0x48] sm:$0xf] %vm245, %v2173
        %2206 = vst.msk [vmem:[%s243 + $0x4c] sm:$0xf] %vm245, %v2174
        %v2207 = vld [vmem:[%s238 + $0x44] sm:$0xc]
        %v2208 = vld [vmem:[%s238 + $0x48] sm:$0xf]
        %v2209 = vld [vmem:[%s238 + $0x4c] sm:$0xf]
        %v2210 = vld [vmem:[%s238 + $0x50] sm:$0xf]
        %v2211 = vld [vmem:[%s238 + $0x54] sm:$0xf]
        %v2212 = vld [vmem:[%s238 + $0x58] sm:$0xf]
        %v2213 = vld [vmem:[%s238 + $0x5c] sm:$0xf]
        %v2214 = vld [vmem:[%s238 + $0x60] sm:$0xf]
        %v2215 = vld [vmem:[%s238 + $0x64] sm:$0xf]
        %v2216 = vld [vmem:[%s238 + $0x68] sm:$0xf]
        %v2217 = vld [vmem:[%s238 + $0x6c] sm:$0xf]
        %v2218 = vld [vmem:[%s238 + $0x70] sm:$0xf]
        %v2219 = vld [vmem:[%s238 + $0x74] sm:$0xf]
        %v2220 = vld [vmem:[%s238 + $0x78] sm:$0xf]
        %v2221 = vld [vmem:[%s238 + $0x7c] sm:$0xf]
        %v2222 = vld [vmem:[%s238 + $0x80] sm:$0xf]
        %v2223 = vld [vmem:[%s238 + $0x84] sm:$0x7]
        %v2224 = vld [vmem:[%s238 + $0x44] sm:$0x8]
        %v2225 = vld [vmem:[%s238 + $0x84] sm:$0xf]
        %v2243 = vunpack.c.l.b16 %v2207
        %v2244 = vunpack.c.l.b16 %v2208
        %v2245 = vunpack.c.l.b16 %v2209
        %v2246 = vunpack.c.l.b16 %v2210
        %v2247 = vunpack.c.l.b16 %v2211
        %v2248 = vunpack.c.l.b16 %v2212
        %v2249 = vunpack.c.l.b16 %v2213
        %v2250 = vunpack.c.l.b16 %v2214
        %v2251 = vunpack.c.l.b16 %v2215
        %v2252 = vunpack.c.l.b16 %v2216
        %v2253 = vunpack.c.l.b16 %v2217
        %v2254 = vunpack.c.l.b16 %v2218
        %v2255 = vunpack.c.l.b16 %v2219
        %v2256 = vunpack.c.l.b16 %v2220
        %v2257 = vunpack.c.l.b16 %v2221
        %v2258 = vunpack.c.l.b16 %v2222
        %v2259 = vunpack.c.l.b16 %v2223
        %v2260 = vpack.c.b16 %v2244, %v2243
        %v2261 = vpack.c.b16 %v2246, %v2245
        %v2262 = vpack.c.b16 %v2248, %v2247
        %v2263 = vpack.c.b16 %v2250, %v2249
        %v2264 = vpack.c.b16 %v2252, %v2251
        %v2265 = vpack.c.b16 %v2254, %v2253
        %v2266 = vpack.c.b16 %v2256, %v2255
        %v2267 = vpack.c.b16 %v2258, %v2257
        %v2268 = vpack.c.b16 %v2259, %v2259
        %v2270 = vunpack.c.l.b16 %v2224
        %v2271 = vpack.c.b16 %v2244, %v2270
        %v2273 = vshrl.u32 %v2271, 16
        %v2275 = vshll.u32 %v2271, 16
        %v2277 = vrot.slane %v2275, 1
        %v2278 = vor.u32 %v2273, %v2277
        %v2280 = vshll.u32 %v2261, 16
        %v2282 = vrot.slane %v2280, 1
        %v2283 = vsel %vm325, %v2278, %v2282
        %v2284 = vshrl.u32 %v2261, 16
        %v2286 = vor.u32 %v2284, %v2282
        %v2288 = vshll.u32 %v2262, 16
        %v2290 = vrot.slane %v2288, 1
        %v2291 = vsel %vm325, %v2286, %v2290
        %v2292 = vshrl.u32 %v2262, 16
        %v2294 = vor.u32 %v2292, %v2290
        %v2296 = vshll.u32 %v2263, 16
        %v2298 = vrot.slane %v2296, 1
        %v2299 = vsel %vm325, %v2294, %v2298
        %v2300 = vshrl.u32 %v2263, 16
        %v2302 = vor.u32 %v2300, %v2298
        %v2304 = vshll.u32 %v2264, 16
        %v2306 = vrot.slane %v2304, 1
        %v2307 = vsel %vm325, %v2302, %v2306
        %v2308 = vshrl.u32 %v2264, 16
        %v2310 = vor.u32 %v2308, %v2306
        %v2312 = vshll.u32 %v2265, 16
        %v2314 = vrot.slane %v2312, 1
        %v2315 = vsel %vm325, %v2310, %v2314
        %v2316 = vshrl.u32 %v2265, 16
        %v2318 = vor.u32 %v2316, %v2314
        %v2320 = vshll.u32 %v2266, 16
        %v2322 = vrot.slane %v2320, 1
        %v2323 = vsel %vm325, %v2318, %v2322
        %v2324 = vshrl.u32 %v2266, 16
        %v2326 = vor.u32 %v2324, %v2322
        %v2328 = vshll.u32 %v2267, 16
        %v2330 = vrot.slane %v2328, 1
        %v2331 = vsel %vm325, %v2326, %v2330
        %v2332 = vshrl.u32 %v2267, 16
        %v2334 = vor.u32 %v2332, %v2330
        %v2336 = vshll.u32 %v2268, 16
        %v2338 = vrot.slane %v2336, 1
        %v2339 = vsel %vm325, %v2334, %v2338
        %v2340 = vshrl.u32 %v2268, 16
        %v2342 = vor.u32 %v2340, %v2338
        %2343 = vrot.lane.b32.xlu0 %v2283, 64
        %v2344 = vpop.permute.xlu0 %2343
        %2345 = vrot.lane.b32.xlu0 %v2291, 64
        %v2346 = vpop.permute.xlu0 %2345
        %2347 = vrot.lane.b32.xlu0 %v2299, 64
        %v2348 = vpop.permute.xlu0 %2347
        %2349 = vrot.lane.b32.xlu0 %v2307, 64
        %v2350 = vpop.permute.xlu0 %2349
        %2351 = vrot.lane.b32.xlu0 %v2315, 64
        %v2352 = vpop.permute.xlu0 %2351
        %2353 = vrot.lane.b32.xlu0 %v2323, 64
        %v2354 = vpop.permute.xlu0 %2353
        %2355 = vrot.lane.b32.xlu0 %v2331, 64
        %v2356 = vpop.permute.xlu0 %2355
        %2357 = vrot.lane.b32.xlu0 %v2339, 64
        %v2358 = vpop.permute.xlu0 %2357
        %2359 = vrot.lane.b32.xlu0 %v2342, 64
        %v2360 = vpop.permute.xlu0 %2359
        %v2362 = vunpack.c.l.b16 %v2225
        %v2363 = vpack.c.b16 %v2362, %v2362
        %v2364 = vrot.slane %v2271, 1
        %v2365 = vrot.slane %v2261, 1
        %v2366 = vsel %vm418, %v2364, %v2365
        %v2367 = vrot.slane %v2262, 1
        %v2368 = vsel %vm418, %v2365, %v2367
        %v2369 = vrot.slane %v2263, 1
        %v2370 = vsel %vm418, %v2367, %v2369
        %v2371 = vrot.slane %v2264, 1
        %v2372 = vsel %vm418, %v2369, %v2371
        %v2373 = vrot.slane %v2265, 1
        %v2374 = vsel %vm418, %v2371, %v2373
        %v2375 = vrot.slane %v2266, 1
        %v2376 = vsel %vm418, %v2373, %v2375
        %v2377 = vrot.slane %v2267, 1
        %v2378 = vsel %vm418, %v2375, %v2377
        %v2379 = vrot.slane %v2363, 1
        %v2380 = vsel %vm418, %v2377, %v2379
        %v2383 = vsel %vm436, %v2260, %v2344
        %v2385 = vsel %vm436, %v2261, %v2346
        %v2387 = vsel %vm436, %v2262, %v2348
        %v2389 = vsel %vm436, %v2263, %v2350
        %v2391 = vsel %vm436, %v2264, %v2352
        %v2393 = vsel %vm436, %v2265, %v2354
        %v2395 = vsel %vm436, %v2266, %v2356
        %v2397 = vsel %vm436, %v2267, %v2358
        %v2399 = vsel %vm436, %v2268, %v2360
        %v2400 = vld [vmem:[%s1] sm:$0xf]
        %v2401 = vld [vmem:[%s1 + $0x4] sm:$0xf]
        %v2402 = vld [vmem:[%s1 + $0x8] sm:$0xf]
        %v2403 = vld [vmem:[%s1 + $0xc] sm:$0xf]
        %v2404 = vld [vmem:[%s1 + $0x10] sm:$0xf]
        %v2405 = vld [vmem:[%s1 + $0x14] sm:$0xf]
        %v2406 = vld [vmem:[%s1 + $0x18] sm:$0xf]
        %v2407 = vld [vmem:[%s1 + $0x1c] sm:$0xf]
        %v2408 = vld [vmem:[%s1 + $0x20] sm:$0xf]
        %v2409 = vld [vmem:[%s1 + $0x24] sm:$0xf]
        %v2410 = vld [vmem:[%s1 + $0x28] sm:$0xf]
        %v2411 = vld [vmem:[%s1 + $0x2c] sm:$0xf]
        %v2412 = vld [vmem:[%s1 + $0x30] sm:$0xf]
        %v2413 = vld [vmem:[%s1 + $0x34] sm:$0xf]
        %v2414 = vld [vmem:[%s1 + $0x38] sm:$0xf]
        %v2415 = vld [vmem:[%s1 + $0x3c] sm:$0xf]
        %v2416 = vld [vmem:[%s1 + $0x40] sm:$0xf]
        %v2417 = vld [vmem:[%s1 + $0x44] sm:$0xf]
        %v2418 = vld [vmem:[%s1 + $0x48] sm:$0xf]
        %v2419 = vld [vmem:[%s1 + $0x4c] sm:$0xf]
        %v2420 = vld [vmem:[%s1 + $0x50] sm:$0xf]
        %v2421 = vld [vmem:[%s1 + $0x54] sm:$0xf]
        %v2422 = vld [vmem:[%s1 + $0x58] sm:$0xf]
        %v2423 = vld [vmem:[%s1 + $0x5c] sm:$0xf]
        %v2424 = vld [vmem:[%s238 + $0x4c] sm:$0x8]
        %v2425 = vld [vmem:[%s238 + $0x88] sm:$0xf]
        %v2426 = vld [vmem:[%s238 + $0x8c] sm:$0xf]
        %v2427 = vld [vmem:[%s238 + $0x90] sm:$0x1]
        %v2431 = vunpack.c.l.b16 %v2424
        %v2432 = vunpack.c.l.b16 %v2425
        %v2433 = vunpack.c.l.b16 %v2426
        %v2434 = vpack.c.b16 %v2246, %v2431
        %v2435 = vpack.c.b16 %v2432, %v2362
        %v2436 = vpack.c.b16 %v2433, %v2433
        %v2437 = vpack.c.b16 %v2247, %v2246
        %v2438 = vpack.c.b16 %v2249, %v2248
        %v2439 = vpack.c.b16 %v2251, %v2250
        %v2440 = vpack.c.b16 %v2253, %v2252
        %v2441 = vpack.c.b16 %v2255, %v2254
        %v2442 = vpack.c.b16 %v2257, %v2256
        %v2443 = vpack.c.b16 %v2362, %v2258
        %v2444 = vpack.c.b16 %v2433, %v2432
        %v2446 = vshrl.u32 %v2437, 16
        %v2448 = vrot.slane %v2446, 4
        %v2449 = vshll.u32 %v2437, 16
        %v2451 = vrot.slane %v2449, 5
        %v2452 = vor.u32 %v2448, %v2451
        %v2454 = vshrl.u32 %v2438, 16
        %v2456 = vrot.slane %v2454, 4
        %v2457 = vshll.u32 %v2438, 16
        %v2459 = vrot.slane %v2457, 5
        %v2460 = vor.u32 %v2456, %v2459
        %v2461 = vsel %vm501, %v2452, %v2460
        %v2463 = vshrl.u32 %v2439, 16
        %v2465 = vrot.slane %v2463, 4
        %v2466 = vshll.u32 %v2439, 16
        %v2468 = vrot.slane %v2466, 5
        %v2469 = vor.u32 %v2465, %v2468
        %v2470 = vsel %vm501, %v2460, %v2469
        %v2472 = vshrl.u32 %v2440, 16
        %v2474 = vrot.slane %v2472, 4
        %v2475 = vshll.u32 %v2440, 16
        %v2477 = vrot.slane %v2475, 5
        %v2478 = vor.u32 %v2474, %v2477
        %v2479 = vsel %vm501, %v2469, %v2478
        %v2481 = vshrl.u32 %v2441, 16
        %v2483 = vrot.slane %v2481, 4
        %v2484 = vshll.u32 %v2441, 16
        %v2486 = vrot.slane %v2484, 5
        %v2487 = vor.u32 %v2483, %v2486
        %v2488 = vsel %vm501, %v2478, %v2487
        %v2490 = vshrl.u32 %v2442, 16
        %v2492 = vrot.slane %v2490, 4
        %v2493 = vshll.u32 %v2442, 16
        %v2495 = vrot.slane %v2493, 5
        %v2496 = vor.u32 %v2492, %v2495
        %v2497 = vsel %vm501, %v2487, %v2496
        %v2499 = vshrl.u32 %v2443, 16
        %v2501 = vrot.slane %v2499, 4
        %v2502 = vshll.u32 %v2443, 16
        %v2504 = vrot.slane %v2502, 5
        %v2505 = vor.u32 %v2501, %v2504
        %v2506 = vsel %vm501, %v2496, %v2505
        %v2508 = vshrl.u32 %v2444, 16
        %v2510 = vrot.slane %v2508, 4
        %v2511 = vshll.u32 %v2444, 16
        %v2513 = vrot.slane %v2511, 5
        %v2514 = vor.u32 %v2510, %v2513
        %v2515 = vsel %vm501, %v2505, %v2514
        %2516 = vrot.lane.b32.xlu0 %v2452, 64
        %v2517 = vpop.permute.xlu0 %2516
        %2518 = vrot.lane.b32.xlu0 %v2461, 64
        %v2519 = vpop.permute.xlu0 %2518
        %2520 = vrot.lane.b32.xlu0 %v2470, 64
        %v2521 = vpop.permute.xlu0 %2520
        %2522 = vrot.lane.b32.xlu0 %v2479, 64
        %v2523 = vpop.permute.xlu0 %2522
        %2524 = vrot.lane.b32.xlu0 %v2488, 64
        %v2525 = vpop.permute.xlu0 %2524
        %2526 = vrot.lane.b32.xlu0 %v2497, 64
        %v2527 = vpop.permute.xlu0 %2526
        %2528 = vrot.lane.b32.xlu0 %v2506, 64
        %v2529 = vpop.permute.xlu0 %2528
        %2530 = vrot.lane.b32.xlu0 %v2515, 64
        %v2531 = vpop.permute.xlu0 %2530
        %2532 = vrot.lane.b32.xlu0 %v2514, 64
        %v2533 = vpop.permute.xlu0 %2532
        %v2535 = vunpack.c.l.b16 %v2427
        %v2536 = vpack.c.b16 %v2535, %v2535
        %v2537 = vrot.slane %v2437, 5
        %v2538 = vrot.slane %v2438, 5
        %v2539 = vsel %vm594, %v2537, %v2538
        %v2540 = vrot.slane %v2439, 5
        %v2541 = vsel %vm594, %v2538, %v2540
        %v2542 = vrot.slane %v2440, 5
        %v2543 = vsel %vm594, %v2540, %v2542
        %v2544 = vrot.slane %v2441, 5
        %v2545 = vsel %vm594, %v2542, %v2544
        %v2546 = vrot.slane %v2442, 5
        %v2547 = vsel %vm594, %v2544, %v2546
        %v2548 = vrot.slane %v2443, 5
        %v2549 = vsel %vm594, %v2546, %v2548
        %v2550 = vrot.slane %v2444, 5
        %v2551 = vsel %vm594, %v2548, %v2550
        %v2552 = vrot.slane %v2536, 5
        %v2553 = vsel %vm594, %v2550, %v2552
        %v2556 = vsel %vm436, %v2434, %v2517
        %v2558 = vsel %vm436, %v2262, %v2519
        %v2560 = vsel %vm436, %v2263, %v2521
        %v2562 = vsel %vm436, %v2264, %v2523
        %v2564 = vsel %vm436, %v2265, %v2525
        %v2566 = vsel %vm436, %v2266, %v2527
        %v2568 = vsel %vm436, %v2267, %v2529
        %v2571 = vsel %vm436, %v2435, %v2531
        %v2574 = vsel %vm436, %v2436, %v2533
        %v2575 = vld [vmem:[%s1 + $0x60] sm:$0xf]
        %v2576 = vld [vmem:[%s1 + $0x64] sm:$0xf]
        %v2577 = vld [vmem:[%s1 + $0x68] sm:$0xf]
        %v2578 = vld [vmem:[%s1 + $0x6c] sm:$0xf]
        %v2579 = vld [vmem:[%s1 + $0x70] sm:$0xf]
        %v2580 = vld [vmem:[%s1 + $0x74] sm:$0xf]
        %v2581 = vld [vmem:[%s1 + $0x78] sm:$0xf]
        %v2582 = vld [vmem:[%s1 + $0x7c] sm:$0xf]
        %v2583 = vld [vmem:[%s1 + $0x80] sm:$0xf]
        %v2584 = vld [vmem:[%s1 + $0x84] sm:$0xf]
        %v2585 = vld [vmem:[%s1 + $0x88] sm:$0xf]
        %v2586 = vld [vmem:[%s1 + $0x8c] sm:$0xf]
        %v2587 = vld [vmem:[%s1 + $0x90] sm:$0xf]
        %v2588 = vld [vmem:[%s1 + $0x94] sm:$0xf]
        %v2589 = vld [vmem:[%s1 + $0x98] sm:$0xf]
        %v2590 = vld [vmem:[%s1 + $0x9c] sm:$0xf]
        %v2591 = vld [vmem:[%s1 + $0xa0] sm:$0xf]
        %v2592 = vld [vmem:[%s1 + $0xa4] sm:$0xf]
        %v2593 = vld [vmem:[%s1 + $0xa8] sm:$0xf]
        %v2594 = vld [vmem:[%s1 + $0xac] sm:$0xf]
        %v2595 = vld [vmem:[%s1 + $0xb0] sm:$0xf]
        %v2596 = vld [vmem:[%s1 + $0xb4] sm:$0xf]
        %v2597 = vld [vmem:[%s1 + $0xb8] sm:$0xf]
        %v2598 = vld [vmem:[%s1 + $0xbc] sm:$0xf]
        %v2599 = vshrl.u32 %v2556, 16
        %v2601 = vrot.slane %v2599, 3
        %v2602 = vshll.u32 %v2556, 16
        %v2604 = vrot.slane %v2602, 4
        %v2605 = vor.u32 %v2601, %v2604
        %v2606 = vshrl.u32 %v2558, 16
        %v2608 = vrot.slane %v2606, 3
        %v2609 = vshll.u32 %v2558, 16
        %v2611 = vrot.slane %v2609, 4
        %v2612 = vor.u32 %v2608, %v2611
        %v2613 = vsel %vm657, %v2605, %v2612
        %v2615 = vshrl.u32 %v2537, 16
        %v2617 = vrot.slane %v2615, 3
        %v2618 = vshll.u32 %v2537, 16
        %v2620 = vrot.slane %v2618, 4
        %v2621 = vor.u32 %v2617, %v2620
        %v2623 = vshrl.u32 %v2539, 16
        %v2625 = vrot.slane %v2623, 3
        %v2626 = vshll.u32 %v2539, 16
        %v2628 = vrot.slane %v2626, 4
        %v2629 = vor.u32 %v2625, %v2628
        %v2630 = vsel %vm657, %v2621, %v2629
        %v2631 = vshrl.u32 %v2560, 16
        %v2633 = vrot.slane %v2631, 3
        %v2634 = vshll.u32 %v2560, 16
        %v2636 = vrot.slane %v2634, 4
        %v2637 = vor.u32 %v2633, %v2636
        %v2638 = vsel %vm657, %v2612, %v2637
        %v2640 = vshrl.u32 %v2541, 16
        %v2642 = vrot.slane %v2640, 3
        %v2643 = vshll.u32 %v2541, 16
        %v2645 = vrot.slane %v2643, 4
        %v2646 = vor.u32 %v2642, %v2645
        %v2647 = vsel %vm657, %v2629, %v2646
        %v2648 = vshrl.u32 %v2562, 16
        %v2650 = vrot.slane %v2648, 3
        %v2651 = vshll.u32 %v2562, 16
        %v2653 = vrot.slane %v2651, 4
        %v2654 = vor.u32 %v2650, %v2653
        %v2655 = vsel %vm657, %v2637, %v2654
        %v2657 = vshrl.u32 %v2543, 16
        %v2659 = vrot.slane %v2657, 3
        %v2660 = vshll.u32 %v2543, 16
        %v2662 = vrot.slane %v2660, 4
        %v2663 = vor.u32 %v2659, %v2662
        %v2664 = vsel %vm657, %v2646, %v2663
        %v2665 = vshrl.u32 %v2564, 16
        %v2667 = vrot.slane %v2665, 3
        %v2668 = vshll.u32 %v2564, 16
        %v2670 = vrot.slane %v2668, 4
        %v2671 = vor.u32 %v2667, %v2670
        %v2672 = vsel %vm657, %v2654, %v2671
        %v2674 = vshrl.u32 %v2545, 16
        %v2676 = vrot.slane %v2674, 3
        %v2677 = vshll.u32 %v2545, 16
        %v2679 = vrot.slane %v2677, 4
        %v2680 = vor.u32 %v2676, %v2679
        %v2681 = vsel %vm657, %v2663, %v2680
        %v2682 = vshrl.u32 %v2566, 16
        %v2684 = vrot.slane %v2682, 3
        %v2685 = vshll.u32 %v2566, 16
        %v2687 = vrot.slane %v2685, 4
        %v2688 = vor.u32 %v2684, %v2687
        %v2689 = vsel %vm657, %v2671, %v2688
        %v2691 = vshrl.u32 %v2547, 16
        %v2693 = vrot.slane %v2691, 3
        %v2694 = vshll.u32 %v2547, 16
        %v2696 = vrot.slane %v2694, 4
        %v2697 = vor.u32 %v2693, %v2696
        %v2698 = vsel %vm657, %v2680, %v2697
        %v2699 = vshrl.u32 %v2568, 16
        %v2701 = vrot.slane %v2699, 3
        %v2702 = vshll.u32 %v2568, 16
        %v2704 = vrot.slane %v2702, 4
        %v2705 = vor.u32 %v2701, %v2704
        %v2706 = vsel %vm657, %v2688, %v2705
        %v2708 = vshrl.u32 %v2549, 16
        %v2710 = vrot.slane %v2708, 3
        %v2711 = vshll.u32 %v2549, 16
        %v2713 = vrot.slane %v2711, 4
        %v2714 = vor.u32 %v2710, %v2713
        %v2715 = vsel %vm657, %v2697, %v2714
        %v2716 = vshrl.u32 %v2571, 16
        %v2718 = vrot.slane %v2716, 3
        %v2719 = vshll.u32 %v2571, 16
        %v2721 = vrot.slane %v2719, 4
        %v2722 = vor.u32 %v2718, %v2721
        %v2723 = vsel %vm657, %v2705, %v2722
        %v2725 = vshrl.u32 %v2551, 16
        %v2727 = vrot.slane %v2725, 3
        %v2728 = vshll.u32 %v2551, 16
        %v2730 = vrot.slane %v2728, 4
        %v2731 = vor.u32 %v2727, %v2730
        %v2732 = vsel %vm657, %v2714, %v2731
        %v2733 = vshrl.u32 %v2574, 16
        %v2735 = vrot.slane %v2733, 3
        %v2736 = vshll.u32 %v2574, 16
        %v2738 = vrot.slane %v2736, 4
        %v2739 = vor.u32 %v2735, %v2738
        %v2740 = vsel %vm657, %v2722, %v2739
        %v2742 = vshrl.u32 %v2553, 16
        %v2744 = vrot.slane %v2742, 3
        %v2745 = vshll.u32 %v2553, 16
        %v2747 = vrot.slane %v2745, 4
        %v2748 = vor.u32 %v2744, %v2747
        %v2749 = vsel %vm657, %v2731, %v2748
        %v2782 = vunpack.c.l.b16 %v2575
        %v2783 = vunpack.c.l.b16 %v2576
        %v2784 = vunpack.c.l.b16 %v2577
        %v2785 = vunpack.c.l.b16 %v2578
        %v2786 = vunpack.c.l.b16 %v2579
        %v2787 = vunpack.c.l.b16 %v2580
        %v2788 = vunpack.c.l.b16 %v2581
        %v2789 = vunpack.c.l.b16 %v2582
        %v2790 = vunpack.c.l.b16 %v2583
        %v2791 = vunpack.c.l.b16 %v2584
        %v2792 = vunpack.c.l.b16 %v2585
        %v2793 = vunpack.c.l.b16 %v2586
        %v2794 = vunpack.c.l.b16 %v2587
        %v2795 = vunpack.c.l.b16 %v2588
        %v2796 = vunpack.c.l.b16 %v2589
        %v2797 = vunpack.c.l.b16 %v2590
        %v2798 = vunpack.c.l.b16 %v2591
        %v2799 = vunpack.c.l.b16 %v2592
        %v2800 = vunpack.c.l.b16 %v2593
        %v2801 = vunpack.c.l.b16 %v2594
        %v2802 = vunpack.c.l.b16 %v2595
        %v2803 = vunpack.c.l.b16 %v2596
        %v2804 = vunpack.c.l.b16 %v2597
        %v2805 = vunpack.c.l.b16 %v2598
        %v2806 = vpack.c.b16 %v2783, %v2782
        %v2807 = vpack.c.b16 %v2785, %v2784
        %v2808 = vpack.c.b16 %v2787, %v2786
        %v2809 = vpack.c.b16 %v2789, %v2788
        %v2810 = vpack.c.b16 %v2791, %v2790
        %v2811 = vpack.c.b16 %v2793, %v2792
        %v2812 = vpack.c.b16 %v2795, %v2794
        %v2813 = vpack.c.b16 %v2797, %v2796
        %v2814 = vpack.c.b16 %v2799, %v2798
        %v2815 = vpack.c.b16 %v2801, %v2800
        %v2816 = vpack.c.b16 %v2803, %v2802
        %v2817 = vpack.c.b16 %v2805, %v2804
        %v2831 = vsel %vm436, %v2630, 0
        %v2834 = vsel %vm436, %v2647, 0
        %v2837 = vsel %vm436, %v2664, 0
        %v2840 = vsel %vm436, %v2681, 0
        %v2843 = vsel %vm436, %v2698, 0
        %v2846 = vsel %vm436, %v2715, 0
        %v2849 = vsel %vm436, %v2732, 0
        %v2852 = vsel %vm436, %v2749, 0
        %2854 = vmatprep.subr.bf16.mxu0 0
        %2855 = vmatpush1.bf16.msra.mxu0 %v2813
        %2856 = vmatprep.subr.bf16.mxu0 0
        %2857 = vmatpush1.bf16.msra.mxu0 %v2812
        %2858 = vmatprep.subr.bf16.mxu0 0
        %2859 = vmatpush1.bf16.msra.mxu0 %v2811
        %2860 = vmatprep.subr.bf16.mxu0 0
        %2861 = vmatpush1.bf16.msra.mxu0 %v2810
        %2862 = vmatprep.subr.bf16.mxu0 0
        %2863 = vmatpush1.bf16.msra.mxu0 %v2809
        %2864 = vmatprep.subr.bf16.mxu0 0
        %2865 = vmatpush1.bf16.msra.mxu0 %v2808
        %2866 = vmatprep.subr.bf16.mxu0 0
        %2867 = vmatpush1.bf16.msra.mxu0 %v2807
        %2868 = vmatprep.subr.bf16.mxu0 0
        %2869 = vmatpush1.bf16.msra.mxu0 %v2806
        %2870 = vmatprep.subr.bf16.mxu0 0
        %2871 = vmatpush2.bf16.msra.mxu0 0
        %2872 = vmatprep.subr.bf16.mxu0 0
        %2873 = vmatpush2.bf16.msra.mxu0 0
        %2874 = vmatprep.subr.bf16.mxu0 0
        %2875 = vmatpush2.bf16.msra.mxu0 0
        %2876 = vmatprep.subr.bf16.mxu0 0
        %2877 = vmatpush2.bf16.msra.mxu0 0
        %2878 = vmatprep.subr.bf16.mxu0 0
        %2879 = vmatpush2.bf16.msra.mxu0 %v2817
        %2880 = vmatprep.subr.bf16.mxu0 0
        %2881 = vmatpush2.bf16.msra.mxu0 %v2816
        %2882 = vmatprep.subr.bf16.mxu0 0
        %2883 = vmatpush2.bf16.msra.mxu0 %v2815
        %2884 = vmatprep.subr.bf16.mxu0 0
        %2885 = vmatpush2.bf16.msra.mxu0 %v2814
        %2886 = vmatprep.mubr.bf16.mxu0 %v2831
        %2887 = vmatmul.mubr.bf16.gmra.mxu0 %v2613
        %v2888 = vpop.f32.mrf.mxu0
        %v2889 = vadd.f32 0.0, %v2888
        %v2890 = vpop.f32.mrf.mxu0
        %v2891 = vpop.f32.mrf.mxu0
        %v2892 = vadd.f32 0.0, %v2891
        %v2893 = vpop.f32.mrf.mxu0
        %2894 = vmatprep.mubr.bf16.mxu0 %v2834
        %2895 = vmatmul.mubr.bf16.gmra.mxu0 %v2638
        %v2896 = vpop.f32.mrf.mxu0
        %v2897 = vadd.f32 0.0, %v2896
        %v2898 = vpop.f32.mrf.mxu0
        %v2899 = vpop.f32.mrf.mxu0
        %v2900 = vadd.f32 0.0, %v2899
        %v2901 = vpop.f32.mrf.mxu0
        %2902 = vmatprep.mubr.bf16.mxu0 %v2837
        %2903 = vmatmul.mubr.bf16.gmra.mxu0 %v2655
        %v2904 = vpop.f32.mrf.mxu0
        %v2905 = vadd.f32 0.0, %v2904
        %v2906 = vpop.f32.mrf.mxu0
        %v2907 = vpop.f32.mrf.mxu0
        %v2908 = vadd.f32 0.0, %v2907
        %v2909 = vpop.f32.mrf.mxu0
        %2910 = vmatprep.mubr.bf16.mxu0 %v2840
        %2911 = vmatmul.mubr.bf16.gmra.mxu0 %v2672
        %v2912 = vpop.f32.mrf.mxu0
        %v2913 = vadd.f32 0.0, %v2912
        %v2914 = vpop.f32.mrf.mxu0
        %v2915 = vpop.f32.mrf.mxu0
        %v2916 = vadd.f32 0.0, %v2915
        %v2917 = vpop.f32.mrf.mxu0
        %2918 = vmatprep.mubr.bf16.mxu0 %v2843
        %2919 = vmatmul.mubr.bf16.gmra.mxu0 %v2689
        %v2920 = vpop.f32.mrf.mxu0
        %v2921 = vadd.f32 0.0, %v2920
        %v2922 = vpop.f32.mrf.mxu0
        %v2923 = vpop.f32.mrf.mxu0
        %v2924 = vadd.f32 0.0, %v2923
        %v2925 = vpop.f32.mrf.mxu0
        %2926 = vmatprep.mubr.bf16.mxu0 %v2846
        %2927 = vmatmul.mubr.bf16.gmra.mxu0 %v2706
        %v2928 = vpop.f32.mrf.mxu0
        %v2929 = vadd.f32 0.0, %v2928
        %v2930 = vpop.f32.mrf.mxu0
        %v2931 = vpop.f32.mrf.mxu0
        %v2932 = vadd.f32 0.0, %v2931
        %v2933 = vpop.f32.mrf.mxu0
        %2934 = vmatprep.mubr.bf16.mxu0 %v2849
        %2935 = vmatmul.mubr.bf16.gmra.mxu0 %v2723
        %v2936 = vpop.f32.mrf.mxu0
        %v2937 = vadd.f32 0.0, %v2936
        %v2938 = vpop.f32.mrf.mxu0
        %v2939 = vpop.f32.mrf.mxu0
        %v2940 = vadd.f32 0.0, %v2939
        %v2941 = vpop.f32.mrf.mxu0
        %2942 = vmatprep.mubr.bf16.mxu0 %v2852
        %2943 = vmatmul.mubr.bf16.gmra.mxu0 %v2740
        %v2944 = vpop.f32.mrf.mxu0
        %v2945 = vadd.f32 0.0, %v2944
        %v2946 = vpop.f32.mrf.mxu0
        %v2947 = vpop.f32.mrf.mxu0
        %v2948 = vadd.f32 0.0, %v2947
        %v2949 = vpop.f32.mrf.mxu0
        %2950 = vdwg.mxu0
        %v2951 = vshrl.u32 %v2383, 16
        %v2953 = vrot.slane %v2951, 2
        %v2954 = vshll.u32 %v2383, 16
        %v2956 = vrot.slane %v2954, 3
        %v2957 = vor.u32 %v2953, %v2956
        %v2958 = vshrl.u32 %v2385, 16
        %v2960 = vrot.slane %v2958, 2
        %v2961 = vshll.u32 %v2385, 16
        %v2963 = vrot.slane %v2961, 3
        %v2964 = vor.u32 %v2960, %v2963
        %v2965 = vsel %vm1010, %v2957, %v2964
        %v2967 = vshrl.u32 %v2366, 16
        %v2969 = vrot.slane %v2967, 2
        %v2970 = vshll.u32 %v2366, 16
        %v2972 = vrot.slane %v2970, 3
        %v2973 = vor.u32 %v2969, %v2972
        %v2975 = vshrl.u32 %v2368, 16
        %v2977 = vrot.slane %v2975, 2
        %v2978 = vshll.u32 %v2368, 16
        %v2980 = vrot.slane %v2978, 3
        %v2981 = vor.u32 %v2977, %v2980
        %v2982 = vsel %vm1010, %v2973, %v2981
        %v2983 = vshrl.u32 %v2387, 16
        %v2985 = vrot.slane %v2983, 2
        %v2986 = vshll.u32 %v2387, 16
        %v2988 = vrot.slane %v2986, 3
        %v2989 = vor.u32 %v2985, %v2988
        %v2990 = vsel %vm1010, %v2964, %v2989
        %v2992 = vshrl.u32 %v2370, 16
        %v2994 = vrot.slane %v2992, 2
        %v2995 = vshll.u32 %v2370, 16
        %v2997 = vrot.slane %v2995, 3
        %v2998 = vor.u32 %v2994, %v2997
        %v2999 = vsel %vm1010, %v2981, %v2998
        %v3000 = vshrl.u32 %v2389, 16
        %v3002 = vrot.slane %v3000, 2
        %v3003 = vshll.u32 %v2389, 16
        %v3005 = vrot.slane %v3003, 3
        %v3006 = vor.u32 %v3002, %v3005
        %v3007 = vsel %vm1010, %v2989, %v3006
        %v3009 = vshrl.u32 %v2372, 16
        %v3011 = vrot.slane %v3009, 2
        %v3012 = vshll.u32 %v2372, 16
        %v3014 = vrot.slane %v3012, 3
        %v3015 = vor.u32 %v3011, %v3014
        %v3016 = vsel %vm1010, %v2998, %v3015
        %v3017 = vshrl.u32 %v2391, 16
        %v3019 = vrot.slane %v3017, 2
        %v3020 = vshll.u32 %v2391, 16
        %v3022 = vrot.slane %v3020, 3
        %v3023 = vor.u32 %v3019, %v3022
        %v3024 = vsel %vm1010, %v3006, %v3023
        %v3026 = vshrl.u32 %v2374, 16
        %v3028 = vrot.slane %v3026, 2
        %v3029 = vshll.u32 %v2374, 16
        %v3031 = vrot.slane %v3029, 3
        %v3032 = vor.u32 %v3028, %v3031
        %v3033 = vsel %vm1010, %v3015, %v3032
        %v3034 = vshrl.u32 %v2393, 16
        %v3036 = vrot.slane %v3034, 2
        %v3037 = vshll.u32 %v2393, 16
        %v3039 = vrot.slane %v3037, 3
        %v3040 = vor.u32 %v3036, %v3039
        %v3041 = vsel %vm1010, %v3023, %v3040
        %v3043 = vshrl.u32 %v2376, 16
        %v3045 = vrot.slane %v3043, 2
        %v3046 = vshll.u32 %v2376, 16
        %v3048 = vrot.slane %v3046, 3
        %v3049 = vor.u32 %v3045, %v3048
        %v3050 = vsel %vm1010, %v3032, %v3049
        %v3051 = vshrl.u32 %v2395, 16
        %v3053 = vrot.slane %v3051, 2
        %v3054 = vshll.u32 %v2395, 16
        %v3056 = vrot.slane %v3054, 3
        %v3057 = vor.u32 %v3053, %v3056
        %v3058 = vsel %vm1010, %v3040, %v3057
        %v3060 = vshrl.u32 %v2378, 16
        %v3062 = vrot.slane %v3060, 2
        %v3063 = vshll.u32 %v2378, 16
        %v3065 = vrot.slane %v3063, 3
        %v3066 = vor.u32 %v3062, %v3065
        %v3067 = vsel %vm1010, %v3049, %v3066
        %v3068 = vshrl.u32 %v2397, 16
        %v3070 = vrot.slane %v3068, 2
        %v3071 = vshll.u32 %v2397, 16
        %v3073 = vrot.slane %v3071, 3
        %v3074 = vor.u32 %v3070, %v3073
        %v3075 = vsel %vm1010, %v3057, %v3074
        %v3077 = vshrl.u32 %v2380, 16
        %v3079 = vrot.slane %v3077, 2
        %v3080 = vshll.u32 %v2380, 16
        %v3082 = vrot.slane %v3080, 3
        %v3083 = vor.u32 %v3079, %v3082
        %v3084 = vsel %vm1010, %v3066, %v3083
        %v3085 = vshrl.u32 %v2399, 16
        %v3087 = vrot.slane %v3085, 2
        %v3088 = vshll.u32 %v2399, 16
        %v3090 = vrot.slane %v3088, 3
        %v3091 = vor.u32 %v3087, %v3090
        %v3092 = vsel %vm1010, %v3074, %v3091
        %v3094 = vshrl.u32 %v2379, 16
        %v3096 = vrot.slane %v3094, 2
        %v3097 = vshll.u32 %v2379, 16
        %v3099 = vrot.slane %v3097, 3
        %v3100 = vor.u32 %v3096, %v3099
        %v3101 = vsel %vm1010, %v3083, %v3100
        %v3134 = vunpack.c.l.b16 %v2400
        %v3135 = vunpack.c.l.b16 %v2401
        %v3136 = vunpack.c.l.b16 %v2402
        %v3137 = vunpack.c.l.b16 %v2403
        %v3138 = vunpack.c.l.b16 %v2404
        %v3139 = vunpack.c.l.b16 %v2405
        %v3140 = vunpack.c.l.b16 %v2406
        %v3141 = vunpack.c.l.b16 %v2407
        %v3142 = vunpack.c.l.b16 %v2408
        %v3143 = vunpack.c.l.b16 %v2409
        %v3144 = vunpack.c.l.b16 %v2410
        %v3145 = vunpack.c.l.b16 %v2411
        %v3146 = vunpack.c.l.b16 %v2412
        %v3147 = vunpack.c.l.b16 %v2413
        %v3148 = vunpack.c.l.b16 %v2414
        %v3149 = vunpack.c.l.b16 %v2415
        %v3150 = vunpack.c.l.b16 %v2416
        %v3151 = vunpack.c.l.b16 %v2417
        %v3152 = vunpack.c.l.b16 %v2418
        %v3153 = vunpack.c.l.b16 %v2419
        %v3154 = vunpack.c.l.b16 %v2420
        %v3155 = vunpack.c.l.b16 %v2421
        %v3156 = vunpack.c.l.b16 %v2422
        %v3157 = vunpack.c.l.b16 %v2423
        %v3158 = vpack.c.b16 %v3135, %v3134
        %v3159 = vpack.c.b16 %v3137, %v3136
        %v3160 = vpack.c.b16 %v3139, %v3138
        %v3161 = vpack.c.b16 %v3141, %v3140
        %v3162 = vpack.c.b16 %v3143, %v3142
        %v3163 = vpack.c.b16 %v3145, %v3144
        %v3164 = vpack.c.b16 %v3147, %v3146
        %v3165 = vpack.c.b16 %v3149, %v3148
        %v3166 = vpack.c.b16 %v3151, %v3150
        %v3167 = vpack.c.b16 %v3153, %v3152
        %v3168 = vpack.c.b16 %v3155, %v3154
        %v3169 = vpack.c.b16 %v3157, %v3156
        %v3183 = vsel %vm436, %v2982, 0
        %v3186 = vsel %vm436, %v2999, 0
        %v3189 = vsel %vm436, %v3016, 0
        %v3192 = vsel %vm436, %v3033, 0
        %v3195 = vsel %vm436, %v3050, 0
        %v3198 = vsel %vm436, %v3067, 0
        %v3201 = vsel %vm436, %v3084, 0
        %v3204 = vsel %vm436, %v3101, 0
        %3206 = vmatprep.subr.bf16.mxu0 0
        %3207 = vmatpush1.bf16.msra.mxu0 %v3165
        %3208 = vmatprep.subr.bf16.mxu0 0
        %3209 = vmatpush1.bf16.msra.mxu0 %v3164
        %3210 = vmatprep.subr.bf16.mxu0 0
        %3211 = vmatpush1.bf16.msra.mxu0 %v3163
        %3212 = vmatprep.subr.bf16.mxu0 0
        %3213 = vmatpush1.bf16.msra.mxu0 %v3162
        %3214 = vmatprep.subr.bf16.mxu0 0
        %3215 = vmatpush1.bf16.msra.mxu0 %v3161
        %3216 = vmatprep.subr.bf16.mxu0 0
        %3217 = vmatpush1.bf16.msra.mxu0 %v3160
        %3218 = vmatprep.subr.bf16.mxu0 0
        %3219 = vmatpush1.bf16.msra.mxu0 %v3159
        %3220 = vmatprep.subr.bf16.mxu0 0
        %3221 = vmatpush1.bf16.msra.mxu0 %v3158
        %3222 = vmatprep.subr.bf16.mxu0 0
        %3223 = vmatpush2.bf16.msra.mxu0 0
        %3224 = vmatprep.subr.bf16.mxu0 0
        %3225 = vmatpush2.bf16.msra.mxu0 0
        %3226 = vmatprep.subr.bf16.mxu0 0
        %3227 = vmatpush2.bf16.msra.mxu0 0
        %3228 = vmatprep.subr.bf16.mxu0 0
        %3229 = vmatpush2.bf16.msra.mxu0 0
        %3230 = vmatprep.subr.bf16.mxu0 0
        %3231 = vmatpush2.bf16.msra.mxu0 %v3169
        %3232 = vmatprep.subr.bf16.mxu0 0
        %3233 = vmatpush2.bf16.msra.mxu0 %v3168
        %3234 = vmatprep.subr.bf16.mxu0 0
        %3235 = vmatpush2.bf16.msra.mxu0 %v3167
        %3236 = vmatprep.subr.bf16.mxu0 0
        %3237 = vmatpush2.bf16.msra.mxu0 %v3166
        %3238 = vmatprep.mubr.bf16.mxu0 %v3183
        %3239 = vmatmul.mubr.bf16.gmra.mxu0 %v2965
        %v3240 = vpop.f32.mrf.mxu0
        %v3241 = vadd.f32 %v2889, %v3240
        %v3242 = vpop.f32.mrf.mxu0
        %v3243 = vpop.f32.mrf.mxu0
        %v3244 = vadd.f32 %v2892, %v3243
        %v3245 = vpop.f32.mrf.mxu0
        %3246 = vmatprep.mubr.bf16.mxu0 %v3186
        %3247 = vmatmul.mubr.bf16.gmra.mxu0 %v2990
        %v3248 = vpop.f32.mrf.mxu0
        %v3249 = vadd.f32 %v2897, %v3248
        %v3250 = vpop.f32.mrf.mxu0
        %v3251 = vpop.f32.mrf.mxu0
        %v3252 = vadd.f32 %v2900, %v3251
        %v3253 = vpop.f32.mrf.mxu0
        %3254 = vmatprep.mubr.bf16.mxu0 %v3189
        %3255 = vmatmul.mubr.bf16.gmra.mxu0 %v3007
        %v3256 = vpop.f32.mrf.mxu0
        %v3257 = vadd.f32 %v2905, %v3256
        %v3258 = vpop.f32.mrf.mxu0
        %v3259 = vpop.f32.mrf.mxu0
        %v3260 = vadd.f32 %v2908, %v3259
        %v3261 = vpop.f32.mrf.mxu0
        %3262 = vmatprep.mubr.bf16.mxu0 %v3192
        %3263 = vmatmul.mubr.bf16.gmra.mxu0 %v3024
        %v3264 = vpop.f32.mrf.mxu0
        %v3265 = vadd.f32 %v2913, %v3264
        %v3266 = vpop.f32.mrf.mxu0
        %v3267 = vpop.f32.mrf.mxu0
        %v3268 = vadd.f32 %v2916, %v3267
        %v3269 = vpop.f32.mrf.mxu0
        %3270 = vmatprep.mubr.bf16.mxu0 %v3195
        %3271 = vmatmul.mubr.bf16.gmra.mxu0 %v3041
        %v3272 = vpop.f32.mrf.mxu0
        %v3273 = vadd.f32 %v2921, %v3272
        %v3274 = vpop.f32.mrf.mxu0
        %v3275 = vpop.f32.mrf.mxu0
        %v3276 = vadd.f32 %v2924, %v3275
        %v3277 = vpop.f32.mrf.mxu0
        %3278 = vmatprep.mubr.bf16.mxu0 %v3198
        %3279 = vmatmul.mubr.bf16.gmra.mxu0 %v3058
        %v3280 = vpop.f32.mrf.mxu0
        %v3281 = vadd.f32 %v2929, %v3280
        %v3282 = vpop.f32.mrf.mxu0
        %v3283 = vpop.f32.mrf.mxu0
        %v3284 = vadd.f32 %v2932, %v3283
        %v3285 = vpop.f32.mrf.mxu0
        %3286 = vmatprep.mubr.bf16.mxu0 %v3201
        %3287 = vmatmul.mubr.bf16.gmra.mxu0 %v3075
        %v3288 = vpop.f32.mrf.mxu0
        %v3289 = vadd.f32 %v2937, %v3288
        %v3290 = vpop.f32.mrf.mxu0
        %v3291 = vpop.f32.mrf.mxu0
        %v3292 = vadd.f32 %v2940, %v3291
        %v3293 = vpop.f32.mrf.mxu0
        %3294 = vmatprep.mubr.bf16.mxu0 %v3204
        %3295 = vmatmul.mubr.bf16.gmra.mxu0 %v3092
        %v3296 = vpop.f32.mrf.mxu0
        %v3297 = vadd.f32 %v2945, %v3296
        %v3298 = vpop.f32.mrf.mxu0
        %v3299 = vpop.f32.mrf.mxu0
        %v3300 = vadd.f32 %v2948, %v3299
        %v3301 = vpop.f32.mrf.mxu0
        %3302 = vdwg.mxu0
        %v3303 = vld [vmem:[%s238 + $0x58] sm:$0xf]
        %v3304 = vld [vmem:[%s238 + $0x5c] sm:$0xf]
        %v3305 = vld [vmem:[%s238 + $0x60] sm:$0xf]
        %v3306 = vld [vmem:[%s238 + $0x64] sm:$0xf]
        %v3307 = vld [vmem:[%s238 + $0x68] sm:$0xf]
        %v3308 = vld [vmem:[%s238 + $0x6c] sm:$0xf]
        %v3309 = vld [vmem:[%s238 + $0x70] sm:$0xf]
        %v3310 = vld [vmem:[%s238 + $0x74] sm:$0xf]
        %v3311 = vld [vmem:[%s238 + $0x78] sm:$0xf]
        %v3312 = vld [vmem:[%s238 + $0x7c] sm:$0xf]
        %v3313 = vld [vmem:[%s238 + $0x80] sm:$0xf]
        %v3314 = vld [vmem:[%s238 + $0x84] sm:$0xf]
        %v3315 = vld [vmem:[%s238 + $0x88] sm:$0xf]
        %v3316 = vld [vmem:[%s238 + $0x8c] sm:$0xf]
        %v3317 = vld [vmem:[%s238 + $0x90] sm:$0xf]
        %v3318 = vld [vmem:[%s238 + $0x94] sm:$0xf]
        %v3319 = vld [vmem:[%s238 + $0x98] sm:$0x1]
        %v3320 = vld [vmem:[%s238 + $0x58] sm:$0xe]
        %v3321 = vld [vmem:[%s238 + $0x98] sm:$0x3]
        %v3339 = vunpack.c.l.b16 %v3303
        %v3340 = vunpack.c.l.b16 %v3304
        %v3341 = vunpack.c.l.b16 %v3305
        %v3342 = vunpack.c.l.b16 %v3306
        %v3343 = vunpack.c.l.b16 %v3307
        %v3344 = vunpack.c.l.b16 %v3308
        %v3345 = vunpack.c.l.b16 %v3309
        %v3346 = vunpack.c.l.b16 %v3310
        %v3347 = vunpack.c.l.b16 %v3311
        %v3348 = vunpack.c.l.b16 %v3312
        %v3349 = vunpack.c.l.b16 %v3313
        %v3350 = vunpack.c.l.b16 %v3314
        %v3351 = vunpack.c.l.b16 %v3315
        %v3352 = vunpack.c.l.b16 %v3316
        %v3353 = vunpack.c.l.b16 %v3317
        %v3354 = vunpack.c.l.b16 %v3318
        %v3355 = vunpack.c.l.b16 %v3319
        %v3356 = vpack.c.b16 %v3340, %v3339
        %v3357 = vpack.c.b16 %v3342, %v3341
        %v3358 = vpack.c.b16 %v3344, %v3343
        %v3359 = vpack.c.b16 %v3346, %v3345
        %v3360 = vpack.c.b16 %v3348, %v3347
        %v3361 = vpack.c.b16 %v3350, %v3349
        %v3362 = vpack.c.b16 %v3352, %v3351
        %v3363 = vpack.c.b16 %v3354, %v3353
        %v3364 = vpack.c.b16 %v3355, %v3355
        %v3366 = vunpack.c.l.b16 %v3320
        %v3367 = vpack.c.b16 %v3340, %v3366
        %v3369 = vshrl.u32 %v3367, 16
        %v3371 = vshll.u32 %v3367, 16
        %v3373 = vrot.slane %v3371, 1
        %v3374 = vor.u32 %v3369, %v3373
        %v3376 = vshll.u32 %v3357, 16
        %v3378 = vrot.slane %v3376, 1
        %v3379 = vsel %vm325, %v3374, %v3378
        %v3380 = vshrl.u32 %v3357, 16
        %v3382 = vor.u32 %v3380, %v3378
        %v3384 = vshll.u32 %v3358, 16
        %v3386 = vrot.slane %v3384, 1
        %v3387 = vsel %vm325, %v3382, %v3386
        %v3388 = vshrl.u32 %v3358, 16
        %v3390 = vor.u32 %v3388, %v3386
        %v3392 = vshll.u32 %v3359, 16
        %v3394 = vrot.slane %v3392, 1
        %v3395 = vsel %vm325, %v3390, %v3394
        %v3396 = vshrl.u32 %v3359, 16
        %v3398 = vor.u32 %v3396, %v3394
        %v3400 = vshll.u32 %v3360, 16
        %v3402 = vrot.slane %v3400, 1
        %v3403 = vsel %vm325, %v3398, %v3402
        %v3404 = vshrl.u32 %v3360, 16
        %v3406 = vor.u32 %v3404, %v3402
        %v3408 = vshll.u32 %v3361, 16
        %v3410 = vrot.slane %v3408, 1
        %v3411 = vsel %vm325, %v3406, %v3410
        %v3412 = vshrl.u32 %v3361, 16
        %v3414 = vor.u32 %v3412, %v3410
        %v3416 = vshll.u32 %v3362, 16
        %v3418 = vrot.slane %v3416, 1
        %v3419 = vsel %vm325, %v3414, %v3418
        %v3420 = vshrl.u32 %v3362, 16
        %v3422 = vor.u32 %v3420, %v3418
        %v3424 = vshll.u32 %v3363, 16
        %v3426 = vrot.slane %v3424, 1
        %v3427 = vsel %vm325, %v3422, %v3426
        %v3428 = vshrl.u32 %v3363, 16
        %v3430 = vor.u32 %v3428, %v3426
        %v3432 = vshll.u32 %v3364, 16
        %v3434 = vrot.slane %v3432, 1
        %v3435 = vsel %vm325, %v3430, %v3434
        %v3436 = vshrl.u32 %v3364, 16
        %3438 = vrot.lane.b32.xlu0 %v3379, 64
        %v3439 = vpop.permute.xlu0 %3438
        %3440 = vrot.lane.b32.xlu0 %v3387, 64
        %v3441 = vpop.permute.xlu0 %3440
        %3442 = vrot.lane.b32.xlu0 %v3395, 64
        %v3443 = vpop.permute.xlu0 %3442
        %3444 = vrot.lane.b32.xlu0 %v3403, 64
        %v3445 = vpop.permute.xlu0 %3444
        %3446 = vrot.lane.b32.xlu0 %v3411, 64
        %v3447 = vpop.permute.xlu0 %3446
        %3448 = vrot.lane.b32.xlu0 %v3419, 64
        %v3449 = vpop.permute.xlu0 %3448
        %3450 = vrot.lane.b32.xlu0 %v3427, 64
        %v3451 = vpop.permute.xlu0 %3450
        %3452 = vrot.lane.b32.xlu0 %v3435, 64
        %v3453 = vpop.permute.xlu0 %3452
        %3454 = vrot.lane.b32.xlu0 %v3436, 64
        %v3455 = vpop.permute.xlu0 %3454
        %v3457 = vunpack.c.l.b16 %v3321
        %v3458 = vpack.c.b16 %v3457, %v3457
        %v3459 = vrot.slane %v3367, 1
        %v3460 = vrot.slane %v3357, 1
        %v3461 = vsel %vm418, %v3459, %v3460
        %v3462 = vrot.slane %v3358, 1
        %v3463 = vsel %vm418, %v3460, %v3462
        %v3464 = vrot.slane %v3359, 1
        %v3465 = vsel %vm418, %v3462, %v3464
        %v3466 = vrot.slane %v3360, 1
        %v3467 = vsel %vm418, %v3464, %v3466
        %v3468 = vrot.slane %v3361, 1
        %v3469 = vsel %vm418, %v3466, %v3468
        %v3470 = vrot.slane %v3362, 1
        %v3471 = vsel %vm418, %v3468, %v3470
        %v3472 = vrot.slane %v3363, 1
        %v3473 = vsel %vm418, %v3470, %v3472
        %v3474 = vrot.slane %v3458, 1
        %v3475 = vsel %vm418, %v3472, %v3474
        %v3478 = vsel %vm436, %v3356, %v3439
        %v3480 = vsel %vm436, %v3357, %v3441
        %v3482 = vsel %vm436, %v3358, %v3443
        %v3484 = vsel %vm436, %v3359, %v3445
        %v3486 = vsel %vm436, %v3360, %v3447
        %v3488 = vsel %vm436, %v3361, %v3449
        %v3490 = vsel %vm436, %v3362, %v3451
        %v3492 = vsel %vm436, %v3363, %v3453
        %v3494 = vsel %vm436, %v3364, %v3455
        %v3495 = vld [vmem:[%s1 + $0xc0] sm:$0xf]
        %v3496 = vld [vmem:[%s1 + $0xc4] sm:$0xf]
        %v3497 = vld [vmem:[%s1 + $0xc8] sm:$0xf]
        %v3498 = vld [vmem:[%s1 + $0xcc] sm:$0xf]
        %v3499 = vld [vmem:[%s1 + $0xd0] sm:$0xf]
        %v3500 = vld [vmem:[%s1 + $0xd4] sm:$0xf]
        %v3501 = vld [vmem:[%s1 + $0xd8] sm:$0xf]
        %v3502 = vld [vmem:[%s1 + $0xdc] sm:$0xf]
        %v3503 = vld [vmem:[%s1 + $0xe0] sm:$0xf]
        %v3504 = vld [vmem:[%s1 + $0xe4] sm:$0xf]
        %v3505 = vld [vmem:[%s1 + $0xe8] sm:$0xf]
        %v3506 = vld [vmem:[%s1 + $0xec] sm:$0xf]
        %v3507 = vld [vmem:[%s1 + $0xf0] sm:$0xf]
        %v3508 = vld [vmem:[%s1 + $0xf4] sm:$0xf]
        %v3509 = vld [vmem:[%s1 + $0xf8] sm:$0xf]
        %v3510 = vld [vmem:[%s1 + $0xfc] sm:$0xf]
        %v3511 = vld [vmem:[%s1 + $0x100] sm:$0xf]
        %v3512 = vld [vmem:[%s1 + $0x104] sm:$0xf]
        %v3513 = vld [vmem:[%s1 + $0x108] sm:$0xf]
        %v3514 = vld [vmem:[%s1 + $0x10c] sm:$0xf]
        %v3515 = vld [vmem:[%s1 + $0x110] sm:$0xf]
        %v3516 = vld [vmem:[%s1 + $0x114] sm:$0xf]
        %v3517 = vld [vmem:[%s1 + $0x118] sm:$0xf]
        %v3518 = vld [vmem:[%s1 + $0x11c] sm:$0xf]
        %v3519 = vshrl.u32 %v3478, 16
        %v3521 = vshll.u32 %v3478, 16
        %v3523 = vrot.slane %v3521, 1
        %v3524 = vor.u32 %v3519, %v3523
        %v3525 = vshll.u32 %v3480, 16
        %v3527 = vrot.slane %v3525, 1
        %v3528 = vsel %vm325, %v3524, %v3527
        %v3530 = vshrl.u32 %v3461, 16
        %v3532 = vshll.u32 %v3461, 16
        %v3534 = vrot.slane %v3532, 1
        %v3535 = vor.u32 %v3530, %v3534
        %v3537 = vshll.u32 %v3463, 16
        %v3539 = vrot.slane %v3537, 1
        %v3540 = vsel %vm325, %v3535, %v3539
        %v3541 = vshrl.u32 %v3480, 16
        %v3543 = vor.u32 %v3541, %v3527
        %v3544 = vshll.u32 %v3482, 16
        %v3546 = vrot.slane %v3544, 1
        %v3547 = vsel %vm325, %v3543, %v3546
        %v3548 = vshrl.u32 %v3463, 16
        %v3550 = vor.u32 %v3548, %v3539
        %v3552 = vshll.u32 %v3465, 16
        %v3554 = vrot.slane %v3552, 1
        %v3555 = vsel %vm325, %v3550, %v3554
        %v3556 = vshrl.u32 %v3482, 16
        %v3558 = vor.u32 %v3556, %v3546
        %v3559 = vshll.u32 %v3484, 16
        %v3561 = vrot.slane %v3559, 1
        %v3562 = vsel %vm325, %v3558, %v3561
        %v3563 = vshrl.u32 %v3465, 16
        %v3565 = vor.u32 %v3563, %v3554
        %v3567 = vshll.u32 %v3467, 16
        %v3569 = vrot.slane %v3567, 1
        %v3570 = vsel %vm325, %v3565, %v3569
        %v3571 = vshrl.u32 %v3484, 16
        %v3573 = vor.u32 %v3571, %v3561
        %v3574 = vshll.u32 %v3486, 16
        %v3576 = vrot.slane %v3574, 1
        %v3577 = vsel %vm325, %v3573, %v3576
        %v3578 = vshrl.u32 %v3467, 16
        %v3580 = vor.u32 %v3578, %v3569
        %v3582 = vshll.u32 %v3469, 16
        %v3584 = vrot.slane %v3582, 1
        %v3585 = vsel %vm325, %v3580, %v3584
        %v3586 = vshrl.u32 %v3486, 16
        %v3588 = vor.u32 %v3586, %v3576
        %v3589 = vshll.u32 %v3488, 16
        %v3591 = vrot.slane %v3589, 1
        %v3592 = vsel %vm325, %v3588, %v3591
        %v3593 = vshrl.u32 %v3469, 16
        %v3595 = vor.u32 %v3593, %v3584
        %v3597 = vshll.u32 %v3471, 16
        %v3599 = vrot.slane %v3597, 1
        %v3600 = vsel %vm325, %v3595, %v3599
        %v3601 = vshrl.u32 %v3488, 16
        %v3603 = vor.u32 %v3601, %v3591
        %v3604 = vshll.u32 %v3490, 16
        %v3606 = vrot.slane %v3604, 1
        %v3607 = vsel %vm325, %v3603, %v3606
        %v3608 = vshrl.u32 %v3471, 16
        %v3610 = vor.u32 %v3608, %v3599
        %v3612 = vshll.u32 %v3473, 16
        %v3614 = vrot.slane %v3612, 1
        %v3615 = vsel %vm325, %v3610, %v3614
        %v3616 = vshrl.u32 %v3490, 16
        %v3618 = vor.u32 %v3616, %v3606
        %v3619 = vshll.u32 %v3492, 16
        %v3621 = vrot.slane %v3619, 1
        %v3622 = vsel %vm325, %v3618, %v3621
        %v3623 = vshrl.u32 %v3473, 16
        %v3625 = vor.u32 %v3623, %v3614
        %v3627 = vshll.u32 %v3475, 16
        %v3629 = vrot.slane %v3627, 1
        %v3630 = vsel %vm325, %v3625, %v3629
        %v3631 = vshrl.u32 %v3492, 16
        %v3633 = vor.u32 %v3631, %v3621
        %v3634 = vshll.u32 %v3494, 16
        %v3636 = vrot.slane %v3634, 1
        %v3637 = vsel %vm325, %v3633, %v3636
        %v3638 = vshrl.u32 %v3475, 16
        %v3640 = vor.u32 %v3638, %v3629
        %v3642 = vshll.u32 %v3474, 16
        %v3644 = vrot.slane %v3642, 1
        %v3645 = vsel %vm325, %v3640, %v3644
        %v3678 = vunpack.c.l.b16 %v3495
        %v3679 = vunpack.c.l.b16 %v3496
        %v3680 = vunpack.c.l.b16 %v3497
        %v3681 = vunpack.c.l.b16 %v3498
        %v3682 = vunpack.c.l.b16 %v3499
        %v3683 = vunpack.c.l.b16 %v3500
        %v3684 = vunpack.c.l.b16 %v3501
        %v3685 = vunpack.c.l.b16 %v3502
        %v3686 = vunpack.c.l.b16 %v3503
        %v3687 = vunpack.c.l.b16 %v3504
        %v3688 = vunpack.c.l.b16 %v3505
        %v3689 = vunpack.c.l.b16 %v3506
        %v3690 = vunpack.c.l.b16 %v3507
        %v3691 = vunpack.c.l.b16 %v3508
        %v3692 = vunpack.c.l.b16 %v3509
        %v3693 = vunpack.c.l.b16 %v3510
        %v3694 = vunpack.c.l.b16 %v3511
        %v3695 = vunpack.c.l.b16 %v3512
        %v3696 = vunpack.c.l.b16 %v3513
        %v3697 = vunpack.c.l.b16 %v3514
        %v3698 = vunpack.c.l.b16 %v3515
        %v3699 = vunpack.c.l.b16 %v3516
        %v3700 = vunpack.c.l.b16 %v3517
        %v3701 = vunpack.c.l.b16 %v3518
        %v3702 = vpack.c.b16 %v3679, %v3678
        %v3703 = vpack.c.b16 %v3681, %v3680
        %v3704 = vpack.c.b16 %v3683, %v3682
        %v3705 = vpack.c.b16 %v3685, %v3684
        %v3706 = vpack.c.b16 %v3687, %v3686
        %v3707 = vpack.c.b16 %v3689, %v3688
        %v3708 = vpack.c.b16 %v3691, %v3690
        %v3709 = vpack.c.b16 %v3693, %v3692
        %v3710 = vpack.c.b16 %v3695, %v3694
        %v3711 = vpack.c.b16 %v3697, %v3696
        %v3712 = vpack.c.b16 %v3699, %v3698
        %v3713 = vpack.c.b16 %v3701, %v3700
        %v3727 = vsel %vm436, %v3540, 0
        %v3730 = vsel %vm436, %v3555, 0
        %v3733 = vsel %vm436, %v3570, 0
        %v3736 = vsel %vm436, %v3585, 0
        %v3739 = vsel %vm436, %v3600, 0
        %v3742 = vsel %vm436, %v3615, 0
        %v3745 = vsel %vm436, %v3630, 0
        %v3748 = vsel %vm436, %v3645, 0
        %3750 = vmatprep.subr.bf16.mxu0 0
        %3751 = vmatpush1.bf16.msra.mxu0 %v3709
        %3752 = vmatprep.subr.bf16.mxu0 0
        %3753 = vmatpush1.bf16.msra.mxu0 %v3708
        %3754 = vmatprep.subr.bf16.mxu0 0
        %3755 = vmatpush1.bf16.msra.mxu0 %v3707
        %3756 = vmatprep.subr.bf16.mxu0 0
        %3757 = vmatpush1.bf16.msra.mxu0 %v3706
        %3758 = vmatprep.subr.bf16.mxu0 0
        %3759 = vmatpush1.bf16.msra.mxu0 %v3705
        %3760 = vmatprep.subr.bf16.mxu0 0
        %3761 = vmatpush1.bf16.msra.mxu0 %v3704
        %3762 = vmatprep.subr.bf16.mxu0 0
        %3763 = vmatpush1.bf16.msra.mxu0 %v3703
        %3764 = vmatprep.subr.bf16.mxu0 0
        %3765 = vmatpush1.bf16.msra.mxu0 %v3702
        %3766 = vmatprep.subr.bf16.mxu0 0
        %3767 = vmatpush2.bf16.msra.mxu0 0
        %3768 = vmatprep.subr.bf16.mxu0 0
        %3769 = vmatpush2.bf16.msra.mxu0 0
        %3770 = vmatprep.subr.bf16.mxu0 0
        %3771 = vmatpush2.bf16.msra.mxu0 0
        %3772 = vmatprep.subr.bf16.mxu0 0
        %3773 = vmatpush2.bf16.msra.mxu0 0
        %3774 = vmatprep.subr.bf16.mxu0 0
        %3775 = vmatpush2.bf16.msra.mxu0 %v3713
        %3776 = vmatprep.subr.bf16.mxu0 0
        %3777 = vmatpush2.bf16.msra.mxu0 %v3712
        %3778 = vmatprep.subr.bf16.mxu0 0
        %3779 = vmatpush2.bf16.msra.mxu0 %v3711
        %3780 = vmatprep.subr.bf16.mxu0 0
        %3781 = vmatpush2.bf16.msra.mxu0 %v3710
        %3782 = vmatprep.mubr.bf16.mxu0 %v3727
        %3783 = vmatmul.mubr.bf16.gmra.mxu0 %v3528
        %v3784 = vpop.f32.mrf.mxu0
        %v3785 = vadd.f32 0.0, %v3784
        %v3786 = vpop.f32.mrf.mxu0
        %v3787 = vpop.f32.mrf.mxu0
        %v3788 = vadd.f32 0.0, %v3787
        %v3789 = vpop.f32.mrf.mxu0
        %3790 = vmatprep.mubr.bf16.mxu0 %v3730
        %3791 = vmatmul.mubr.bf16.gmra.mxu0 %v3547
        %v3792 = vpop.f32.mrf.mxu0
        %v3793 = vadd.f32 0.0, %v3792
        %v3794 = vpop.f32.mrf.mxu0
        %v3795 = vpop.f32.mrf.mxu0
        %v3796 = vadd.f32 0.0, %v3795
        %v3797 = vpop.f32.mrf.mxu0
        %3798 = vmatprep.mubr.bf16.mxu0 %v3733
        %3799 = vmatmul.mubr.bf16.gmra.mxu0 %v3562
        %v3800 = vpop.f32.mrf.mxu0
        %v3801 = vadd.f32 0.0, %v3800
        %v3802 = vpop.f32.mrf.mxu0
        %v3803 = vpop.f32.mrf.mxu0
        %v3804 = vadd.f32 0.0, %v3803
        %v3805 = vpop.f32.mrf.mxu0
        %3806 = vmatprep.mubr.bf16.mxu0 %v3736
        %3807 = vmatmul.mubr.bf16.gmra.mxu0 %v3577
        %v3808 = vpop.f32.mrf.mxu0
        %v3809 = vadd.f32 0.0, %v3808
        %v3810 = vpop.f32.mrf.mxu0
        %v3811 = vpop.f32.mrf.mxu0
        %v3812 = vadd.f32 0.0, %v3811
        %v3813 = vpop.f32.mrf.mxu0
        %3814 = vmatprep.mubr.bf16.mxu0 %v3739
        %3815 = vmatmul.mubr.bf16.gmra.mxu0 %v3592
        %v3816 = vpop.f32.mrf.mxu0
        %v3817 = vadd.f32 0.0, %v3816
        %v3818 = vpop.f32.mrf.mxu0
        %v3819 = vpop.f32.mrf.mxu0
        %v3820 = vadd.f32 0.0, %v3819
        %v3821 = vpop.f32.mrf.mxu0
        %3822 = vmatprep.mubr.bf16.mxu0 %v3742
        %3823 = vmatmul.mubr.bf16.gmra.mxu0 %v3607
        %v3824 = vpop.f32.mrf.mxu0
        %v3825 = vadd.f32 0.0, %v3824
        %v3826 = vpop.f32.mrf.mxu0
        %v3827 = vpop.f32.mrf.mxu0
        %v3828 = vadd.f32 0.0, %v3827
        %v3829 = vpop.f32.mrf.mxu0
        %3830 = vmatprep.mubr.bf16.mxu0 %v3745
        %3831 = vmatmul.mubr.bf16.gmra.mxu0 %v3622
        %v3832 = vpop.f32.mrf.mxu0
        %v3833 = vadd.f32 0.0, %v3832
        %v3834 = vpop.f32.mrf.mxu0
        %v3835 = vpop.f32.mrf.mxu0
        %v3836 = vadd.f32 0.0, %v3835
        %v3837 = vpop.f32.mrf.mxu0
        %3838 = vmatprep.mubr.bf16.mxu0 %v3748
        %3839 = vmatmul.mubr.bf16.gmra.mxu0 %v3637
        %v3840 = vpop.f32.mrf.mxu0
        %v3841 = vadd.f32 0.0, %v3840
        %v3842 = vpop.f32.mrf.mxu0
        %v3843 = vpop.f32.mrf.mxu0
        %v3844 = vadd.f32 0.0, %v3843
        %v3845 = vpop.f32.mrf.mxu0
        %3846 = vdwg.mxu0
        %v3847 = vadd.f32 %v3241, %v3785
        %v3848 = vadd.f32 %v3244, %v3788
        %v3849 = vadd.f32 %v3249, %v3793
        %v3850 = vadd.f32 %v3252, %v3796
        %v3851 = vadd.f32 %v3257, %v3801
        %v3852 = vadd.f32 %v3260, %v3804
        %v3853 = vadd.f32 %v3265, %v3809
        %v3854 = vadd.f32 %v3268, %v3812
        %v3855 = vadd.f32 %v3273, %v3817
        %v3856 = vadd.f32 %v3276, %v3820
        %v3857 = vadd.f32 %v3281, %v3825
        %v3858 = vadd.f32 %v3284, %v3828
        %v3859 = vadd.f32 %v3289, %v3833
        %v3860 = vadd.f32 %v3292, %v3836
        %v3861 = vadd.f32 %v3297, %v3841
        %v3862 = vadd.f32 %v3300, %v3844
        %v3863 = vld [vmem:[%s2 + $0xa0] sm:$0xff]
        %v3864 = vld [vmem:[%s2 + $0xa8] sm:$0xff]
        %v3865 = vld [vmem:[%s2 + $0xb0] sm:$0xff]
        %v3866 = vld [vmem:[%s2 + $0xb8] sm:$0xff]
        %v3867 = vld [vmem:[%s2 + $0xc0] sm:$0xff]
        %v3868 = vld [vmem:[%s2 + $0xc8] sm:$0xff]
        %v3869 = vld [vmem:[%s2 + $0xd0] sm:$0xff]
        %v3870 = vld [vmem:[%s2 + $0xd8] sm:$0xff]
        %v3871 = vld [vmem:[%s2 + $0xe0] sm:$0xff]
        %v3872 = vld [vmem:[%s2 + $0xe8] sm:$0xff]
        %v3873 = vld [vmem:[%s2 + $0xf0] sm:$0xff]
        %v3874 = vld [vmem:[%s2 + $0xf8] sm:$0xff]
        %v3875 = vld [vmem:[%s2 + $0x100] sm:$0xff]
        %v3876 = vld [vmem:[%s2 + $0x108] sm:$0xff]
        %v3877 = vld [vmem:[%s2 + $0x110] sm:$0xff]
        %v3878 = vld [vmem:[%s2 + $0x118] sm:$0xff]
        %3880 = vset.pattern.permute.xlu0 0
        %3881 = vperm.xlu0 %3880, %v3863
        %v3882 = vpop.permute.xlu0 %3881
        %3885 = vset.pattern.permute.xlu0 0
        %3886 = vperm.xlu0 %3885, %v3864
        %v3887 = vpop.permute.xlu0 %3886
        %3890 = vset.pattern.permute.xlu0 0
        %3891 = vperm.xlu0 %3890, %v3865
        %v3892 = vpop.permute.xlu0 %3891
        %3895 = vset.pattern.permute.xlu0 0
        %3896 = vperm.xlu0 %3895, %v3866
        %v3897 = vpop.permute.xlu0 %3896
        %3900 = vset.pattern.permute.xlu0 0
        %3901 = vperm.xlu0 %3900, %v3867
        %v3902 = vpop.permute.xlu0 %3901
        %3905 = vset.pattern.permute.xlu0 0
        %3906 = vperm.xlu0 %3905, %v3868
        %v3907 = vpop.permute.xlu0 %3906
        %3910 = vset.pattern.permute.xlu0 0
        %3911 = vperm.xlu0 %3910, %v3869
        %v3912 = vpop.permute.xlu0 %3911
        %3915 = vset.pattern.permute.xlu0 0
        %3916 = vperm.xlu0 %3915, %v3870
        %v3917 = vpop.permute.xlu0 %3916
        %3920 = vset.pattern.permute.xlu0 0
        %3921 = vperm.xlu0 %3920, %v3871
        %v3922 = vpop.permute.xlu0 %3921
        %3925 = vset.pattern.permute.xlu0 0
        %3926 = vperm.xlu0 %3925, %v3872
        %v3927 = vpop.permute.xlu0 %3926
        %3930 = vset.pattern.permute.xlu0 0
        %3931 = vperm.xlu0 %3930, %v3873
        %v3932 = vpop.permute.xlu0 %3931
        %3935 = vset.pattern.permute.xlu0 0
        %3936 = vperm.xlu0 %3935, %v3874
        %v3937 = vpop.permute.xlu0 %3936
        %3940 = vset.pattern.permute.xlu0 0
        %3941 = vperm.xlu0 %3940, %v3875
        %v3942 = vpop.permute.xlu0 %3941
        %3945 = vset.pattern.permute.xlu0 0
        %3946 = vperm.xlu0 %3945, %v3876
        %v3947 = vpop.permute.xlu0 %3946
        %3950 = vset.pattern.permute.xlu0 0
        %3951 = vperm.xlu0 %3950, %v3877
        %v3952 = vpop.permute.xlu0 %3951
        %3955 = vset.pattern.permute.xlu0 0
        %3956 = vperm.xlu0 %3955, %v3878
        %v3957 = vpop.permute.xlu0 %3956
        %v3959 = vmul.f32 %v3847, %v3882
        %v3960 = vmul.f32 %v3848, %v3887
        %v3961 = vmul.f32 %v3849, %v3892
        %v3962 = vmul.f32 %v3850, %v3897
        %v3963 = vmul.f32 %v3851, %v3902
        %v3964 = vmul.f32 %v3852, %v3907
        %v3965 = vmul.f32 %v3853, %v3912
        %v3966 = vmul.f32 %v3854, %v3917
        %v3967 = vmul.f32 %v3855, %v3922
        %v3968 = vmul.f32 %v3856, %v3927
        %v3969 = vmul.f32 %v3857, %v3932
        %v3970 = vmul.f32 %v3858, %v3937
        %v3971 = vmul.f32 %v3859, %v3942
        %v3972 = vmul.f32 %v3860, %v3947
        %v3973 = vmul.f32 %v3861, %v3952
        %v3974 = vmul.f32 %v3862, %v3957
        %v3975 = vsel %vm436, %v3959, 0.0
        %v3976 = vsel %vm436, %v3960, 0.0
        %v3977 = vadd.f32 %v3975, %v3976
        %v3978 = vsel %vm436, %v3961, 0.0
        %v3979 = vadd.f32 %v3977, %v3978
        %v3980 = vsel %vm436, %v3962, 0.0
        %v3981 = vadd.f32 %v3979, %v3980
        %v3982 = vsel %vm436, %v3963, 0.0
        %v3983 = vadd.f32 %v3981, %v3982
        %v3984 = vsel %vm436, %v3964, 0.0
        %v3985 = vadd.f32 %v3983, %v3984
        %v3986 = vsel %vm436, %v3965, 0.0
        %v3987 = vadd.f32 %v3985, %v3986
        %v3988 = vsel %vm436, %v3966, 0.0
        %v3989 = vadd.f32 %v3987, %v3988
        %v3990 = vsel %vm436, %v3967, 0.0
        %v3991 = vadd.f32 %v3989, %v3990
        %v3992 = vsel %vm436, %v3968, 0.0
        %v3993 = vadd.f32 %v3991, %v3992
        %v3994 = vsel %vm436, %v3969, 0.0
        %v3995 = vadd.f32 %v3993, %v3994
        %v3996 = vsel %vm436, %v3970, 0.0
        %v3997 = vadd.f32 %v3995, %v3996
        %v3998 = vsel %vm436, %v3971, 0.0
        %v3999 = vadd.f32 %v3997, %v3998
        %v4000 = vsel %vm436, %v3972, 0.0
        %v4001 = vadd.f32 %v3999, %v4000
        %v4002 = vsel %vm436, %v3973, 0.0
        %v4003 = vadd.f32 %v4001, %v4002
        %v4004 = vsel %vm436, %v3974, 0.0
        %v4005 = vadd.f32 %v4003, %v4004
        %v4006 = vrot.slane %v4005, 4
        %v4007 = vadd.f32 %v4005, %v4006
        %v4008 = vrot.slane %v4007, 2
        %v4009 = vadd.f32 %v4007, %v4008
        %v4010 = vrot.slane %v4009, 1
        %v4011 = vadd.f32 %v4009, %v4010
        %v4012 = vadd.f32 %v2072, %v4011
        %v4013 = vmul.f32 %v3959, %v3959
        %v4014 = vmul.f32 %v3960, %v3960
        %v4015 = vmul.f32 %v3961, %v3961
        %v4016 = vmul.f32 %v3962, %v3962
        %v4017 = vmul.f32 %v3963, %v3963
        %v4018 = vmul.f32 %v3964, %v3964
        %v4019 = vmul.f32 %v3965, %v3965
        %v4020 = vmul.f32 %v3966, %v3966
        %v4021 = vmul.f32 %v3967, %v3967
        %v4022 = vmul.f32 %v3968, %v3968
        %v4023 = vmul.f32 %v3969, %v3969
        %v4024 = vmul.f32 %v3970, %v3970
        %v4025 = vmul.f32 %v3971, %v3971
        %v4026 = vmul.f32 %v3972, %v3972
        %v4027 = vmul.f32 %v3973, %v3973
        %v4028 = vmul.f32 %v3974, %v3974
        %v4029 = vsel %vm436, %v4013, 0.0
        %v4030 = vsel %vm436, %v4014, 0.0
        %v4031 = vadd.f32 %v4029, %v4030
        %v4032 = vsel %vm436, %v4015, 0.0
        %v4033 = vadd.f32 %v4031, %v4032
        %v4034 = vsel %vm436, %v4016, 0.0
        %v4035 = vadd.f32 %v4033, %v4034
        %v4036 = vsel %vm436, %v4017, 0.0
        %v4037 = vadd.f32 %v4035, %v4036
        %v4038 = vsel %vm436, %v4018, 0.0
        %v4039 = vadd.f32 %v4037, %v4038
        %v4040 = vsel %vm436, %v4019, 0.0
        %v4041 = vadd.f32 %v4039, %v4040
        %v4042 = vsel %vm436, %v4020, 0.0
        %v4043 = vadd.f32 %v4041, %v4042
        %v4044 = vsel %vm436, %v4021, 0.0
        %v4045 = vadd.f32 %v4043, %v4044
        %v4046 = vsel %vm436, %v4022, 0.0
        %v4047 = vadd.f32 %v4045, %v4046
        %v4048 = vsel %vm436, %v4023, 0.0
        %v4049 = vadd.f32 %v4047, %v4048
        %v4050 = vsel %vm436, %v4024, 0.0
        %v4051 = vadd.f32 %v4049, %v4050
        %v4052 = vsel %vm436, %v4025, 0.0
        %v4053 = vadd.f32 %v4051, %v4052
        %v4054 = vsel %vm436, %v4026, 0.0
        %v4055 = vadd.f32 %v4053, %v4054
        %v4056 = vsel %vm436, %v4027, 0.0
        %v4057 = vadd.f32 %v4055, %v4056
        %v4058 = vsel %vm436, %v4028, 0.0
        %v4059 = vadd.f32 %v4057, %v4058
        %v4060 = vrot.slane %v4059, 4
        %v4061 = vadd.f32 %v4059, %v4060
        %v4062 = vrot.slane %v4061, 2
        %v4063 = vadd.f32 %v4061, %v4062
        %v4064 = vrot.slane %v4063, 1
        %v4065 = vadd.f32 %v4063, %v4064
        %v4066 = vadd.f32 %v2126, %v4065
        %v4067 = vpack.c.bf16 %v3960, %v3959
        %v4068 = vpack.c.bf16 %v3962, %v3961
        %v4069 = vpack.c.bf16 %v3964, %v3963
        %v4070 = vpack.c.bf16 %v3966, %v3965
        %v4071 = vpack.c.bf16 %v3968, %v3967
        %v4072 = vpack.c.bf16 %v3970, %v3969
        %v4073 = vpack.c.bf16 %v3972, %v3971
        %v4074 = vpack.c.bf16 %v3974, %v3973
        %v4083 = vunpack.c.l.b16 %v4067
        %v4084 = vunpack.c.h.b16 %v4067
        %v4085 = vunpack.c.l.b16 %v4068
        %v4086 = vunpack.c.h.b16 %v4068
        %v4087 = vunpack.c.l.b16 %v4069
        %v4088 = vunpack.c.h.b16 %v4069
        %v4089 = vunpack.c.l.b16 %v4070
        %v4090 = vunpack.c.h.b16 %v4070
        %v4091 = vunpack.c.l.b16 %v4071
        %v4092 = vunpack.c.h.b16 %v4071
        %v4093 = vunpack.c.l.b16 %v4072
        %v4094 = vunpack.c.h.b16 %v4072
        %v4095 = vunpack.c.l.b16 %v4073
        %v4096 = vunpack.c.h.b16 %v4073
        %v4097 = vunpack.c.l.b16 %v4074
        %v4098 = vunpack.c.h.b16 %v4074
        %v4099 = vpack.c.b16 %v4083, %v4083
        %v4100 = vpack.c.b16 %v4084, %v4084
        %v4101 = vpack.c.b16 %v4085, %v4085
        %v4102 = vpack.c.b16 %v4086, %v4086
        %v4103 = vpack.c.b16 %v4087, %v4087
        %v4104 = vpack.c.b16 %v4088, %v4088
        %v4105 = vpack.c.b16 %v4089, %v4089
        %v4106 = vpack.c.b16 %v4090, %v4090
        %v4107 = vpack.c.b16 %v4091, %v4091
        %v4108 = vpack.c.b16 %v4092, %v4092
        %v4109 = vpack.c.b16 %v4093, %v4093
        %v4110 = vpack.c.b16 %v4094, %v4094
        %v4111 = vpack.c.b16 %v4095, %v4095
        %v4112 = vpack.c.b16 %v4096, %v4096
        %v4113 = vpack.c.b16 %v4097, %v4097
        %v4114 = vpack.c.b16 %v4098, %v4098
        %4131 = vst.msk [vmem:[%s243 + $0x50] sm:$0xf] %vm245, %v4099
        %4132 = vst.msk [vmem:[%s243 + $0x54] sm:$0xf] %vm245, %v4100
        %4133 = vst.msk [vmem:[%s243 + $0x58] sm:$0xf] %vm245, %v4101
        %4134 = vst.msk [vmem:[%s243 + $0x5c] sm:$0xf] %vm245, %v4102
        %4135 = vst.msk [vmem:[%s243 + $0x60] sm:$0xf] %vm245, %v4103
        %4136 = vst.msk [vmem:[%s243 + $0x64] sm:$0xf] %vm245, %v4104
        %4137 = vst.msk [vmem:[%s243 + $0x68] sm:$0xf] %vm245, %v4105
        %4138 = vst.msk [vmem:[%s243 + $0x6c] sm:$0xf] %vm245, %v4106
        %4139 = vst.msk [vmem:[%s243 + $0x70] sm:$0xf] %vm245, %v4107
        %4140 = vst.msk [vmem:[%s243 + $0x74] sm:$0xf] %vm245, %v4108
        %4141 = vst.msk [vmem:[%s243 + $0x78] sm:$0xf] %vm245, %v4109
        %4142 = vst.msk [vmem:[%s243 + $0x7c] sm:$0xf] %vm245, %v4110
        %4143 = vst.msk [vmem:[%s243 + $0x80] sm:$0xf] %vm245, %v4111
        %4144 = vst.msk [vmem:[%s243 + $0x84] sm:$0xf] %vm245, %v4112
        %4145 = vst.msk [vmem:[%s243 + $0x88] sm:$0xf] %vm245, %v4113
        %4146 = vst.msk [vmem:[%s243 + $0x8c] sm:$0xf] %vm245, %v4114
        %v4147 = vld [vmem:[%s238 + $0x84] sm:$0xc]
        %v4148 = vld [vmem:[%s238 + $0x88] sm:$0xf]
        %v4149 = vld [vmem:[%s238 + $0x8c] sm:$0xf]
        %v4150 = vld [vmem:[%s238 + $0x90] sm:$0xf]
        %v4151 = vld [vmem:[%s238 + $0x94] sm:$0x7]
        %v4152 = vld [vmem:[%s238 + $0x84] sm:$0x8]
        %v4153 = vld [vmem:[%s238 + $0x94] sm:$0xf]
        %v4159 = vunpack.c.l.b16 %v4147
        %v4160 = vunpack.c.l.b16 %v4148
        %v4161 = vunpack.c.l.b16 %v4149
        %v4162 = vunpack.c.l.b16 %v4150
        %v4163 = vunpack.c.l.b16 %v4151
        %v4164 = vpack.c.b16 %v4160, %v4159
        %v4165 = vpack.c.b16 %v4162, %v4161
        %v4166 = vpack.c.b16 %v4163, %v4163
        %v4168 = vunpack.c.l.b16 %v4152
        %v4169 = vpack.c.b16 %v4160, %v4168
        %v4171 = vshrl.u32 %v4169, 16
        %v4173 = vshll.u32 %v4169, 16
        %v4175 = vrot.slane %v4173, 1
        %v4176 = vor.u32 %v4171, %v4175
        %v4178 = vshll.u32 %v4165, 16
        %v4180 = vrot.slane %v4178, 1
        %v4181 = vsel %vm325, %v4176, %v4180
        %v4182 = vshrl.u32 %v4165, 16
        %v4184 = vor.u32 %v4182, %v4180
        %v4186 = vshll.u32 %v4166, 16
        %v4188 = vrot.slane %v4186, 1
        %v4189 = vsel %vm325, %v4184, %v4188
        %v4190 = vshrl.u32 %v4166, 16
        %v4192 = vor.u32 %v4190, %v4188
        %4193 = vrot.lane.b32.xlu0 %v4181, 64
        %v4194 = vpop.permute.xlu0 %4193
        %4195 = vrot.lane.b32.xlu0 %v4189, 64
        %v4196 = vpop.permute.xlu0 %4195
        %4197 = vrot.lane.b32.xlu0 %v4192, 64
        %v4198 = vpop.permute.xlu0 %4197
        %v4200 = vunpack.c.l.b16 %v4153
        %v4201 = vpack.c.b16 %v4200, %v4200
        %v4202 = vrot.slane %v4169, 1
        %v4203 = vrot.slane %v4165, 1
        %v4204 = vsel %vm418, %v4202, %v4203
        %v4205 = vrot.slane %v4201, 1
        %v4206 = vsel %vm418, %v4203, %v4205
        %v4209 = vsel %vm436, %v4164, %v4194
        %v4211 = vsel %vm436, %v4165, %v4196
        %v4213 = vsel %vm436, %v4166, %v4198
        %v4214 = vld [vmem:[%s1] sm:$0xf]
        %v4215 = vld [vmem:[%s1 + $0x4] sm:$0xf]
        %v4216 = vld [vmem:[%s1 + $0x8] sm:$0xf]
        %v4217 = vld [vmem:[%s1 + $0xc] sm:$0xf]
        %v4218 = vld [vmem:[%s1 + $0x10] sm:$0xf]
        %v4219 = vld [vmem:[%s1 + $0x14] sm:$0xf]
        %v4220 = vld [vmem:[%s1 + $0x18] sm:$0xf]
        %v4221 = vld [vmem:[%s1 + $0x1c] sm:$0xf]
        %v4222 = vld [vmem:[%s1 + $0x20] sm:$0xf]
        %v4223 = vld [vmem:[%s1 + $0x24] sm:$0xf]
        %v4224 = vld [vmem:[%s1 + $0x28] sm:$0xf]
        %v4225 = vld [vmem:[%s1 + $0x2c] sm:$0xf]
        %v4226 = vld [vmem:[%s1 + $0x30] sm:$0xf]
        %v4227 = vld [vmem:[%s1 + $0x34] sm:$0xf]
        %v4228 = vld [vmem:[%s1 + $0x38] sm:$0xf]
        %v4229 = vld [vmem:[%s1 + $0x3c] sm:$0xf]
        %v4230 = vld [vmem:[%s1 + $0x40] sm:$0xf]
        %v4231 = vld [vmem:[%s1 + $0x44] sm:$0xf]
        %v4232 = vld [vmem:[%s1 + $0x48] sm:$0xf]
        %v4233 = vld [vmem:[%s1 + $0x4c] sm:$0xf]
        %v4234 = vld [vmem:[%s1 + $0x50] sm:$0xf]
        %v4235 = vld [vmem:[%s1 + $0x54] sm:$0xf]
        %v4236 = vld [vmem:[%s1 + $0x58] sm:$0xf]
        %v4237 = vld [vmem:[%s1 + $0x5c] sm:$0xf]
        %v4238 = vld [vmem:[%s238 + $0x8c] sm:$0x8]
        %v4239 = vld [vmem:[%s238 + $0x98] sm:$0xf]
        %v4240 = vld [vmem:[%s238 + $0x9c] sm:$0xf]
        %v4241 = vld [vmem:[%s238 + $0xa0] sm:$0x1]
        %v4245 = vunpack.c.l.b16 %v4238
        %v4246 = vunpack.c.l.b16 %v4239
        %v4247 = vunpack.c.l.b16 %v4240
        %v4248 = vpack.c.b16 %v4162, %v4245
        %v4249 = vpack.c.b16 %v4246, %v4200
        %v4250 = vpack.c.b16 %v4247, %v4247
        %v4251 = vpack.c.b16 %v4200, %v4162
        %v4252 = vpack.c.b16 %v4247, %v4246
        %v4254 = vshrl.u32 %v4251, 16
        %v4256 = vrot.slane %v4254, 4
        %v4257 = vshll.u32 %v4251, 16
        %v4259 = vrot.slane %v4257, 5
        %v4260 = vor.u32 %v4256, %v4259
        %v4262 = vshrl.u32 %v4252, 16
        %v4264 = vrot.slane %v4262, 4
        %v4265 = vshll.u32 %v4252, 16
        %v4267 = vrot.slane %v4265, 5
        %v4268 = vor.u32 %v4264, %v4267
        %v4269 = vsel %vm501, %v4260, %v4268
        %4270 = vrot.lane.b32.xlu0 %v4260, 64
        %v4271 = vpop.permute.xlu0 %4270
        %4272 = vrot.lane.b32.xlu0 %v4269, 64
        %v4273 = vpop.permute.xlu0 %4272
        %4274 = vrot.lane.b32.xlu0 %v4268, 64
        %v4275 = vpop.permute.xlu0 %4274
        %v4277 = vunpack.c.l.b16 %v4241
        %v4278 = vpack.c.b16 %v4277, %v4277
        %v4279 = vrot.slane %v4251, 5
        %v4280 = vrot.slane %v4252, 5
        %v4281 = vsel %vm594, %v4279, %v4280
        %v4282 = vrot.slane %v4278, 5
        %v4283 = vsel %vm594, %v4280, %v4282
        %v4286 = vsel %vm436, %v4248, %v4271
        %v4289 = vsel %vm436, %v4249, %v4273
        %v4292 = vsel %vm436, %v4250, %v4275
        %v4293 = vld [vmem:[%s1 + $0x60] sm:$0xf]
        %v4294 = vld [vmem:[%s1 + $0x64] sm:$0xf]
        %v4295 = vld [vmem:[%s1 + $0x68] sm:$0xf]
        %v4296 = vld [vmem:[%s1 + $0x6c] sm:$0xf]
        %v4297 = vld [vmem:[%s1 + $0x70] sm:$0xf]
        %v4298 = vld [vmem:[%s1 + $0x74] sm:$0xf]
        %v4299 = vld [vmem:[%s1 + $0x78] sm:$0xf]
        %v4300 = vld [vmem:[%s1 + $0x7c] sm:$0xf]
        %v4301 = vld [vmem:[%s1 + $0x80] sm:$0xf]
        %v4302 = vld [vmem:[%s1 + $0x84] sm:$0xf]
        %v4303 = vld [vmem:[%s1 + $0x88] sm:$0xf]
        %v4304 = vld [vmem:[%s1 + $0x8c] sm:$0xf]
        %v4305 = vld [vmem:[%s1 + $0x90] sm:$0xf]
        %v4306 = vld [vmem:[%s1 + $0x94] sm:$0xf]
        %v4307 = vld [vmem:[%s1 + $0x98] sm:$0xf]
        %v4308 = vld [vmem:[%s1 + $0x9c] sm:$0xf]
        %v4309 = vld [vmem:[%s1 + $0xa0] sm:$0xf]
        %v4310 = vld [vmem:[%s1 + $0xa4] sm:$0xf]
        %v4311 = vld [vmem:[%s1 + $0xa8] sm:$0xf]
        %v4312 = vld [vmem:[%s1 + $0xac] sm:$0xf]
        %v4313 = vld [vmem:[%s1 + $0xb0] sm:$0xf]
        %v4314 = vld [vmem:[%s1 + $0xb4] sm:$0xf]
        %v4315 = vld [vmem:[%s1 + $0xb8] sm:$0xf]
        %v4316 = vld [vmem:[%s1 + $0xbc] sm:$0xf]
        %v4317 = vshrl.u32 %v4286, 16
        %v4319 = vrot.slane %v4317, 3
        %v4320 = vshll.u32 %v4286, 16
        %v4322 = vrot.slane %v4320, 4
        %v4323 = vor.u32 %v4319, %v4322
        %v4324 = vshrl.u32 %v4289, 16
        %v4326 = vrot.slane %v4324, 3
        %v4327 = vshll.u32 %v4289, 16
        %v4329 = vrot.slane %v4327, 4
        %v4330 = vor.u32 %v4326, %v4329
        %v4331 = vsel %vm657, %v4323, %v4330
        %v4333 = vshrl.u32 %v4279, 16
        %v4335 = vrot.slane %v4333, 3
        %v4336 = vshll.u32 %v4279, 16
        %v4338 = vrot.slane %v4336, 4
        %v4339 = vor.u32 %v4335, %v4338
        %v4341 = vshrl.u32 %v4281, 16
        %v4343 = vrot.slane %v4341, 3
        %v4344 = vshll.u32 %v4281, 16
        %v4346 = vrot.slane %v4344, 4
        %v4347 = vor.u32 %v4343, %v4346
        %v4348 = vsel %vm657, %v4339, %v4347
        %v4349 = vshrl.u32 %v4292, 16
        %v4351 = vrot.slane %v4349, 3
        %v4352 = vshll.u32 %v4292, 16
        %v4354 = vrot.slane %v4352, 4
        %v4355 = vor.u32 %v4351, %v4354
        %v4356 = vsel %vm657, %v4330, %v4355
        %v4358 = vshrl.u32 %v4283, 16
        %v4360 = vrot.slane %v4358, 3
        %v4361 = vshll.u32 %v4283, 16
        %v4363 = vrot.slane %v4361, 4
        %v4364 = vor.u32 %v4360, %v4363
        %v4365 = vsel %vm657, %v4347, %v4364
        %v4392 = vunpack.c.l.b16 %v4293
        %v4393 = vunpack.c.l.b16 %v4294
        %v4394 = vunpack.c.l.b16 %v4295
        %v4395 = vunpack.c.l.b16 %v4296
        %v4396 = vunpack.c.l.b16 %v4297
        %v4397 = vunpack.c.l.b16 %v4298
        %v4398 = vunpack.c.l.b16 %v4299
        %v4399 = vunpack.c.l.b16 %v4300
        %v4400 = vunpack.c.l.b16 %v4301
        %v4401 = vunpack.c.l.b16 %v4302
        %v4402 = vunpack.c.l.b16 %v4303
        %v4403 = vunpack.c.l.b16 %v4304
        %v4404 = vunpack.c.l.b16 %v4305
        %v4405 = vunpack.c.l.b16 %v4306
        %v4406 = vunpack.c.l.b16 %v4307
        %v4407 = vunpack.c.l.b16 %v4308
        %v4408 = vunpack.c.l.b16 %v4309
        %v4409 = vunpack.c.l.b16 %v4310
        %v4410 = vunpack.c.l.b16 %v4311
        %v4411 = vunpack.c.l.b16 %v4312
        %v4412 = vunpack.c.l.b16 %v4313
        %v4413 = vunpack.c.l.b16 %v4314
        %v4414 = vunpack.c.l.b16 %v4315
        %v4415 = vunpack.c.l.b16 %v4316
        %v4416 = vpack.c.b16 %v4393, %v4392
        %v4417 = vpack.c.b16 %v4395, %v4394
        %v4418 = vpack.c.b16 %v4397, %v4396
        %v4419 = vpack.c.b16 %v4399, %v4398
        %v4420 = vpack.c.b16 %v4401, %v4400
        %v4421 = vpack.c.b16 %v4403, %v4402
        %v4422 = vpack.c.b16 %v4405, %v4404
        %v4423 = vpack.c.b16 %v4407, %v4406
        %v4424 = vpack.c.b16 %v4409, %v4408
        %v4425 = vpack.c.b16 %v4411, %v4410
        %v4426 = vpack.c.b16 %v4413, %v4412
        %v4427 = vpack.c.b16 %v4415, %v4414
        %v4441 = vsel %vm436, %v4348, 0
        %v4444 = vsel %vm436, %v4365, 0
        %4446 = vmatprep.subr.bf16.mxu0 0
        %4447 = vmatpush1.bf16.msra.mxu0 %v4423
        %4448 = vmatprep.subr.bf16.mxu0 0
        %4449 = vmatpush1.bf16.msra.mxu0 %v4422
        %4450 = vmatprep.subr.bf16.mxu0 0
        %4451 = vmatpush1.bf16.msra.mxu0 %v4421
        %4452 = vmatprep.subr.bf16.mxu0 0
        %4453 = vmatpush1.bf16.msra.mxu0 %v4420
        %4454 = vmatprep.subr.bf16.mxu0 0
        %4455 = vmatpush1.bf16.msra.mxu0 %v4419
        %4456 = vmatprep.subr.bf16.mxu0 0
        %4457 = vmatpush1.bf16.msra.mxu0 %v4418
        %4458 = vmatprep.subr.bf16.mxu0 0
        %4459 = vmatpush1.bf16.msra.mxu0 %v4417
        %4460 = vmatprep.subr.bf16.mxu0 0
        %4461 = vmatpush1.bf16.msra.mxu0 %v4416
        %4462 = vmatprep.subr.bf16.mxu0 0
        %4463 = vmatpush2.bf16.msra.mxu0 0
        %4464 = vmatprep.subr.bf16.mxu0 0
        %4465 = vmatpush2.bf16.msra.mxu0 0
        %4466 = vmatprep.subr.bf16.mxu0 0
        %4467 = vmatpush2.bf16.msra.mxu0 0
        %4468 = vmatprep.subr.bf16.mxu0 0
        %4469 = vmatpush2.bf16.msra.mxu0 0
        %4470 = vmatprep.subr.bf16.mxu0 0
        %4471 = vmatpush2.bf16.msra.mxu0 %v4427
        %4472 = vmatprep.subr.bf16.mxu0 0
        %4473 = vmatpush2.bf16.msra.mxu0 %v4426
        %4474 = vmatprep.subr.bf16.mxu0 0
        %4475 = vmatpush2.bf16.msra.mxu0 %v4425
        %4476 = vmatprep.subr.bf16.mxu0 0
        %4477 = vmatpush2.bf16.msra.mxu0 %v4424
        %4478 = vmatprep.mubr.bf16.mxu0 %v4441
        %4479 = vmatmul.mubr.bf16.gmra.mxu0 %v4331
        %v4480 = vpop.f32.mrf.mxu0
        %v4481 = vadd.f32 0.0, %v4480
        %v4482 = vpop.f32.mrf.mxu0
        %v4483 = vpop.f32.mrf.mxu0
        %v4484 = vadd.f32 0.0, %v4483
        %v4485 = vpop.f32.mrf.mxu0
        %4486 = vmatprep.mubr.bf16.mxu0 %v4444
        %4487 = vmatmul.mubr.bf16.gmra.mxu0 %v4356
        %v4488 = vpop.f32.mrf.mxu0
        %v4489 = vadd.f32 0.0, %v4488
        %v4490 = vpop.f32.mrf.mxu0
        %v4491 = vpop.f32.mrf.mxu0
        %v4492 = vadd.f32 0.0, %v4491
        %v4493 = vpop.f32.mrf.mxu0
        %4494 = vdwg.mxu0
        %v4495 = vshrl.u32 %v4209, 16
        %v4497 = vrot.slane %v4495, 2
        %v4498 = vshll.u32 %v4209, 16
        %v4500 = vrot.slane %v4498, 3
        %v4501 = vor.u32 %v4497, %v4500
        %v4502 = vshrl.u32 %v4211, 16
        %v4504 = vrot.slane %v4502, 2
        %v4505 = vshll.u32 %v4211, 16
        %v4507 = vrot.slane %v4505, 3
        %v4508 = vor.u32 %v4504, %v4507
        %v4509 = vsel %vm1010, %v4501, %v4508
        %v4511 = vshrl.u32 %v4204, 16
        %v4513 = vrot.slane %v4511, 2
        %v4514 = vshll.u32 %v4204, 16
        %v4516 = vrot.slane %v4514, 3
        %v4517 = vor.u32 %v4513, %v4516
        %v4519 = vshrl.u32 %v4206, 16
        %v4521 = vrot.slane %v4519, 2
        %v4522 = vshll.u32 %v4206, 16
        %v4524 = vrot.slane %v4522, 3
        %v4525 = vor.u32 %v4521, %v4524
        %v4526 = vsel %vm1010, %v4517, %v4525
        %v4527 = vshrl.u32 %v4213, 16
        %v4529 = vrot.slane %v4527, 2
        %v4530 = vshll.u32 %v4213, 16
        %v4532 = vrot.slane %v4530, 3
        %v4533 = vor.u32 %v4529, %v4532
        %v4534 = vsel %vm1010, %v4508, %v4533
        %v4536 = vshrl.u32 %v4205, 16
        %v4538 = vrot.slane %v4536, 2
        %v4539 = vshll.u32 %v4205, 16
        %v4541 = vrot.slane %v4539, 3
        %v4542 = vor.u32 %v4538, %v4541
        %v4543 = vsel %vm1010, %v4525, %v4542
        %v4570 = vunpack.c.l.b16 %v4214
        %v4571 = vunpack.c.l.b16 %v4215
        %v4572 = vunpack.c.l.b16 %v4216
        %v4573 = vunpack.c.l.b16 %v4217
        %v4574 = vunpack.c.l.b16 %v4218
        %v4575 = vunpack.c.l.b16 %v4219
        %v4576 = vunpack.c.l.b16 %v4220
        %v4577 = vunpack.c.l.b16 %v4221
        %v4578 = vunpack.c.l.b16 %v4222
        %v4579 = vunpack.c.l.b16 %v4223
        %v4580 = vunpack.c.l.b16 %v4224
        %v4581 = vunpack.c.l.b16 %v4225
        %v4582 = vunpack.c.l.b16 %v4226
        %v4583 = vunpack.c.l.b16 %v4227
        %v4584 = vunpack.c.l.b16 %v4228
        %v4585 = vunpack.c.l.b16 %v4229
        %v4586 = vunpack.c.l.b16 %v4230
        %v4587 = vunpack.c.l.b16 %v4231
        %v4588 = vunpack.c.l.b16 %v4232
        %v4589 = vunpack.c.l.b16 %v4233
        %v4590 = vunpack.c.l.b16 %v4234
        %v4591 = vunpack.c.l.b16 %v4235
        %v4592 = vunpack.c.l.b16 %v4236
        %v4593 = vunpack.c.l.b16 %v4237
        %v4594 = vpack.c.b16 %v4571, %v4570
        %v4595 = vpack.c.b16 %v4573, %v4572
        %v4596 = vpack.c.b16 %v4575, %v4574
        %v4597 = vpack.c.b16 %v4577, %v4576
        %v4598 = vpack.c.b16 %v4579, %v4578
        %v4599 = vpack.c.b16 %v4581, %v4580
        %v4600 = vpack.c.b16 %v4583, %v4582
        %v4601 = vpack.c.b16 %v4585, %v4584
        %v4602 = vpack.c.b16 %v4587, %v4586
        %v4603 = vpack.c.b16 %v4589, %v4588
        %v4604 = vpack.c.b16 %v4591, %v4590
        %v4605 = vpack.c.b16 %v4593, %v4592
        %v4619 = vsel %vm436, %v4526, 0
        %v4622 = vsel %vm436, %v4543, 0
        %4624 = vmatprep.subr.bf16.mxu0 0
        %4625 = vmatpush1.bf16.msra.mxu0 %v4601
        %4626 = vmatprep.subr.bf16.mxu0 0
        %4627 = vmatpush1.bf16.msra.mxu0 %v4600
        %4628 = vmatprep.subr.bf16.mxu0 0
        %4629 = vmatpush1.bf16.msra.mxu0 %v4599
        %4630 = vmatprep.subr.bf16.mxu0 0
        %4631 = vmatpush1.bf16.msra.mxu0 %v4598
        %4632 = vmatprep.subr.bf16.mxu0 0
        %4633 = vmatpush1.bf16.msra.mxu0 %v4597
        %4634 = vmatprep.subr.bf16.mxu0 0
        %4635 = vmatpush1.bf16.msra.mxu0 %v4596
        %4636 = vmatprep.subr.bf16.mxu0 0
        %4637 = vmatpush1.bf16.msra.mxu0 %v4595
        %4638 = vmatprep.subr.bf16.mxu0 0
        %4639 = vmatpush1.bf16.msra.mxu0 %v4594
        %4640 = vmatprep.subr.bf16.mxu0 0
        %4641 = vmatpush2.bf16.msra.mxu0 0
        %4642 = vmatprep.subr.bf16.mxu0 0
        %4643 = vmatpush2.bf16.msra.mxu0 0
        %4644 = vmatprep.subr.bf16.mxu0 0
        %4645 = vmatpush2.bf16.msra.mxu0 0
        %4646 = vmatprep.subr.bf16.mxu0 0
        %4647 = vmatpush2.bf16.msra.mxu0 0
        %4648 = vmatprep.subr.bf16.mxu0 0
        %4649 = vmatpush2.bf16.msra.mxu0 %v4605
        %4650 = vmatprep.subr.bf16.mxu0 0
        %4651 = vmatpush2.bf16.msra.mxu0 %v4604
        %4652 = vmatprep.subr.bf16.mxu0 0
        %4653 = vmatpush2.bf16.msra.mxu0 %v4603
        %4654 = vmatprep.subr.bf16.mxu0 0
        %4655 = vmatpush2.bf16.msra.mxu0 %v4602
        %4656 = vmatprep.mubr.bf16.mxu0 %v4619
        %4657 = vmatmul.mubr.bf16.gmra.mxu0 %v4509
        %v4658 = vpop.f32.mrf.mxu0
        %v4659 = vadd.f32 %v4481, %v4658
        %v4660 = vpop.f32.mrf.mxu0
        %v4661 = vpop.f32.mrf.mxu0
        %v4662 = vadd.f32 %v4484, %v4661
        %v4663 = vpop.f32.mrf.mxu0
        %4664 = vmatprep.mubr.bf16.mxu0 %v4622
        %4665 = vmatmul.mubr.bf16.gmra.mxu0 %v4534
        %v4666 = vpop.f32.mrf.mxu0
        %v4667 = vadd.f32 %v4489, %v4666
        %v4668 = vpop.f32.mrf.mxu0
        %v4669 = vpop.f32.mrf.mxu0
        %v4670 = vadd.f32 %v4492, %v4669
        %v4671 = vpop.f32.mrf.mxu0
        %4672 = vdwg.mxu0
        %v4673 = vld [vmem:[%s238 + $0x98] sm:$0xf]
        %v4674 = vld [vmem:[%s238 + $0x9c] sm:$0xf]
        %v4675 = vld [vmem:[%s238 + $0xa0] sm:$0xf]
        %v4676 = vld [vmem:[%s238 + $0xa4] sm:$0xf]
        %v4677 = vld [vmem:[%s238 + $0xa8] sm:$0x1]
        %v4678 = vld [vmem:[%s238 + $0x98] sm:$0xe]
        %v4679 = vld [vmem:[%s238 + $0xa8] sm:$0x3]
        %v4685 = vunpack.c.l.b16 %v4673
        %v4686 = vunpack.c.l.b16 %v4674
        %v4687 = vunpack.c.l.b16 %v4675
        %v4688 = vunpack.c.l.b16 %v4676
        %v4689 = vunpack.c.l.b16 %v4677
        %v4690 = vpack.c.b16 %v4686, %v4685
        %v4691 = vpack.c.b16 %v4688, %v4687
        %v4692 = vpack.c.b16 %v4689, %v4689
        %v4694 = vunpack.c.l.b16 %v4678
        %v4695 = vpack.c.b16 %v4686, %v4694
        %v4697 = vshrl.u32 %v4695, 16
        %v4699 = vshll.u32 %v4695, 16
        %v4701 = vrot.slane %v4699, 1
        %v4702 = vor.u32 %v4697, %v4701
        %v4704 = vshll.u32 %v4691, 16
        %v4706 = vrot.slane %v4704, 1
        %v4707 = vsel %vm325, %v4702, %v4706
        %v4708 = vshrl.u32 %v4691, 16
        %v4710 = vor.u32 %v4708, %v4706
        %v4712 = vshll.u32 %v4692, 16
        %v4714 = vrot.slane %v4712, 1
        %v4715 = vsel %vm325, %v4710, %v4714
        %v4716 = vshrl.u32 %v4692, 16
        %4718 = vrot.lane.b32.xlu0 %v4707, 64
        %v4719 = vpop.permute.xlu0 %4718
        %4720 = vrot.lane.b32.xlu0 %v4715, 64
        %v4721 = vpop.permute.xlu0 %4720
        %4722 = vrot.lane.b32.xlu0 %v4716, 64
        %v4723 = vpop.permute.xlu0 %4722
        %v4725 = vunpack.c.l.b16 %v4679
        %v4726 = vpack.c.b16 %v4725, %v4725
        %v4727 = vrot.slane %v4695, 1
        %v4728 = vrot.slane %v4691, 1
        %v4729 = vsel %vm418, %v4727, %v4728
        %v4730 = vrot.slane %v4726, 1
        %v4731 = vsel %vm418, %v4728, %v4730
        %v4734 = vsel %vm436, %v4690, %v4719
        %v4736 = vsel %vm436, %v4691, %v4721
        %v4738 = vsel %vm436, %v4692, %v4723
        %v4739 = vld [vmem:[%s1 + $0xc0] sm:$0xf]
        %v4740 = vld [vmem:[%s1 + $0xc4] sm:$0xf]
        %v4741 = vld [vmem:[%s1 + $0xc8] sm:$0xf]
        %v4742 = vld [vmem:[%s1 + $0xcc] sm:$0xf]
        %v4743 = vld [vmem:[%s1 + $0xd0] sm:$0xf]
        %v4744 = vld [vmem:[%s1 + $0xd4] sm:$0xf]
        %v4745 = vld [vmem:[%s1 + $0xd8] sm:$0xf]
        %v4746 = vld [vmem:[%s1 + $0xdc] sm:$0xf]
        %v4747 = vld [vmem:[%s1 + $0xe0] sm:$0xf]
        %v4748 = vld [vmem:[%s1 + $0xe4] sm:$0xf]
        %v4749 = vld [vmem:[%s1 + $0xe8] sm:$0xf]
        %v4750 = vld [vmem:[%s1 + $0xec] sm:$0xf]
        %v4751 = vld [vmem:[%s1 + $0xf0] sm:$0xf]
        %v4752 = vld [vmem:[%s1 + $0xf4] sm:$0xf]
        %v4753 = vld [vmem:[%s1 + $0xf8] sm:$0xf]
        %v4754 = vld [vmem:[%s1 + $0xfc] sm:$0xf]
        %v4755 = vld [vmem:[%s1 + $0x100] sm:$0xf]
        %v4756 = vld [vmem:[%s1 + $0x104] sm:$0xf]
        %v4757 = vld [vmem:[%s1 + $0x108] sm:$0xf]
        %v4758 = vld [vmem:[%s1 + $0x10c] sm:$0xf]
        %v4759 = vld [vmem:[%s1 + $0x110] sm:$0xf]
        %v4760 = vld [vmem:[%s1 + $0x114] sm:$0xf]
        %v4761 = vld [vmem:[%s1 + $0x118] sm:$0xf]
        %v4762 = vld [vmem:[%s1 + $0x11c] sm:$0xf]
        %v4763 = vshrl.u32 %v4734, 16
        %v4765 = vshll.u32 %v4734, 16
        %v4767 = vrot.slane %v4765, 1
        %v4768 = vor.u32 %v4763, %v4767
        %v4769 = vshll.u32 %v4736, 16
        %v4771 = vrot.slane %v4769, 1
        %v4772 = vsel %vm325, %v4768, %v4771
        %v4774 = vshrl.u32 %v4729, 16
        %v4776 = vshll.u32 %v4729, 16
        %v4778 = vrot.slane %v4776, 1
        %v4779 = vor.u32 %v4774, %v4778
        %v4781 = vshll.u32 %v4731, 16
        %v4783 = vrot.slane %v4781, 1
        %v4784 = vsel %vm325, %v4779, %v4783
        %v4785 = vshrl.u32 %v4736, 16
        %v4787 = vor.u32 %v4785, %v4771
        %v4788 = vshll.u32 %v4738, 16
        %v4790 = vrot.slane %v4788, 1
        %v4791 = vsel %vm325, %v4787, %v4790
        %v4792 = vshrl.u32 %v4731, 16
        %v4794 = vor.u32 %v4792, %v4783
        %v4796 = vshll.u32 %v4730, 16
        %v4798 = vrot.slane %v4796, 1
        %v4799 = vsel %vm325, %v4794, %v4798
        %v4826 = vunpack.c.l.b16 %v4739
        %v4827 = vunpack.c.l.b16 %v4740
        %v4828 = vunpack.c.l.b16 %v4741
        %v4829 = vunpack.c.l.b16 %v4742
        %v4830 = vunpack.c.l.b16 %v4743
        %v4831 = vunpack.c.l.b16 %v4744
        %v4832 = vunpack.c.l.b16 %v4745
        %v4833 = vunpack.c.l.b16 %v4746
        %v4834 = vunpack.c.l.b16 %v4747
        %v4835 = vunpack.c.l.b16 %v4748
        %v4836 = vunpack.c.l.b16 %v4749
        %v4837 = vunpack.c.l.b16 %v4750
        %v4838 = vunpack.c.l.b16 %v4751
        %v4839 = vunpack.c.l.b16 %v4752
        %v4840 = vunpack.c.l.b16 %v4753
        %v4841 = vunpack.c.l.b16 %v4754
        %v4842 = vunpack.c.l.b16 %v4755
        %v4843 = vunpack.c.l.b16 %v4756
        %v4844 = vunpack.c.l.b16 %v4757
        %v4845 = vunpack.c.l.b16 %v4758
        %v4846 = vunpack.c.l.b16 %v4759
        %v4847 = vunpack.c.l.b16 %v4760
        %v4848 = vunpack.c.l.b16 %v4761
        %v4849 = vunpack.c.l.b16 %v4762
        %v4850 = vpack.c.b16 %v4827, %v4826
        %v4851 = vpack.c.b16 %v4829, %v4828
        %v4852 = vpack.c.b16 %v4831, %v4830
        %v4853 = vpack.c.b16 %v4833, %v4832
        %v4854 = vpack.c.b16 %v4835, %v4834
        %v4855 = vpack.c.b16 %v4837, %v4836
        %v4856 = vpack.c.b16 %v4839, %v4838
        %v4857 = vpack.c.b16 %v4841, %v4840
        %v4858 = vpack.c.b16 %v4843, %v4842
        %v4859 = vpack.c.b16 %v4845, %v4844
        %v4860 = vpack.c.b16 %v4847, %v4846
        %v4861 = vpack.c.b16 %v4849, %v4848
        %v4875 = vsel %vm436, %v4784, 0
        %v4878 = vsel %vm436, %v4799, 0
        %4880 = vmatprep.subr.bf16.mxu0 0
        %4881 = vmatpush1.bf16.msra.mxu0 %v4857
        %4882 = vmatprep.subr.bf16.mxu0 0
        %4883 = vmatpush1.bf16.msra.mxu0 %v4856
        %4884 = vmatprep.subr.bf16.mxu0 0
        %4885 = vmatpush1.bf16.msra.mxu0 %v4855
        %4886 = vmatprep.subr.bf16.mxu0 0
        %4887 = vmatpush1.bf16.msra.mxu0 %v4854
        %4888 = vmatprep.subr.bf16.mxu0 0
        %4889 = vmatpush1.bf16.msra.mxu0 %v4853
        %4890 = vmatprep.subr.bf16.mxu0 0
        %4891 = vmatpush1.bf16.msra.mxu0 %v4852
        %4892 = vmatprep.subr.bf16.mxu0 0
        %4893 = vmatpush1.bf16.msra.mxu0 %v4851
        %4894 = vmatprep.subr.bf16.mxu0 0
        %4895 = vmatpush1.bf16.msra.mxu0 %v4850
        %4896 = vmatprep.subr.bf16.mxu0 0
        %4897 = vmatpush2.bf16.msra.mxu0 0
        %4898 = vmatprep.subr.bf16.mxu0 0
        %4899 = vmatpush2.bf16.msra.mxu0 0
        %4900 = vmatprep.subr.bf16.mxu0 0
        %4901 = vmatpush2.bf16.msra.mxu0 0
        %4902 = vmatprep.subr.bf16.mxu0 0
        %4903 = vmatpush2.bf16.msra.mxu0 0
        %4904 = vmatprep.subr.bf16.mxu0 0
        %4905 = vmatpush2.bf16.msra.mxu0 %v4861
        %4906 = vmatprep.subr.bf16.mxu0 0
        %4907 = vmatpush2.bf16.msra.mxu0 %v4860
        %4908 = vmatprep.subr.bf16.mxu0 0
        %4909 = vmatpush2.bf16.msra.mxu0 %v4859
        %4910 = vmatprep.subr.bf16.mxu0 0
        %4911 = vmatpush2.bf16.msra.mxu0 %v4858
        %4912 = vmatprep.mubr.bf16.mxu0 %v4875
        %4913 = vmatmul.mubr.bf16.gmra.mxu0 %v4772
        %v4914 = vpop.f32.mrf.mxu0
        %v4915 = vadd.f32 0.0, %v4914
        %v4916 = vpop.f32.mrf.mxu0
        %v4917 = vpop.f32.mrf.mxu0
        %v4918 = vadd.f32 0.0, %v4917
        %v4919 = vpop.f32.mrf.mxu0
        %4920 = vmatprep.mubr.bf16.mxu0 %v4878
        %4921 = vmatmul.mubr.bf16.gmra.mxu0 %v4791
        %v4922 = vpop.f32.mrf.mxu0
        %v4923 = vadd.f32 0.0, %v4922
        %v4924 = vpop.f32.mrf.mxu0
        %v4925 = vpop.f32.mrf.mxu0
        %v4926 = vadd.f32 0.0, %v4925
        %v4927 = vpop.f32.mrf.mxu0
        %4928 = vdwg.mxu0
        %v4929 = vadd.f32 %v4659, %v4915
        %v4930 = vadd.f32 %v4662, %v4918
        %v4931 = vadd.f32 %v4667, %v4923
        %v4932 = vadd.f32 %v4670, %v4926
        %v4933 = vld [vmem:[%s2 + $0x120] sm:$0xff]
        %v4934 = vld [vmem:[%s2 + $0x128] sm:$0xff]
        %v4935 = vld [vmem:[%s2 + $0x130] sm:$0xff]
        %v4936 = vld [vmem:[%s2 + $0x138] sm:$0xff]
        %4938 = vset.pattern.permute.xlu0 0
        %4939 = vperm.xlu0 %4938, %v4933
        %v4940 = vpop.permute.xlu0 %4939
        %4943 = vset.pattern.permute.xlu0 0
        %4944 = vperm.xlu0 %4943, %v4934
        %v4945 = vpop.permute.xlu0 %4944
        %4948 = vset.pattern.permute.xlu0 0
        %4949 = vperm.xlu0 %4948, %v4935
        %v4950 = vpop.permute.xlu0 %4949
        %4953 = vset.pattern.permute.xlu0 0
        %4954 = vperm.xlu0 %4953, %v4936
        %v4955 = vpop.permute.xlu0 %4954
        %v4957 = vmul.f32 %v4929, %v4940
        %v4958 = vmul.f32 %v4930, %v4945
        %v4959 = vmul.f32 %v4931, %v4950
        %v4960 = vmul.f32 %v4932, %v4955
        %v4961 = vsel %vm436, %v4957, 0.0
        %v4962 = vsel %vm436, %v4958, 0.0
        %v4963 = vadd.f32 %v4961, %v4962
        %v4964 = vsel %vm436, %v4959, 0.0
        %v4965 = vadd.f32 %v4963, %v4964
        %v4966 = vsel %vm436, %v4960, 0.0
        %v4967 = vadd.f32 %v4965, %v4966
        %v4968 = vrot.slane %v4967, 4
        %v4969 = vadd.f32 %v4967, %v4968
        %v4970 = vrot.slane %v4969, 2
        %v4971 = vadd.f32 %v4969, %v4970
        %v4972 = vrot.slane %v4971, 1
        %v4973 = vadd.f32 %v4971, %v4972
        %v4974 = vadd.f32 %v4012, %v4973
        %v4975 = vmul.f32 %v4957, %v4957
        %v4976 = vmul.f32 %v4958, %v4958
        %v4977 = vmul.f32 %v4959, %v4959
        %v4978 = vmul.f32 %v4960, %v4960
        %v4979 = vsel %vm436, %v4975, 0.0
        %v4980 = vsel %vm436, %v4976, 0.0
        %v4981 = vadd.f32 %v4979, %v4980
        %v4982 = vsel %vm436, %v4977, 0.0
        %v4983 = vadd.f32 %v4981, %v4982
        %v4984 = vsel %vm436, %v4978, 0.0
        %v4985 = vadd.f32 %v4983, %v4984
        %v4986 = vrot.slane %v4985, 4
        %v4987 = vadd.f32 %v4985, %v4986
        %v4988 = vrot.slane %v4987, 2
        %v4989 = vadd.f32 %v4987, %v4988
        %v4990 = vrot.slane %v4989, 1
        %v4991 = vadd.f32 %v4989, %v4990
        %v4992 = vadd.f32 %v4066, %v4991
        %v4993 = vpack.c.bf16 %v4958, %v4957
        %v4994 = vpack.c.bf16 %v4960, %v4959
        %v4997 = vunpack.c.l.b16 %v4993
        %v4998 = vunpack.c.h.b16 %v4993
        %v4999 = vunpack.c.l.b16 %v4994
        %v5000 = vunpack.c.h.b16 %v4994
        %v5001 = vpack.c.b16 %v4997, %v4997
        %v5002 = vpack.c.b16 %v4998, %v4998
        %v5003 = vpack.c.b16 %v4999, %v4999
        %v5004 = vpack.c.b16 %v5000, %v5000
        %5009 = vst.msk [vmem:[%s243 + $0x90] sm:$0xf] %vm245, %v5001
        %5010 = vst.msk [vmem:[%s243 + $0x94] sm:$0xf] %vm245, %v5002
        %5011 = vst.msk [vmem:[%s243 + $0x98] sm:$0xf] %vm245, %v5003
        %5012 = vst.msk [vmem:[%s243 + $0x9c] sm:$0xf] %vm245, %v5004
        %vm5013 = vcmask 516096
        %5014 = vst.msk [vmem:[%s227] sm:$0x1] %vm5013, %v4974
        %5015 = vst.msk [vmem:[%s233] sm:$0x1] %vm5013, %v4992
        %p5016 = scmp.lt.s32.totalorder %s23, 1
        %s5017 = scalar_select %p5016, %s23, 1
        %s5018 = smul.addr %s5017, 45
        %s5019 = smul.addr %s5018, 4
        %s5020 = scalar_lea.vmem %s3, %s5019
        %s5021 = sand.u32 %s125, 1
        %s5022 = scalar_lea.sflag [#allocation3], %s5021
        %s5023 = sand.u32 %s125, 1
        %s5024 = scalar_lea.vmem [#allocation2], %s5023
        %s5025 = sand.u32 %s151, 1
        %s5026 = scalar_lea.sflag [#allocation5], %s5025
        %s5027 = sand.u32 %s151, 1
        %s5028 = scalar_lea.vmem [#allocation4], %s5027
        // Predicated region
        $region33: #{tpu_custom_call.1} parent=31 // pred_check
          %p5029 = pneg %p109
        $region34: #{tpu_custom_call.1} parent=31 // pred_check_branch
          %5031 = sbr.rel (%p5029) target = $region36
        $region35: #{tpu_custom_call.1} parent=31 // pred_region
          _
        $region36: #{tpu_custom_call.1} parent=31 // pred_fallthru
          _
        // Predicated region
        $region37: #{tpu_custom_call.1} parent=31 // pred_check
          %p5032 = pneg %p135
        $region38: #{tpu_custom_call.1} parent=31 // pred_check_branch
          %5034 = sbr.rel (%p5032) target = $region40
        $region39: #{tpu_custom_call.1} parent=31 // pred_region
          %s5036 = ssub.s32 16, 16
          %5037 = vsyncadd %s5022, %s5036
          %s5038 = smul.addr %s23, 16
          %s5039 = scalar_lea.hbm %s4, %s5038
          %s5041 = sshll.u32 %s5024, 4
          %s5042 = int_to_ptr.vmem [resolvable:$true] %s5041
          %5044 = dma.vmem_to_hbm [thread:$0]  %s5042, 16, %s5039, %s5022
        $region40: #{tpu_custom_call.1} parent=31 // pred_fallthru
          _
        // Predicated region
        $region41: #{tpu_custom_call.1} parent=31 // pred_check
          %p5045 = pneg %p161
        $region42: #{tpu_custom_call.1} parent=31 // pred_check_branch
          %5047 = sbr.rel (%p5045) target = $region44
        $region43: #{tpu_custom_call.1} parent=31 // pred_region
          %s5049 = ssub.s32 16, 16
          %5050 = vsyncadd %s5026, %s5049
          %s5051 = smul.addr %s23, 16
          %s5052 = scalar_lea.hbm %s5, %s5051
          %s5054 = sshll.u32 %s5028, 4
          %s5055 = int_to_ptr.vmem [resolvable:$true] %s5054
          %5057 = dma.vmem_to_hbm [thread:$0]  %s5055, 16, %s5052, %s5026
        $region44: #{tpu_custom_call.1} parent=31 // pred_fallthru
          _
      $region32: #{tpu_custom_call.1} parent=5 // pred_fallthru
        _
      %p5058 = scmp.le.s32.totalorder 2, %s18
      // Predicated region
      $region45: #{tpu_custom_call.1} parent=5 // pred_check
        %p5059 = pneg %p5058
      $region46: #{tpu_custom_call.1} parent=5 // pred_check_branch
        %5061 = sbr.rel (%p5059) target = $region48
      $region47: #{tpu_custom_call.1} parent=5 // pred_region
        %s5062 = ssub.s32 %s18, 2
        // Predicated region
        $region49: #{tpu_custom_call.1} parent=47 // pred_check
          %p5063 = pneg %p115
        $region50: #{tpu_custom_call.1} parent=47 // pred_check_branch
          %5065 = sbr.rel (%p5063) target = $region52
        $region51: #{tpu_custom_call.1} parent=47 // pred_region
          %p5066 = scmp.lt.s32.totalorder %s24, 1
          %s5067 = scalar_select %p5066, %s24, 1
          %s5068 = smul.addr %s5067, 45
          %s5069 = smul.addr %s5068, 4
          %s5070 = scalar_lea.vmem %s3, %s5069
        $region52: #{tpu_custom_call.1} parent=47 // pred_fallthru
          _
        // Predicated region
        $region53: #{tpu_custom_call.1} parent=47 // pred_check
          %p5071 = pneg %p141
        $region54: #{tpu_custom_call.1} parent=47 // pred_check_branch
          %5073 = sbr.rel (%p5071) target = $region56
        $region55: #{tpu_custom_call.1} parent=47 // pred_region
          %s5074 = sand.u32 %s126, 1
          %s5075 = scalar_lea.sflag [#allocation3], %s5074
          %s5076 = sand.u32 %s126, 1
          %s5077 = scalar_lea.vmem [#allocation2], %s5076
          %5078 = dma.done %s5075, 16
        $region56: #{tpu_custom_call.1} parent=47 // pred_fallthru
          _
        // Predicated region
        $region57: #{tpu_custom_call.1} parent=47 // pred_check
          %p5079 = pneg %p167
        $region58: #{tpu_custom_call.1} parent=47 // pred_check_branch
          %5081 = sbr.rel (%p5079) target = $region60
        $region59: #{tpu_custom_call.1} parent=47 // pred_region
          %s5082 = sand.u32 %s152, 1
          %s5083 = scalar_lea.sflag [#allocation5], %s5082
          %s5084 = sand.u32 %s152, 1
          %s5085 = scalar_lea.vmem [#allocation4], %s5084
          %5086 = dma.done %s5083, 16
        $region60: #{tpu_custom_call.1} parent=47 // pred_fallthru
          _
      $region48: #{tpu_custom_call.1} parent=5 // pred_fallthru
        _
    $region6: #{tpu_custom_call.1} parent=1 // loop_footer
      %s22 = sadd.s32 1, %s18
    $region7: #{tpu_custom_call.1} parent=1 // loop_footer_branch
      %17 = sbr.rel target = $region3
    $region8: #{tpu_custom_call.1} parent=1 // loop_exit
      _
    %5087 = vsyncpa [#allocation3], 1
    %s5088 = scalar_lea.sflag [#allocation3], 1
    %5089 = vsyncpa %s5088, 1
    %5090 = vsyncpa [#allocation5], 1
    %s5091 = scalar_lea.sflag [#allocation5], 1
    %5092 = vsyncpa %s5091, 1

// kernel: tpu_custom_call.1
$region0: #{tpu_custom_call.1}
  #allocation0 [shape = 'u32[]', space=smem, size = 0x4, offset = 0x4, fixed_abs, tag = 'smem constant byte address 0x4 - core index']
  #allocation1 [shape = 'u32[144,128]{1,0:T(1,128)}', space=vmem, size = 0x12000, scoped, tag = 'internal scratch']
  %s0 = inlined_call_operand.vmem [shape: bf16[2,355,64], index: 0, kind: input, shape index: {}]
  %s1 = inlined_call_operand.vmem [shape: bf16[576,64], index: 1, kind: input, shape index: {}]
  %s2 = inlined_call_operand.vmem [shape: f32[1,355,1], index: 2, kind: input, shape index: {}]
  %s3 = inlined_call_operand.vmem [shape: bf16[2,355,64], index: 3, kind: output, shape index: {0}]
  %s4 = inlined_call_operand.hbm [shape: f32[2,1,64], index: 4, kind: output, shape index: {1}]
  %s5 = inlined_call_operand.hbm [shape: f32[2,1,64], index: 5, kind: output, shape index: {2}]
  %6 = xla_tuple %s3, %s4, %s5
  %s7 = sld [smem:[#allocation0]]
  $region61: #{tpu_custom_call.1} parent=0
    _
  %s9 = ssub.s32 1, %s7
  %s10 = scalar_select 0, %s9, %s7
  $region1: #{tpu_custom_call.1} parent=0
    #allocation2 [shape = 'u8[1024]{0}', space=vmem, size = 0x400, scoped, tag = 'output window, operand 1']
    #allocation3 [shape = 's32[2]{0}', space=sflag, size = 0x8, scoped, tag = 'scoped memory for tpu_custom_call.1']
    #allocation4 [shape = 'u8[1024]{0}', space=vmem, size = 0x400, scoped, tag = 'output window, operand 2']
    #allocation5 [shape = 's32[2]{0}', space=sflag, size = 0x8, scoped, tag = 'scoped memory for tpu_custom_call.1']
    %11 = vsyncpa [#allocation3], 0
    %s12 = scalar_lea.sflag [#allocation3], 1
    %13 = vsyncpa %s12, 0
    %14 = vsyncpa [#allocation5], 0
    %s15 = scalar_lea.sflag [#allocation5], 1
    %16 = vsyncpa %s15, 0
    loop: start=0, step=1, limit=4
    $region2: #{tpu_custom_call.1} parent=1 // loop_pre_header
      _
    $region3: #{tpu_custom_call.1} parent=1 // loop_header
      %s18 = sphi 0, %s22
      %p19 = scmp.ge.s32.totalorder %s18, 4
      %s28 = sphi 0, %s30
      %s31 = sphi 0, %s28
      %s32 = sphi 0, %s31
      %s48 = sphi 0, %s32
      %s52 = sphi 0, %s52
      %s54 = sphi 0, %s52
      %s55 = sphi 0, %s54
      %s69 = sphi 0, %s55
      %s73 = sphi 0, %s73
      %s75 = sphi 0, %s73
      %s76 = sphi 0, %s75
      %s90 = sphi 0, %s76
      %s96 = sphi 0, %s98
      %s99 = sphi 0, %s96
      %s100 = sphi 0, %s99
      %s116 = sphi 0, %s100
      %s122 = sphi 0, %s124
      %s125 = sphi 0, %s122
      %s126 = sphi 0, %s125
      %s142 = sphi 0, %s126
      %s148 = sphi 0, %s150
      %s151 = sphi 0, %s148
      %s152 = sphi 0, %s151
      %s168 = sphi 0, %s152
    $region4: #{tpu_custom_call.1} parent=1 // loop_header_branch
      %21 = sbr.rel (%p19) target = $region8
    $region5: #{tpu_custom_call.1} parent=1 // loop_body
      %s23 = ssub.s32 %s18, 1
      %s24 = ssub.s32 %s18, 2
      %s25 = sadd.s32 %s18, 1
      %s26 = ssub.s32 %s18, %s25
      %p27 = scmp.eq.s32.totalorder %s26, 0
      %s29 = sadd.s32 %s28, 1
      %s30 = scalar_select %p27, %s28, %s29
      %p33 = pneg %p27
      %p34 = scmp.eq.s32.totalorder %s18, 1
      %p35 = por %p33, %p34
      %p36 = scmp.ne.s32.totalorder %s28, %s31
      %p37 = scmp.eq.s32.totalorder %s18, 0
      %p38 = por %p36, %p37
      %p39 = scmp.ne.s32.totalorder %s28, %s31
      %p40 = scmp.eq.s32.totalorder %s23, 1
      %p41 = por %p39, %p40
      %p42 = scmp.ne.s32.totalorder %s31, %s32
      %p43 = scmp.eq.s32.totalorder %s23, 0
      %p44 = por %p42, %p43
      %p45 = scmp.ne.s32.totalorder %s31, %s32
      %p46 = scmp.eq.s32.totalorder %s24, 1
      %p47 = por %p45, %p46
      %p49 = scmp.ne.s32.totalorder %s32, %s48
      %p50 = scmp.eq.s32.totalorder %s24, 0
      %p51 = por %p49, %p50
      %s53 = sadd.s32 %s52, 1
      %p56 = scmp.eq.s32.totalorder %s18, 1
      %p57 = scmp.ne.s32.totalorder %s52, %s54
      %p58 = scmp.eq.s32.totalorder %s18, 0
      %p59 = por %p57, %p58
      %p60 = scmp.ne.s32.totalorder %s52, %s54
      %p61 = scmp.eq.s32.totalorder %s23, 1
      %p62 = por %p60, %p61
      %p63 = scmp.ne.s32.totalorder %s54, %s55
      %p64 = scmp.eq.s32.totalorder %s23, 0
      %p65 = por %p63, %p64
      %p66 = scmp.ne.s32.totalorder %s54, %s55
      %p67 = scmp.eq.s32.totalorder %s24, 1
      %p68 = por %p66, %p67
      %p70 = scmp.ne.s32.totalorder %s55, %s69
      %p71 = scmp.eq.s32.totalorder %s24, 0
      %p72 = por %p70, %p71
      %s74 = sadd.s32 %s73, 1
      %p77 = scmp.eq.s32.totalorder %s18, 1
      %p78 = scmp.ne.s32.totalorder %s73, %s75
      %p79 = scmp.eq.s32.totalorder %s18, 0
      %p80 = por %p78, %p79
      %p81 = scmp.ne.s32.totalorder %s73, %s75
      %p82 = scmp.eq.s32.totalorder %s23, 1
      %p83 = por %p81, %p82
      %p84 = scmp.ne.s32.totalorder %s75, %s76
      %p85 = scmp.eq.s32.totalorder %s23, 0
      %p86 = por %p84, %p85
      %p87 = scmp.ne.s32.totalorder %s75, %s76
      %p88 = scmp.eq.s32.totalorder %s24, 1
      %p89 = por %p87, %p88
      %p91 = scmp.ne.s32.totalorder %s76, %s90
      %p92 = scmp.eq.s32.totalorder %s24, 0
      %p93 = por %p91, %p92
      %s94 = ssub.s32 %s18, %s25
      %p95 = scmp.eq.s32.totalorder %s94, 0
      %s97 = sadd.s32 %s96, 1
      %s98 = scalar_select %p95, %s96, %s97
      %p101 = pneg %p95
      %p102 = scmp.eq.s32.totalorder %s18, 1
      %p103 = por %p101, %p102
      %p104 = scmp.ne.s32.totalorder %s96, %s99
      %p105 = scmp.eq.s32.totalorder %s18, 0
      %p106 = por %p104, %p105
      %p107 = scmp.ne.s32.totalorder %s96, %s99
      %p108 = scmp.eq.s32.totalorder %s23, 1
      %p109 = por %p107, %p108
      %p110 = scmp.ne.s32.totalorder %s99, %s100
      %p111 = scmp.eq.s32.totalorder %s23, 0
      %p112 = por %p110, %p111
      %p113 = scmp.ne.s32.totalorder %s99, %s100
      %p114 = scmp.eq.s32.totalorder %s24, 1
      %p115 = por %p113, %p114
      %p117 = scmp.ne.s32.totalorder %s100, %s116
      %p118 = scmp.eq.s32.totalorder %s24, 0
      %p119 = por %p117, %p118
      %s120 = ssub.s32 %s18, %s25
      %p121 = scmp.eq.s32.totalorder %s120, 0
      %s123 = sadd.s32 %s122, 1
      %s124 = scalar_select %p121, %s122, %s123
      %p127 = pneg %p121
      %p128 = scmp.eq.s32.totalorder %s18, 1
      %p129 = por %p127, %p128
      %p130 = scmp.ne.s32.totalorder %s122, %s125
      %p131 = scmp.eq.s32.totalorder %s18, 0
      %p132 = por %p130, %p131
      %p133 = scmp.ne.s32.totalorder %s122, %s125
      %p134 = scmp.eq.s32.totalorder %s23, 1
      %p135 = por %p133, %p134
      %p136 = scmp.ne.s32.totalorder %s125, %s126
      %p137 = scmp.eq.s32.totalorder %s23, 0
      %p138 = por %p136, %p137
      %p139 = scmp.ne.s32.totalorder %s125, %s126
      %p140 = scmp.eq.s32.totalorder %s24, 1
      %p141 = por %p139, %p140
      %p143 = scmp.ne.s32.totalorder %s126, %s142
      %p144 = scmp.eq.s32.totalorder %s24, 0
      %p145 = por %p143, %p144
      %s146 = ssub.s32 %s18, %s25
      %p147 = scmp.eq.s32.totalorder %s146, 0
      %s149 = sadd.s32 %s148, 1
      %s150 = scalar_select %p147, %s148, %s149
      %p153 = pneg %p147
      %p154 = scmp.eq.s32.totalorder %s18, 1
      %p155 = por %p153, %p154
      %p156 = scmp.ne.s32.totalorder %s148, %s151
      %p157 = scmp.eq.s32.totalorder %s18, 0
      %p158 = por %p156, %p157
      %p159 = scmp.ne.s32.totalorder %s148, %s151
      %p160 = scmp.eq.s32.totalorder %s23, 1
      %p161 = por %p159, %p160
      %p162 = scmp.ne.s32.totalorder %s151, %s152
      %p163 = scmp.eq.s32.totalorder %s23, 0
      %p164 = por %p162, %p163
      %p165 = scmp.ne.s32.totalorder %s151, %s152
      %p166 = scmp.eq.s32.totalorder %s24, 1
      %p167 = por %p165, %p166
      %p169 = scmp.ne.s32.totalorder %s152, %s168
      %p170 = scmp.eq.s32.totalorder %s24, 0
      %p171 = por %p169, %p170
      %p172 = scmp.le.s32.totalorder 1, %s18
      %p173 = scmp.lt.s32.totalorder %s18, 3
      %p174 = pnand %p172, %p173
      %p175 = pneg %p174
      // Predicated region
      $region9: #{tpu_custom_call.1} parent=5 // pred_check
        _
      $region10: #{tpu_custom_call.1} parent=5 // pred_check_branch
        %177 = sbr.rel (%p174) target = $region12
      $region11: #{tpu_custom_call.1} parent=5 // pred_region
        %s178 = ssub.s32 %s18, 1
        // Predicated region
        $region13: #{tpu_custom_call.1} parent=11 // pred_check
          %p179 = pneg %p65
        $region14: #{tpu_custom_call.1} parent=11 // pred_check_branch
          %181 = sbr.rel (%p179) target = $region16
        $region15: #{tpu_custom_call.1} parent=11 // pred_region
          _
        $region16: #{tpu_custom_call.1} parent=11 // pred_fallthru
          _
        // Predicated region
        $region17: #{tpu_custom_call.1} parent=11 // pred_check
          %p182 = pneg %p86
        $region18: #{tpu_custom_call.1} parent=11 // pred_check_branch
          %184 = sbr.rel (%p182) target = $region20
        $region19: #{tpu_custom_call.1} parent=11 // pred_region
          _
        $region20: #{tpu_custom_call.1} parent=11 // pred_fallthru
          _
      $region12: #{tpu_custom_call.1} parent=5 // pred_fallthru
        _
      %p185 = scmp.lt.s32.totalorder %s18, 2
      // Predicated region
      $region21: #{tpu_custom_call.1} parent=5 // pred_check
        %p186 = pneg %p185
      $region22: #{tpu_custom_call.1} parent=5 // pred_check_branch
        %188 = sbr.rel (%p186) target = $region24
      $region23: #{tpu_custom_call.1} parent=5 // pred_region
        // Predicated region
        $region25: #{tpu_custom_call.1} parent=23 // pred_check
          %p189 = pneg %p38
        $region26: #{tpu_custom_call.1} parent=23 // pred_check_branch
          %191 = sbr.rel (%p189) target = $region28
        $region27: #{tpu_custom_call.1} parent=23 // pred_region
          %p192 = scmp.lt.s32.totalorder %s18, 1
          %s193 = scalar_select %p192, %s18, 1
          %s194 = smul.addr %s193, 45
          %s195 = smul.addr %s194, 4
          %s196 = scalar_lea.vmem %s0, %s195
        $region28: #{tpu_custom_call.1} parent=23 // pred_fallthru
          _
      $region24: #{tpu_custom_call.1} parent=5 // pred_fallthru
        _
      %p197 = scmp.le.s32.totalorder 1, %s18
      %p198 = scmp.lt.s32.totalorder %s18, 3
      %p199 = pnand %p197, %p198
      %p200 = pneg %p199
      // Predicated region
      $region29: #{tpu_custom_call.1} parent=5 // pred_check
        _
      $region30: #{tpu_custom_call.1} parent=5 // pred_check_branch
        %202 = sbr.rel (%p199) target = $region32
      $region31: #{tpu_custom_call.1} parent=5 // pred_region
        %s203 = ssub.s32 %s18, 1
        %p204 = scmp.lt.s32.totalorder %s23, 1
        %s205 = scalar_select %p204, %s23, 1
        %s206 = smul.addr %s205, 45
        %s207 = smul.addr %s206, 4
        %s208 = scalar_lea.vmem %s0, %s207
        %p209 = pneg %p44
        %p210 = pneg %p41
        %p211 = pneg %p65
        %p212 = pneg %p62
        %p213 = pneg %p86
        %p214 = pneg %p83
        %p215 = pneg %p112
        %p216 = pneg %p109
        %p217 = scmp.lt.s32.totalorder %s23, 1
        %s218 = scalar_select %p217, %s23, 1
        %s219 = smul.addr %s218, 45
        %s220 = smul.addr %s219, 4
        %s221 = scalar_lea.vmem %s3, %s220
        %p222 = pneg %p138
        %p223 = pneg %p135
        %s224 = sand.u32 %s125, 1
        %s225 = scalar_lea.sflag [#allocation3], %s224
        %s226 = sand.u32 %s125, 1
        %s227 = scalar_lea.vmem [#allocation2], %s226
        %p228 = pneg %p164
        %p229 = pneg %p161
        %s230 = sand.u32 %s151, 1
        %s231 = scalar_lea.sflag [#allocation5], %s230
        %s232 = sand.u32 %s151, 1
        %s233 = scalar_lea.vmem [#allocation4], %s232
        %p234 = scmp.lt.s32.totalorder %s23, 1
        %s235 = scalar_select %p234, %s23, 1
        %s236 = smul.addr %s235, 45
        %s237 = smul.addr %s236, 4
        %s238 = scalar_lea.vmem %s0, %s237
        %p239 = scmp.lt.s32.totalorder %s23, 1
        %s240 = scalar_select %p239, %s23, 1
        %s241 = smul.addr %s240, 45
        %s242 = smul.addr %s241, 4
        %s243 = scalar_lea.vmem %s3, %s242
        %vm245 = vcmask 519168
        %246 = vst.msk [vmem:[%s243] sm:$0xf] %vm245, 0
        %247 = vst.msk [vmem:[%s243 + $0x4] sm:$0xf] %vm245, 0
        %248 = vst.msk [vmem:[%s243 + $0x8] sm:$0xf] %vm245, 0
        %249 = vst.msk [vmem:[%s243 + $0xc] sm:$0xf] %vm245, 0
        %250 = vst.msk [vmem:[%s243 + $0xa0] sm:$0xf] %vm245, 0
        %251 = vst.msk [vmem:[%s243 + $0xa4] sm:$0xf] %vm245, 0
        %252 = vst.msk [vmem:[%s243 + $0xa8] sm:$0xf] %vm245, 0
        %253 = vst.msk [vmem:[%s243 + $0xac] sm:$0xf] %vm245, 0
        %vm254 = vcmask 517120
        %vm255 = vsmask.f32 1280
        %vm256 = vmand %vm254, %vm255
        %v257 = vld [vmem:[%s243 + $0xb0] sm:$0x3]
        %v258 = vsel %vm256, 0, %v257
        %259 = vst [vmem:[%s243 + $0xb0] sm:$0x3] %v258
        %v260 = vld [vmem:[%s1] sm:$0xf]
        %v261 = vld [vmem:[%s1 + $0x4] sm:$0xf]
        %v262 = vld [vmem:[%s1 + $0x8] sm:$0xf]
        %v263 = vld [vmem:[%s1 + $0xc] sm:$0xf]
        %v264 = vld [vmem:[%s1 + $0x10] sm:$0xf]
        %v265 = vld [vmem:[%s1 + $0x14] sm:$0xf]
        %v266 = vld [vmem:[%s1 + $0x18] sm:$0xf]
        %v267 = vld [vmem:[%s1 + $0x1c] sm:$0xf]
        %v268 = vld [vmem:[%s238 + $0x4] sm:$0xc]
        %v269 = vld [vmem:[%s238 + $0x8] sm:$0xf]
        %v270 = vld [vmem:[%s238 + $0xc] sm:$0xf]
        %v271 = vld [vmem:[%s238 + $0x10] sm:$0xf]
        %v272 = vld [vmem:[%s238 + $0x14] sm:$0xf]
        %v273 = vld [vmem:[%s238 + $0x18] sm:$0xf]
        %v274 = vld [vmem:[%s238 + $0x1c] sm:$0xf]
        %v275 = vld [vmem:[%s238 + $0x20] sm:$0xf]
        %v276 = vld [vmem:[%s238 + $0x24] sm:$0xf]
        %v277 = vld [vmem:[%s238 + $0x28] sm:$0xf]
        %v278 = vld [vmem:[%s238 + $0x2c] sm:$0xf]
        %v279 = vld [vmem:[%s238 + $0x30] sm:$0xf]
        %v280 = vld [vmem:[%s238 + $0x34] sm:$0xf]
        %v281 = vld [vmem:[%s238 + $0x38] sm:$0xf]
        %v282 = vld [vmem:[%s238 + $0x3c] sm:$0xf]
        %v283 = vld [vmem:[%s238 + $0x40] sm:$0xf]
        %v284 = vld [vmem:[%s238 + $0x44] sm:$0x7]
        %v285 = vld [vmem:[%s1 + $0x20] sm:$0xf]
        %v286 = vld [vmem:[%s1 + $0x24] sm:$0xf]
        %v287 = vld [vmem:[%s1 + $0x28] sm:$0xf]
        %v288 = vld [vmem:[%s1 + $0x2c] sm:$0xf]
        %v289 = vld [vmem:[%s1 + $0x30] sm:$0xf]
        %v290 = vld [vmem:[%s1 + $0x34] sm:$0xf]
        %v291 = vld [vmem:[%s1 + $0x38] sm:$0xf]
        %v292 = vld [vmem:[%s1 + $0x3c] sm:$0xf]
        %v293 = vld [vmem:[%s238 + $0x4] sm:$0x8]
        %v311 = vunpack.c.l.b16 %v293
        %v312 = vunpack.c.l.b16 %v269
        %v313 = vunpack.c.l.b16 %v270
        %v314 = vunpack.c.l.b16 %v271
        %v315 = vunpack.c.l.b16 %v272
        %v316 = vunpack.c.l.b16 %v273
        %v317 = vunpack.c.l.b16 %v274
        %v318 = vunpack.c.l.b16 %v275
        %v319 = vunpack.c.l.b16 %v276
        %v320 = vunpack.c.l.b16 %v277
        %v321 = vunpack.c.l.b16 %v278
        %v322 = vunpack.c.l.b16 %v279
        %v323 = vunpack.c.l.b16 %v280
        %v324 = vunpack.c.l.b16 %v281
        %v325 = vunpack.c.l.b16 %v282
        %v326 = vunpack.c.l.b16 %v283
        %v327 = vunpack.c.l.b16 %v284
        %v328 = vpack.c.b16 %v312, %v311
        %v329 = vpack.c.b16 %v314, %v313
        %v330 = vpack.c.b16 %v316, %v315
        %v331 = vpack.c.b16 %v318, %v317
        %v332 = vpack.c.b16 %v320, %v319
        %v333 = vpack.c.b16 %v322, %v321
        %v334 = vpack.c.b16 %v324, %v323
        %v335 = vpack.c.b16 %v326, %v325
        %v336 = vpack.c.b16 %v327, %v327
        %vm337 = vcmask 1044480
        %v338 = vrot.slane %v328, 3
        %v339 = vrot.slane %v329, 3
        %v340 = vsel %vm337, %v338, %v339
        %v341 = vrot.slane %v330, 3
        %v342 = vsel %vm337, %v339, %v341
        %v343 = vrot.slane %v331, 3
        %v344 = vsel %vm337, %v341, %v343
        %v345 = vrot.slane %v332, 3
        %v346 = vsel %vm337, %v343, %v345
        %v347 = vrot.slane %v333, 3
        %v348 = vsel %vm337, %v345, %v347
        %v349 = vrot.slane %v334, 3
        %v350 = vsel %vm337, %v347, %v349
        %v351 = vrot.slane %v335, 3
        %v352 = vsel %vm337, %v349, %v351
        %v353 = vrot.slane %v336, 3
        %v354 = vsel %vm337, %v351, %v353
        %v363 = vunpack.c.l.b16 %v285
        %v364 = vunpack.c.l.b16 %v286
        %v365 = vunpack.c.l.b16 %v287
        %v366 = vunpack.c.l.b16 %v288
        %v367 = vunpack.c.l.b16 %v289
        %v368 = vunpack.c.l.b16 %v290
        %v369 = vunpack.c.l.b16 %v291
        %v370 = vunpack.c.l.b16 %v292
        %v371 = vpack.c.b16 %v364, %v363
        %v372 = vpack.c.b16 %v366, %v365
        %v373 = vpack.c.b16 %v368, %v367
        %v374 = vpack.c.b16 %v370, %v369
        %vm379 = vcmask 523264
        %v381 = vsel %vm379, %v340, 0
        %v384 = vsel %vm379, %v342, 0
        %v387 = vsel %vm379, %v344, 0
        %v390 = vsel %vm379, %v346, 0
        %v393 = vsel %vm379, %v348, 0
        %v396 = vsel %vm379, %v350, 0
        %v399 = vsel %vm379, %v352, 0
        %v402 = vsel %vm379, %v354, 0
        %404 = vmatprep.subr.bf16.mxu0 0
        %405 = vmatpush1.bf16.msra.mxu0 0
        %406 = vmatprep.subr.bf16.mxu0 0
        %407 = vmatpush1.bf16.msra.mxu0 0
        %408 = vmatprep.subr.bf16.mxu0 0
        %409 = vmatpush1.bf16.msra.mxu0 0
        %410 = vmatprep.subr.bf16.mxu0 0
        %411 = vmatpush1.bf16.msra.mxu0 0
        %412 = vmatprep.subr.bf16.mxu0 0
        %413 = vmatpush1.bf16.msra.mxu0 %v374
        %414 = vmatprep.subr.bf16.mxu0 0
        %415 = vmatpush1.bf16.msra.mxu0 %v373
        %416 = vmatprep.subr.bf16.mxu0 0
        %417 = vmatpush1.bf16.msra.mxu0 %v372
        %418 = vmatprep.subr.bf16.mxu0 0
        %419 = vmatpush1.bf16.msra.mxu0 %v371
        %420 = vmatprep.subr.bf16.mxu0 0
        %421 = vmatpush2.bf16.msra.mxu0 0
        %422 = vmatprep.subr.bf16.mxu0 0
        %423 = vmatpush2.bf16.msra.mxu0 0
        %424 = vmatprep.subr.bf16.mxu0 0
        %425 = vmatpush2.bf16.msra.mxu0 0
        %426 = vmatprep.subr.bf16.mxu0 0
        %427 = vmatpush2.bf16.msra.mxu0 0
        %428 = vmatprep.subr.bf16.mxu0 0
        %429 = vmatpush2.bf16.msra.mxu0 0
        %430 = vmatprep.subr.bf16.mxu0 0
        %431 = vmatpush2.bf16.msra.mxu0 0
        %432 = vmatprep.subr.bf16.mxu0 0
        %433 = vmatpush2.bf16.msra.mxu0 0
        %434 = vmatprep.subr.bf16.mxu0 0
        %435 = vmatpush2.bf16.msra.mxu0 0
        %436 = vmatprep.mubr.bf16.mxu0 0
        %437 = vmatmul.mubr.bf16.gmra.mxu0 %v381
        %v438 = vpop.f32.mrf.mxu0
        %v439 = vadd.f32 0.0, %v438
        %v440 = vpop.f32.mrf.mxu0
        %v441 = vpop.f32.mrf.mxu0
        %v442 = vadd.f32 0.0, %v441
        %v443 = vpop.f32.mrf.mxu0
        %444 = vmatprep.mubr.bf16.mxu0 0
        %445 = vmatmul.mubr.bf16.gmra.mxu0 %v384
        %v446 = vpop.f32.mrf.mxu0
        %v447 = vadd.f32 0.0, %v446
        %v448 = vpop.f32.mrf.mxu0
        %v449 = vpop.f32.mrf.mxu0
        %v450 = vadd.f32 0.0, %v449
        %v451 = vpop.f32.mrf.mxu0
        %452 = vmatprep.mubr.bf16.mxu0 0
        %453 = vmatmul.mubr.bf16.gmra.mxu0 %v387
        %v454 = vpop.f32.mrf.mxu0
        %v455 = vadd.f32 0.0, %v454
        %v456 = vpop.f32.mrf.mxu0
        %v457 = vpop.f32.mrf.mxu0
        %v458 = vadd.f32 0.0, %v457
        %v459 = vpop.f32.mrf.mxu0
        %460 = vmatprep.mubr.bf16.mxu0 0
        %461 = vmatmul.mubr.bf16.gmra.mxu0 %v390
        %v462 = vpop.f32.mrf.mxu0
        %v463 = vadd.f32 0.0, %v462
        %v464 = vpop.f32.mrf.mxu0
        %v465 = vpop.f32.mrf.mxu0
        %v466 = vadd.f32 0.0, %v465
        %v467 = vpop.f32.mrf.mxu0
        %468 = vmatprep.mubr.bf16.mxu0 0
        %469 = vmatmul.mubr.bf16.gmra.mxu0 %v393
        %v470 = vpop.f32.mrf.mxu0
        %v471 = vadd.f32 0.0, %v470
        %v472 = vpop.f32.mrf.mxu0
        %v473 = vpop.f32.mrf.mxu0
        %v474 = vadd.f32 0.0, %v473
        %v475 = vpop.f32.mrf.mxu0
        %476 = vmatprep.mubr.bf16.mxu0 0
        %477 = vmatmul.mubr.bf16.gmra.mxu0 %v396
        %v478 = vpop.f32.mrf.mxu0
        %v479 = vadd.f32 0.0, %v478
        %v480 = vpop.f32.mrf.mxu0
        %v481 = vpop.f32.mrf.mxu0
        %v482 = vadd.f32 0.0, %v481
        %v483 = vpop.f32.mrf.mxu0
        %484 = vmatprep.mubr.bf16.mxu0 0
        %485 = vmatmul.mubr.bf16.gmra.mxu0 %v399
        %v486 = vpop.f32.mrf.mxu0
        %v487 = vadd.f32 0.0, %v486
        %v488 = vpop.f32.mrf.mxu0
        %v489 = vpop.f32.mrf.mxu0
        %v490 = vadd.f32 0.0, %v489
        %v491 = vpop.f32.mrf.mxu0
        %492 = vmatprep.mubr.bf16.mxu0 0
        %493 = vmatmul.mubr.bf16.gmra.mxu0 %v402
        %v494 = vpop.f32.mrf.mxu0
        %v495 = vadd.f32 0.0, %v494
        %v496 = vpop.f32.mrf.mxu0
        %v497 = vpop.f32.mrf.mxu0
        %v498 = vadd.f32 0.0, %v497
        %v499 = vpop.f32.mrf.mxu0
        %500 = vdwg.mxu0
        %v502 = vunpack.c.l.b16 %v268
        %v503 = vpack.c.b16 %v312, %v502
        %vm504 = vsmask.f32 5376
        %v506 = vshrl.u32 %v503, 16
        %v508 = vrot.slane %v506, 2
        %v509 = vshll.u32 %v503, 16
        %v511 = vrot.slane %v509, 3
        %v512 = vor.u32 %v508, %v511
        %v514 = vshrl.u32 %v329, 16
        %v516 = vrot.slane %v514, 2
        %v517 = vshll.u32 %v329, 16
        %v519 = vrot.slane %v517, 3
        %v520 = vor.u32 %v516, %v519
        %v521 = vsel %vm504, %v512, %v520
        %v523 = vshrl.u32 %v330, 16
        %v525 = vrot.slane %v523, 2
        %v526 = vshll.u32 %v330, 16
        %v528 = vrot.slane %v526, 3
        %v529 = vor.u32 %v525, %v528
        %v530 = vsel %vm504, %v520, %v529
        %v532 = vshrl.u32 %v331, 16
        %v534 = vrot.slane %v532, 2
        %v535 = vshll.u32 %v331, 16
        %v537 = vrot.slane %v535, 3
        %v538 = vor.u32 %v534, %v537
        %v539 = vsel %vm504, %v529, %v538
        %v541 = vshrl.u32 %v332, 16
        %v543 = vrot.slane %v541, 2
        %v544 = vshll.u32 %v332, 16
        %v546 = vrot.slane %v544, 3
        %v547 = vor.u32 %v543, %v546
        %v548 = vsel %vm504, %v538, %v547
        %v550 = vshrl.u32 %v333, 16
        %v552 = vrot.slane %v550, 2
        %v553 = vshll.u32 %v333, 16
        %v555 = vrot.slane %v553, 3
        %v556 = vor.u32 %v552, %v555
        %v557 = vsel %vm504, %v547, %v556
        %v559 = vshrl.u32 %v334, 16
        %v561 = vrot.slane %v559, 2
        %v562 = vshll.u32 %v334, 16
        %v564 = vrot.slane %v562, 3
        %v565 = vor.u32 %v561, %v564
        %v566 = vsel %vm504, %v556, %v565
        %v568 = vshrl.u32 %v335, 16
        %v570 = vrot.slane %v568, 2
        %v571 = vshll.u32 %v335, 16
        %v573 = vrot.slane %v571, 3
        %v574 = vor.u32 %v570, %v573
        %v575 = vsel %vm504, %v565, %v574
        %v577 = vshrl.u32 %v336, 16
        %v579 = vrot.slane %v577, 2
        %v580 = vshll.u32 %v336, 16
        %v582 = vrot.slane %v580, 3
        %v583 = vor.u32 %v579, %v582
        %v584 = vsel %vm504, %v574, %v583
        %v593 = vunpack.c.l.b16 %v260
        %v594 = vunpack.c.l.b16 %v261
        %v595 = vunpack.c.l.b16 %v262
        %v596 = vunpack.c.l.b16 %v263
        %v597 = vunpack.c.l.b16 %v264
        %v598 = vunpack.c.l.b16 %v265
        %v599 = vunpack.c.l.b16 %v266
        %v600 = vunpack.c.l.b16 %v267
        %v601 = vpack.c.b16 %v594, %v593
        %v602 = vpack.c.b16 %v596, %v595
        %v603 = vpack.c.b16 %v598, %v597
        %v604 = vpack.c.b16 %v600, %v599
        %v610 = vsel %vm379, %v521, 0
        %v613 = vsel %vm379, %v530, 0
        %v616 = vsel %vm379, %v539, 0
        %v619 = vsel %vm379, %v548, 0
        %v622 = vsel %vm379, %v557, 0
        %v625 = vsel %vm379, %v566, 0
        %v628 = vsel %vm379, %v575, 0
        %v631 = vsel %vm379, %v584, 0
        %633 = vmatprep.subr.bf16.mxu0 0
        %634 = vmatpush1.bf16.msra.mxu0 0
        %635 = vmatprep.subr.bf16.mxu0 0
        %636 = vmatpush1.bf16.msra.mxu0 0
        %637 = vmatprep.subr.bf16.mxu0 0
        %638 = vmatpush1.bf16.msra.mxu0 0
        %639 = vmatprep.subr.bf16.mxu0 0
        %640 = vmatpush1.bf16.msra.mxu0 0
        %641 = vmatprep.subr.bf16.mxu0 0
        %642 = vmatpush1.bf16.msra.mxu0 %v604
        %643 = vmatprep.subr.bf16.mxu0 0
        %644 = vmatpush1.bf16.msra.mxu0 %v603
        %645 = vmatprep.subr.bf16.mxu0 0
        %646 = vmatpush1.bf16.msra.mxu0 %v602
        %647 = vmatprep.subr.bf16.mxu0 0
        %648 = vmatpush1.bf16.msra.mxu0 %v601
        %649 = vmatprep.subr.bf16.mxu0 0
        %650 = vmatpush2.bf16.msra.mxu0 0
        %651 = vmatprep.subr.bf16.mxu0 0
        %652 = vmatpush2.bf16.msra.mxu0 0
        %653 = vmatprep.subr.bf16.mxu0 0
        %654 = vmatpush2.bf16.msra.mxu0 0
        %655 = vmatprep.subr.bf16.mxu0 0
        %656 = vmatpush2.bf16.msra.mxu0 0
        %657 = vmatprep.subr.bf16.mxu0 0
        %658 = vmatpush2.bf16.msra.mxu0 0
        %659 = vmatprep.subr.bf16.mxu0 0
        %660 = vmatpush2.bf16.msra.mxu0 0
        %661 = vmatprep.subr.bf16.mxu0 0
        %662 = vmatpush2.bf16.msra.mxu0 0
        %663 = vmatprep.subr.bf16.mxu0 0
        %664 = vmatpush2.bf16.msra.mxu0 0
        %665 = vmatprep.mubr.bf16.mxu0 0
        %666 = vmatmul.mubr.bf16.gmra.mxu0 %v610
        %v667 = vpop.f32.mrf.mxu0
        %v668 = vadd.f32 %v439, %v667
        %v669 = vpop.f32.mrf.mxu0
        %v670 = vpop.f32.mrf.mxu0
        %v671 = vadd.f32 %v442, %v670
        %v672 = vpop.f32.mrf.mxu0
        %673 = vmatprep.mubr.bf16.mxu0 0
        %674 = vmatmul.mubr.bf16.gmra.mxu0 %v613
        %v675 = vpop.f32.mrf.mxu0
        %v676 = vadd.f32 %v447, %v675
        %v677 = vpop.f32.mrf.mxu0
        %v678 = vpop.f32.mrf.mxu0
        %v679 = vadd.f32 %v450, %v678
        %v680 = vpop.f32.mrf.mxu0
        %681 = vmatprep.mubr.bf16.mxu0 0
        %682 = vmatmul.mubr.bf16.gmra.mxu0 %v616
        %v683 = vpop.f32.mrf.mxu0
        %v684 = vadd.f32 %v455, %v683
        %v685 = vpop.f32.mrf.mxu0
        %v686 = vpop.f32.mrf.mxu0
        %v687 = vadd.f32 %v458, %v686
        %v688 = vpop.f32.mrf.mxu0
        %689 = vmatprep.mubr.bf16.mxu0 0
        %690 = vmatmul.mubr.bf16.gmra.mxu0 %v619
        %v691 = vpop.f32.mrf.mxu0
        %v692 = vadd.f32 %v463, %v691
        %v693 = vpop.f32.mrf.mxu0
        %v694 = vpop.f32.mrf.mxu0
        %v695 = vadd.f32 %v466, %v694
        %v696 = vpop.f32.mrf.mxu0
        %697 = vmatprep.mubr.bf16.mxu0 0
        %698 = vmatmul.mubr.bf16.gmra.mxu0 %v622
        %v699 = vpop.f32.mrf.mxu0
        %v700 = vadd.f32 %v471, %v699
        %v701 = vpop.f32.mrf.mxu0
        %v702 = vpop.f32.mrf.mxu0
        %v703 = vadd.f32 %v474, %v702
        %v704 = vpop.f32.mrf.mxu0
        %705 = vmatprep.mubr.bf16.mxu0 0
        %706 = vmatmul.mubr.bf16.gmra.mxu0 %v625
        %v707 = vpop.f32.mrf.mxu0
        %v708 = vadd.f32 %v479, %v707
        %v709 = vpop.f32.mrf.mxu0
        %v710 = vpop.f32.mrf.mxu0
        %v711 = vadd.f32 %v482, %v710
        %v712 = vpop.f32.mrf.mxu0
        %713 = vmatprep.mubr.bf16.mxu0 0
        %714 = vmatmul.mubr.bf16.gmra.mxu0 %v628
        %v715 = vpop.f32.mrf.mxu0
        %v716 = vadd.f32 %v487, %v715
        %v717 = vpop.f32.mrf.mxu0
        %v718 = vpop.f32.mrf.mxu0
        %v719 = vadd.f32 %v490, %v718
        %v720 = vpop.f32.mrf.mxu0
        %721 = vmatprep.mubr.bf16.mxu0 0
        %722 = vmatmul.mubr.bf16.gmra.mxu0 %v631
        %v723 = vpop.f32.mrf.mxu0
        %v724 = vadd.f32 %v495, %v723
        %v725 = vpop.f32.mrf.mxu0
        %v726 = vpop.f32.mrf.mxu0
        %v727 = vadd.f32 %v498, %v726
        %v728 = vpop.f32.mrf.mxu0
        %729 = vdwg.mxu0
        %v730 = vld [vmem:[%s1 + $0x40] sm:$0xf]
        %v731 = vld [vmem:[%s1 + $0x44] sm:$0xf]
        %v732 = vld [vmem:[%s1 + $0x48] sm:$0xf]
        %v733 = vld [vmem:[%s1 + $0x4c] sm:$0xf]
        %v734 = vld [vmem:[%s1 + $0x50] sm:$0xf]
        %v735 = vld [vmem:[%s1 + $0x54] sm:$0xf]
        %v736 = vld [vmem:[%s1 + $0x58] sm:$0xf]
        %v737 = vld [vmem:[%s1 + $0x5c] sm:$0xf]
        %v738 = vld [vmem:[%s238 + $0x44] sm:$0xf]
        %v740 = vunpack.c.l.b16 %v738
        %v741 = vpack.c.b16 %v740, %v740
        %vm742 = vsmask.f32 4352
        %v744 = vshrl.u32 %v328, 16
        %v746 = vrot.slane %v744, 3
        %v747 = vshll.u32 %v328, 16
        %v749 = vrot.slane %v747, 4
        %v750 = vor.u32 %v746, %v749
        %v751 = vrot.slane %v514, 3
        %v752 = vrot.slane %v517, 4
        %v753 = vor.u32 %v751, %v752
        %v754 = vsel %vm742, %v750, %v753
        %v755 = vrot.slane %v523, 3
        %v756 = vrot.slane %v526, 4
        %v757 = vor.u32 %v755, %v756
        %v758 = vsel %vm742, %v753, %v757
        %v759 = vrot.slane %v532, 3
        %v760 = vrot.slane %v535, 4
        %v761 = vor.u32 %v759, %v760
        %v762 = vsel %vm742, %v757, %v761
        %v763 = vrot.slane %v541, 3
        %v764 = vrot.slane %v544, 4
        %v765 = vor.u32 %v763, %v764
        %v766 = vsel %vm742, %v761, %v765
        %v767 = vrot.slane %v550, 3
        %v768 = vrot.slane %v553, 4
        %v769 = vor.u32 %v767, %v768
        %v770 = vsel %vm742, %v765, %v769
        %v771 = vrot.slane %v559, 3
        %v772 = vrot.slane %v562, 4
        %v773 = vor.u32 %v771, %v772
        %v774 = vsel %vm742, %v769, %v773
        %v775 = vrot.slane %v568, 3
        %v776 = vrot.slane %v571, 4
        %v777 = vor.u32 %v775, %v776
        %v778 = vsel %vm742, %v773, %v777
        %v780 = vshrl.u32 %v741, 16
        %v782 = vrot.slane %v780, 3
        %v783 = vshll.u32 %v741, 16
        %v785 = vrot.slane %v783, 4
        %v786 = vor.u32 %v782, %v785
        %v787 = vsel %vm742, %v777, %v786
        %v796 = vunpack.c.l.b16 %v730
        %v797 = vunpack.c.l.b16 %v731
        %v798 = vunpack.c.l.b16 %v732
        %v799 = vunpack.c.l.b16 %v733
        %v800 = vunpack.c.l.b16 %v734
        %v801 = vunpack.c.l.b16 %v735
        %v802 = vunpack.c.l.b16 %v736
        %v803 = vunpack.c.l.b16 %v737
        %v804 = vpack.c.b16 %v797, %v796
        %v805 = vpack.c.b16 %v799, %v798
        %v806 = vpack.c.b16 %v801, %v800
        %v807 = vpack.c.b16 %v803, %v802
        %v813 = vsel %vm379, %v754, 0
        %v816 = vsel %vm379, %v758, 0
        %v819 = vsel %vm379, %v762, 0
        %v822 = vsel %vm379, %v766, 0
        %v825 = vsel %vm379, %v770, 0
        %v828 = vsel %vm379, %v774, 0
        %v831 = vsel %vm379, %v778, 0
        %v834 = vsel %vm379, %v787, 0
        %836 = vmatprep.subr.bf16.mxu0 0
        %837 = vmatpush1.bf16.msra.mxu0 0
        %838 = vmatprep.subr.bf16.mxu0 0
        %839 = vmatpush1.bf16.msra.mxu0 0
        %840 = vmatprep.subr.bf16.mxu0 0
        %841 = vmatpush1.bf16.msra.mxu0 0
        %842 = vmatprep.subr.bf16.mxu0 0
        %843 = vmatpush1.bf16.msra.mxu0 0
        %844 = vmatprep.subr.bf16.mxu0 0
        %845 = vmatpush1.bf16.msra.mxu0 %v807
        %846 = vmatprep.subr.bf16.mxu0 0
        %847 = vmatpush1.bf16.msra.mxu0 %v806
        %848 = vmatprep.subr.bf16.mxu0 0
        %849 = vmatpush1.bf16.msra.mxu0 %v805
        %850 = vmatprep.subr.bf16.mxu0 0
        %851 = vmatpush1.bf16.msra.mxu0 %v804
        %852 = vmatprep.subr.bf16.mxu0 0
        %853 = vmatpush2.bf16.msra.mxu0 0
        %854 = vmatprep.subr.bf16.mxu0 0
        %855 = vmatpush2.bf16.msra.mxu0 0
        %856 = vmatprep.subr.bf16.mxu0 0
        %857 = vmatpush2.bf16.msra.mxu0 0
        %858 = vmatprep.subr.bf16.mxu0 0
        %859 = vmatpush2.bf16.msra.mxu0 0
        %860 = vmatprep.subr.bf16.mxu0 0
        %861 = vmatpush2.bf16.msra.mxu0 0
        %862 = vmatprep.subr.bf16.mxu0 0
        %863 = vmatpush2.bf16.msra.mxu0 0
        %864 = vmatprep.subr.bf16.mxu0 0
        %865 = vmatpush2.bf16.msra.mxu0 0
        %866 = vmatprep.subr.bf16.mxu0 0
        %867 = vmatpush2.bf16.msra.mxu0 0
        %868 = vmatprep.mubr.bf16.mxu0 0
        %869 = vmatmul.mubr.bf16.gmra.mxu0 %v813
        %v870 = vpop.f32.mrf.mxu0
        %v871 = vadd.f32 0.0, %v870
        %v872 = vpop.f32.mrf.mxu0
        %v873 = vpop.f32.mrf.mxu0
        %v874 = vadd.f32 0.0, %v873
        %v875 = vpop.f32.mrf.mxu0
        %876 = vmatprep.mubr.bf16.mxu0 0
        %877 = vmatmul.mubr.bf16.gmra.mxu0 %v816
        %v878 = vpop.f32.mrf.mxu0
        %v879 = vadd.f32 0.0, %v878
        %v880 = vpop.f32.mrf.mxu0
        %v881 = vpop.f32.mrf.mxu0
        %v882 = vadd.f32 0.0, %v881
        %v883 = vpop.f32.mrf.mxu0
        %884 = vmatprep.mubr.bf16.mxu0 0
        %885 = vmatmul.mubr.bf16.gmra.mxu0 %v819
        %v886 = vpop.f32.mrf.mxu0
        %v887 = vadd.f32 0.0, %v886
        %v888 = vpop.f32.mrf.mxu0
        %v889 = vpop.f32.mrf.mxu0
        %v890 = vadd.f32 0.0, %v889
        %v891 = vpop.f32.mrf.mxu0
        %892 = vmatprep.mubr.bf16.mxu0 0
        %893 = vmatmul.mubr.bf16.gmra.mxu0 %v822
        %v894 = vpop.f32.mrf.mxu0
        %v895 = vadd.f32 0.0, %v894
        %v896 = vpop.f32.mrf.mxu0
        %v897 = vpop.f32.mrf.mxu0
        %v898 = vadd.f32 0.0, %v897
        %v899 = vpop.f32.mrf.mxu0
        %900 = vmatprep.mubr.bf16.mxu0 0
        %901 = vmatmul.mubr.bf16.gmra.mxu0 %v825
        %v902 = vpop.f32.mrf.mxu0
        %v903 = vadd.f32 0.0, %v902
        %v904 = vpop.f32.mrf.mxu0
        %v905 = vpop.f32.mrf.mxu0
        %v906 = vadd.f32 0.0, %v905
        %v907 = vpop.f32.mrf.mxu0
        %908 = vmatprep.mubr.bf16.mxu0 0
        %909 = vmatmul.mubr.bf16.gmra.mxu0 %v828
        %v910 = vpop.f32.mrf.mxu0
        %v911 = vadd.f32 0.0, %v910
        %v912 = vpop.f32.mrf.mxu0
        %v913 = vpop.f32.mrf.mxu0
        %v914 = vadd.f32 0.0, %v913
        %v915 = vpop.f32.mrf.mxu0
        %916 = vmatprep.mubr.bf16.mxu0 0
        %917 = vmatmul.mubr.bf16.gmra.mxu0 %v831
        %v918 = vpop.f32.mrf.mxu0
        %v919 = vadd.f32 0.0, %v918
        %v920 = vpop.f32.mrf.mxu0
        %v921 = vpop.f32.mrf.mxu0
        %v922 = vadd.f32 0.0, %v921
        %v923 = vpop.f32.mrf.mxu0
        %924 = vmatprep.mubr.bf16.mxu0 0
        %925 = vmatmul.mubr.bf16.gmra.mxu0 %v834
        %v926 = vpop.f32.mrf.mxu0
        %v927 = vadd.f32 0.0, %v926
        %v928 = vpop.f32.mrf.mxu0
        %v929 = vpop.f32.mrf.mxu0
        %v930 = vadd.f32 0.0, %v929
        %v931 = vpop.f32.mrf.mxu0
        %932 = vdwg.mxu0
        %v933 = vadd.f32 %v668, %v871
        %v934 = vadd.f32 %v671, %v874
        %v935 = vadd.f32 %v676, %v879
        %v936 = vadd.f32 %v679, %v882
        %v937 = vadd.f32 %v684, %v887
        %v938 = vadd.f32 %v687, %v890
        %v939 = vadd.f32 %v692, %v895
        %v940 = vadd.f32 %v695, %v898
        %v941 = vadd.f32 %v700, %v903
        %v942 = vadd.f32 %v703, %v906
        %v943 = vadd.f32 %v708, %v911
        %v944 = vadd.f32 %v711, %v914
        %v945 = vadd.f32 %v716, %v919
        %v946 = vadd.f32 %v719, %v922
        %v947 = vadd.f32 %v724, %v927
        %v948 = vadd.f32 %v727, %v930
        %v949 = vld [vmem:[%s1 + $0x60] sm:$0xf]
        %v950 = vld [vmem:[%s1 + $0x64] sm:$0xf]
        %v951 = vld [vmem:[%s1 + $0x68] sm:$0xf]
        %v952 = vld [vmem:[%s1 + $0x6c] sm:$0xf]
        %v953 = vld [vmem:[%s1 + $0x70] sm:$0xf]
        %v954 = vld [vmem:[%s1 + $0x74] sm:$0xf]
        %v955 = vld [vmem:[%s1 + $0x78] sm:$0xf]
        %v956 = vld [vmem:[%s1 + $0x7c] sm:$0xf]
        %v957 = vld [vmem:[%s238 + $0xc] sm:$0x8]
        %v958 = vld [vmem:[%s238 + $0x10] sm:$0xf]
        %v959 = vld [vmem:[%s238 + $0x14] sm:$0xf]
        %v960 = vld [vmem:[%s238 + $0x18] sm:$0xf]
        %v961 = vld [vmem:[%s238 + $0x1c] sm:$0xf]
        %v962 = vld [vmem:[%s238 + $0x20] sm:$0xf]
        %v963 = vld [vmem:[%s238 + $0x24] sm:$0xf]
        %v964 = vld [vmem:[%s238 + $0x28] sm:$0xf]
        %v965 = vld [vmem:[%s238 + $0x2c] sm:$0xf]
        %v966 = vld [vmem:[%s238 + $0x30] sm:$0xf]
        %v967 = vld [vmem:[%s238 + $0x34] sm:$0xf]
        %v968 = vld [vmem:[%s238 + $0x38] sm:$0xf]
        %v969 = vld [vmem:[%s238 + $0x3c] sm:$0xf]
        %v970 = vld [vmem:[%s238 + $0x40] sm:$0xf]
        %v971 = vld [vmem:[%s238 + $0x44] sm:$0xf]
        %v972 = vld [vmem:[%s238 + $0x48] sm:$0xf]
        %v973 = vld [vmem:[%s238 + $0x4c] sm:$0xf]
        %v991 = vunpack.c.l.b16 %v957
        %v992 = vunpack.c.l.b16 %v958
        %v993 = vunpack.c.l.b16 %v959
        %v994 = vunpack.c.l.b16 %v960
        %v995 = vunpack.c.l.b16 %v961
        %v996 = vunpack.c.l.b16 %v962
        %v997 = vunpack.c.l.b16 %v963
        %v998 = vunpack.c.l.b16 %v964
        %v999 = vunpack.c.l.b16 %v965
        %v1000 = vunpack.c.l.b16 %v966
        %v1001 = vunpack.c.l.b16 %v967
        %v1002 = vunpack.c.l.b16 %v968
        %v1003 = vunpack.c.l.b16 %v969
        %v1004 = vunpack.c.l.b16 %v970
        %v1005 = vunpack.c.l.b16 %v971
        %v1006 = vunpack.c.l.b16 %v972
        %v1007 = vunpack.c.l.b16 %v973
        %v1008 = vpack.c.b16 %v992, %v991
        %v1009 = vpack.c.b16 %v994, %v993
        %v1010 = vpack.c.b16 %v996, %v995
        %v1011 = vpack.c.b16 %v998, %v997
        %v1012 = vpack.c.b16 %v1000, %v999
        %v1013 = vpack.c.b16 %v1002, %v1001
        %v1014 = vpack.c.b16 %v1004, %v1003
        %v1015 = vpack.c.b16 %v1006, %v1005
        %v1016 = vpack.c.b16 %v1007, %v1007
        %v1018 = vshrl.u32 %v1008, 16
        %v1020 = vrot.slane %v1018, 3
        %v1021 = vshll.u32 %v1008, 16
        %v1023 = vrot.slane %v1021, 4
        %v1024 = vor.u32 %v1020, %v1023
        %v1026 = vshrl.u32 %v1009, 16
        %v1028 = vrot.slane %v1026, 3
        %v1029 = vshll.u32 %v1009, 16
        %v1031 = vrot.slane %v1029, 4
        %v1032 = vor.u32 %v1028, %v1031
        %v1033 = vsel %vm742, %v1024, %v1032
        %v1035 = vshrl.u32 %v1010, 16
        %v1037 = vrot.slane %v1035, 3
        %v1038 = vshll.u32 %v1010, 16
        %v1040 = vrot.slane %v1038, 4
        %v1041 = vor.u32 %v1037, %v1040
        %v1042 = vsel %vm742, %v1032, %v1041
        %v1044 = vshrl.u32 %v1011, 16
        %v1046 = vrot.slane %v1044, 3
        %v1047 = vshll.u32 %v1011, 16
        %v1049 = vrot.slane %v1047, 4
        %v1050 = vor.u32 %v1046, %v1049
        %v1051 = vsel %vm742, %v1041, %v1050
        %v1053 = vshrl.u32 %v1012, 16
        %v1055 = vrot.slane %v1053, 3
        %v1056 = vshll.u32 %v1012, 16
        %v1058 = vrot.slane %v1056, 4
        %v1059 = vor.u32 %v1055, %v1058
        %v1060 = vsel %vm742, %v1050, %v1059
        %v1062 = vshrl.u32 %v1013, 16
        %v1064 = vrot.slane %v1062, 3
        %v1065 = vshll.u32 %v1013, 16
        %v1067 = vrot.slane %v1065, 4
        %v1068 = vor.u32 %v1064, %v1067
        %v1069 = vsel %vm742, %v1059, %v1068
        %v1071 = vshrl.u32 %v1014, 16
        %v1073 = vrot.slane %v1071, 3
        %v1074 = vshll.u32 %v1014, 16
        %v1076 = vrot.slane %v1074, 4
        %v1077 = vor.u32 %v1073, %v1076
        %v1078 = vsel %vm742, %v1068, %v1077
        %v1080 = vshrl.u32 %v1015, 16
        %v1082 = vrot.slane %v1080, 3
        %v1083 = vshll.u32 %v1015, 16
        %v1085 = vrot.slane %v1083, 4
        %v1086 = vor.u32 %v1082, %v1085
        %v1087 = vsel %vm742, %v1077, %v1086
        %v1089 = vshrl.u32 %v1016, 16
        %v1091 = vrot.slane %v1089, 3
        %v1092 = vshll.u32 %v1016, 16
        %v1094 = vrot.slane %v1092, 4
        %v1095 = vor.u32 %v1091, %v1094
        %v1096 = vsel %vm742, %v1086, %v1095
        %v1105 = vunpack.c.l.b16 %v949
        %v1106 = vunpack.c.l.b16 %v950
        %v1107 = vunpack.c.l.b16 %v951
        %v1108 = vunpack.c.l.b16 %v952
        %v1109 = vunpack.c.l.b16 %v953
        %v1110 = vunpack.c.l.b16 %v954
        %v1111 = vunpack.c.l.b16 %v955
        %v1112 = vunpack.c.l.b16 %v956
        %v1113 = vpack.c.b16 %v1106, %v1105
        %v1114 = vpack.c.b16 %v1108, %v1107
        %v1115 = vpack.c.b16 %v1110, %v1109
        %v1116 = vpack.c.b16 %v1112, %v1111
        %v1122 = vsel %vm379, %v1033, 0
        %v1125 = vsel %vm379, %v1042, 0
        %v1128 = vsel %vm379, %v1051, 0
        %v1131 = vsel %vm379, %v1060, 0
        %v1134 = vsel %vm379, %v1069, 0
        %v1137 = vsel %vm379, %v1078, 0
        %v1140 = vsel %vm379, %v1087, 0
        %v1143 = vsel %vm379, %v1096, 0
        %1145 = vmatprep.subr.bf16.mxu0 0
        %1146 = vmatpush1.bf16.msra.mxu0 0
        %1147 = vmatprep.subr.bf16.mxu0 0
        %1148 = vmatpush1.bf16.msra.mxu0 0
        %1149 = vmatprep.subr.bf16.mxu0 0
        %1150 = vmatpush1.bf16.msra.mxu0 0
        %1151 = vmatprep.subr.bf16.mxu0 0
        %1152 = vmatpush1.bf16.msra.mxu0 0
        %1153 = vmatprep.subr.bf16.mxu0 0
        %1154 = vmatpush1.bf16.msra.mxu0 %v1116
        %1155 = vmatprep.subr.bf16.mxu0 0
        %1156 = vmatpush1.bf16.msra.mxu0 %v1115
        %1157 = vmatprep.subr.bf16.mxu0 0
        %1158 = vmatpush1.bf16.msra.mxu0 %v1114
        %1159 = vmatprep.subr.bf16.mxu0 0
        %1160 = vmatpush1.bf16.msra.mxu0 %v1113
        %1161 = vmatprep.subr.bf16.mxu0 0
        %1162 = vmatpush2.bf16.msra.mxu0 0
        %1163 = vmatprep.subr.bf16.mxu0 0
        %1164 = vmatpush2.bf16.msra.mxu0 0
        %1165 = vmatprep.subr.bf16.mxu0 0
        %1166 = vmatpush2.bf16.msra.mxu0 0
        %1167 = vmatprep.subr.bf16.mxu0 0
        %1168 = vmatpush2.bf16.msra.mxu0 0
        %1169 = vmatprep.subr.bf16.mxu0 0
        %1170 = vmatpush2.bf16.msra.mxu0 0
        %1171 = vmatprep.subr.bf16.mxu0 0
        %1172 = vmatpush2.bf16.msra.mxu0 0
        %1173 = vmatprep.subr.bf16.mxu0 0
        %1174 = vmatpush2.bf16.msra.mxu0 0
        %1175 = vmatprep.subr.bf16.mxu0 0
        %1176 = vmatpush2.bf16.msra.mxu0 0
        %1177 = vmatprep.mubr.bf16.mxu0 0
        %1178 = vmatmul.mubr.bf16.gmra.mxu0 %v1122
        %v1179 = vpop.f32.mrf.mxu0
        %v1180 = vadd.f32 0.0, %v1179
        %v1181 = vpop.f32.mrf.mxu0
        %v1182 = vpop.f32.mrf.mxu0
        %v1183 = vadd.f32 0.0, %v1182
        %v1184 = vpop.f32.mrf.mxu0
        %1185 = vmatprep.mubr.bf16.mxu0 0
        %1186 = vmatmul.mubr.bf16.gmra.mxu0 %v1125
        %v1187 = vpop.f32.mrf.mxu0
        %v1188 = vadd.f32 0.0, %v1187
        %v1189 = vpop.f32.mrf.mxu0
        %v1190 = vpop.f32.mrf.mxu0
        %v1191 = vadd.f32 0.0, %v1190
        %v1192 = vpop.f32.mrf.mxu0
        %1193 = vmatprep.mubr.bf16.mxu0 0
        %1194 = vmatmul.mubr.bf16.gmra.mxu0 %v1128
        %v1195 = vpop.f32.mrf.mxu0
        %v1196 = vadd.f32 0.0, %v1195
        %v1197 = vpop.f32.mrf.mxu0
        %v1198 = vpop.f32.mrf.mxu0
        %v1199 = vadd.f32 0.0, %v1198
        %v1200 = vpop.f32.mrf.mxu0
        %1201 = vmatprep.mubr.bf16.mxu0 0
        %1202 = vmatmul.mubr.bf16.gmra.mxu0 %v1131
        %v1203 = vpop.f32.mrf.mxu0
        %v1204 = vadd.f32 0.0, %v1203
        %v1205 = vpop.f32.mrf.mxu0
        %v1206 = vpop.f32.mrf.mxu0
        %v1207 = vadd.f32 0.0, %v1206
        %v1208 = vpop.f32.mrf.mxu0
        %1209 = vmatprep.mubr.bf16.mxu0 0
        %1210 = vmatmul.mubr.bf16.gmra.mxu0 %v1134
        %v1211 = vpop.f32.mrf.mxu0
        %v1212 = vadd.f32 0.0, %v1211
        %v1213 = vpop.f32.mrf.mxu0
        %v1214 = vpop.f32.mrf.mxu0
        %v1215 = vadd.f32 0.0, %v1214
        %v1216 = vpop.f32.mrf.mxu0
        %1217 = vmatprep.mubr.bf16.mxu0 0
        %1218 = vmatmul.mubr.bf16.gmra.mxu0 %v1137
        %v1219 = vpop.f32.mrf.mxu0
        %v1220 = vadd.f32 0.0, %v1219
        %v1221 = vpop.f32.mrf.mxu0
        %v1222 = vpop.f32.mrf.mxu0
        %v1223 = vadd.f32 0.0, %v1222
        %v1224 = vpop.f32.mrf.mxu0
        %1225 = vmatprep.mubr.bf16.mxu0 0
        %1226 = vmatmul.mubr.bf16.gmra.mxu0 %v1140
        %v1227 = vpop.f32.mrf.mxu0
        %v1228 = vadd.f32 0.0, %v1227
        %v1229 = vpop.f32.mrf.mxu0
        %v1230 = vpop.f32.mrf.mxu0
        %v1231 = vadd.f32 0.0, %v1230
        %v1232 = vpop.f32.mrf.mxu0
        %1233 = vmatprep.mubr.bf16.mxu0 0
        %1234 = vmatmul.mubr.bf16.gmra.mxu0 %v1143
        %v1235 = vpop.f32.mrf.mxu0
        %v1236 = vadd.f32 0.0, %v1235
        %v1237 = vpop.f32.mrf.mxu0
        %v1238 = vpop.f32.mrf.mxu0
        %v1239 = vadd.f32 0.0, %v1238
        %v1240 = vpop.f32.mrf.mxu0
        %1241 = vdwg.mxu0
        %v1242 = vadd.f32 %v933, %v1180
        %v1243 = vadd.f32 %v934, %v1183
        %v1244 = vadd.f32 %v935, %v1188
        %v1245 = vadd.f32 %v936, %v1191
        %v1246 = vadd.f32 %v937, %v1196
        %v1247 = vadd.f32 %v938, %v1199
        %v1248 = vadd.f32 %v939, %v1204
        %v1249 = vadd.f32 %v940, %v1207
        %v1250 = vadd.f32 %v941, %v1212
        %v1251 = vadd.f32 %v942, %v1215
        %v1252 = vadd.f32 %v943, %v1220
        %v1253 = vadd.f32 %v944, %v1223
        %v1254 = vadd.f32 %v945, %v1228
        %v1255 = vadd.f32 %v946, %v1231
        %v1256 = vadd.f32 %v947, %v1236
        %v1257 = vadd.f32 %v948, %v1239
        %v1258 = vld [vmem:[%s1 + $0x80] sm:$0xf]
        %v1259 = vld [vmem:[%s1 + $0x84] sm:$0xf]
        %v1260 = vld [vmem:[%s1 + $0x88] sm:$0xf]
        %v1261 = vld [vmem:[%s1 + $0x8c] sm:$0xf]
        %v1262 = vld [vmem:[%s1 + $0x90] sm:$0xf]
        %v1263 = vld [vmem:[%s1 + $0x94] sm:$0xf]
        %v1264 = vld [vmem:[%s1 + $0x98] sm:$0xf]
        %v1265 = vld [vmem:[%s1 + $0x9c] sm:$0xf]
        %v1266 = vpack.c.b16 %v993, %v992
        %v1267 = vpack.c.b16 %v995, %v994
        %v1268 = vpack.c.b16 %v997, %v996
        %v1269 = vpack.c.b16 %v999, %v998
        %v1270 = vpack.c.b16 %v1001, %v1000
        %v1271 = vpack.c.b16 %v1003, %v1002
        %v1272 = vpack.c.b16 %v1005, %v1004
        %v1273 = vpack.c.b16 %v1007, %v1006
        %v1282 = vunpack.c.l.b16 %v1258
        %v1283 = vunpack.c.l.b16 %v1259
        %v1284 = vunpack.c.l.b16 %v1260
        %v1285 = vunpack.c.l.b16 %v1261
        %v1286 = vunpack.c.l.b16 %v1262
        %v1287 = vunpack.c.l.b16 %v1263
        %v1288 = vunpack.c.l.b16 %v1264
        %v1289 = vunpack.c.l.b16 %v1265
        %v1290 = vpack.c.b16 %v1283, %v1282
        %v1291 = vpack.c.b16 %v1285, %v1284
        %v1292 = vpack.c.b16 %v1287, %v1286
        %v1293 = vpack.c.b16 %v1289, %v1288
        %v1299 = vsel %vm379, %v1266, 0
        %v1302 = vsel %vm379, %v1267, 0
        %v1305 = vsel %vm379, %v1268, 0
        %v1308 = vsel %vm379, %v1269, 0
        %v1311 = vsel %vm379, %v1270, 0
        %v1314 = vsel %vm379, %v1271, 0
        %v1317 = vsel %vm379, %v1272, 0
        %v1320 = vsel %vm379, %v1273, 0
        %1322 = vmatprep.subr.bf16.mxu0 0
        %1323 = vmatpush1.bf16.msra.mxu0 0
        %1324 = vmatprep.subr.bf16.mxu0 0
        %1325 = vmatpush1.bf16.msra.mxu0 0
        %1326 = vmatprep.subr.bf16.mxu0 0
        %1327 = vmatpush1.bf16.msra.mxu0 0
        %1328 = vmatprep.subr.bf16.mxu0 0
        %1329 = vmatpush1.bf16.msra.mxu0 0
        %1330 = vmatprep.subr.bf16.mxu0 0
        %1331 = vmatpush1.bf16.msra.mxu0 %v1293
        %1332 = vmatprep.subr.bf16.mxu0 0
        %1333 = vmatpush1.bf16.msra.mxu0 %v1292
        %1334 = vmatprep.subr.bf16.mxu0 0
        %1335 = vmatpush1.bf16.msra.mxu0 %v1291
        %1336 = vmatprep.subr.bf16.mxu0 0
        %1337 = vmatpush1.bf16.msra.mxu0 %v1290
        %1338 = vmatprep.subr.bf16.mxu0 0
        %1339 = vmatpush2.bf16.msra.mxu0 0
        %1340 = vmatprep.subr.bf16.mxu0 0
        %1341 = vmatpush2.bf16.msra.mxu0 0
        %1342 = vmatprep.subr.bf16.mxu0 0
        %1343 = vmatpush2.bf16.msra.mxu0 0
        %1344 = vmatprep.subr.bf16.mxu0 0
        %1345 = vmatpush2.bf16.msra.mxu0 0
        %1346 = vmatprep.subr.bf16.mxu0 0
        %1347 = vmatpush2.bf16.msra.mxu0 0
        %1348 = vmatprep.subr.bf16.mxu0 0
        %1349 = vmatpush2.bf16.msra.mxu0 0
        %1350 = vmatprep.subr.bf16.mxu0 0
        %1351 = vmatpush2.bf16.msra.mxu0 0
        %1352 = vmatprep.subr.bf16.mxu0 0
        %1353 = vmatpush2.bf16.msra.mxu0 0
        %1354 = vmatprep.mubr.bf16.mxu0 0
        %1355 = vmatmul.mubr.bf16.gmra.mxu0 %v1299
        %v1356 = vpop.f32.mrf.mxu0
        %v1357 = vadd.f32 0.0, %v1356
        %v1358 = vpop.f32.mrf.mxu0
        %v1359 = vpop.f32.mrf.mxu0
        %v1360 = vadd.f32 0.0, %v1359
        %v1361 = vpop.f32.mrf.mxu0
        %1362 = vmatprep.mubr.bf16.mxu0 0
        %1363 = vmatmul.mubr.bf16.gmra.mxu0 %v1302
        %v1364 = vpop.f32.mrf.mxu0
        %v1365 = vadd.f32 0.0, %v1364
        %v1366 = vpop.f32.mrf.mxu0
        %v1367 = vpop.f32.mrf.mxu0
        %v1368 = vadd.f32 0.0, %v1367
        %v1369 = vpop.f32.mrf.mxu0
        %1370 = vmatprep.mubr.bf16.mxu0 0
        %1371 = vmatmul.mubr.bf16.gmra.mxu0 %v1305
        %v1372 = vpop.f32.mrf.mxu0
        %v1373 = vadd.f32 0.0, %v1372
        %v1374 = vpop.f32.mrf.mxu0
        %v1375 = vpop.f32.mrf.mxu0
        %v1376 = vadd.f32 0.0, %v1375
        %v1377 = vpop.f32.mrf.mxu0
        %1378 = vmatprep.mubr.bf16.mxu0 0
        %1379 = vmatmul.mubr.bf16.gmra.mxu0 %v1308
        %v1380 = vpop.f32.mrf.mxu0
        %v1381 = vadd.f32 0.0, %v1380
        %v1382 = vpop.f32.mrf.mxu0
        %v1383 = vpop.f32.mrf.mxu0
        %v1384 = vadd.f32 0.0, %v1383
        %v1385 = vpop.f32.mrf.mxu0
        %1386 = vmatprep.mubr.bf16.mxu0 0
        %1387 = vmatmul.mubr.bf16.gmra.mxu0 %v1311
        %v1388 = vpop.f32.mrf.mxu0
        %v1389 = vadd.f32 0.0, %v1388
        %v1390 = vpop.f32.mrf.mxu0
        %v1391 = vpop.f32.mrf.mxu0
        %v1392 = vadd.f32 0.0, %v1391
        %v1393 = vpop.f32.mrf.mxu0
        %1394 = vmatprep.mubr.bf16.mxu0 0
        %1395 = vmatmul.mubr.bf16.gmra.mxu0 %v1314
        %v1396 = vpop.f32.mrf.mxu0
        %v1397 = vadd.f32 0.0, %v1396
        %v1398 = vpop.f32.mrf.mxu0
        %v1399 = vpop.f32.mrf.mxu0
        %v1400 = vadd.f32 0.0, %v1399
        %v1401 = vpop.f32.mrf.mxu0
        %1402 = vmatprep.mubr.bf16.mxu0 0
        %1403 = vmatmul.mubr.bf16.gmra.mxu0 %v1317
        %v1404 = vpop.f32.mrf.mxu0
        %v1405 = vadd.f32 0.0, %v1404
        %v1406 = vpop.f32.mrf.mxu0
        %v1407 = vpop.f32.mrf.mxu0
        %v1408 = vadd.f32 0.0, %v1407
        %v1409 = vpop.f32.mrf.mxu0
        %1410 = vmatprep.mubr.bf16.mxu0 0
        %1411 = vmatmul.mubr.bf16.gmra.mxu0 %v1320
        %v1412 = vpop.f32.mrf.mxu0
        %v1413 = vadd.f32 0.0, %v1412
        %v1414 = vpop.f32.mrf.mxu0
        %v1415 = vpop.f32.mrf.mxu0
        %v1416 = vadd.f32 0.0, %v1415
        %v1417 = vpop.f32.mrf.mxu0
        %1418 = vdwg.mxu0
        %v1419 = vadd.f32 %v1242, %v1357
        %v1420 = vadd.f32 %v1243, %v1360
        %v1421 = vadd.f32 %v1244, %v1365
        %v1422 = vadd.f32 %v1245, %v1368
        %v1423 = vadd.f32 %v1246, %v1373
        %v1424 = vadd.f32 %v1247, %v1376
        %v1425 = vadd.f32 %v1248, %v1381
        %v1426 = vadd.f32 %v1249, %v1384
        %v1427 = vadd.f32 %v1250, %v1389
        %v1428 = vadd.f32 %v1251, %v1392
        %v1429 = vadd.f32 %v1252, %v1397
        %v1430 = vadd.f32 %v1253, %v1400
        %v1431 = vadd.f32 %v1254, %v1405
        %v1432 = vadd.f32 %v1255, %v1408
        %v1433 = vadd.f32 %v1256, %v1413
        %v1434 = vadd.f32 %v1257, %v1416
        %v1435 = vld [vmem:[%s1 + $0xa0] sm:$0xf]
        %v1436 = vld [vmem:[%s1 + $0xa4] sm:$0xf]
        %v1437 = vld [vmem:[%s1 + $0xa8] sm:$0xf]
        %v1438 = vld [vmem:[%s1 + $0xac] sm:$0xf]
        %v1439 = vld [vmem:[%s1 + $0xb0] sm:$0xf]
        %v1440 = vld [vmem:[%s1 + $0xb4] sm:$0xf]
        %v1441 = vld [vmem:[%s1 + $0xb8] sm:$0xf]
        %v1442 = vld [vmem:[%s1 + $0xbc] sm:$0xf]
        %v1443 = vld [vmem:[%s238 + $0x10] sm:$0xf]
        %v1444 = vld [vmem:[%s238 + $0x14] sm:$0xf]
        %v1445 = vld [vmem:[%s238 + $0x18] sm:$0xf]
        %v1446 = vld [vmem:[%s238 + $0x1c] sm:$0xf]
        %v1447 = vld [vmem:[%s238 + $0x20] sm:$0xf]
        %v1448 = vld [vmem:[%s238 + $0x24] sm:$0xf]
        %v1449 = vld [vmem:[%s238 + $0x28] sm:$0xf]
        %v1450 = vld [vmem:[%s238 + $0x2c] sm:$0xf]
        %v1451 = vld [vmem:[%s238 + $0x30] sm:$0xf]
        %v1452 = vld [vmem:[%s238 + $0x34] sm:$0xf]
        %v1453 = vld [vmem:[%s238 + $0x38] sm:$0xf]
        %v1454 = vld [vmem:[%s238 + $0x3c] sm:$0xf]
        %v1455 = vld [vmem:[%s238 + $0x40] sm:$0xf]
        %v1456 = vld [vmem:[%s238 + $0x44] sm:$0xf]
        %v1457 = vld [vmem:[%s238 + $0x48] sm:$0xf]
        %v1458 = vld [vmem:[%s238 + $0x4c] sm:$0xf]
        %v1459 = vld [vmem:[%s238 + $0x50] sm:$0x1]
        %v1477 = vunpack.c.l.b16 %v1443
        %v1478 = vunpack.c.l.b16 %v1444
        %v1479 = vunpack.c.l.b16 %v1445
        %v1480 = vunpack.c.l.b16 %v1446
        %v1481 = vunpack.c.l.b16 %v1447
        %v1482 = vunpack.c.l.b16 %v1448
        %v1483 = vunpack.c.l.b16 %v1449
        %v1484 = vunpack.c.l.b16 %v1450
        %v1485 = vunpack.c.l.b16 %v1451
        %v1486 = vunpack.c.l.b16 %v1452
        %v1487 = vunpack.c.l.b16 %v1453
        %v1488 = vunpack.c.l.b16 %v1454
        %v1489 = vunpack.c.l.b16 %v1455
        %v1490 = vunpack.c.l.b16 %v1456
        %v1491 = vunpack.c.l.b16 %v1457
        %v1492 = vunpack.c.l.b16 %v1458
        %v1493 = vunpack.c.l.b16 %v1459
        %v1494 = vpack.c.b16 %v1478, %v1477
        %v1495 = vpack.c.b16 %v1480, %v1479
        %v1496 = vpack.c.b16 %v1482, %v1481
        %v1497 = vpack.c.b16 %v1484, %v1483
        %v1498 = vpack.c.b16 %v1486, %v1485
        %v1499 = vpack.c.b16 %v1488, %v1487
        %v1500 = vpack.c.b16 %v1490, %v1489
        %v1501 = vpack.c.b16 %v1492, %v1491
        %v1502 = vpack.c.b16 %v1493, %v1493
        %vm1503 = vsmask.f32 7424
        %v1505 = vshrl.u32 %v1494, 16
        %v1507 = vshll.u32 %v1494, 16
        %v1509 = vrot.slane %v1507, 1
        %v1510 = vor.u32 %v1505, %v1509
        %v1512 = vshll.u32 %v1495, 16
        %v1514 = vrot.slane %v1512, 1
        %v1515 = vsel %vm1503, %v1510, %v1514
        %v1516 = vshrl.u32 %v1495, 16
        %v1518 = vor.u32 %v1516, %v1514
        %v1520 = vshll.u32 %v1496, 16
        %v1522 = vrot.slane %v1520, 1
        %v1523 = vsel %vm1503, %v1518, %v1522
        %v1524 = vshrl.u32 %v1496, 16
        %v1526 = vor.u32 %v1524, %v1522
        %v1528 = vshll.u32 %v1497, 16
        %v1530 = vrot.slane %v1528, 1
        %v1531 = vsel %vm1503, %v1526, %v1530
        %v1532 = vshrl.u32 %v1497, 16
        %v1534 = vor.u32 %v1532, %v1530
        %v1536 = vshll.u32 %v1498, 16
        %v1538 = vrot.slane %v1536, 1
        %v1539 = vsel %vm1503, %v1534, %v1538
        %v1540 = vshrl.u32 %v1498, 16
        %v1542 = vor.u32 %v1540, %v1538
        %v1544 = vshll.u32 %v1499, 16
        %v1546 = vrot.slane %v1544, 1
        %v1547 = vsel %vm1503, %v1542, %v1546
        %v1548 = vshrl.u32 %v1499, 16
        %v1550 = vor.u32 %v1548, %v1546
        %v1552 = vshll.u32 %v1500, 16
        %v1554 = vrot.slane %v1552, 1
        %v1555 = vsel %vm1503, %v1550, %v1554
        %v1556 = vshrl.u32 %v1500, 16
        %v1558 = vor.u32 %v1556, %v1554
        %v1560 = vshll.u32 %v1501, 16
        %v1562 = vrot.slane %v1560, 1
        %v1563 = vsel %vm1503, %v1558, %v1562
        %v1564 = vshrl.u32 %v1501, 16
        %v1566 = vor.u32 %v1564, %v1562
        %v1568 = vshll.u32 %v1502, 16
        %v1570 = vrot.slane %v1568, 1
        %v1571 = vsel %vm1503, %v1566, %v1570
        %v1580 = vunpack.c.l.b16 %v1435
        %v1581 = vunpack.c.l.b16 %v1436
        %v1582 = vunpack.c.l.b16 %v1437
        %v1583 = vunpack.c.l.b16 %v1438
        %v1584 = vunpack.c.l.b16 %v1439
        %v1585 = vunpack.c.l.b16 %v1440
        %v1586 = vunpack.c.l.b16 %v1441
        %v1587 = vunpack.c.l.b16 %v1442
        %v1588 = vpack.c.b16 %v1581, %v1580
        %v1589 = vpack.c.b16 %v1583, %v1582
        %v1590 = vpack.c.b16 %v1585, %v1584
        %v1591 = vpack.c.b16 %v1587, %v1586
        %v1597 = vsel %vm379, %v1515, 0
        %v1600 = vsel %vm379, %v1523, 0
        %v1603 = vsel %vm379, %v1531, 0
        %v1606 = vsel %vm379, %v1539, 0
        %v1609 = vsel %vm379, %v1547, 0
        %v1612 = vsel %vm379, %v1555, 0
        %v1615 = vsel %vm379, %v1563, 0
        %v1618 = vsel %vm379, %v1571, 0
        %1620 = vmatprep.subr.bf16.mxu0 0
        %1621 = vmatpush1.bf16.msra.mxu0 0
        %1622 = vmatprep.subr.bf16.mxu0 0
        %1623 = vmatpush1.bf16.msra.mxu0 0
        %1624 = vmatprep.subr.bf16.mxu0 0
        %1625 = vmatpush1.bf16.msra.mxu0 0
        %1626 = vmatprep.subr.bf16.mxu0 0
        %1627 = vmatpush1.bf16.msra.mxu0 0
        %1628 = vmatprep.subr.bf16.mxu0 0
        %1629 = vmatpush1.bf16.msra.mxu0 %v1591
        %1630 = vmatprep.subr.bf16.mxu0 0
        %1631 = vmatpush1.bf16.msra.mxu0 %v1590
        %1632 = vmatprep.subr.bf16.mxu0 0
        %1633 = vmatpush1.bf16.msra.mxu0 %v1589
        %1634 = vmatprep.subr.bf16.mxu0 0
        %1635 = vmatpush1.bf16.msra.mxu0 %v1588
        %1636 = vmatprep.subr.bf16.mxu0 0
        %1637 = vmatpush2.bf16.msra.mxu0 0
        %1638 = vmatprep.subr.bf16.mxu0 0
        %1639 = vmatpush2.bf16.msra.mxu0 0
        %1640 = vmatprep.subr.bf16.mxu0 0
        %1641 = vmatpush2.bf16.msra.mxu0 0
        %1642 = vmatprep.subr.bf16.mxu0 0
        %1643 = vmatpush2.bf16.msra.mxu0 0
        %1644 = vmatprep.subr.bf16.mxu0 0
        %1645 = vmatpush2.bf16.msra.mxu0 0
        %1646 = vmatprep.subr.bf16.mxu0 0
        %1647 = vmatpush2.bf16.msra.mxu0 0
        %1648 = vmatprep.subr.bf16.mxu0 0
        %1649 = vmatpush2.bf16.msra.mxu0 0
        %1650 = vmatprep.subr.bf16.mxu0 0
        %1651 = vmatpush2.bf16.msra.mxu0 0
        %1652 = vmatprep.mubr.bf16.mxu0 0
        %1653 = vmatmul.mubr.bf16.gmra.mxu0 %v1597
        %v1654 = vpop.f32.mrf.mxu0
        %v1655 = vadd.f32 0.0, %v1654
        %v1656 = vpop.f32.mrf.mxu0
        %v1657 = vpop.f32.mrf.mxu0
        %v1658 = vadd.f32 0.0, %v1657
        %v1659 = vpop.f32.mrf.mxu0
        %1660 = vmatprep.mubr.bf16.mxu0 0
        %1661 = vmatmul.mubr.bf16.gmra.mxu0 %v1600
        %v1662 = vpop.f32.mrf.mxu0
        %v1663 = vadd.f32 0.0, %v1662
        %v1664 = vpop.f32.mrf.mxu0
        %v1665 = vpop.f32.mrf.mxu0
        %v1666 = vadd.f32 0.0, %v1665
        %v1667 = vpop.f32.mrf.mxu0
        %1668 = vmatprep.mubr.bf16.mxu0 0
        %1669 = vmatmul.mubr.bf16.gmra.mxu0 %v1603
        %v1670 = vpop.f32.mrf.mxu0
        %v1671 = vadd.f32 0.0, %v1670
        %v1672 = vpop.f32.mrf.mxu0
        %v1673 = vpop.f32.mrf.mxu0
        %v1674 = vadd.f32 0.0, %v1673
        %v1675 = vpop.f32.mrf.mxu0
        %1676 = vmatprep.mubr.bf16.mxu0 0
        %1677 = vmatmul.mubr.bf16.gmra.mxu0 %v1606
        %v1678 = vpop.f32.mrf.mxu0
        %v1679 = vadd.f32 0.0, %v1678
        %v1680 = vpop.f32.mrf.mxu0
        %v1681 = vpop.f32.mrf.mxu0
        %v1682 = vadd.f32 0.0, %v1681
        %v1683 = vpop.f32.mrf.mxu0
        %1684 = vmatprep.mubr.bf16.mxu0 0
        %1685 = vmatmul.mubr.bf16.gmra.mxu0 %v1609
        %v1686 = vpop.f32.mrf.mxu0
        %v1687 = vadd.f32 0.0, %v1686
        %v1688 = vpop.f32.mrf.mxu0
        %v1689 = vpop.f32.mrf.mxu0
        %v1690 = vadd.f32 0.0, %v1689
        %v1691 = vpop.f32.mrf.mxu0
        %1692 = vmatprep.mubr.bf16.mxu0 0
        %1693 = vmatmul.mubr.bf16.gmra.mxu0 %v1612
        %v1694 = vpop.f32.mrf.mxu0
        %v1695 = vadd.f32 0.0, %v1694
        %v1696 = vpop.f32.mrf.mxu0
        %v1697 = vpop.f32.mrf.mxu0
        %v1698 = vadd.f32 0.0, %v1697
        %v1699 = vpop.f32.mrf.mxu0
        %1700 = vmatprep.mubr.bf16.mxu0 0
        %1701 = vmatmul.mubr.bf16.gmra.mxu0 %v1615
        %v1702 = vpop.f32.mrf.mxu0
        %v1703 = vadd.f32 0.0, %v1702
        %v1704 = vpop.f32.mrf.mxu0
        %v1705 = vpop.f32.mrf.mxu0
        %v1706 = vadd.f32 0.0, %v1705
        %v1707 = vpop.f32.mrf.mxu0
        %1708 = vmatprep.mubr.bf16.mxu0 0
        %1709 = vmatmul.mubr.bf16.gmra.mxu0 %v1618
        %v1710 = vpop.f32.mrf.mxu0
        %v1711 = vadd.f32 0.0, %v1710
        %v1712 = vpop.f32.mrf.mxu0
        %v1713 = vpop.f32.mrf.mxu0
        %v1714 = vadd.f32 0.0, %v1713
        %v1715 = vpop.f32.mrf.mxu0
        %1716 = vdwg.mxu0
        %v1717 = vadd.f32 %v1419, %v1655
        %v1718 = vadd.f32 %v1420, %v1658
        %v1719 = vadd.f32 %v1421, %v1663
        %v1720 = vadd.f32 %v1422, %v1666
        %v1721 = vadd.f32 %v1423, %v1671
        %v1722 = vadd.f32 %v1424, %v1674
        %v1723 = vadd.f32 %v1425, %v1679
        %v1724 = vadd.f32 %v1426, %v1682
        %v1725 = vadd.f32 %v1427, %v1687
        %v1726 = vadd.f32 %v1428, %v1690
        %v1727 = vadd.f32 %v1429, %v1695
        %v1728 = vadd.f32 %v1430, %v1698
        %v1729 = vadd.f32 %v1431, %v1703
        %v1730 = vadd.f32 %v1432, %v1706
        %v1731 = vadd.f32 %v1433, %v1711
        %v1732 = vadd.f32 %v1434, %v1714
        %v1733 = vld [vmem:[%s1 + $0xc0] sm:$0xf]
        %v1734 = vld [vmem:[%s1 + $0xc4] sm:$0xf]
        %v1735 = vld [vmem:[%s1 + $0xc8] sm:$0xf]
        %v1736 = vld [vmem:[%s1 + $0xcc] sm:$0xf]
        %v1737 = vld [vmem:[%s1 + $0xd0] sm:$0xf]
        %v1738 = vld [vmem:[%s1 + $0xd4] sm:$0xf]
        %v1739 = vld [vmem:[%s1 + $0xd8] sm:$0xf]
        %v1740 = vld [vmem:[%s1 + $0xdc] sm:$0xf]
        %v1741 = vld [vmem:[%s238 + $0x18] sm:$0xf]
        %v1742 = vld [vmem:[%s238 + $0x1c] sm:$0xf]
        %v1743 = vld [vmem:[%s238 + $0x20] sm:$0xf]
        %v1744 = vld [vmem:[%s238 + $0x24] sm:$0xf]
        %v1745 = vld [vmem:[%s238 + $0x28] sm:$0xf]
        %v1746 = vld [vmem:[%s238 + $0x2c] sm:$0xf]
        %v1747 = vld [vmem:[%s238 + $0x30] sm:$0xf]
        %v1748 = vld [vmem:[%s238 + $0x34] sm:$0xf]
        %v1749 = vld [vmem:[%s238 + $0x38] sm:$0xf]
        %v1750 = vld [vmem:[%s238 + $0x3c] sm:$0xf]
        %v1751 = vld [vmem:[%s238 + $0x40] sm:$0xf]
        %v1752 = vld [vmem:[%s238 + $0x44] sm:$0xf]
        %v1753 = vld [vmem:[%s238 + $0x48] sm:$0xf]
        %v1754 = vld [vmem:[%s238 + $0x4c] sm:$0xf]
        %v1755 = vld [vmem:[%s238 + $0x50] sm:$0xf]
        %v1756 = vld [vmem:[%s238 + $0x54] sm:$0xf]
        %v1757 = vld [vmem:[%s238 + $0x58] sm:$0x1]
        %v1775 = vunpack.c.l.b16 %v1741
        %v1776 = vunpack.c.l.b16 %v1742
        %v1777 = vunpack.c.l.b16 %v1743
        %v1778 = vunpack.c.l.b16 %v1744
        %v1779 = vunpack.c.l.b16 %v1745
        %v1780 = vunpack.c.l.b16 %v1746
        %v1781 = vunpack.c.l.b16 %v1747
        %v1782 = vunpack.c.l.b16 %v1748
        %v1783 = vunpack.c.l.b16 %v1749
        %v1784 = vunpack.c.l.b16 %v1750
        %v1785 = vunpack.c.l.b16 %v1751
        %v1786 = vunpack.c.l.b16 %v1752
        %v1787 = vunpack.c.l.b16 %v1753
        %v1788 = vunpack.c.l.b16 %v1754
        %v1789 = vunpack.c.l.b16 %v1755
        %v1790 = vunpack.c.l.b16 %v1756
        %v1791 = vunpack.c.l.b16 %v1757
        %v1792 = vpack.c.b16 %v1776, %v1775
        %v1793 = vpack.c.b16 %v1778, %v1777
        %v1794 = vpack.c.b16 %v1780, %v1779
        %v1795 = vpack.c.b16 %v1782, %v1781
        %v1796 = vpack.c.b16 %v1784, %v1783
        %v1797 = vpack.c.b16 %v1786, %v1785
        %v1798 = vpack.c.b16 %v1788, %v1787
        %v1799 = vpack.c.b16 %v1790, %v1789
        %v1800 = vpack.c.b16 %v1791, %v1791
        %v1802 = vshrl.u32 %v1792, 16
        %v1804 = vshll.u32 %v1792, 16
        %v1806 = vrot.slane %v1804, 1
        %v1807 = vor.u32 %v1802, %v1806
        %v1809 = vshll.u32 %v1793, 16
        %v1811 = vrot.slane %v1809, 1
        %v1812 = vsel %vm1503, %v1807, %v1811
        %v1813 = vshrl.u32 %v1793, 16
        %v1815 = vor.u32 %v1813, %v1811
        %v1817 = vshll.u32 %v1794, 16
        %v1819 = vrot.slane %v1817, 1
        %v1820 = vsel %vm1503, %v1815, %v1819
        %v1821 = vshrl.u32 %v1794, 16
        %v1823 = vor.u32 %v1821, %v1819
        %v1825 = vshll.u32 %v1795, 16
        %v1827 = vrot.slane %v1825, 1
        %v1828 = vsel %vm1503, %v1823, %v1827
        %v1829 = vshrl.u32 %v1795, 16
        %v1831 = vor.u32 %v1829, %v1827
        %v1833 = vshll.u32 %v1796, 16
        %v1835 = vrot.slane %v1833, 1
        %v1836 = vsel %vm1503, %v1831, %v1835
        %v1837 = vshrl.u32 %v1796, 16
        %v1839 = vor.u32 %v1837, %v1835
        %v1841 = vshll.u32 %v1797, 16
        %v1843 = vrot.slane %v1841, 1
        %v1844 = vsel %vm1503, %v1839, %v1843
        %v1845 = vshrl.u32 %v1797, 16
        %v1847 = vor.u32 %v1845, %v1843
        %v1849 = vshll.u32 %v1798, 16
        %v1851 = vrot.slane %v1849, 1
        %v1852 = vsel %vm1503, %v1847, %v1851
        %v1853 = vshrl.u32 %v1798, 16
        %v1855 = vor.u32 %v1853, %v1851
        %v1857 = vshll.u32 %v1799, 16
        %v1859 = vrot.slane %v1857, 1
        %v1860 = vsel %vm1503, %v1855, %v1859
        %v1861 = vshrl.u32 %v1799, 16
        %v1863 = vor.u32 %v1861, %v1859
        %v1865 = vshll.u32 %v1800, 16
        %v1867 = vrot.slane %v1865, 1
        %v1868 = vsel %vm1503, %v1863, %v1867
        %v1877 = vunpack.c.l.b16 %v1733
        %v1878 = vunpack.c.l.b16 %v1734
        %v1879 = vunpack.c.l.b16 %v1735
        %v1880 = vunpack.c.l.b16 %v1736
        %v1881 = vunpack.c.l.b16 %v1737
        %v1882 = vunpack.c.l.b16 %v1738
        %v1883 = vunpack.c.l.b16 %v1739
        %v1884 = vunpack.c.l.b16 %v1740
        %v1885 = vpack.c.b16 %v1878, %v1877
        %v1886 = vpack.c.b16 %v1880, %v1879
        %v1887 = vpack.c.b16 %v1882, %v1881
        %v1888 = vpack.c.b16 %v1884, %v1883
        %v1894 = vsel %vm379, %v1812, 0
        %v1897 = vsel %vm379, %v1820, 0
        %v1900 = vsel %vm379, %v1828, 0
        %v1903 = vsel %vm379, %v1836, 0
        %v1906 = vsel %vm379, %v1844, 0
        %v1909 = vsel %vm379, %v1852, 0
        %v1912 = vsel %vm379, %v1860, 0
        %v1915 = vsel %vm379, %v1868, 0
        %1917 = vmatprep.subr.bf16.mxu0 0
        %1918 = vmatpush1.bf16.msra.mxu0 0
        %1919 = vmatprep.subr.bf16.mxu0 0
        %1920 = vmatpush1.bf16.msra.mxu0 0
        %1921 = vmatprep.subr.bf16.mxu0 0
        %1922 = vmatpush1.bf16.msra.mxu0 0
        %1923 = vmatprep.subr.bf16.mxu0 0
        %1924 = vmatpush1.bf16.msra.mxu0 0
        %1925 = vmatprep.subr.bf16.mxu0 0
        %1926 = vmatpush1.bf16.msra.mxu0 %v1888
        %1927 = vmatprep.subr.bf16.mxu0 0
        %1928 = vmatpush1.bf16.msra.mxu0 %v1887
        %1929 = vmatprep.subr.bf16.mxu0 0
        %1930 = vmatpush1.bf16.msra.mxu0 %v1886
        %1931 = vmatprep.subr.bf16.mxu0 0
        %1932 = vmatpush1.bf16.msra.mxu0 %v1885
        %1933 = vmatprep.subr.bf16.mxu0 0
        %1934 = vmatpush2.bf16.msra.mxu0 0
        %1935 = vmatprep.subr.bf16.mxu0 0
        %1936 = vmatpush2.bf16.msra.mxu0 0
        %1937 = vmatprep.subr.bf16.mxu0 0
        %1938 = vmatpush2.bf16.msra.mxu0 0
        %1939 = vmatprep.subr.bf16.mxu0 0
        %1940 = vmatpush2.bf16.msra.mxu0 0
        %1941 = vmatprep.subr.bf16.mxu0 0
        %1942 = vmatpush2.bf16.msra.mxu0 0
        %1943 = vmatprep.subr.bf16.mxu0 0
        %1944 = vmatpush2.bf16.msra.mxu0 0
        %1945 = vmatprep.subr.bf16.mxu0 0
        %1946 = vmatpush2.bf16.msra.mxu0 0
        %1947 = vmatprep.subr.bf16.mxu0 0
        %1948 = vmatpush2.bf16.msra.mxu0 0
        %1949 = vmatprep.mubr.bf16.mxu0 0
        %1950 = vmatmul.mubr.bf16.gmra.mxu0 %v1894
        %v1951 = vpop.f32.mrf.mxu0
        %v1952 = vadd.f32 0.0, %v1951
        %v1953 = vpop.f32.mrf.mxu0
        %v1954 = vpop.f32.mrf.mxu0
        %v1955 = vadd.f32 0.0, %v1954
        %v1956 = vpop.f32.mrf.mxu0
        %1957 = vmatprep.mubr.bf16.mxu0 0
        %1958 = vmatmul.mubr.bf16.gmra.mxu0 %v1897
        %v1959 = vpop.f32.mrf.mxu0
        %v1960 = vadd.f32 0.0, %v1959
        %v1961 = vpop.f32.mrf.mxu0
        %v1962 = vpop.f32.mrf.mxu0
        %v1963 = vadd.f32 0.0, %v1962
        %v1964 = vpop.f32.mrf.mxu0
        %1965 = vmatprep.mubr.bf16.mxu0 0
        %1966 = vmatmul.mubr.bf16.gmra.mxu0 %v1900
        %v1967 = vpop.f32.mrf.mxu0
        %v1968 = vadd.f32 0.0, %v1967
        %v1969 = vpop.f32.mrf.mxu0
        %v1970 = vpop.f32.mrf.mxu0
        %v1971 = vadd.f32 0.0, %v1970
        %v1972 = vpop.f32.mrf.mxu0
        %1973 = vmatprep.mubr.bf16.mxu0 0
        %1974 = vmatmul.mubr.bf16.gmra.mxu0 %v1903
        %v1975 = vpop.f32.mrf.mxu0
        %v1976 = vadd.f32 0.0, %v1975
        %v1977 = vpop.f32.mrf.mxu0
        %v1978 = vpop.f32.mrf.mxu0
        %v1979 = vadd.f32 0.0, %v1978
        %v1980 = vpop.f32.mrf.mxu0
        %1981 = vmatprep.mubr.bf16.mxu0 0
        %1982 = vmatmul.mubr.bf16.gmra.mxu0 %v1906
        %v1983 = vpop.f32.mrf.mxu0
        %v1984 = vadd.f32 0.0, %v1983
        %v1985 = vpop.f32.mrf.mxu0
        %v1986 = vpop.f32.mrf.mxu0
        %v1987 = vadd.f32 0.0, %v1986
        %v1988 = vpop.f32.mrf.mxu0
        %1989 = vmatprep.mubr.bf16.mxu0 0
        %1990 = vmatmul.mubr.bf16.gmra.mxu0 %v1909
        %v1991 = vpop.f32.mrf.mxu0
        %v1992 = vadd.f32 0.0, %v1991
        %v1993 = vpop.f32.mrf.mxu0
        %v1994 = vpop.f32.mrf.mxu0
        %v1995 = vadd.f32 0.0, %v1994
        %v1996 = vpop.f32.mrf.mxu0
        %1997 = vmatprep.mubr.bf16.mxu0 0
        %1998 = vmatmul.mubr.bf16.gmra.mxu0 %v1912
        %v1999 = vpop.f32.mrf.mxu0
        %v2000 = vadd.f32 0.0, %v1999
        %v2001 = vpop.f32.mrf.mxu0
        %v2002 = vpop.f32.mrf.mxu0
        %v2003 = vadd.f32 0.0, %v2002
        %v2004 = vpop.f32.mrf.mxu0
        %2005 = vmatprep.mubr.bf16.mxu0 0
        %2006 = vmatmul.mubr.bf16.gmra.mxu0 %v1915
        %v2007 = vpop.f32.mrf.mxu0
        %v2008 = vadd.f32 0.0, %v2007
        %v2009 = vpop.f32.mrf.mxu0
        %v2010 = vpop.f32.mrf.mxu0
        %v2011 = vadd.f32 0.0, %v2010
        %v2012 = vpop.f32.mrf.mxu0
        %2013 = vdwg.mxu0
        %v2014 = vadd.f32 %v1717, %v1952
        %v2015 = vadd.f32 %v1718, %v1955
        %v2016 = vadd.f32 %v1719, %v1960
        %v2017 = vadd.f32 %v1720, %v1963
        %v2018 = vadd.f32 %v1721, %v1968
        %v2019 = vadd.f32 %v1722, %v1971
        %v2020 = vadd.f32 %v1723, %v1976
        %v2021 = vadd.f32 %v1724, %v1979
        %v2022 = vadd.f32 %v1725, %v1984
        %v2023 = vadd.f32 %v1726, %v1987
        %v2024 = vadd.f32 %v1727, %v1992
        %v2025 = vadd.f32 %v1728, %v1995
        %v2026 = vadd.f32 %v1729, %v2000
        %v2027 = vadd.f32 %v1730, %v2003
        %v2028 = vadd.f32 %v1731, %v2008
        %v2029 = vadd.f32 %v1732, %v2011
        %v2030 = vld [vmem:[%s1 + $0xe0] sm:$0xf]
        %v2031 = vld [vmem:[%s1 + $0xe4] sm:$0xf]
        %v2032 = vld [vmem:[%s1 + $0xe8] sm:$0xf]
        %v2033 = vld [vmem:[%s1 + $0xec] sm:$0xf]
        %v2034 = vld [vmem:[%s1 + $0xf0] sm:$0xf]
        %v2035 = vld [vmem:[%s1 + $0xf4] sm:$0xf]
        %v2036 = vld [vmem:[%s1 + $0xf8] sm:$0xf]
        %v2037 = vld [vmem:[%s1 + $0xfc] sm:$0xf]
        %v2038 = vld [vmem:[%s238 + $0x18] sm:$0xe]
        %v2040 = vunpack.c.l.b16 %v2038
        %v2041 = vpack.c.b16 %v1776, %v2040
        %vm2042 = vcmask 1046528
        %v2043 = vrot.slane %v2041, 1
        %v2044 = vrot.slane %v1793, 1
        %v2045 = vsel %vm2042, %v2043, %v2044
        %v2046 = vrot.slane %v1794, 1
        %v2047 = vsel %vm2042, %v2044, %v2046
        %v2048 = vrot.slane %v1795, 1
        %v2049 = vsel %vm2042, %v2046, %v2048
        %v2050 = vrot.slane %v1796, 1
        %v2051 = vsel %vm2042, %v2048, %v2050
        %v2052 = vrot.slane %v1797, 1
        %v2053 = vsel %vm2042, %v2050, %v2052
        %v2054 = vrot.slane %v1798, 1
        %v2055 = vsel %vm2042, %v2052, %v2054
        %v2056 = vrot.slane %v1799, 1
        %v2057 = vsel %vm2042, %v2054, %v2056
        %v2058 = vrot.slane %v1800, 1
        %v2059 = vsel %vm2042, %v2056, %v2058
        %v2068 = vunpack.c.l.b16 %v2030
        %v2069 = vunpack.c.l.b16 %v2031
        %v2070 = vunpack.c.l.b16 %v2032
        %v2071 = vunpack.c.l.b16 %v2033
        %v2072 = vunpack.c.l.b16 %v2034
        %v2073 = vunpack.c.l.b16 %v2035
        %v2074 = vunpack.c.l.b16 %v2036
        %v2075 = vunpack.c.l.b16 %v2037
        %v2076 = vpack.c.b16 %v2069, %v2068
        %v2077 = vpack.c.b16 %v2071, %v2070
        %v2078 = vpack.c.b16 %v2073, %v2072
        %v2079 = vpack.c.b16 %v2075, %v2074
        %v2085 = vsel %vm379, %v2045, 0
        %v2088 = vsel %vm379, %v2047, 0
        %v2091 = vsel %vm379, %v2049, 0
        %v2094 = vsel %vm379, %v2051, 0
        %v2097 = vsel %vm379, %v2053, 0
        %v2100 = vsel %vm379, %v2055, 0
        %v2103 = vsel %vm379, %v2057, 0
        %v2106 = vsel %vm379, %v2059, 0
        %2108 = vmatprep.subr.bf16.mxu0 0
        %2109 = vmatpush1.bf16.msra.mxu0 0
        %2110 = vmatprep.subr.bf16.mxu0 0
        %2111 = vmatpush1.bf16.msra.mxu0 0
        %2112 = vmatprep.subr.bf16.mxu0 0
        %2113 = vmatpush1.bf16.msra.mxu0 0
        %2114 = vmatprep.subr.bf16.mxu0 0
        %2115 = vmatpush1.bf16.msra.mxu0 0
        %2116 = vmatprep.subr.bf16.mxu0 0
        %2117 = vmatpush1.bf16.msra.mxu0 %v2079
        %2118 = vmatprep.subr.bf16.mxu0 0
        %2119 = vmatpush1.bf16.msra.mxu0 %v2078
        %2120 = vmatprep.subr.bf16.mxu0 0
        %2121 = vmatpush1.bf16.msra.mxu0 %v2077
        %2122 = vmatprep.subr.bf16.mxu0 0
        %2123 = vmatpush1.bf16.msra.mxu0 %v2076
        %2124 = vmatprep.subr.bf16.mxu0 0
        %2125 = vmatpush2.bf16.msra.mxu0 0
        %2126 = vmatprep.subr.bf16.mxu0 0
        %2127 = vmatpush2.bf16.msra.mxu0 0
        %2128 = vmatprep.subr.bf16.mxu0 0
        %2129 = vmatpush2.bf16.msra.mxu0 0
        %2130 = vmatprep.subr.bf16.mxu0 0
        %2131 = vmatpush2.bf16.msra.mxu0 0
        %2132 = vmatprep.subr.bf16.mxu0 0
        %2133 = vmatpush2.bf16.msra.mxu0 0
        %2134 = vmatprep.subr.bf16.mxu0 0
        %2135 = vmatpush2.bf16.msra.mxu0 0
        %2136 = vmatprep.subr.bf16.mxu0 0
        %2137 = vmatpush2.bf16.msra.mxu0 0
        %2138 = vmatprep.subr.bf16.mxu0 0
        %2139 = vmatpush2.bf16.msra.mxu0 0
        %2140 = vmatprep.mubr.bf16.mxu0 0
        %2141 = vmatmul.mubr.bf16.gmra.mxu0 %v2085
        %v2142 = vpop.f32.mrf.mxu0
        %v2143 = vadd.f32 0.0, %v2142
        %v2144 = vpop.f32.mrf.mxu0
        %v2145 = vpop.f32.mrf.mxu0
        %v2146 = vadd.f32 0.0, %v2145
        %v2147 = vpop.f32.mrf.mxu0
        %2148 = vmatprep.mubr.bf16.mxu0 0
        %2149 = vmatmul.mubr.bf16.gmra.mxu0 %v2088
        %v2150 = vpop.f32.mrf.mxu0
        %v2151 = vadd.f32 0.0, %v2150
        %v2152 = vpop.f32.mrf.mxu0
        %v2153 = vpop.f32.mrf.mxu0
        %v2154 = vadd.f32 0.0, %v2153
        %v2155 = vpop.f32.mrf.mxu0
        %2156 = vmatprep.mubr.bf16.mxu0 0
        %2157 = vmatmul.mubr.bf16.gmra.mxu0 %v2091
        %v2158 = vpop.f32.mrf.mxu0
        %v2159 = vadd.f32 0.0, %v2158
        %v2160 = vpop.f32.mrf.mxu0
        %v2161 = vpop.f32.mrf.mxu0
        %v2162 = vadd.f32 0.0, %v2161
        %v2163 = vpop.f32.mrf.mxu0
        %2164 = vmatprep.mubr.bf16.mxu0 0
        %2165 = vmatmul.mubr.bf16.gmra.mxu0 %v2094
        %v2166 = vpop.f32.mrf.mxu0
        %v2167 = vadd.f32 0.0, %v2166
        %v2168 = vpop.f32.mrf.mxu0
        %v2169 = vpop.f32.mrf.mxu0
        %v2170 = vadd.f32 0.0, %v2169
        %v2171 = vpop.f32.mrf.mxu0
        %2172 = vmatprep.mubr.bf16.mxu0 0
        %2173 = vmatmul.mubr.bf16.gmra.mxu0 %v2097
        %v2174 = vpop.f32.mrf.mxu0
        %v2175 = vadd.f32 0.0, %v2174
        %v2176 = vpop.f32.mrf.mxu0
        %v2177 = vpop.f32.mrf.mxu0
        %v2178 = vadd.f32 0.0, %v2177
        %v2179 = vpop.f32.mrf.mxu0
        %2180 = vmatprep.mubr.bf16.mxu0 0
        %2181 = vmatmul.mubr.bf16.gmra.mxu0 %v2100
        %v2182 = vpop.f32.mrf.mxu0
        %v2183 = vadd.f32 0.0, %v2182
        %v2184 = vpop.f32.mrf.mxu0
        %v2185 = vpop.f32.mrf.mxu0
        %v2186 = vadd.f32 0.0, %v2185
        %v2187 = vpop.f32.mrf.mxu0
        %2188 = vmatprep.mubr.bf16.mxu0 0
        %2189 = vmatmul.mubr.bf16.gmra.mxu0 %v2103
        %v2190 = vpop.f32.mrf.mxu0
        %v2191 = vadd.f32 0.0, %v2190
        %v2192 = vpop.f32.mrf.mxu0
        %v2193 = vpop.f32.mrf.mxu0
        %v2194 = vadd.f32 0.0, %v2193
        %v2195 = vpop.f32.mrf.mxu0
        %2196 = vmatprep.mubr.bf16.mxu0 0
        %2197 = vmatmul.mubr.bf16.gmra.mxu0 %v2106
        %v2198 = vpop.f32.mrf.mxu0
        %v2199 = vadd.f32 0.0, %v2198
        %v2200 = vpop.f32.mrf.mxu0
        %v2201 = vpop.f32.mrf.mxu0
        %v2202 = vadd.f32 0.0, %v2201
        %v2203 = vpop.f32.mrf.mxu0
        %2204 = vdwg.mxu0
        %v2205 = vadd.f32 %v2014, %v2143
        %v2206 = vadd.f32 %v2015, %v2146
        %v2207 = vadd.f32 %v2016, %v2151
        %v2208 = vadd.f32 %v2017, %v2154
        %v2209 = vadd.f32 %v2018, %v2159
        %v2210 = vadd.f32 %v2019, %v2162
        %v2211 = vadd.f32 %v2020, %v2167
        %v2212 = vadd.f32 %v2021, %v2170
        %v2213 = vadd.f32 %v2022, %v2175
        %v2214 = vadd.f32 %v2023, %v2178
        %v2215 = vadd.f32 %v2024, %v2183
        %v2216 = vadd.f32 %v2025, %v2186
        %v2217 = vadd.f32 %v2026, %v2191
        %v2218 = vadd.f32 %v2027, %v2194
        %v2219 = vadd.f32 %v2028, %v2199
        %v2220 = vadd.f32 %v2029, %v2202
        %v2221 = vld [vmem:[%s1 + $0x100] sm:$0xf]
        %v2222 = vld [vmem:[%s1 + $0x104] sm:$0xf]
        %v2223 = vld [vmem:[%s1 + $0x108] sm:$0xf]
        %v2224 = vld [vmem:[%s1 + $0x10c] sm:$0xf]
        %v2225 = vld [vmem:[%s1 + $0x110] sm:$0xf]
        %v2226 = vld [vmem:[%s1 + $0x114] sm:$0xf]
        %v2227 = vld [vmem:[%s1 + $0x118] sm:$0xf]
        %v2228 = vld [vmem:[%s1 + $0x11c] sm:$0xf]
        %v2229 = vld [vmem:[%s238 + $0x58] sm:$0x3]
        %v2231 = vunpack.c.l.b16 %v2229
        %v2232 = vpack.c.b16 %v2231, %v2231
        %vm2233 = vsmask.f32 6400
        %v2235 = vshrl.u32 %v2041, 16
        %v2237 = vrot.slane %v2235, 1
        %v2238 = vshll.u32 %v2041, 16
        %v2240 = vrot.slane %v2238, 2
        %v2241 = vor.u32 %v2237, %v2240
        %v2242 = vrot.slane %v1813, 1
        %v2243 = vrot.slane %v1809, 2
        %v2244 = vor.u32 %v2242, %v2243
        %v2245 = vsel %vm2233, %v2241, %v2244
        %v2246 = vrot.slane %v1821, 1
        %v2247 = vrot.slane %v1817, 2
        %v2248 = vor.u32 %v2246, %v2247
        %v2249 = vsel %vm2233, %v2244, %v2248
        %v2250 = vrot.slane %v1829, 1
        %v2251 = vrot.slane %v1825, 2
        %v2252 = vor.u32 %v2250, %v2251
        %v2253 = vsel %vm2233, %v2248, %v2252
        %v2254 = vrot.slane %v1837, 1
        %v2255 = vrot.slane %v1833, 2
        %v2256 = vor.u32 %v2254, %v2255
        %v2257 = vsel %vm2233, %v2252, %v2256
        %v2258 = vrot.slane %v1845, 1
        %v2259 = vrot.slane %v1841, 2
        %v2260 = vor.u32 %v2258, %v2259
        %v2261 = vsel %vm2233, %v2256, %v2260
        %v2262 = vrot.slane %v1853, 1
        %v2263 = vrot.slane %v1849, 2
        %v2264 = vor.u32 %v2262, %v2263
        %v2265 = vsel %vm2233, %v2260, %v2264
        %v2266 = vrot.slane %v1861, 1
        %v2267 = vrot.slane %v1857, 2
        %v2268 = vor.u32 %v2266, %v2267
        %v2269 = vsel %vm2233, %v2264, %v2268
        %v2271 = vshrl.u32 %v2232, 16
        %v2273 = vrot.slane %v2271, 1
        %v2274 = vshll.u32 %v2232, 16
        %v2276 = vrot.slane %v2274, 2
        %v2277 = vor.u32 %v2273, %v2276
        %v2278 = vsel %vm2233, %v2268, %v2277
        %v2287 = vunpack.c.l.b16 %v2221
        %v2288 = vunpack.c.l.b16 %v2222
        %v2289 = vunpack.c.l.b16 %v2223
        %v2290 = vunpack.c.l.b16 %v2224
        %v2291 = vunpack.c.l.b16 %v2225
        %v2292 = vunpack.c.l.b16 %v2226
        %v2293 = vunpack.c.l.b16 %v2227
        %v2294 = vunpack.c.l.b16 %v2228
        %v2295 = vpack.c.b16 %v2288, %v2287
        %v2296 = vpack.c.b16 %v2290, %v2289
        %v2297 = vpack.c.b16 %v2292, %v2291
        %v2298 = vpack.c.b16 %v2294, %v2293
        %v2304 = vsel %vm379, %v2245, 0
        %v2307 = vsel %vm379, %v2249, 0
        %v2310 = vsel %vm379, %v2253, 0
        %v2313 = vsel %vm379, %v2257, 0
        %v2316 = vsel %vm379, %v2261, 0
        %v2319 = vsel %vm379, %v2265, 0
        %v2322 = vsel %vm379, %v2269, 0
        %v2325 = vsel %vm379, %v2278, 0
        %2327 = vmatprep.subr.bf16.mxu0 0
        %2328 = vmatpush1.bf16.msra.mxu0 0
        %2329 = vmatprep.subr.bf16.mxu0 0
        %2330 = vmatpush1.bf16.msra.mxu0 0
        %2331 = vmatprep.subr.bf16.mxu0 0
        %2332 = vmatpush1.bf16.msra.mxu0 0
        %2333 = vmatprep.subr.bf16.mxu0 0
        %2334 = vmatpush1.bf16.msra.mxu0 0
        %2335 = vmatprep.subr.bf16.mxu0 0
        %2336 = vmatpush1.bf16.msra.mxu0 %v2298
        %2337 = vmatprep.subr.bf16.mxu0 0
        %2338 = vmatpush1.bf16.msra.mxu0 %v2297
        %2339 = vmatprep.subr.bf16.mxu0 0
        %2340 = vmatpush1.bf16.msra.mxu0 %v2296
        %2341 = vmatprep.subr.bf16.mxu0 0
        %2342 = vmatpush1.bf16.msra.mxu0 %v2295
        %2343 = vmatprep.subr.bf16.mxu0 0
        %2344 = vmatpush2.bf16.msra.mxu0 0
        %2345 = vmatprep.subr.bf16.mxu0 0
        %2346 = vmatpush2.bf16.msra.mxu0 0
        %2347 = vmatprep.subr.bf16.mxu0 0
        %2348 = vmatpush2.bf16.msra.mxu0 0
        %2349 = vmatprep.subr.bf16.mxu0 0
        %2350 = vmatpush2.bf16.msra.mxu0 0
        %2351 = vmatprep.subr.bf16.mxu0 0
        %2352 = vmatpush2.bf16.msra.mxu0 0
        %2353 = vmatprep.subr.bf16.mxu0 0
        %2354 = vmatpush2.bf16.msra.mxu0 0
        %2355 = vmatprep.subr.bf16.mxu0 0
        %2356 = vmatpush2.bf16.msra.mxu0 0
        %2357 = vmatprep.subr.bf16.mxu0 0
        %2358 = vmatpush2.bf16.msra.mxu0 0
        %2359 = vmatprep.mubr.bf16.mxu0 0
        %2360 = vmatmul.mubr.bf16.gmra.mxu0 %v2304
        %v2361 = vpop.f32.mrf.mxu0
        %v2362 = vadd.f32 0.0, %v2361
        %v2363 = vpop.f32.mrf.mxu0
        %v2364 = vpop.f32.mrf.mxu0
        %v2365 = vadd.f32 0.0, %v2364
        %v2366 = vpop.f32.mrf.mxu0
        %2367 = vmatprep.mubr.bf16.mxu0 0
        %2368 = vmatmul.mubr.bf16.gmra.mxu0 %v2307
        %v2369 = vpop.f32.mrf.mxu0
        %v2370 = vadd.f32 0.0, %v2369
        %v2371 = vpop.f32.mrf.mxu0
        %v2372 = vpop.f32.mrf.mxu0
        %v2373 = vadd.f32 0.0, %v2372
        %v2374 = vpop.f32.mrf.mxu0
        %2375 = vmatprep.mubr.bf16.mxu0 0
        %2376 = vmatmul.mubr.bf16.gmra.mxu0 %v2310
        %v2377 = vpop.f32.mrf.mxu0
        %v2378 = vadd.f32 0.0, %v2377
        %v2379 = vpop.f32.mrf.mxu0
        %v2380 = vpop.f32.mrf.mxu0
        %v2381 = vadd.f32 0.0, %v2380
        %v2382 = vpop.f32.mrf.mxu0
        %2383 = vmatprep.mubr.bf16.mxu0 0
        %2384 = vmatmul.mubr.bf16.gmra.mxu0 %v2313
        %v2385 = vpop.f32.mrf.mxu0
        %v2386 = vadd.f32 0.0, %v2385
        %v2387 = vpop.f32.mrf.mxu0
        %v2388 = vpop.f32.mrf.mxu0
        %v2389 = vadd.f32 0.0, %v2388
        %v2390 = vpop.f32.mrf.mxu0
        %2391 = vmatprep.mubr.bf16.mxu0 0
        %2392 = vmatmul.mubr.bf16.gmra.mxu0 %v2316
        %v2393 = vpop.f32.mrf.mxu0
        %v2394 = vadd.f32 0.0, %v2393
        %v2395 = vpop.f32.mrf.mxu0
        %v2396 = vpop.f32.mrf.mxu0
        %v2397 = vadd.f32 0.0, %v2396
        %v2398 = vpop.f32.mrf.mxu0
        %2399 = vmatprep.mubr.bf16.mxu0 0
        %2400 = vmatmul.mubr.bf16.gmra.mxu0 %v2319
        %v2401 = vpop.f32.mrf.mxu0
        %v2402 = vadd.f32 0.0, %v2401
        %v2403 = vpop.f32.mrf.mxu0
        %v2404 = vpop.f32.mrf.mxu0
        %v2405 = vadd.f32 0.0, %v2404
        %v2406 = vpop.f32.mrf.mxu0
        %2407 = vmatprep.mubr.bf16.mxu0 0
        %2408 = vmatmul.mubr.bf16.gmra.mxu0 %v2322
        %v2409 = vpop.f32.mrf.mxu0
        %v2410 = vadd.f32 0.0, %v2409
        %v2411 = vpop.f32.mrf.mxu0
        %v2412 = vpop.f32.mrf.mxu0
        %v2413 = vadd.f32 0.0, %v2412
        %v2414 = vpop.f32.mrf.mxu0
        %2415 = vmatprep.mubr.bf16.mxu0 0
        %2416 = vmatmul.mubr.bf16.gmra.mxu0 %v2325
        %v2417 = vpop.f32.mrf.mxu0
        %v2418 = vadd.f32 0.0, %v2417
        %v2419 = vpop.f32.mrf.mxu0
        %v2420 = vpop.f32.mrf.mxu0
        %v2421 = vadd.f32 0.0, %v2420
        %v2422 = vpop.f32.mrf.mxu0
        %2423 = vdwg.mxu0
        %v2424 = vadd.f32 %v2205, %v2362
        %v2425 = vadd.f32 %v2206, %v2365
        %v2426 = vadd.f32 %v2207, %v2370
        %v2427 = vadd.f32 %v2208, %v2373
        %v2428 = vadd.f32 %v2209, %v2378
        %v2429 = vadd.f32 %v2210, %v2381
        %v2430 = vadd.f32 %v2211, %v2386
        %v2431 = vadd.f32 %v2212, %v2389
        %v2432 = vadd.f32 %v2213, %v2394
        %v2433 = vadd.f32 %v2214, %v2397
        %v2434 = vadd.f32 %v2215, %v2402
        %v2435 = vadd.f32 %v2216, %v2405
        %v2436 = vadd.f32 %v2217, %v2410
        %v2437 = vadd.f32 %v2218, %v2413
        %v2438 = vadd.f32 %v2219, %v2418
        %v2439 = vadd.f32 %v2220, %v2421
        %v2440 = vld [vmem:[%s2 + $0x20] sm:$0xff]
        %v2441 = vld [vmem:[%s2 + $0x28] sm:$0xff]
        %v2442 = vld [vmem:[%s2 + $0x30] sm:$0xff]
        %v2443 = vld [vmem:[%s2 + $0x38] sm:$0xff]
        %v2444 = vld [vmem:[%s2 + $0x40] sm:$0xff]
        %v2445 = vld [vmem:[%s2 + $0x48] sm:$0xff]
        %v2446 = vld [vmem:[%s2 + $0x50] sm:$0xff]
        %v2447 = vld [vmem:[%s2 + $0x58] sm:$0xff]
        %v2448 = vld [vmem:[%s2 + $0x60] sm:$0xff]
        %v2449 = vld [vmem:[%s2 + $0x68] sm:$0xff]
        %v2450 = vld [vmem:[%s2 + $0x70] sm:$0xff]
        %v2451 = vld [vmem:[%s2 + $0x78] sm:$0xff]
        %v2452 = vld [vmem:[%s2 + $0x80] sm:$0xff]
        %v2453 = vld [vmem:[%s2 + $0x88] sm:$0xff]
        %v2454 = vld [vmem:[%s2 + $0x90] sm:$0xff]
        %v2455 = vld [vmem:[%s2 + $0x98] sm:$0xff]
        %2457 = vset.pattern.permute.xlu0 0
        %2458 = vperm.xlu0 %2457, %v2440
        %v2459 = vpop.permute.xlu0 %2458
        %2462 = vset.pattern.permute.xlu0 0
        %2463 = vperm.xlu0 %2462, %v2441
        %v2464 = vpop.permute.xlu0 %2463
        %2467 = vset.pattern.permute.xlu0 0
        %2468 = vperm.xlu0 %2467, %v2442
        %v2469 = vpop.permute.xlu0 %2468
        %2472 = vset.pattern.permute.xlu0 0
        %2473 = vperm.xlu0 %2472, %v2443
        %v2474 = vpop.permute.xlu0 %2473
        %2477 = vset.pattern.permute.xlu0 0
        %2478 = vperm.xlu0 %2477, %v2444
        %v2479 = vpop.permute.xlu0 %2478
        %2482 = vset.pattern.permute.xlu0 0
        %2483 = vperm.xlu0 %2482, %v2445
        %v2484 = vpop.permute.xlu0 %2483
        %2487 = vset.pattern.permute.xlu0 0
        %2488 = vperm.xlu0 %2487, %v2446
        %v2489 = vpop.permute.xlu0 %2488
        %2492 = vset.pattern.permute.xlu0 0
        %2493 = vperm.xlu0 %2492, %v2447
        %v2494 = vpop.permute.xlu0 %2493
        %2497 = vset.pattern.permute.xlu0 0
        %2498 = vperm.xlu0 %2497, %v2448
        %v2499 = vpop.permute.xlu0 %2498
        %2502 = vset.pattern.permute.xlu0 0
        %2503 = vperm.xlu0 %2502, %v2449
        %v2504 = vpop.permute.xlu0 %2503
        %2507 = vset.pattern.permute.xlu0 0
        %2508 = vperm.xlu0 %2507, %v2450
        %v2509 = vpop.permute.xlu0 %2508
        %2512 = vset.pattern.permute.xlu0 0
        %2513 = vperm.xlu0 %2512, %v2451
        %v2514 = vpop.permute.xlu0 %2513
        %2517 = vset.pattern.permute.xlu0 0
        %2518 = vperm.xlu0 %2517, %v2452
        %v2519 = vpop.permute.xlu0 %2518
        %2522 = vset.pattern.permute.xlu0 0
        %2523 = vperm.xlu0 %2522, %v2453
        %v2524 = vpop.permute.xlu0 %2523
        %2527 = vset.pattern.permute.xlu0 0
        %2528 = vperm.xlu0 %2527, %v2454
        %v2529 = vpop.permute.xlu0 %2528
        %2532 = vset.pattern.permute.xlu0 0
        %2533 = vperm.xlu0 %2532, %v2455
        %v2534 = vpop.permute.xlu0 %2533
        %v2536 = vmul.f32 %v2424, %v2459
        %v2537 = vmul.f32 %v2425, %v2464
        %v2538 = vmul.f32 %v2426, %v2469
        %v2539 = vmul.f32 %v2427, %v2474
        %v2540 = vmul.f32 %v2428, %v2479
        %v2541 = vmul.f32 %v2429, %v2484
        %v2542 = vmul.f32 %v2430, %v2489
        %v2543 = vmul.f32 %v2431, %v2494
        %v2544 = vmul.f32 %v2432, %v2499
        %v2545 = vmul.f32 %v2433, %v2504
        %v2546 = vmul.f32 %v2434, %v2509
        %v2547 = vmul.f32 %v2435, %v2514
        %v2548 = vmul.f32 %v2436, %v2519
        %v2549 = vmul.f32 %v2437, %v2524
        %v2550 = vmul.f32 %v2438, %v2529
        %v2551 = vmul.f32 %v2439, %v2534
        %v2552 = vsel %vm379, %v2536, 0.0
        %v2553 = vsel %vm379, %v2537, 0.0
        %v2554 = vadd.f32 %v2552, %v2553
        %v2555 = vsel %vm379, %v2538, 0.0
        %v2556 = vadd.f32 %v2554, %v2555
        %v2557 = vsel %vm379, %v2539, 0.0
        %v2558 = vadd.f32 %v2556, %v2557
        %v2559 = vsel %vm379, %v2540, 0.0
        %v2560 = vadd.f32 %v2558, %v2559
        %v2561 = vsel %vm379, %v2541, 0.0
        %v2562 = vadd.f32 %v2560, %v2561
        %v2563 = vsel %vm379, %v2542, 0.0
        %v2564 = vadd.f32 %v2562, %v2563
        %v2565 = vsel %vm379, %v2543, 0.0
        %v2566 = vadd.f32 %v2564, %v2565
        %v2567 = vsel %vm379, %v2544, 0.0
        %v2568 = vadd.f32 %v2566, %v2567
        %v2569 = vsel %vm379, %v2545, 0.0
        %v2570 = vadd.f32 %v2568, %v2569
        %v2571 = vsel %vm379, %v2546, 0.0
        %v2572 = vadd.f32 %v2570, %v2571
        %v2573 = vsel %vm379, %v2547, 0.0
        %v2574 = vadd.f32 %v2572, %v2573
        %v2575 = vsel %vm379, %v2548, 0.0
        %v2576 = vadd.f32 %v2574, %v2575
        %v2577 = vsel %vm379, %v2549, 0.0
        %v2578 = vadd.f32 %v2576, %v2577
        %v2579 = vsel %vm379, %v2550, 0.0
        %v2580 = vadd.f32 %v2578, %v2579
        %v2581 = vsel %vm379, %v2551, 0.0
        %v2582 = vadd.f32 %v2580, %v2581
        %v2583 = vrot.slane %v2582, 4
        %v2584 = vadd.f32 %v2582, %v2583
        %v2585 = vrot.slane %v2584, 2
        %v2586 = vadd.f32 %v2584, %v2585
        %v2587 = vrot.slane %v2586, 1
        %v2588 = vadd.f32 %v2586, %v2587
        %v2589 = vadd.f32 %v2588, 0.0
        %v2590 = vmul.f32 %v2536, %v2536
        %v2591 = vmul.f32 %v2537, %v2537
        %v2592 = vmul.f32 %v2538, %v2538
        %v2593 = vmul.f32 %v2539, %v2539
        %v2594 = vmul.f32 %v2540, %v2540
        %v2595 = vmul.f32 %v2541, %v2541
        %v2596 = vmul.f32 %v2542, %v2542
        %v2597 = vmul.f32 %v2543, %v2543
        %v2598 = vmul.f32 %v2544, %v2544
        %v2599 = vmul.f32 %v2545, %v2545
        %v2600 = vmul.f32 %v2546, %v2546
        %v2601 = vmul.f32 %v2547, %v2547
        %v2602 = vmul.f32 %v2548, %v2548
        %v2603 = vmul.f32 %v2549, %v2549
        %v2604 = vmul.f32 %v2550, %v2550
        %v2605 = vmul.f32 %v2551, %v2551
        %v2606 = vsel %vm379, %v2590, 0.0
        %v2607 = vsel %vm379, %v2591, 0.0
        %v2608 = vadd.f32 %v2606, %v2607
        %v2609 = vsel %vm379, %v2592, 0.0
        %v2610 = vadd.f32 %v2608, %v2609
        %v2611 = vsel %vm379, %v2593, 0.0
        %v2612 = vadd.f32 %v2610, %v2611
        %v2613 = vsel %vm379, %v2594, 0.0
        %v2614 = vadd.f32 %v2612, %v2613
        %v2615 = vsel %vm379, %v2595, 0.0
        %v2616 = vadd.f32 %v2614, %v2615
        %v2617 = vsel %vm379, %v2596, 0.0
        %v2618 = vadd.f32 %v2616, %v2617
        %v2619 = vsel %vm379, %v2597, 0.0
        %v2620 = vadd.f32 %v2618, %v2619
        %v2621 = vsel %vm379, %v2598, 0.0
        %v2622 = vadd.f32 %v2620, %v2621
        %v2623 = vsel %vm379, %v2599, 0.0
        %v2624 = vadd.f32 %v2622, %v2623
        %v2625 = vsel %vm379, %v2600, 0.0
        %v2626 = vadd.f32 %v2624, %v2625
        %v2627 = vsel %vm379, %v2601, 0.0
        %v2628 = vadd.f32 %v2626, %v2627
        %v2629 = vsel %vm379, %v2602, 0.0
        %v2630 = vadd.f32 %v2628, %v2629
        %v2631 = vsel %vm379, %v2603, 0.0
        %v2632 = vadd.f32 %v2630, %v2631
        %v2633 = vsel %vm379, %v2604, 0.0
        %v2634 = vadd.f32 %v2632, %v2633
        %v2635 = vsel %vm379, %v2605, 0.0
        %v2636 = vadd.f32 %v2634, %v2635
        %v2637 = vrot.slane %v2636, 4
        %v2638 = vadd.f32 %v2636, %v2637
        %v2639 = vrot.slane %v2638, 2
        %v2640 = vadd.f32 %v2638, %v2639
        %v2641 = vrot.slane %v2640, 1
        %v2642 = vadd.f32 %v2640, %v2641
        %v2643 = vadd.f32 %v2642, 0.0
        %v2644 = vpack.c.bf16 %v2537, %v2536
        %v2645 = vpack.c.bf16 %v2539, %v2538
        %v2646 = vpack.c.bf16 %v2541, %v2540
        %v2647 = vpack.c.bf16 %v2543, %v2542
        %v2648 = vpack.c.bf16 %v2545, %v2544
        %v2649 = vpack.c.bf16 %v2547, %v2546
        %v2650 = vpack.c.bf16 %v2549, %v2548
        %v2651 = vpack.c.bf16 %v2551, %v2550
        %v2660 = vunpack.c.l.b16 %v2644
        %v2661 = vunpack.c.h.b16 %v2644
        %v2662 = vunpack.c.l.b16 %v2645
        %v2663 = vunpack.c.h.b16 %v2645
        %v2664 = vunpack.c.l.b16 %v2646
        %v2665 = vunpack.c.h.b16 %v2646
        %v2666 = vunpack.c.l.b16 %v2647
        %v2667 = vunpack.c.h.b16 %v2647
        %v2668 = vunpack.c.l.b16 %v2648
        %v2669 = vunpack.c.h.b16 %v2648
        %v2670 = vunpack.c.l.b16 %v2649
        %v2671 = vunpack.c.h.b16 %v2649
        %v2672 = vunpack.c.l.b16 %v2650
        %v2673 = vunpack.c.h.b16 %v2650
        %v2674 = vunpack.c.l.b16 %v2651
        %v2675 = vunpack.c.h.b16 %v2651
        %v2676 = vpack.c.b16 %v2660, %v2660
        %v2677 = vpack.c.b16 %v2661, %v2661
        %v2678 = vpack.c.b16 %v2662, %v2662
        %v2679 = vpack.c.b16 %v2663, %v2663
        %v2680 = vpack.c.b16 %v2664, %v2664
        %v2681 = vpack.c.b16 %v2665, %v2665
        %v2682 = vpack.c.b16 %v2666, %v2666
        %v2683 = vpack.c.b16 %v2667, %v2667
        %v2684 = vpack.c.b16 %v2668, %v2668
        %v2685 = vpack.c.b16 %v2669, %v2669
        %v2686 = vpack.c.b16 %v2670, %v2670
        %v2687 = vpack.c.b16 %v2671, %v2671
        %v2688 = vpack.c.b16 %v2672, %v2672
        %v2689 = vpack.c.b16 %v2673, %v2673
        %v2690 = vpack.c.b16 %v2674, %v2674
        %v2691 = vpack.c.b16 %v2675, %v2675
        %2708 = vst.msk [vmem:[%s243 + $0x10] sm:$0xf] %vm245, %v2676
        %2709 = vst.msk [vmem:[%s243 + $0x14] sm:$0xf] %vm245, %v2677
        %2710 = vst.msk [vmem:[%s243 + $0x18] sm:$0xf] %vm245, %v2678
        %2711 = vst.msk [vmem:[%s243 + $0x1c] sm:$0xf] %vm245, %v2679
        %2712 = vst.msk [vmem:[%s243 + $0x20] sm:$0xf] %vm245, %v2680
        %2713 = vst.msk [vmem:[%s243 + $0x24] sm:$0xf] %vm245, %v2681
        %2714 = vst.msk [vmem:[%s243 + $0x28] sm:$0xf] %vm245, %v2682
        %2715 = vst.msk [vmem:[%s243 + $0x2c] sm:$0xf] %vm245, %v2683
        %2716 = vst.msk [vmem:[%s243 + $0x30] sm:$0xf] %vm245, %v2684
        %2717 = vst.msk [vmem:[%s243 + $0x34] sm:$0xf] %vm245, %v2685
        %2718 = vst.msk [vmem:[%s243 + $0x38] sm:$0xf] %vm245, %v2686
        %2719 = vst.msk [vmem:[%s243 + $0x3c] sm:$0xf] %vm245, %v2687
        %2720 = vst.msk [vmem:[%s243 + $0x40] sm:$0xf] %vm245, %v2688
        %2721 = vst.msk [vmem:[%s243 + $0x44] sm:$0xf] %vm245, %v2689
        %2722 = vst.msk [vmem:[%s243 + $0x48] sm:$0xf] %vm245, %v2690
        %2723 = vst.msk [vmem:[%s243 + $0x4c] sm:$0xf] %vm245, %v2691
        %v2724 = vld [vmem:[%s1] sm:$0xf]
        %v2725 = vld [vmem:[%s1 + $0x4] sm:$0xf]
        %v2726 = vld [vmem:[%s1 + $0x8] sm:$0xf]
        %v2727 = vld [vmem:[%s1 + $0xc] sm:$0xf]
        %v2728 = vld [vmem:[%s1 + $0x10] sm:$0xf]
        %v2729 = vld [vmem:[%s1 + $0x14] sm:$0xf]
        %v2730 = vld [vmem:[%s1 + $0x18] sm:$0xf]
        %v2731 = vld [vmem:[%s1 + $0x1c] sm:$0xf]
        %v2732 = vld [vmem:[%s238 + $0x44] sm:$0xc]
        %v2733 = vld [vmem:[%s238 + $0x48] sm:$0xf]
        %v2734 = vld [vmem:[%s238 + $0x4c] sm:$0xf]
        %v2735 = vld [vmem:[%s238 + $0x50] sm:$0xf]
        %v2736 = vld [vmem:[%s238 + $0x54] sm:$0xf]
        %v2737 = vld [vmem:[%s238 + $0x58] sm:$0xf]
        %v2738 = vld [vmem:[%s238 + $0x5c] sm:$0xf]
        %v2739 = vld [vmem:[%s238 + $0x60] sm:$0xf]
        %v2740 = vld [vmem:[%s238 + $0x64] sm:$0xf]
        %v2741 = vld [vmem:[%s238 + $0x68] sm:$0xf]
        %v2742 = vld [vmem:[%s238 + $0x6c] sm:$0xf]
        %v2743 = vld [vmem:[%s238 + $0x70] sm:$0xf]
        %v2744 = vld [vmem:[%s238 + $0x74] sm:$0xf]
        %v2745 = vld [vmem:[%s238 + $0x78] sm:$0xf]
        %v2746 = vld [vmem:[%s238 + $0x7c] sm:$0xf]
        %v2747 = vld [vmem:[%s238 + $0x80] sm:$0xf]
        %v2748 = vld [vmem:[%s238 + $0x84] sm:$0x7]
        %v2749 = vld [vmem:[%s1 + $0x20] sm:$0xf]
        %v2750 = vld [vmem:[%s1 + $0x24] sm:$0xf]
        %v2751 = vld [vmem:[%s1 + $0x28] sm:$0xf]
        %v2752 = vld [vmem:[%s1 + $0x2c] sm:$0xf]
        %v2753 = vld [vmem:[%s1 + $0x30] sm:$0xf]
        %v2754 = vld [vmem:[%s1 + $0x34] sm:$0xf]
        %v2755 = vld [vmem:[%s1 + $0x38] sm:$0xf]
        %v2756 = vld [vmem:[%s1 + $0x3c] sm:$0xf]
        %v2757 = vld [vmem:[%s238 + $0x44] sm:$0x8]
        %v2775 = vunpack.c.l.b16 %v2757
        %v2776 = vunpack.c.l.b16 %v2733
        %v2777 = vunpack.c.l.b16 %v2734
        %v2778 = vunpack.c.l.b16 %v2735
        %v2779 = vunpack.c.l.b16 %v2736
        %v2780 = vunpack.c.l.b16 %v2737
        %v2781 = vunpack.c.l.b16 %v2738
        %v2782 = vunpack.c.l.b16 %v2739
        %v2783 = vunpack.c.l.b16 %v2740
        %v2784 = vunpack.c.l.b16 %v2741
        %v2785 = vunpack.c.l.b16 %v2742
        %v2786 = vunpack.c.l.b16 %v2743
        %v2787 = vunpack.c.l.b16 %v2744
        %v2788 = vunpack.c.l.b16 %v2745
        %v2789 = vunpack.c.l.b16 %v2746
        %v2790 = vunpack.c.l.b16 %v2747
        %v2791 = vunpack.c.l.b16 %v2748
        %v2792 = vpack.c.b16 %v2776, %v2775
        %v2793 = vpack.c.b16 %v2778, %v2777
        %v2794 = vpack.c.b16 %v2780, %v2779
        %v2795 = vpack.c.b16 %v2782, %v2781
        %v2796 = vpack.c.b16 %v2784, %v2783
        %v2797 = vpack.c.b16 %v2786, %v2785
        %v2798 = vpack.c.b16 %v2788, %v2787
        %v2799 = vpack.c.b16 %v2790, %v2789
        %v2800 = vpack.c.b16 %v2791, %v2791
        %v2801 = vrot.slane %v2792, 3
        %v2802 = vrot.slane %v2793, 3
        %v2803 = vsel %vm337, %v2801, %v2802
        %v2804 = vrot.slane %v2794, 3
        %v2805 = vsel %vm337, %v2802, %v2804
        %v2806 = vrot.slane %v2795, 3
        %v2807 = vsel %vm337, %v2804, %v2806
        %v2808 = vrot.slane %v2796, 3
        %v2809 = vsel %vm337, %v2806, %v2808
        %v2810 = vrot.slane %v2797, 3
        %v2811 = vsel %vm337, %v2808, %v2810
        %v2812 = vrot.slane %v2798, 3
        %v2813 = vsel %vm337, %v2810, %v2812
        %v2814 = vrot.slane %v2799, 3
        %v2815 = vsel %vm337, %v2812, %v2814
        %v2816 = vrot.slane %v2800, 3
        %v2817 = vsel %vm337, %v2814, %v2816
        %v2826 = vunpack.c.l.b16 %v2749
        %v2827 = vunpack.c.l.b16 %v2750
        %v2828 = vunpack.c.l.b16 %v2751
        %v2829 = vunpack.c.l.b16 %v2752
        %v2830 = vunpack.c.l.b16 %v2753
        %v2831 = vunpack.c.l.b16 %v2754
        %v2832 = vunpack.c.l.b16 %v2755
        %v2833 = vunpack.c.l.b16 %v2756
        %v2834 = vpack.c.b16 %v2827, %v2826
        %v2835 = vpack.c.b16 %v2829, %v2828
        %v2836 = vpack.c.b16 %v2831, %v2830
        %v2837 = vpack.c.b16 %v2833, %v2832
        %v2843 = vsel %vm379, %v2803, 0
        %v2846 = vsel %vm379, %v2805, 0
        %v2849 = vsel %vm379, %v2807, 0
        %v2852 = vsel %vm379, %v2809, 0
        %v2855 = vsel %vm379, %v2811, 0
        %v2858 = vsel %vm379, %v2813, 0
        %v2861 = vsel %vm379, %v2815, 0
        %v2864 = vsel %vm379, %v2817, 0
        %2866 = vmatprep.subr.bf16.mxu0 0
        %2867 = vmatpush1.bf16.msra.mxu0 0
        %2868 = vmatprep.subr.bf16.mxu0 0
        %2869 = vmatpush1.bf16.msra.mxu0 0
        %2870 = vmatprep.subr.bf16.mxu0 0
        %2871 = vmatpush1.bf16.msra.mxu0 0
        %2872 = vmatprep.subr.bf16.mxu0 0
        %2873 = vmatpush1.bf16.msra.mxu0 0
        %2874 = vmatprep.subr.bf16.mxu0 0
        %2875 = vmatpush1.bf16.msra.mxu0 %v2837
        %2876 = vmatprep.subr.bf16.mxu0 0
        %2877 = vmatpush1.bf16.msra.mxu0 %v2836
        %2878 = vmatprep.subr.bf16.mxu0 0
        %2879 = vmatpush1.bf16.msra.mxu0 %v2835
        %2880 = vmatprep.subr.bf16.mxu0 0
        %2881 = vmatpush1.bf16.msra.mxu0 %v2834
        %2882 = vmatprep.subr.bf16.mxu0 0
        %2883 = vmatpush2.bf16.msra.mxu0 0
        %2884 = vmatprep.subr.bf16.mxu0 0
        %2885 = vmatpush2.bf16.msra.mxu0 0
        %2886 = vmatprep.subr.bf16.mxu0 0
        %2887 = vmatpush2.bf16.msra.mxu0 0
        %2888 = vmatprep.subr.bf16.mxu0 0
        %2889 = vmatpush2.bf16.msra.mxu0 0
        %2890 = vmatprep.subr.bf16.mxu0 0
        %2891 = vmatpush2.bf16.msra.mxu0 0
        %2892 = vmatprep.subr.bf16.mxu0 0
        %2893 = vmatpush2.bf16.msra.mxu0 0
        %2894 = vmatprep.subr.bf16.mxu0 0
        %2895 = vmatpush2.bf16.msra.mxu0 0
        %2896 = vmatprep.subr.bf16.mxu0 0
        %2897 = vmatpush2.bf16.msra.mxu0 0
        %2898 = vmatprep.mubr.bf16.mxu0 0
        %2899 = vmatmul.mubr.bf16.gmra.mxu0 %v2843
        %v2900 = vpop.f32.mrf.mxu0
        %v2901 = vadd.f32 0.0, %v2900
        %v2902 = vpop.f32.mrf.mxu0
        %v2903 = vpop.f32.mrf.mxu0
        %v2904 = vadd.f32 0.0, %v2903
        %v2905 = vpop.f32.mrf.mxu0
        %2906 = vmatprep.mubr.bf16.mxu0 0
        %2907 = vmatmul.mubr.bf16.gmra.mxu0 %v2846
        %v2908 = vpop.f32.mrf.mxu0
        %v2909 = vadd.f32 0.0, %v2908
        %v2910 = vpop.f32.mrf.mxu0
        %v2911 = vpop.f32.mrf.mxu0
        %v2912 = vadd.f32 0.0, %v2911
        %v2913 = vpop.f32.mrf.mxu0
        %2914 = vmatprep.mubr.bf16.mxu0 0
        %2915 = vmatmul.mubr.bf16.gmra.mxu0 %v2849
        %v2916 = vpop.f32.mrf.mxu0
        %v2917 = vadd.f32 0.0, %v2916
        %v2918 = vpop.f32.mrf.mxu0
        %v2919 = vpop.f32.mrf.mxu0
        %v2920 = vadd.f32 0.0, %v2919
        %v2921 = vpop.f32.mrf.mxu0
        %2922 = vmatprep.mubr.bf16.mxu0 0
        %2923 = vmatmul.mubr.bf16.gmra.mxu0 %v2852
        %v2924 = vpop.f32.mrf.mxu0
        %v2925 = vadd.f32 0.0, %v2924
        %v2926 = vpop.f32.mrf.mxu0
        %v2927 = vpop.f32.mrf.mxu0
        %v2928 = vadd.f32 0.0, %v2927
        %v2929 = vpop.f32.mrf.mxu0
        %2930 = vmatprep.mubr.bf16.mxu0 0
        %2931 = vmatmul.mubr.bf16.gmra.mxu0 %v2855
        %v2932 = vpop.f32.mrf.mxu0
        %v2933 = vadd.f32 0.0, %v2932
        %v2934 = vpop.f32.mrf.mxu0
        %v2935 = vpop.f32.mrf.mxu0
        %v2936 = vadd.f32 0.0, %v2935
        %v2937 = vpop.f32.mrf.mxu0
        %2938 = vmatprep.mubr.bf16.mxu0 0
        %2939 = vmatmul.mubr.bf16.gmra.mxu0 %v2858
        %v2940 = vpop.f32.mrf.mxu0
        %v2941 = vadd.f32 0.0, %v2940
        %v2942 = vpop.f32.mrf.mxu0
        %v2943 = vpop.f32.mrf.mxu0
        %v2944 = vadd.f32 0.0, %v2943
        %v2945 = vpop.f32.mrf.mxu0
        %2946 = vmatprep.mubr.bf16.mxu0 0
        %2947 = vmatmul.mubr.bf16.gmra.mxu0 %v2861
        %v2948 = vpop.f32.mrf.mxu0
        %v2949 = vadd.f32 0.0, %v2948
        %v2950 = vpop.f32.mrf.mxu0
        %v2951 = vpop.f32.mrf.mxu0
        %v2952 = vadd.f32 0.0, %v2951
        %v2953 = vpop.f32.mrf.mxu0
        %2954 = vmatprep.mubr.bf16.mxu0 0
        %2955 = vmatmul.mubr.bf16.gmra.mxu0 %v2864
        %v2956 = vpop.f32.mrf.mxu0
        %v2957 = vadd.f32 0.0, %v2956
        %v2958 = vpop.f32.mrf.mxu0
        %v2959 = vpop.f32.mrf.mxu0
        %v2960 = vadd.f32 0.0, %v2959
        %v2961 = vpop.f32.mrf.mxu0
        %2962 = vdwg.mxu0
        %v2964 = vunpack.c.l.b16 %v2732
        %v2965 = vpack.c.b16 %v2776, %v2964
        %v2967 = vshrl.u32 %v2965, 16
        %v2969 = vrot.slane %v2967, 2
        %v2970 = vshll.u32 %v2965, 16
        %v2972 = vrot.slane %v2970, 3
        %v2973 = vor.u32 %v2969, %v2972
        %v2975 = vshrl.u32 %v2793, 16
        %v2977 = vrot.slane %v2975, 2
        %v2978 = vshll.u32 %v2793, 16
        %v2980 = vrot.slane %v2978, 3
        %v2981 = vor.u32 %v2977, %v2980
        %v2982 = vsel %vm504, %v2973, %v2981
        %v2984 = vshrl.u32 %v2794, 16
        %v2986 = vrot.slane %v2984, 2
        %v2987 = vshll.u32 %v2794, 16
        %v2989 = vrot.slane %v2987, 3
        %v2990 = vor.u32 %v2986, %v2989
        %v2991 = vsel %vm504, %v2981, %v2990
        %v2993 = vshrl.u32 %v2795, 16
        %v2995 = vrot.slane %v2993, 2
        %v2996 = vshll.u32 %v2795, 16
        %v2998 = vrot.slane %v2996, 3
        %v2999 = vor.u32 %v2995, %v2998
        %v3000 = vsel %vm504, %v2990, %v2999
        %v3002 = vshrl.u32 %v2796, 16
        %v3004 = vrot.slane %v3002, 2
        %v3005 = vshll.u32 %v2796, 16
        %v3007 = vrot.slane %v3005, 3
        %v3008 = vor.u32 %v3004, %v3007
        %v3009 = vsel %vm504, %v2999, %v3008
        %v3011 = vshrl.u32 %v2797, 16
        %v3013 = vrot.slane %v3011, 2
        %v3014 = vshll.u32 %v2797, 16
        %v3016 = vrot.slane %v3014, 3
        %v3017 = vor.u32 %v3013, %v3016
        %v3018 = vsel %vm504, %v3008, %v3017
        %v3020 = vshrl.u32 %v2798, 16
        %v3022 = vrot.slane %v3020, 2
        %v3023 = vshll.u32 %v2798, 16
        %v3025 = vrot.slane %v3023, 3
        %v3026 = vor.u32 %v3022, %v3025
        %v3027 = vsel %vm504, %v3017, %v3026
        %v3029 = vshrl.u32 %v2799, 16
        %v3031 = vrot.slane %v3029, 2
        %v3032 = vshll.u32 %v2799, 16
        %v3034 = vrot.slane %v3032, 3
        %v3035 = vor.u32 %v3031, %v3034
        %v3036 = vsel %vm504, %v3026, %v3035
        %v3038 = vshrl.u32 %v2800, 16
        %v3040 = vrot.slane %v3038, 2
        %v3041 = vshll.u32 %v2800, 16
        %v3043 = vrot.slane %v3041, 3
        %v3044 = vor.u32 %v3040, %v3043
        %v3045 = vsel %vm504, %v3035, %v3044
        %v3054 = vunpack.c.l.b16 %v2724
        %v3055 = vunpack.c.l.b16 %v2725
        %v3056 = vunpack.c.l.b16 %v2726
        %v3057 = vunpack.c.l.b16 %v2727
        %v3058 = vunpack.c.l.b16 %v2728
        %v3059 = vunpack.c.l.b16 %v2729
        %v3060 = vunpack.c.l.b16 %v2730
        %v3061 = vunpack.c.l.b16 %v2731
        %v3062 = vpack.c.b16 %v3055, %v3054
        %v3063 = vpack.c.b16 %v3057, %v3056
        %v3064 = vpack.c.b16 %v3059, %v3058
        %v3065 = vpack.c.b16 %v3061, %v3060
        %v3071 = vsel %vm379, %v2982, 0
        %v3074 = vsel %vm379, %v2991, 0
        %v3077 = vsel %vm379, %v3000, 0
        %v3080 = vsel %vm379, %v3009, 0
        %v3083 = vsel %vm379, %v3018, 0
        %v3086 = vsel %vm379, %v3027, 0
        %v3089 = vsel %vm379, %v3036, 0
        %v3092 = vsel %vm379, %v3045, 0
        %3094 = vmatprep.subr.bf16.mxu0 0
        %3095 = vmatpush1.bf16.msra.mxu0 0
        %3096 = vmatprep.subr.bf16.mxu0 0
        %3097 = vmatpush1.bf16.msra.mxu0 0
        %3098 = vmatprep.subr.bf16.mxu0 0
        %3099 = vmatpush1.bf16.msra.mxu0 0
        %3100 = vmatprep.subr.bf16.mxu0 0
        %3101 = vmatpush1.bf16.msra.mxu0 0
        %3102 = vmatprep.subr.bf16.mxu0 0
        %3103 = vmatpush1.bf16.msra.mxu0 %v3065
        %3104 = vmatprep.subr.bf16.mxu0 0
        %3105 = vmatpush1.bf16.msra.mxu0 %v3064
        %3106 = vmatprep.subr.bf16.mxu0 0
        %3107 = vmatpush1.bf16.msra.mxu0 %v3063
        %3108 = vmatprep.subr.bf16.mxu0 0
        %3109 = vmatpush1.bf16.msra.mxu0 %v3062
        %3110 = vmatprep.subr.bf16.mxu0 0
        %3111 = vmatpush2.bf16.msra.mxu0 0
        %3112 = vmatprep.subr.bf16.mxu0 0
        %3113 = vmatpush2.bf16.msra.mxu0 0
        %3114 = vmatprep.subr.bf16.mxu0 0
        %3115 = vmatpush2.bf16.msra.mxu0 0
        %3116 = vmatprep.subr.bf16.mxu0 0
        %3117 = vmatpush2.bf16.msra.mxu0 0
        %3118 = vmatprep.subr.bf16.mxu0 0
        %3119 = vmatpush2.bf16.msra.mxu0 0
        %3120 = vmatprep.subr.bf16.mxu0 0
        %3121 = vmatpush2.bf16.msra.mxu0 0
        %3122 = vmatprep.subr.bf16.mxu0 0
        %3123 = vmatpush2.bf16.msra.mxu0 0
        %3124 = vmatprep.subr.bf16.mxu0 0
        %3125 = vmatpush2.bf16.msra.mxu0 0
        %3126 = vmatprep.mubr.bf16.mxu0 0
        %3127 = vmatmul.mubr.bf16.gmra.mxu0 %v3071
        %v3128 = vpop.f32.mrf.mxu0
        %v3129 = vadd.f32 %v2901, %v3128
        %v3130 = vpop.f32.mrf.mxu0
        %v3131 = vpop.f32.mrf.mxu0
        %v3132 = vadd.f32 %v2904, %v3131
        %v3133 = vpop.f32.mrf.mxu0
        %3134 = vmatprep.mubr.bf16.mxu0 0
        %3135 = vmatmul.mubr.bf16.gmra.mxu0 %v3074
        %v3136 = vpop.f32.mrf.mxu0
        %v3137 = vadd.f32 %v2909, %v3136
        %v3138 = vpop.f32.mrf.mxu0
        %v3139 = vpop.f32.mrf.mxu0
        %v3140 = vadd.f32 %v2912, %v3139
        %v3141 = vpop.f32.mrf.mxu0
        %3142 = vmatprep.mubr.bf16.mxu0 0
        %3143 = vmatmul.mubr.bf16.gmra.mxu0 %v3077
        %v3144 = vpop.f32.mrf.mxu0
        %v3145 = vadd.f32 %v2917, %v3144
        %v3146 = vpop.f32.mrf.mxu0
        %v3147 = vpop.f32.mrf.mxu0
        %v3148 = vadd.f32 %v2920, %v3147
        %v3149 = vpop.f32.mrf.mxu0
        %3150 = vmatprep.mubr.bf16.mxu0 0
        %3151 = vmatmul.mubr.bf16.gmra.mxu0 %v3080
        %v3152 = vpop.f32.mrf.mxu0
        %v3153 = vadd.f32 %v2925, %v3152
        %v3154 = vpop.f32.mrf.mxu0
        %v3155 = vpop.f32.mrf.mxu0
        %v3156 = vadd.f32 %v2928, %v3155
        %v3157 = vpop.f32.mrf.mxu0
        %3158 = vmatprep.mubr.bf16.mxu0 0
        %3159 = vmatmul.mubr.bf16.gmra.mxu0 %v3083
        %v3160 = vpop.f32.mrf.mxu0
        %v3161 = vadd.f32 %v2933, %v3160
        %v3162 = vpop.f32.mrf.mxu0
        %v3163 = vpop.f32.mrf.mxu0
        %v3164 = vadd.f32 %v2936, %v3163
        %v3165 = vpop.f32.mrf.mxu0
        %3166 = vmatprep.mubr.bf16.mxu0 0
        %3167 = vmatmul.mubr.bf16.gmra.mxu0 %v3086
        %v3168 = vpop.f32.mrf.mxu0
        %v3169 = vadd.f32 %v2941, %v3168
        %v3170 = vpop.f32.mrf.mxu0
        %v3171 = vpop.f32.mrf.mxu0
        %v3172 = vadd.f32 %v2944, %v3171
        %v3173 = vpop.f32.mrf.mxu0
        %3174 = vmatprep.mubr.bf16.mxu0 0
        %3175 = vmatmul.mubr.bf16.gmra.mxu0 %v3089
        %v3176 = vpop.f32.mrf.mxu0
        %v3177 = vadd.f32 %v2949, %v3176
        %v3178 = vpop.f32.mrf.mxu0
        %v3179 = vpop.f32.mrf.mxu0
        %v3180 = vadd.f32 %v2952, %v3179
        %v3181 = vpop.f32.mrf.mxu0
        %3182 = vmatprep.mubr.bf16.mxu0 0
        %3183 = vmatmul.mubr.bf16.gmra.mxu0 %v3092
        %v3184 = vpop.f32.mrf.mxu0
        %v3185 = vadd.f32 %v2957, %v3184
        %v3186 = vpop.f32.mrf.mxu0
        %v3187 = vpop.f32.mrf.mxu0
        %v3188 = vadd.f32 %v2960, %v3187
        %v3189 = vpop.f32.mrf.mxu0
        %3190 = vdwg.mxu0
        %v3191 = vld [vmem:[%s1 + $0x40] sm:$0xf]
        %v3192 = vld [vmem:[%s1 + $0x44] sm:$0xf]
        %v3193 = vld [vmem:[%s1 + $0x48] sm:$0xf]
        %v3194 = vld [vmem:[%s1 + $0x4c] sm:$0xf]
        %v3195 = vld [vmem:[%s1 + $0x50] sm:$0xf]
        %v3196 = vld [vmem:[%s1 + $0x54] sm:$0xf]
        %v3197 = vld [vmem:[%s1 + $0x58] sm:$0xf]
        %v3198 = vld [vmem:[%s1 + $0x5c] sm:$0xf]
        %v3199 = vld [vmem:[%s238 + $0x84] sm:$0xf]
        %v3201 = vunpack.c.l.b16 %v3199
        %v3202 = vpack.c.b16 %v3201, %v3201
        %v3204 = vshrl.u32 %v2792, 16
        %v3206 = vrot.slane %v3204, 3
        %v3207 = vshll.u32 %v2792, 16
        %v3209 = vrot.slane %v3207, 4
        %v3210 = vor.u32 %v3206, %v3209
        %v3211 = vrot.slane %v2975, 3
        %v3212 = vrot.slane %v2978, 4
        %v3213 = vor.u32 %v3211, %v3212
        %v3214 = vsel %vm742, %v3210, %v3213
        %v3215 = vrot.slane %v2984, 3
        %v3216 = vrot.slane %v2987, 4
        %v3217 = vor.u32 %v3215, %v3216
        %v3218 = vsel %vm742, %v3213, %v3217
        %v3219 = vrot.slane %v2993, 3
        %v3220 = vrot.slane %v2996, 4
        %v3221 = vor.u32 %v3219, %v3220
        %v3222 = vsel %vm742, %v3217, %v3221
        %v3223 = vrot.slane %v3002, 3
        %v3224 = vrot.slane %v3005, 4
        %v3225 = vor.u32 %v3223, %v3224
        %v3226 = vsel %vm742, %v3221, %v3225
        %v3227 = vrot.slane %v3011, 3
        %v3228 = vrot.slane %v3014, 4
        %v3229 = vor.u32 %v3227, %v3228
        %v3230 = vsel %vm742, %v3225, %v3229
        %v3231 = vrot.slane %v3020, 3
        %v3232 = vrot.slane %v3023, 4
        %v3233 = vor.u32 %v3231, %v3232
        %v3234 = vsel %vm742, %v3229, %v3233
        %v3235 = vrot.slane %v3029, 3
        %v3236 = vrot.slane %v3032, 4
        %v3237 = vor.u32 %v3235, %v3236
        %v3238 = vsel %vm742, %v3233, %v3237
        %v3240 = vshrl.u32 %v3202, 16
        %v3242 = vrot.slane %v3240, 3
        %v3243 = vshll.u32 %v3202, 16
        %v3245 = vrot.slane %v3243, 4
        %v3246 = vor.u32 %v3242, %v3245
        %v3247 = vsel %vm742, %v3237, %v3246
        %v3256 = vunpack.c.l.b16 %v3191
        %v3257 = vunpack.c.l.b16 %v3192
        %v3258 = vunpack.c.l.b16 %v3193
        %v3259 = vunpack.c.l.b16 %v3194
        %v3260 = vunpack.c.l.b16 %v3195
        %v3261 = vunpack.c.l.b16 %v3196
        %v3262 = vunpack.c.l.b16 %v3197
        %v3263 = vunpack.c.l.b16 %v3198
        %v3264 = vpack.c.b16 %v3257, %v3256
        %v3265 = vpack.c.b16 %v3259, %v3258
        %v3266 = vpack.c.b16 %v3261, %v3260
        %v3267 = vpack.c.b16 %v3263, %v3262
        %v3273 = vsel %vm379, %v3214, 0
        %v3276 = vsel %vm379, %v3218, 0
        %v3279 = vsel %vm379, %v3222, 0
        %v3282 = vsel %vm379, %v3226, 0
        %v3285 = vsel %vm379, %v3230, 0
        %v3288 = vsel %vm379, %v3234, 0
        %v3291 = vsel %vm379, %v3238, 0
        %v3294 = vsel %vm379, %v3247, 0
        %3296 = vmatprep.subr.bf16.mxu0 0
        %3297 = vmatpush1.bf16.msra.mxu0 0
        %3298 = vmatprep.subr.bf16.mxu0 0
        %3299 = vmatpush1.bf16.msra.mxu0 0
        %3300 = vmatprep.subr.bf16.mxu0 0
        %3301 = vmatpush1.bf16.msra.mxu0 0
        %3302 = vmatprep.subr.bf16.mxu0 0
        %3303 = vmatpush1.bf16.msra.mxu0 0
        %3304 = vmatprep.subr.bf16.mxu0 0
        %3305 = vmatpush1.bf16.msra.mxu0 %v3267
        %3306 = vmatprep.subr.bf16.mxu0 0
        %3307 = vmatpush1.bf16.msra.mxu0 %v3266
        %3308 = vmatprep.subr.bf16.mxu0 0
        %3309 = vmatpush1.bf16.msra.mxu0 %v3265
        %3310 = vmatprep.subr.bf16.mxu0 0
        %3311 = vmatpush1.bf16.msra.mxu0 %v3264
        %3312 = vmatprep.subr.bf16.mxu0 0
        %3313 = vmatpush2.bf16.msra.mxu0 0
        %3314 = vmatprep.subr.bf16.mxu0 0
        %3315 = vmatpush2.bf16.msra.mxu0 0
        %3316 = vmatprep.subr.bf16.mxu0 0
        %3317 = vmatpush2.bf16.msra.mxu0 0
        %3318 = vmatprep.subr.bf16.mxu0 0
        %3319 = vmatpush2.bf16.msra.mxu0 0
        %3320 = vmatprep.subr.bf16.mxu0 0
        %3321 = vmatpush2.bf16.msra.mxu0 0
        %3322 = vmatprep.subr.bf16.mxu0 0
        %3323 = vmatpush2.bf16.msra.mxu0 0
        %3324 = vmatprep.subr.bf16.mxu0 0
        %3325 = vmatpush2.bf16.msra.mxu0 0
        %3326 = vmatprep.subr.bf16.mxu0 0
        %3327 = vmatpush2.bf16.msra.mxu0 0
        %3328 = vmatprep.mubr.bf16.mxu0 0
        %3329 = vmatmul.mubr.bf16.gmra.mxu0 %v3273
        %v3330 = vpop.f32.mrf.mxu0
        %v3331 = vadd.f32 0.0, %v3330
        %v3332 = vpop.f32.mrf.mxu0
        %v3333 = vpop.f32.mrf.mxu0
        %v3334 = vadd.f32 0.0, %v3333
        %v3335 = vpop.f32.mrf.mxu0
        %3336 = vmatprep.mubr.bf16.mxu0 0
        %3337 = vmatmul.mubr.bf16.gmra.mxu0 %v3276
        %v3338 = vpop.f32.mrf.mxu0
        %v3339 = vadd.f32 0.0, %v3338
        %v3340 = vpop.f32.mrf.mxu0
        %v3341 = vpop.f32.mrf.mxu0
        %v3342 = vadd.f32 0.0, %v3341
        %v3343 = vpop.f32.mrf.mxu0
        %3344 = vmatprep.mubr.bf16.mxu0 0
        %3345 = vmatmul.mubr.bf16.gmra.mxu0 %v3279
        %v3346 = vpop.f32.mrf.mxu0
        %v3347 = vadd.f32 0.0, %v3346
        %v3348 = vpop.f32.mrf.mxu0
        %v3349 = vpop.f32.mrf.mxu0
        %v3350 = vadd.f32 0.0, %v3349
        %v3351 = vpop.f32.mrf.mxu0
        %3352 = vmatprep.mubr.bf16.mxu0 0
        %3353 = vmatmul.mubr.bf16.gmra.mxu0 %v3282
        %v3354 = vpop.f32.mrf.mxu0
        %v3355 = vadd.f32 0.0, %v3354
        %v3356 = vpop.f32.mrf.mxu0
        %v3357 = vpop.f32.mrf.mxu0
        %v3358 = vadd.f32 0.0, %v3357
        %v3359 = vpop.f32.mrf.mxu0
        %3360 = vmatprep.mubr.bf16.mxu0 0
        %3361 = vmatmul.mubr.bf16.gmra.mxu0 %v3285
        %v3362 = vpop.f32.mrf.mxu0
        %v3363 = vadd.f32 0.0, %v3362
        %v3364 = vpop.f32.mrf.mxu0
        %v3365 = vpop.f32.mrf.mxu0
        %v3366 = vadd.f32 0.0, %v3365
        %v3367 = vpop.f32.mrf.mxu0
        %3368 = vmatprep.mubr.bf16.mxu0 0
        %3369 = vmatmul.mubr.bf16.gmra.mxu0 %v3288
        %v3370 = vpop.f32.mrf.mxu0
        %v3371 = vadd.f32 0.0, %v3370
        %v3372 = vpop.f32.mrf.mxu0
        %v3373 = vpop.f32.mrf.mxu0
        %v3374 = vadd.f32 0.0, %v3373
        %v3375 = vpop.f32.mrf.mxu0
        %3376 = vmatprep.mubr.bf16.mxu0 0
        %3377 = vmatmul.mubr.bf16.gmra.mxu0 %v3291
        %v3378 = vpop.f32.mrf.mxu0
        %v3379 = vadd.f32 0.0, %v3378
        %v3380 = vpop.f32.mrf.mxu0
        %v3381 = vpop.f32.mrf.mxu0
        %v3382 = vadd.f32 0.0, %v3381
        %v3383 = vpop.f32.mrf.mxu0
        %3384 = vmatprep.mubr.bf16.mxu0 0
        %3385 = vmatmul.mubr.bf16.gmra.mxu0 %v3294
        %v3386 = vpop.f32.mrf.mxu0
        %v3387 = vadd.f32 0.0, %v3386
        %v3388 = vpop.f32.mrf.mxu0
        %v3389 = vpop.f32.mrf.mxu0
        %v3390 = vadd.f32 0.0, %v3389
        %v3391 = vpop.f32.mrf.mxu0
        %3392 = vdwg.mxu0
        %v3393 = vadd.f32 %v3129, %v3331
        %v3394 = vadd.f32 %v3132, %v3334
        %v3395 = vadd.f32 %v3137, %v3339
        %v3396 = vadd.f32 %v3140, %v3342
        %v3397 = vadd.f32 %v3145, %v3347
        %v3398 = vadd.f32 %v3148, %v3350
        %v3399 = vadd.f32 %v3153, %v3355
        %v3400 = vadd.f32 %v3156, %v3358
        %v3401 = vadd.f32 %v3161, %v3363
        %v3402 = vadd.f32 %v3164, %v3366
        %v3403 = vadd.f32 %v3169, %v3371
        %v3404 = vadd.f32 %v3172, %v3374
        %v3405 = vadd.f32 %v3177, %v3379
        %v3406 = vadd.f32 %v3180, %v3382
        %v3407 = vadd.f32 %v3185, %v3387
        %v3408 = vadd.f32 %v3188, %v3390
        %v3409 = vld [vmem:[%s1 + $0x60] sm:$0xf]
        %v3410 = vld [vmem:[%s1 + $0x64] sm:$0xf]
        %v3411 = vld [vmem:[%s1 + $0x68] sm:$0xf]
        %v3412 = vld [vmem:[%s1 + $0x6c] sm:$0xf]
        %v3413 = vld [vmem:[%s1 + $0x70] sm:$0xf]
        %v3414 = vld [vmem:[%s1 + $0x74] sm:$0xf]
        %v3415 = vld [vmem:[%s1 + $0x78] sm:$0xf]
        %v3416 = vld [vmem:[%s1 + $0x7c] sm:$0xf]
        %v3417 = vld [vmem:[%s238 + $0x4c] sm:$0x8]
        %v3418 = vld [vmem:[%s238 + $0x50] sm:$0xf]
        %v3419 = vld [vmem:[%s238 + $0x54] sm:$0xf]
        %v3420 = vld [vmem:[%s238 + $0x58] sm:$0xf]
        %v3421 = vld [vmem:[%s238 + $0x5c] sm:$0xf]
        %v3422 = vld [vmem:[%s238 + $0x60] sm:$0xf]
        %v3423 = vld [vmem:[%s238 + $0x64] sm:$0xf]
        %v3424 = vld [vmem:[%s238 + $0x68] sm:$0xf]
        %v3425 = vld [vmem:[%s238 + $0x6c] sm:$0xf]
        %v3426 = vld [vmem:[%s238 + $0x70] sm:$0xf]
        %v3427 = vld [vmem:[%s238 + $0x74] sm:$0xf]
        %v3428 = vld [vmem:[%s238 + $0x78] sm:$0xf]
        %v3429 = vld [vmem:[%s238 + $0x7c] sm:$0xf]
        %v3430 = vld [vmem:[%s238 + $0x80] sm:$0xf]
        %v3431 = vld [vmem:[%s238 + $0x84] sm:$0xf]
        %v3432 = vld [vmem:[%s238 + $0x88] sm:$0xf]
        %v3433 = vld [vmem:[%s238 + $0x8c] sm:$0xf]
        %v3451 = vunpack.c.l.b16 %v3417
        %v3452 = vunpack.c.l.b16 %v3418
        %v3453 = vunpack.c.l.b16 %v3419
        %v3454 = vunpack.c.l.b16 %v3420
        %v3455 = vunpack.c.l.b16 %v3421
        %v3456 = vunpack.c.l.b16 %v3422
        %v3457 = vunpack.c.l.b16 %v3423
        %v3458 = vunpack.c.l.b16 %v3424
        %v3459 = vunpack.c.l.b16 %v3425
        %v3460 = vunpack.c.l.b16 %v3426
        %v3461 = vunpack.c.l.b16 %v3427
        %v3462 = vunpack.c.l.b16 %v3428
        %v3463 = vunpack.c.l.b16 %v3429
        %v3464 = vunpack.c.l.b16 %v3430
        %v3465 = vunpack.c.l.b16 %v3431
        %v3466 = vunpack.c.l.b16 %v3432
        %v3467 = vunpack.c.l.b16 %v3433
        %v3468 = vpack.c.b16 %v3452, %v3451
        %v3469 = vpack.c.b16 %v3454, %v3453
        %v3470 = vpack.c.b16 %v3456, %v3455
        %v3471 = vpack.c.b16 %v3458, %v3457
        %v3472 = vpack.c.b16 %v3460, %v3459
        %v3473 = vpack.c.b16 %v3462, %v3461
        %v3474 = vpack.c.b16 %v3464, %v3463
        %v3475 = vpack.c.b16 %v3466, %v3465
        %v3476 = vpack.c.b16 %v3467, %v3467
        %v3478 = vshrl.u32 %v3468, 16
        %v3480 = vrot.slane %v3478, 3
        %v3481 = vshll.u32 %v3468, 16
        %v3483 = vrot.slane %v3481, 4
        %v3484 = vor.u32 %v3480, %v3483
        %v3486 = vshrl.u32 %v3469, 16
        %v3488 = vrot.slane %v3486, 3
        %v3489 = vshll.u32 %v3469, 16
        %v3491 = vrot.slane %v3489, 4
        %v3492 = vor.u32 %v3488, %v3491
        %v3493 = vsel %vm742, %v3484, %v3492
        %v3495 = vshrl.u32 %v3470, 16
        %v3497 = vrot.slane %v3495, 3
        %v3498 = vshll.u32 %v3470, 16
        %v3500 = vrot.slane %v3498, 4
        %v3501 = vor.u32 %v3497, %v3500
        %v3502 = vsel %vm742, %v3492, %v3501
        %v3504 = vshrl.u32 %v3471, 16
        %v3506 = vrot.slane %v3504, 3
        %v3507 = vshll.u32 %v3471, 16
        %v3509 = vrot.slane %v3507, 4
        %v3510 = vor.u32 %v3506, %v3509
        %v3511 = vsel %vm742, %v3501, %v3510
        %v3513 = vshrl.u32 %v3472, 16
        %v3515 = vrot.slane %v3513, 3
        %v3516 = vshll.u32 %v3472, 16
        %v3518 = vrot.slane %v3516, 4
        %v3519 = vor.u32 %v3515, %v3518
        %v3520 = vsel %vm742, %v3510, %v3519
        %v3522 = vshrl.u32 %v3473, 16
        %v3524 = vrot.slane %v3522, 3
        %v3525 = vshll.u32 %v3473, 16
        %v3527 = vrot.slane %v3525, 4
        %v3528 = vor.u32 %v3524, %v3527
        %v3529 = vsel %vm742, %v3519, %v3528
        %v3531 = vshrl.u32 %v3474, 16
        %v3533 = vrot.slane %v3531, 3
        %v3534 = vshll.u32 %v3474, 16
        %v3536 = vrot.slane %v3534, 4
        %v3537 = vor.u32 %v3533, %v3536
        %v3538 = vsel %vm742, %v3528, %v3537
        %v3540 = vshrl.u32 %v3475, 16
        %v3542 = vrot.slane %v3540, 3
        %v3543 = vshll.u32 %v3475, 16
        %v3545 = vrot.slane %v3543, 4
        %v3546 = vor.u32 %v3542, %v3545
        %v3547 = vsel %vm742, %v3537, %v3546
        %v3549 = vshrl.u32 %v3476, 16
        %v3551 = vrot.slane %v3549, 3
        %v3552 = vshll.u32 %v3476, 16
        %v3554 = vrot.slane %v3552, 4
        %v3555 = vor.u32 %v3551, %v3554
        %v3556 = vsel %vm742, %v3546, %v3555
        %v3565 = vunpack.c.l.b16 %v3409
        %v3566 = vunpack.c.l.b16 %v3410
        %v3567 = vunpack.c.l.b16 %v3411
        %v3568 = vunpack.c.l.b16 %v3412
        %v3569 = vunpack.c.l.b16 %v3413
        %v3570 = vunpack.c.l.b16 %v3414
        %v3571 = vunpack.c.l.b16 %v3415
        %v3572 = vunpack.c.l.b16 %v3416
        %v3573 = vpack.c.b16 %v3566, %v3565
        %v3574 = vpack.c.b16 %v3568, %v3567
        %v3575 = vpack.c.b16 %v3570, %v3569
        %v3576 = vpack.c.b16 %v3572, %v3571
        %v3582 = vsel %vm379, %v3493, 0
        %v3585 = vsel %vm379, %v3502, 0
        %v3588 = vsel %vm379, %v3511, 0
        %v3591 = vsel %vm379, %v3520, 0
        %v3594 = vsel %vm379, %v3529, 0
        %v3597 = vsel %vm379, %v3538, 0
        %v3600 = vsel %vm379, %v3547, 0
        %v3603 = vsel %vm379, %v3556, 0
        %3605 = vmatprep.subr.bf16.mxu0 0
        %3606 = vmatpush1.bf16.msra.mxu0 0
        %3607 = vmatprep.subr.bf16.mxu0 0
        %3608 = vmatpush1.bf16.msra.mxu0 0
        %3609 = vmatprep.subr.bf16.mxu0 0
        %3610 = vmatpush1.bf16.msra.mxu0 0
        %3611 = vmatprep.subr.bf16.mxu0 0
        %3612 = vmatpush1.bf16.msra.mxu0 0
        %3613 = vmatprep.subr.bf16.mxu0 0
        %3614 = vmatpush1.bf16.msra.mxu0 %v3576
        %3615 = vmatprep.subr.bf16.mxu0 0
        %3616 = vmatpush1.bf16.msra.mxu0 %v3575
        %3617 = vmatprep.subr.bf16.mxu0 0
        %3618 = vmatpush1.bf16.msra.mxu0 %v3574
        %3619 = vmatprep.subr.bf16.mxu0 0
        %3620 = vmatpush1.bf16.msra.mxu0 %v3573
        %3621 = vmatprep.subr.bf16.mxu0 0
        %3622 = vmatpush2.bf16.msra.mxu0 0
        %3623 = vmatprep.subr.bf16.mxu0 0
        %3624 = vmatpush2.bf16.msra.mxu0 0
        %3625 = vmatprep.subr.bf16.mxu0 0
        %3626 = vmatpush2.bf16.msra.mxu0 0
        %3627 = vmatprep.subr.bf16.mxu0 0
        %3628 = vmatpush2.bf16.msra.mxu0 0
        %3629 = vmatprep.subr.bf16.mxu0 0
        %3630 = vmatpush2.bf16.msra.mxu0 0
        %3631 = vmatprep.subr.bf16.mxu0 0
        %3632 = vmatpush2.bf16.msra.mxu0 0
        %3633 = vmatprep.subr.bf16.mxu0 0
        %3634 = vmatpush2.bf16.msra.mxu0 0
        %3635 = vmatprep.subr.bf16.mxu0 0
        %3636 = vmatpush2.bf16.msra.mxu0 0
        %3637 = vmatprep.mubr.bf16.mxu0 0
        %3638 = vmatmul.mubr.bf16.gmra.mxu0 %v3582
        %v3639 = vpop.f32.mrf.mxu0
        %v3640 = vadd.f32 0.0, %v3639
        %v3641 = vpop.f32.mrf.mxu0
        %v3642 = vpop.f32.mrf.mxu0
        %v3643 = vadd.f32 0.0, %v3642
        %v3644 = vpop.f32.mrf.mxu0
        %3645 = vmatprep.mubr.bf16.mxu0 0
        %3646 = vmatmul.mubr.bf16.gmra.mxu0 %v3585
        %v3647 = vpop.f32.mrf.mxu0
        %v3648 = vadd.f32 0.0, %v3647
        %v3649 = vpop.f32.mrf.mxu0
        %v3650 = vpop.f32.mrf.mxu0
        %v3651 = vadd.f32 0.0, %v3650
        %v3652 = vpop.f32.mrf.mxu0
        %3653 = vmatprep.mubr.bf16.mxu0 0
        %3654 = vmatmul.mubr.bf16.gmra.mxu0 %v3588
        %v3655 = vpop.f32.mrf.mxu0
        %v3656 = vadd.f32 0.0, %v3655
        %v3657 = vpop.f32.mrf.mxu0
        %v3658 = vpop.f32.mrf.mxu0
        %v3659 = vadd.f32 0.0, %v3658
        %v3660 = vpop.f32.mrf.mxu0
        %3661 = vmatprep.mubr.bf16.mxu0 0
        %3662 = vmatmul.mubr.bf16.gmra.mxu0 %v3591
        %v3663 = vpop.f32.mrf.mxu0
        %v3664 = vadd.f32 0.0, %v3663
        %v3665 = vpop.f32.mrf.mxu0
        %v3666 = vpop.f32.mrf.mxu0
        %v3667 = vadd.f32 0.0, %v3666
        %v3668 = vpop.f32.mrf.mxu0
        %3669 = vmatprep.mubr.bf16.mxu0 0
        %3670 = vmatmul.mubr.bf16.gmra.mxu0 %v3594
        %v3671 = vpop.f32.mrf.mxu0
        %v3672 = vadd.f32 0.0, %v3671
        %v3673 = vpop.f32.mrf.mxu0
        %v3674 = vpop.f32.mrf.mxu0
        %v3675 = vadd.f32 0.0, %v3674
        %v3676 = vpop.f32.mrf.mxu0
        %3677 = vmatprep.mubr.bf16.mxu0 0
        %3678 = vmatmul.mubr.bf16.gmra.mxu0 %v3597
        %v3679 = vpop.f32.mrf.mxu0
        %v3680 = vadd.f32 0.0, %v3679
        %v3681 = vpop.f32.mrf.mxu0
        %v3682 = vpop.f32.mrf.mxu0
        %v3683 = vadd.f32 0.0, %v3682
        %v3684 = vpop.f32.mrf.mxu0
        %3685 = vmatprep.mubr.bf16.mxu0 0
        %3686 = vmatmul.mubr.bf16.gmra.mxu0 %v3600
        %v3687 = vpop.f32.mrf.mxu0
        %v3688 = vadd.f32 0.0, %v3687
        %v3689 = vpop.f32.mrf.mxu0
        %v3690 = vpop.f32.mrf.mxu0
        %v3691 = vadd.f32 0.0, %v3690
        %v3692 = vpop.f32.mrf.mxu0
        %3693 = vmatprep.mubr.bf16.mxu0 0
        %3694 = vmatmul.mubr.bf16.gmra.mxu0 %v3603
        %v3695 = vpop.f32.mrf.mxu0
        %v3696 = vadd.f32 0.0, %v3695
        %v3697 = vpop.f32.mrf.mxu0
        %v3698 = vpop.f32.mrf.mxu0
        %v3699 = vadd.f32 0.0, %v3698
        %v3700 = vpop.f32.mrf.mxu0
        %3701 = vdwg.mxu0
        %v3702 = vadd.f32 %v3393, %v3640
        %v3703 = vadd.f32 %v3394, %v3643
        %v3704 = vadd.f32 %v3395, %v3648
        %v3705 = vadd.f32 %v3396, %v3651
        %v3706 = vadd.f32 %v3397, %v3656
        %v3707 = vadd.f32 %v3398, %v3659
        %v3708 = vadd.f32 %v3399, %v3664
        %v3709 = vadd.f32 %v3400, %v3667
        %v3710 = vadd.f32 %v3401, %v3672
        %v3711 = vadd.f32 %v3402, %v3675
        %v3712 = vadd.f32 %v3403, %v3680
        %v3713 = vadd.f32 %v3404, %v3683
        %v3714 = vadd.f32 %v3405, %v3688
        %v3715 = vadd.f32 %v3406, %v3691
        %v3716 = vadd.f32 %v3407, %v3696
        %v3717 = vadd.f32 %v3408, %v3699
        %v3718 = vld [vmem:[%s1 + $0x80] sm:$0xf]
        %v3719 = vld [vmem:[%s1 + $0x84] sm:$0xf]
        %v3720 = vld [vmem:[%s1 + $0x88] sm:$0xf]
        %v3721 = vld [vmem:[%s1 + $0x8c] sm:$0xf]
        %v3722 = vld [vmem:[%s1 + $0x90] sm:$0xf]
        %v3723 = vld [vmem:[%s1 + $0x94] sm:$0xf]
        %v3724 = vld [vmem:[%s1 + $0x98] sm:$0xf]
        %v3725 = vld [vmem:[%s1 + $0x9c] sm:$0xf]
        %v3726 = vpack.c.b16 %v3453, %v3452
        %v3727 = vpack.c.b16 %v3455, %v3454
        %v3728 = vpack.c.b16 %v3457, %v3456
        %v3729 = vpack.c.b16 %v3459, %v3458
        %v3730 = vpack.c.b16 %v3461, %v3460
        %v3731 = vpack.c.b16 %v3463, %v3462
        %v3732 = vpack.c.b16 %v3465, %v3464
        %v3733 = vpack.c.b16 %v3467, %v3466
        %v3742 = vunpack.c.l.b16 %v3718
        %v3743 = vunpack.c.l.b16 %v3719
        %v3744 = vunpack.c.l.b16 %v3720
        %v3745 = vunpack.c.l.b16 %v3721
        %v3746 = vunpack.c.l.b16 %v3722
        %v3747 = vunpack.c.l.b16 %v3723
        %v3748 = vunpack.c.l.b16 %v3724
        %v3749 = vunpack.c.l.b16 %v3725
        %v3750 = vpack.c.b16 %v3743, %v3742
        %v3751 = vpack.c.b16 %v3745, %v3744
        %v3752 = vpack.c.b16 %v3747, %v3746
        %v3753 = vpack.c.b16 %v3749, %v3748
        %v3759 = vsel %vm379, %v3726, 0
        %v3762 = vsel %vm379, %v3727, 0
        %v3765 = vsel %vm379, %v3728, 0
        %v3768 = vsel %vm379, %v3729, 0
        %v3771 = vsel %vm379, %v3730, 0
        %v3774 = vsel %vm379, %v3731, 0
        %v3777 = vsel %vm379, %v3732, 0
        %v3780 = vsel %vm379, %v3733, 0
        %3782 = vmatprep.subr.bf16.mxu0 0
        %3783 = vmatpush1.bf16.msra.mxu0 0
        %3784 = vmatprep.subr.bf16.mxu0 0
        %3785 = vmatpush1.bf16.msra.mxu0 0
        %3786 = vmatprep.subr.bf16.mxu0 0
        %3787 = vmatpush1.bf16.msra.mxu0 0
        %3788 = vmatprep.subr.bf16.mxu0 0
        %3789 = vmatpush1.bf16.msra.mxu0 0
        %3790 = vmatprep.subr.bf16.mxu0 0
        %3791 = vmatpush1.bf16.msra.mxu0 %v3753
        %3792 = vmatprep.subr.bf16.mxu0 0
        %3793 = vmatpush1.bf16.msra.mxu0 %v3752
        %3794 = vmatprep.subr.bf16.mxu0 0
        %3795 = vmatpush1.bf16.msra.mxu0 %v3751
        %3796 = vmatprep.subr.bf16.mxu0 0
        %3797 = vmatpush1.bf16.msra.mxu0 %v3750
        %3798 = vmatprep.subr.bf16.mxu0 0
        %3799 = vmatpush2.bf16.msra.mxu0 0
        %3800 = vmatprep.subr.bf16.mxu0 0
        %3801 = vmatpush2.bf16.msra.mxu0 0
        %3802 = vmatprep.subr.bf16.mxu0 0
        %3803 = vmatpush2.bf16.msra.mxu0 0
        %3804 = vmatprep.subr.bf16.mxu0 0
        %3805 = vmatpush2.bf16.msra.mxu0 0
        %3806 = vmatprep.subr.bf16.mxu0 0
        %3807 = vmatpush2.bf16.msra.mxu0 0
        %3808 = vmatprep.subr.bf16.mxu0 0
        %3809 = vmatpush2.bf16.msra.mxu0 0
        %3810 = vmatprep.subr.bf16.mxu0 0
        %3811 = vmatpush2.bf16.msra.mxu0 0
        %3812 = vmatprep.subr.bf16.mxu0 0
        %3813 = vmatpush2.bf16.msra.mxu0 0
        %3814 = vmatprep.mubr.bf16.mxu0 0
        %3815 = vmatmul.mubr.bf16.gmra.mxu0 %v3759
        %v3816 = vpop.f32.mrf.mxu0
        %v3817 = vadd.f32 0.0, %v3816
        %v3818 = vpop.f32.mrf.mxu0
        %v3819 = vpop.f32.mrf.mxu0
        %v3820 = vadd.f32 0.0, %v3819
        %v3821 = vpop.f32.mrf.mxu0
        %3822 = vmatprep.mubr.bf16.mxu0 0
        %3823 = vmatmul.mubr.bf16.gmra.mxu0 %v3762
        %v3824 = vpop.f32.mrf.mxu0
        %v3825 = vadd.f32 0.0, %v3824
        %v3826 = vpop.f32.mrf.mxu0
        %v3827 = vpop.f32.mrf.mxu0
        %v3828 = vadd.f32 0.0, %v3827
        %v3829 = vpop.f32.mrf.mxu0
        %3830 = vmatprep.mubr.bf16.mxu0 0
        %3831 = vmatmul.mubr.bf16.gmra.mxu0 %v3765
        %v3832 = vpop.f32.mrf.mxu0
        %v3833 = vadd.f32 0.0, %v3832
        %v3834 = vpop.f32.mrf.mxu0
        %v3835 = vpop.f32.mrf.mxu0
        %v3836 = vadd.f32 0.0, %v3835
        %v3837 = vpop.f32.mrf.mxu0
        %3838 = vmatprep.mubr.bf16.mxu0 0
        %3839 = vmatmul.mubr.bf16.gmra.mxu0 %v3768
        %v3840 = vpop.f32.mrf.mxu0
        %v3841 = vadd.f32 0.0, %v3840
        %v3842 = vpop.f32.mrf.mxu0
        %v3843 = vpop.f32.mrf.mxu0
        %v3844 = vadd.f32 0.0, %v3843
        %v3845 = vpop.f32.mrf.mxu0
        %3846 = vmatprep.mubr.bf16.mxu0 0
        %3847 = vmatmul.mubr.bf16.gmra.mxu0 %v3771
        %v3848 = vpop.f32.mrf.mxu0
        %v3849 = vadd.f32 0.0, %v3848
        %v3850 = vpop.f32.mrf.mxu0
        %v3851 = vpop.f32.mrf.mxu0
        %v3852 = vadd.f32 0.0, %v3851
        %v3853 = vpop.f32.mrf.mxu0
        %3854 = vmatprep.mubr.bf16.mxu0 0
        %3855 = vmatmul.mubr.bf16.gmra.mxu0 %v3774
        %v3856 = vpop.f32.mrf.mxu0
        %v3857 = vadd.f32 0.0, %v3856
        %v3858 = vpop.f32.mrf.mxu0
        %v3859 = vpop.f32.mrf.mxu0
        %v3860 = vadd.f32 0.0, %v3859
        %v3861 = vpop.f32.mrf.mxu0
        %3862 = vmatprep.mubr.bf16.mxu0 0
        %3863 = vmatmul.mubr.bf16.gmra.mxu0 %v3777
        %v3864 = vpop.f32.mrf.mxu0
        %v3865 = vadd.f32 0.0, %v3864
        %v3866 = vpop.f32.mrf.mxu0
        %v3867 = vpop.f32.mrf.mxu0
        %v3868 = vadd.f32 0.0, %v3867
        %v3869 = vpop.f32.mrf.mxu0
        %3870 = vmatprep.mubr.bf16.mxu0 0
        %3871 = vmatmul.mubr.bf16.gmra.mxu0 %v3780
        %v3872 = vpop.f32.mrf.mxu0
        %v3873 = vadd.f32 0.0, %v3872
        %v3874 = vpop.f32.mrf.mxu0
        %v3875 = vpop.f32.mrf.mxu0
        %v3876 = vadd.f32 0.0, %v3875
        %v3877 = vpop.f32.mrf.mxu0
        %3878 = vdwg.mxu0
        %v3879 = vadd.f32 %v3702, %v3817
        %v3880 = vadd.f32 %v3703, %v3820
        %v3881 = vadd.f32 %v3704, %v3825
        %v3882 = vadd.f32 %v3705, %v3828
        %v3883 = vadd.f32 %v3706, %v3833
        %v3884 = vadd.f32 %v3707, %v3836
        %v3885 = vadd.f32 %v3708, %v3841
        %v3886 = vadd.f32 %v3709, %v3844
        %v3887 = vadd.f32 %v3710, %v3849
        %v3888 = vadd.f32 %v3711, %v3852
        %v3889 = vadd.f32 %v3712, %v3857
        %v3890 = vadd.f32 %v3713, %v3860
        %v3891 = vadd.f32 %v3714, %v3865
        %v3892 = vadd.f32 %v3715, %v3868
        %v3893 = vadd.f32 %v3716, %v3873
        %v3894 = vadd.f32 %v3717, %v3876
        %v3895 = vld [vmem:[%s1 + $0xa0] sm:$0xf]
        %v3896 = vld [vmem:[%s1 + $0xa4] sm:$0xf]
        %v3897 = vld [vmem:[%s1 + $0xa8] sm:$0xf]
        %v3898 = vld [vmem:[%s1 + $0xac] sm:$0xf]
        %v3899 = vld [vmem:[%s1 + $0xb0] sm:$0xf]
        %v3900 = vld [vmem:[%s1 + $0xb4] sm:$0xf]
        %v3901 = vld [vmem:[%s1 + $0xb8] sm:$0xf]
        %v3902 = vld [vmem:[%s1 + $0xbc] sm:$0xf]
        %v3903 = vld [vmem:[%s238 + $0x50] sm:$0xf]
        %v3904 = vld [vmem:[%s238 + $0x54] sm:$0xf]
        %v3905 = vld [vmem:[%s238 + $0x58] sm:$0xf]
        %v3906 = vld [vmem:[%s238 + $0x5c] sm:$0xf]
        %v3907 = vld [vmem:[%s238 + $0x60] sm:$0xf]
        %v3908 = vld [vmem:[%s238 + $0x64] sm:$0xf]
        %v3909 = vld [vmem:[%s238 + $0x68] sm:$0xf]
        %v3910 = vld [vmem:[%s238 + $0x6c] sm:$0xf]
        %v3911 = vld [vmem:[%s238 + $0x70] sm:$0xf]
        %v3912 = vld [vmem:[%s238 + $0x74] sm:$0xf]
        %v3913 = vld [vmem:[%s238 + $0x78] sm:$0xf]
        %v3914 = vld [vmem:[%s238 + $0x7c] sm:$0xf]
        %v3915 = vld [vmem:[%s238 + $0x80] sm:$0xf]
        %v3916 = vld [vmem:[%s238 + $0x84] sm:$0xf]
        %v3917 = vld [vmem:[%s238 + $0x88] sm:$0xf]
        %v3918 = vld [vmem:[%s238 + $0x8c] sm:$0xf]
        %v3919 = vld [vmem:[%s238 + $0x90] sm:$0x1]
        %v3937 = vunpack.c.l.b16 %v3903
        %v3938 = vunpack.c.l.b16 %v3904
        %v3939 = vunpack.c.l.b16 %v3905
        %v3940 = vunpack.c.l.b16 %v3906
        %v3941 = vunpack.c.l.b16 %v3907
        %v3942 = vunpack.c.l.b16 %v3908
        %v3943 = vunpack.c.l.b16 %v3909
        %v3944 = vunpack.c.l.b16 %v3910
        %v3945 = vunpack.c.l.b16 %v3911
        %v3946 = vunpack.c.l.b16 %v3912
        %v3947 = vunpack.c.l.b16 %v3913
        %v3948 = vunpack.c.l.b16 %v3914
        %v3949 = vunpack.c.l.b16 %v3915
        %v3950 = vunpack.c.l.b16 %v3916
        %v3951 = vunpack.c.l.b16 %v3917
        %v3952 = vunpack.c.l.b16 %v3918
        %v3953 = vunpack.c.l.b16 %v3919
        %v3954 = vpack.c.b16 %v3938, %v3937
        %v3955 = vpack.c.b16 %v3940, %v3939
        %v3956 = vpack.c.b16 %v3942, %v3941
        %v3957 = vpack.c.b16 %v3944, %v3943
        %v3958 = vpack.c.b16 %v3946, %v3945
        %v3959 = vpack.c.b16 %v3948, %v3947
        %v3960 = vpack.c.b16 %v3950, %v3949
        %v3961 = vpack.c.b16 %v3952, %v3951
        %v3962 = vpack.c.b16 %v3953, %v3953
        %v3964 = vshrl.u32 %v3954, 16
        %v3966 = vshll.u32 %v3954, 16
        %v3968 = vrot.slane %v3966, 1
        %v3969 = vor.u32 %v3964, %v3968
        %v3971 = vshll.u32 %v3955, 16
        %v3973 = vrot.slane %v3971, 1
        %v3974 = vsel %vm1503, %v3969, %v3973
        %v3975 = vshrl.u32 %v3955, 16
        %v3977 = vor.u32 %v3975, %v3973
        %v3979 = vshll.u32 %v3956, 16
        %v3981 = vrot.slane %v3979, 1
        %v3982 = vsel %vm1503, %v3977, %v3981
        %v3983 = vshrl.u32 %v3956, 16
        %v3985 = vor.u32 %v3983, %v3981
        %v3987 = vshll.u32 %v3957, 16
        %v3989 = vrot.slane %v3987, 1
        %v3990 = vsel %vm1503, %v3985, %v3989
        %v3991 = vshrl.u32 %v3957, 16
        %v3993 = vor.u32 %v3991, %v3989
        %v3995 = vshll.u32 %v3958, 16
        %v3997 = vrot.slane %v3995, 1
        %v3998 = vsel %vm1503, %v3993, %v3997
        %v3999 = vshrl.u32 %v3958, 16
        %v4001 = vor.u32 %v3999, %v3997
        %v4003 = vshll.u32 %v3959, 16
        %v4005 = vrot.slane %v4003, 1
        %v4006 = vsel %vm1503, %v4001, %v4005
        %v4007 = vshrl.u32 %v3959, 16
        %v4009 = vor.u32 %v4007, %v4005
        %v4011 = vshll.u32 %v3960, 16
        %v4013 = vrot.slane %v4011, 1
        %v4014 = vsel %vm1503, %v4009, %v4013
        %v4015 = vshrl.u32 %v3960, 16
        %v4017 = vor.u32 %v4015, %v4013
        %v4019 = vshll.u32 %v3961, 16
        %v4021 = vrot.slane %v4019, 1
        %v4022 = vsel %vm1503, %v4017, %v4021
        %v4023 = vshrl.u32 %v3961, 16
        %v4025 = vor.u32 %v4023, %v4021
        %v4027 = vshll.u32 %v3962, 16
        %v4029 = vrot.slane %v4027, 1
        %v4030 = vsel %vm1503, %v4025, %v4029
        %v4039 = vunpack.c.l.b16 %v3895
        %v4040 = vunpack.c.l.b16 %v3896
        %v4041 = vunpack.c.l.b16 %v3897
        %v4042 = vunpack.c.l.b16 %v3898
        %v4043 = vunpack.c.l.b16 %v3899
        %v4044 = vunpack.c.l.b16 %v3900
        %v4045 = vunpack.c.l.b16 %v3901
        %v4046 = vunpack.c.l.b16 %v3902
        %v4047 = vpack.c.b16 %v4040, %v4039
        %v4048 = vpack.c.b16 %v4042, %v4041
        %v4049 = vpack.c.b16 %v4044, %v4043
        %v4050 = vpack.c.b16 %v4046, %v4045
        %v4056 = vsel %vm379, %v3974, 0
        %v4059 = vsel %vm379, %v3982, 0
        %v4062 = vsel %vm379, %v3990, 0
        %v4065 = vsel %vm379, %v3998, 0
        %v4068 = vsel %vm379, %v4006, 0
        %v4071 = vsel %vm379, %v4014, 0
        %v4074 = vsel %vm379, %v4022, 0
        %v4077 = vsel %vm379, %v4030, 0
        %4079 = vmatprep.subr.bf16.mxu0 0
        %4080 = vmatpush1.bf16.msra.mxu0 0
        %4081 = vmatprep.subr.bf16.mxu0 0
        %4082 = vmatpush1.bf16.msra.mxu0 0
        %4083 = vmatprep.subr.bf16.mxu0 0
        %4084 = vmatpush1.bf16.msra.mxu0 0
        %4085 = vmatprep.subr.bf16.mxu0 0
        %4086 = vmatpush1.bf16.msra.mxu0 0
        %4087 = vmatprep.subr.bf16.mxu0 0
        %4088 = vmatpush1.bf16.msra.mxu0 %v4050
        %4089 = vmatprep.subr.bf16.mxu0 0
        %4090 = vmatpush1.bf16.msra.mxu0 %v4049
        %4091 = vmatprep.subr.bf16.mxu0 0
        %4092 = vmatpush1.bf16.msra.mxu0 %v4048
        %4093 = vmatprep.subr.bf16.mxu0 0
        %4094 = vmatpush1.bf16.msra.mxu0 %v4047
        %4095 = vmatprep.subr.bf16.mxu0 0
        %4096 = vmatpush2.bf16.msra.mxu0 0
        %4097 = vmatprep.subr.bf16.mxu0 0
        %4098 = vmatpush2.bf16.msra.mxu0 0
        %4099 = vmatprep.subr.bf16.mxu0 0
        %4100 = vmatpush2.bf16.msra.mxu0 0
        %4101 = vmatprep.subr.bf16.mxu0 0
        %4102 = vmatpush2.bf16.msra.mxu0 0
        %4103 = vmatprep.subr.bf16.mxu0 0
        %4104 = vmatpush2.bf16.msra.mxu0 0
        %4105 = vmatprep.subr.bf16.mxu0 0
        %4106 = vmatpush2.bf16.msra.mxu0 0
        %4107 = vmatprep.subr.bf16.mxu0 0
        %4108 = vmatpush2.bf16.msra.mxu0 0
        %4109 = vmatprep.subr.bf16.mxu0 0
        %4110 = vmatpush2.bf16.msra.mxu0 0
        %4111 = vmatprep.mubr.bf16.mxu0 0
        %4112 = vmatmul.mubr.bf16.gmra.mxu0 %v4056
        %v4113 = vpop.f32.mrf.mxu0
        %v4114 = vadd.f32 0.0, %v4113
        %v4115 = vpop.f32.mrf.mxu0
        %v4116 = vpop.f32.mrf.mxu0
        %v4117 = vadd.f32 0.0, %v4116
        %v4118 = vpop.f32.mrf.mxu0
        %4119 = vmatprep.mubr.bf16.mxu0 0
        %4120 = vmatmul.mubr.bf16.gmra.mxu0 %v4059
        %v4121 = vpop.f32.mrf.mxu0
        %v4122 = vadd.f32 0.0, %v4121
        %v4123 = vpop.f32.mrf.mxu0
        %v4124 = vpop.f32.mrf.mxu0
        %v4125 = vadd.f32 0.0, %v4124
        %v4126 = vpop.f32.mrf.mxu0
        %4127 = vmatprep.mubr.bf16.mxu0 0
        %4128 = vmatmul.mubr.bf16.gmra.mxu0 %v4062
        %v4129 = vpop.f32.mrf.mxu0
        %v4130 = vadd.f32 0.0, %v4129
        %v4131 = vpop.f32.mrf.mxu0
        %v4132 = vpop.f32.mrf.mxu0
        %v4133 = vadd.f32 0.0, %v4132
        %v4134 = vpop.f32.mrf.mxu0
        %4135 = vmatprep.mubr.bf16.mxu0 0
        %4136 = vmatmul.mubr.bf16.gmra.mxu0 %v4065
        %v4137 = vpop.f32.mrf.mxu0
        %v4138 = vadd.f32 0.0, %v4137
        %v4139 = vpop.f32.mrf.mxu0
        %v4140 = vpop.f32.mrf.mxu0
        %v4141 = vadd.f32 0.0, %v4140
        %v4142 = vpop.f32.mrf.mxu0
        %4143 = vmatprep.mubr.bf16.mxu0 0
        %4144 = vmatmul.mubr.bf16.gmra.mxu0 %v4068
        %v4145 = vpop.f32.mrf.mxu0
        %v4146 = vadd.f32 0.0, %v4145
        %v4147 = vpop.f32.mrf.mxu0
        %v4148 = vpop.f32.mrf.mxu0
        %v4149 = vadd.f32 0.0, %v4148
        %v4150 = vpop.f32.mrf.mxu0
        %4151 = vmatprep.mubr.bf16.mxu0 0
        %4152 = vmatmul.mubr.bf16.gmra.mxu0 %v4071
        %v4153 = vpop.f32.mrf.mxu0
        %v4154 = vadd.f32 0.0, %v4153
        %v4155 = vpop.f32.mrf.mxu0
        %v4156 = vpop.f32.mrf.mxu0
        %v4157 = vadd.f32 0.0, %v4156
        %v4158 = vpop.f32.mrf.mxu0
        %4159 = vmatprep.mubr.bf16.mxu0 0
        %4160 = vmatmul.mubr.bf16.gmra.mxu0 %v4074
        %v4161 = vpop.f32.mrf.mxu0
        %v4162 = vadd.f32 0.0, %v4161
        %v4163 = vpop.f32.mrf.mxu0
        %v4164 = vpop.f32.mrf.mxu0
        %v4165 = vadd.f32 0.0, %v4164
        %v4166 = vpop.f32.mrf.mxu0
        %4167 = vmatprep.mubr.bf16.mxu0 0
        %4168 = vmatmul.mubr.bf16.gmra.mxu0 %v4077
        %v4169 = vpop.f32.mrf.mxu0
        %v4170 = vadd.f32 0.0, %v4169
        %v4171 = vpop.f32.mrf.mxu0
        %v4172 = vpop.f32.mrf.mxu0
        %v4173 = vadd.f32 0.0, %v4172
        %v4174 = vpop.f32.mrf.mxu0
        %4175 = vdwg.mxu0
        %v4176 = vadd.f32 %v3879, %v4114
        %v4177 = vadd.f32 %v3880, %v4117
        %v4178 = vadd.f32 %v3881, %v4122
        %v4179 = vadd.f32 %v3882, %v4125
        %v4180 = vadd.f32 %v3883, %v4130
        %v4181 = vadd.f32 %v3884, %v4133
        %v4182 = vadd.f32 %v3885, %v4138
        %v4183 = vadd.f32 %v3886, %v4141
        %v4184 = vadd.f32 %v3887, %v4146
        %v4185 = vadd.f32 %v3888, %v4149
        %v4186 = vadd.f32 %v3889, %v4154
        %v4187 = vadd.f32 %v3890, %v4157
        %v4188 = vadd.f32 %v3891, %v4162
        %v4189 = vadd.f32 %v3892, %v4165
        %v4190 = vadd.f32 %v3893, %v4170
        %v4191 = vadd.f32 %v3894, %v4173
        %v4192 = vld [vmem:[%s1 + $0xc0] sm:$0xf]
        %v4193 = vld [vmem:[%s1 + $0xc4] sm:$0xf]
        %v4194 = vld [vmem:[%s1 + $0xc8] sm:$0xf]
        %v4195 = vld [vmem:[%s1 + $0xcc] sm:$0xf]
        %v4196 = vld [vmem:[%s1 + $0xd0] sm:$0xf]
        %v4197 = vld [vmem:[%s1 + $0xd4] sm:$0xf]
        %v4198 = vld [vmem:[%s1 + $0xd8] sm:$0xf]
        %v4199 = vld [vmem:[%s1 + $0xdc] sm:$0xf]
        %v4200 = vld [vmem:[%s238 + $0x58] sm:$0xf]
        %v4201 = vld [vmem:[%s238 + $0x5c] sm:$0xf]
        %v4202 = vld [vmem:[%s238 + $0x60] sm:$0xf]
        %v4203 = vld [vmem:[%s238 + $0x64] sm:$0xf]
        %v4204 = vld [vmem:[%s238 + $0x68] sm:$0xf]
        %v4205 = vld [vmem:[%s238 + $0x6c] sm:$0xf]
        %v4206 = vld [vmem:[%s238 + $0x70] sm:$0xf]
        %v4207 = vld [vmem:[%s238 + $0x74] sm:$0xf]
        %v4208 = vld [vmem:[%s238 + $0x78] sm:$0xf]
        %v4209 = vld [vmem:[%s238 + $0x7c] sm:$0xf]
        %v4210 = vld [vmem:[%s238 + $0x80] sm:$0xf]
        %v4211 = vld [vmem:[%s238 + $0x84] sm:$0xf]
        %v4212 = vld [vmem:[%s238 + $0x88] sm:$0xf]
        %v4213 = vld [vmem:[%s238 + $0x8c] sm:$0xf]
        %v4214 = vld [vmem:[%s238 + $0x90] sm:$0xf]
        %v4215 = vld [vmem:[%s238 + $0x94] sm:$0xf]
        %v4216 = vld [vmem:[%s238 + $0x98] sm:$0x1]
        %v4234 = vunpack.c.l.b16 %v4200
        %v4235 = vunpack.c.l.b16 %v4201
        %v4236 = vunpack.c.l.b16 %v4202
        %v4237 = vunpack.c.l.b16 %v4203
        %v4238 = vunpack.c.l.b16 %v4204
        %v4239 = vunpack.c.l.b16 %v4205
        %v4240 = vunpack.c.l.b16 %v4206
        %v4241 = vunpack.c.l.b16 %v4207
        %v4242 = vunpack.c.l.b16 %v4208
        %v4243 = vunpack.c.l.b16 %v4209
        %v4244 = vunpack.c.l.b16 %v4210
        %v4245 = vunpack.c.l.b16 %v4211
        %v4246 = vunpack.c.l.b16 %v4212
        %v4247 = vunpack.c.l.b16 %v4213
        %v4248 = vunpack.c.l.b16 %v4214
        %v4249 = vunpack.c.l.b16 %v4215
        %v4250 = vunpack.c.l.b16 %v4216
        %v4251 = vpack.c.b16 %v4235, %v4234
        %v4252 = vpack.c.b16 %v4237, %v4236
        %v4253 = vpack.c.b16 %v4239, %v4238
        %v4254 = vpack.c.b16 %v4241, %v4240
        %v4255 = vpack.c.b16 %v4243, %v4242
        %v4256 = vpack.c.b16 %v4245, %v4244
        %v4257 = vpack.c.b16 %v4247, %v4246
        %v4258 = vpack.c.b16 %v4249, %v4248
        %v4259 = vpack.c.b16 %v4250, %v4250
        %v4261 = vshrl.u32 %v4251, 16
        %v4263 = vshll.u32 %v4251, 16
        %v4265 = vrot.slane %v4263, 1
        %v4266 = vor.u32 %v4261, %v4265
        %v4268 = vshll.u32 %v4252, 16
        %v4270 = vrot.slane %v4268, 1
        %v4271 = vsel %vm1503, %v4266, %v4270
        %v4272 = vshrl.u32 %v4252, 16
        %v4274 = vor.u32 %v4272, %v4270
        %v4276 = vshll.u32 %v4253, 16
        %v4278 = vrot.slane %v4276, 1
        %v4279 = vsel %vm1503, %v4274, %v4278
        %v4280 = vshrl.u32 %v4253, 16
        %v4282 = vor.u32 %v4280, %v4278
        %v4284 = vshll.u32 %v4254, 16
        %v4286 = vrot.slane %v4284, 1
        %v4287 = vsel %vm1503, %v4282, %v4286
        %v4288 = vshrl.u32 %v4254, 16
        %v4290 = vor.u32 %v4288, %v4286
        %v4292 = vshll.u32 %v4255, 16
        %v4294 = vrot.slane %v4292, 1
        %v4295 = vsel %vm1503, %v4290, %v4294
        %v4296 = vshrl.u32 %v4255, 16
        %v4298 = vor.u32 %v4296, %v4294
        %v4300 = vshll.u32 %v4256, 16
        %v4302 = vrot.slane %v4300, 1
        %v4303 = vsel %vm1503, %v4298, %v4302
        %v4304 = vshrl.u32 %v4256, 16
        %v4306 = vor.u32 %v4304, %v4302
        %v4308 = vshll.u32 %v4257, 16
        %v4310 = vrot.slane %v4308, 1
        %v4311 = vsel %vm1503, %v4306, %v4310
        %v4312 = vshrl.u32 %v4257, 16
        %v4314 = vor.u32 %v4312, %v4310
        %v4316 = vshll.u32 %v4258, 16
        %v4318 = vrot.slane %v4316, 1
        %v4319 = vsel %vm1503, %v4314, %v4318
        %v4320 = vshrl.u32 %v4258, 16
        %v4322 = vor.u32 %v4320, %v4318
        %v4324 = vshll.u32 %v4259, 16
        %v4326 = vrot.slane %v4324, 1
        %v4327 = vsel %vm1503, %v4322, %v4326
        %v4336 = vunpack.c.l.b16 %v4192
        %v4337 = vunpack.c.l.b16 %v4193
        %v4338 = vunpack.c.l.b16 %v4194
        %v4339 = vunpack.c.l.b16 %v4195
        %v4340 = vunpack.c.l.b16 %v4196
        %v4341 = vunpack.c.l.b16 %v4197
        %v4342 = vunpack.c.l.b16 %v4198
        %v4343 = vunpack.c.l.b16 %v4199
        %v4344 = vpack.c.b16 %v4337, %v4336
        %v4345 = vpack.c.b16 %v4339, %v4338
        %v4346 = vpack.c.b16 %v4341, %v4340
        %v4347 = vpack.c.b16 %v4343, %v4342
        %v4353 = vsel %vm379, %v4271, 0
        %v4356 = vsel %vm379, %v4279, 0
        %v4359 = vsel %vm379, %v4287, 0
        %v4362 = vsel %vm379, %v4295, 0
        %v4365 = vsel %vm379, %v4303, 0
        %v4368 = vsel %vm379, %v4311, 0
        %v4371 = vsel %vm379, %v4319, 0
        %v4374 = vsel %vm379, %v4327, 0
        %4376 = vmatprep.subr.bf16.mxu0 0
        %4377 = vmatpush1.bf16.msra.mxu0 0
        %4378 = vmatprep.subr.bf16.mxu0 0
        %4379 = vmatpush1.bf16.msra.mxu0 0
        %4380 = vmatprep.subr.bf16.mxu0 0
        %4381 = vmatpush1.bf16.msra.mxu0 0
        %4382 = vmatprep.subr.bf16.mxu0 0
        %4383 = vmatpush1.bf16.msra.mxu0 0
        %4384 = vmatprep.subr.bf16.mxu0 0
        %4385 = vmatpush1.bf16.msra.mxu0 %v4347
        %4386 = vmatprep.subr.bf16.mxu0 0
        %4387 = vmatpush1.bf16.msra.mxu0 %v4346
        %4388 = vmatprep.subr.bf16.mxu0 0
        %4389 = vmatpush1.bf16.msra.mxu0 %v4345
        %4390 = vmatprep.subr.bf16.mxu0 0
        %4391 = vmatpush1.bf16.msra.mxu0 %v4344
        %4392 = vmatprep.subr.bf16.mxu0 0
        %4393 = vmatpush2.bf16.msra.mxu0 0
        %4394 = vmatprep.subr.bf16.mxu0 0
        %4395 = vmatpush2.bf16.msra.mxu0 0
        %4396 = vmatprep.subr.bf16.mxu0 0
        %4397 = vmatpush2.bf16.msra.mxu0 0
        %4398 = vmatprep.subr.bf16.mxu0 0
        %4399 = vmatpush2.bf16.msra.mxu0 0
        %4400 = vmatprep.subr.bf16.mxu0 0
        %4401 = vmatpush2.bf16.msra.mxu0 0
        %4402 = vmatprep.subr.bf16.mxu0 0
        %4403 = vmatpush2.bf16.msra.mxu0 0
        %4404 = vmatprep.subr.bf16.mxu0 0
        %4405 = vmatpush2.bf16.msra.mxu0 0
        %4406 = vmatprep.subr.bf16.mxu0 0
        %4407 = vmatpush2.bf16.msra.mxu0 0
        %4408 = vmatprep.mubr.bf16.mxu0 0
        %4409 = vmatmul.mubr.bf16.gmra.mxu0 %v4353
        %v4410 = vpop.f32.mrf.mxu0
        %v4411 = vadd.f32 0.0, %v4410
        %v4412 = vpop.f32.mrf.mxu0
        %v4413 = vpop.f32.mrf.mxu0
        %v4414 = vadd.f32 0.0, %v4413
        %v4415 = vpop.f32.mrf.mxu0
        %4416 = vmatprep.mubr.bf16.mxu0 0
        %4417 = vmatmul.mubr.bf16.gmra.mxu0 %v4356
        %v4418 = vpop.f32.mrf.mxu0
        %v4419 = vadd.f32 0.0, %v4418
        %v4420 = vpop.f32.mrf.mxu0
        %v4421 = vpop.f32.mrf.mxu0
        %v4422 = vadd.f32 0.0, %v4421
        %v4423 = vpop.f32.mrf.mxu0
        %4424 = vmatprep.mubr.bf16.mxu0 0
        %4425 = vmatmul.mubr.bf16.gmra.mxu0 %v4359
        %v4426 = vpop.f32.mrf.mxu0
        %v4427 = vadd.f32 0.0, %v4426
        %v4428 = vpop.f32.mrf.mxu0
        %v4429 = vpop.f32.mrf.mxu0
        %v4430 = vadd.f32 0.0, %v4429
        %v4431 = vpop.f32.mrf.mxu0
        %4432 = vmatprep.mubr.bf16.mxu0 0
        %4433 = vmatmul.mubr.bf16.gmra.mxu0 %v4362
        %v4434 = vpop.f32.mrf.mxu0
        %v4435 = vadd.f32 0.0, %v4434
        %v4436 = vpop.f32.mrf.mxu0
        %v4437 = vpop.f32.mrf.mxu0
        %v4438 = vadd.f32 0.0, %v4437
        %v4439 = vpop.f32.mrf.mxu0
        %4440 = vmatprep.mubr.bf16.mxu0 0
        %4441 = vmatmul.mubr.bf16.gmra.mxu0 %v4365
        %v4442 = vpop.f32.mrf.mxu0
        %v4443 = vadd.f32 0.0, %v4442
        %v4444 = vpop.f32.mrf.mxu0
        %v4445 = vpop.f32.mrf.mxu0
        %v4446 = vadd.f32 0.0, %v4445
        %v4447 = vpop.f32.mrf.mxu0
        %4448 = vmatprep.mubr.bf16.mxu0 0
        %4449 = vmatmul.mubr.bf16.gmra.mxu0 %v4368
        %v4450 = vpop.f32.mrf.mxu0
        %v4451 = vadd.f32 0.0, %v4450
        %v4452 = vpop.f32.mrf.mxu0
        %v4453 = vpop.f32.mrf.mxu0
        %v4454 = vadd.f32 0.0, %v4453
        %v4455 = vpop.f32.mrf.mxu0
        %4456 = vmatprep.mubr.bf16.mxu0 0
        %4457 = vmatmul.mubr.bf16.gmra.mxu0 %v4371
        %v4458 = vpop.f32.mrf.mxu0
        %v4459 = vadd.f32 0.0, %v4458
        %v4460 = vpop.f32.mrf.mxu0
        %v4461 = vpop.f32.mrf.mxu0
        %v4462 = vadd.f32 0.0, %v4461
        %v4463 = vpop.f32.mrf.mxu0
        %4464 = vmatprep.mubr.bf16.mxu0 0
        %4465 = vmatmul.mubr.bf16.gmra.mxu0 %v4374
        %v4466 = vpop.f32.mrf.mxu0
        %v4467 = vadd.f32 0.0, %v4466
        %v4468 = vpop.f32.mrf.mxu0
        %v4469 = vpop.f32.mrf.mxu0
        %v4470 = vadd.f32 0.0, %v4469
        %v4471 = vpop.f32.mrf.mxu0
        %4472 = vdwg.mxu0
        %v4473 = vadd.f32 %v4176, %v4411
        %v4474 = vadd.f32 %v4177, %v4414
        %v4475 = vadd.f32 %v4178, %v4419
        %v4476 = vadd.f32 %v4179, %v4422
        %v4477 = vadd.f32 %v4180, %v4427
        %v4478 = vadd.f32 %v4181, %v4430
        %v4479 = vadd.f32 %v4182, %v4435
        %v4480 = vadd.f32 %v4183, %v4438
        %v4481 = vadd.f32 %v4184, %v4443
        %v4482 = vadd.f32 %v4185, %v4446
        %v4483 = vadd.f32 %v4186, %v4451
        %v4484 = vadd.f32 %v4187, %v4454
        %v4485 = vadd.f32 %v4188, %v4459
        %v4486 = vadd.f32 %v4189, %v4462
        %v4487 = vadd.f32 %v4190, %v4467
        %v4488 = vadd.f32 %v4191, %v4470
        %v4489 = vld [vmem:[%s1 + $0xe0] sm:$0xf]
        %v4490 = vld [vmem:[%s1 + $0xe4] sm:$0xf]
        %v4491 = vld [vmem:[%s1 + $0xe8] sm:$0xf]
        %v4492 = vld [vmem:[%s1 + $0xec] sm:$0xf]
        %v4493 = vld [vmem:[%s1 + $0xf0] sm:$0xf]
        %v4494 = vld [vmem:[%s1 + $0xf4] sm:$0xf]
        %v4495 = vld [vmem:[%s1 + $0xf8] sm:$0xf]
        %v4496 = vld [vmem:[%s1 + $0xfc] sm:$0xf]
        %v4497 = vld [vmem:[%s238 + $0x58] sm:$0xe]
        %v4499 = vunpack.c.l.b16 %v4497
        %v4500 = vpack.c.b16 %v4235, %v4499
        %v4501 = vrot.slane %v4500, 1
        %v4502 = vrot.slane %v4252, 1
        %v4503 = vsel %vm2042, %v4501, %v4502
        %v4504 = vrot.slane %v4253, 1
        %v4505 = vsel %vm2042, %v4502, %v4504
        %v4506 = vrot.slane %v4254, 1
        %v4507 = vsel %vm2042, %v4504, %v4506
        %v4508 = vrot.slane %v4255, 1
        %v4509 = vsel %vm2042, %v4506, %v4508
        %v4510 = vrot.slane %v4256, 1
        %v4511 = vsel %vm2042, %v4508, %v4510
        %v4512 = vrot.slane %v4257, 1
        %v4513 = vsel %vm2042, %v4510, %v4512
        %v4514 = vrot.slane %v4258, 1
        %v4515 = vsel %vm2042, %v4512, %v4514
        %v4516 = vrot.slane %v4259, 1
        %v4517 = vsel %vm2042, %v4514, %v4516
        %v4526 = vunpack.c.l.b16 %v4489
        %v4527 = vunpack.c.l.b16 %v4490
        %v4528 = vunpack.c.l.b16 %v4491
        %v4529 = vunpack.c.l.b16 %v4492
        %v4530 = vunpack.c.l.b16 %v4493
        %v4531 = vunpack.c.l.b16 %v4494
        %v4532 = vunpack.c.l.b16 %v4495
        %v4533 = vunpack.c.l.b16 %v4496
        %v4534 = vpack.c.b16 %v4527, %v4526
        %v4535 = vpack.c.b16 %v4529, %v4528
        %v4536 = vpack.c.b16 %v4531, %v4530
        %v4537 = vpack.c.b16 %v4533, %v4532
        %v4543 = vsel %vm379, %v4503, 0
        %v4546 = vsel %vm379, %v4505, 0
        %v4549 = vsel %vm379, %v4507, 0
        %v4552 = vsel %vm379, %v4509, 0
        %v4555 = vsel %vm379, %v4511, 0
        %v4558 = vsel %vm379, %v4513, 0
        %v4561 = vsel %vm379, %v4515, 0
        %v4564 = vsel %vm379, %v4517, 0
        %4566 = vmatprep.subr.bf16.mxu0 0
        %4567 = vmatpush1.bf16.msra.mxu0 0
        %4568 = vmatprep.subr.bf16.mxu0 0
        %4569 = vmatpush1.bf16.msra.mxu0 0
        %4570 = vmatprep.subr.bf16.mxu0 0
        %4571 = vmatpush1.bf16.msra.mxu0 0
        %4572 = vmatprep.subr.bf16.mxu0 0
        %4573 = vmatpush1.bf16.msra.mxu0 0
        %4574 = vmatprep.subr.bf16.mxu0 0
        %4575 = vmatpush1.bf16.msra.mxu0 %v4537
        %4576 = vmatprep.subr.bf16.mxu0 0
        %4577 = vmatpush1.bf16.msra.mxu0 %v4536
        %4578 = vmatprep.subr.bf16.mxu0 0
        %4579 = vmatpush1.bf16.msra.mxu0 %v4535
        %4580 = vmatprep.subr.bf16.mxu0 0
        %4581 = vmatpush1.bf16.msra.mxu0 %v4534
        %4582 = vmatprep.subr.bf16.mxu0 0
        %4583 = vmatpush2.bf16.msra.mxu0 0
        %4584 = vmatprep.subr.bf16.mxu0 0
        %4585 = vmatpush2.bf16.msra.mxu0 0
        %4586 = vmatprep.subr.bf16.mxu0 0
        %4587 = vmatpush2.bf16.msra.mxu0 0
        %4588 = vmatprep.subr.bf16.mxu0 0
        %4589 = vmatpush2.bf16.msra.mxu0 0
        %4590 = vmatprep.subr.bf16.mxu0 0
        %4591 = vmatpush2.bf16.msra.mxu0 0
        %4592 = vmatprep.subr.bf16.mxu0 0
        %4593 = vmatpush2.bf16.msra.mxu0 0
        %4594 = vmatprep.subr.bf16.mxu0 0
        %4595 = vmatpush2.bf16.msra.mxu0 0
        %4596 = vmatprep.subr.bf16.mxu0 0
        %4597 = vmatpush2.bf16.msra.mxu0 0
        %4598 = vmatprep.mubr.bf16.mxu0 0
        %4599 = vmatmul.mubr.bf16.gmra.mxu0 %v4543
        %v4600 = vpop.f32.mrf.mxu0
        %v4601 = vadd.f32 0.0, %v4600
        %v4602 = vpop.f32.mrf.mxu0
        %v4603 = vpop.f32.mrf.mxu0
        %v4604 = vadd.f32 0.0, %v4603
        %v4605 = vpop.f32.mrf.mxu0
        %4606 = vmatprep.mubr.bf16.mxu0 0
        %4607 = vmatmul.mubr.bf16.gmra.mxu0 %v4546
        %v4608 = vpop.f32.mrf.mxu0
        %v4609 = vadd.f32 0.0, %v4608
        %v4610 = vpop.f32.mrf.mxu0
        %v4611 = vpop.f32.mrf.mxu0
        %v4612 = vadd.f32 0.0, %v4611
        %v4613 = vpop.f32.mrf.mxu0
        %4614 = vmatprep.mubr.bf16.mxu0 0
        %4615 = vmatmul.mubr.bf16.gmra.mxu0 %v4549
        %v4616 = vpop.f32.mrf.mxu0
        %v4617 = vadd.f32 0.0, %v4616
        %v4618 = vpop.f32.mrf.mxu0
        %v4619 = vpop.f32.mrf.mxu0
        %v4620 = vadd.f32 0.0, %v4619
        %v4621 = vpop.f32.mrf.mxu0
        %4622 = vmatprep.mubr.bf16.mxu0 0
        %4623 = vmatmul.mubr.bf16.gmra.mxu0 %v4552
        %v4624 = vpop.f32.mrf.mxu0
        %v4625 = vadd.f32 0.0, %v4624
        %v4626 = vpop.f32.mrf.mxu0
        %v4627 = vpop.f32.mrf.mxu0
        %v4628 = vadd.f32 0.0, %v4627
        %v4629 = vpop.f32.mrf.mxu0
        %4630 = vmatprep.mubr.bf16.mxu0 0
        %4631 = vmatmul.mubr.bf16.gmra.mxu0 %v4555
        %v4632 = vpop.f32.mrf.mxu0
        %v4633 = vadd.f32 0.0, %v4632
        %v4634 = vpop.f32.mrf.mxu0
        %v4635 = vpop.f32.mrf.mxu0
        %v4636 = vadd.f32 0.0, %v4635
        %v4637 = vpop.f32.mrf.mxu0
        %4638 = vmatprep.mubr.bf16.mxu0 0
        %4639 = vmatmul.mubr.bf16.gmra.mxu0 %v4558
        %v4640 = vpop.f32.mrf.mxu0
        %v4641 = vadd.f32 0.0, %v4640
        %v4642 = vpop.f32.mrf.mxu0
        %v4643 = vpop.f32.mrf.mxu0
        %v4644 = vadd.f32 0.0, %v4643
        %v4645 = vpop.f32.mrf.mxu0
        %4646 = vmatprep.mubr.bf16.mxu0 0
        %4647 = vmatmul.mubr.bf16.gmra.mxu0 %v4561
        %v4648 = vpop.f32.mrf.mxu0
        %v4649 = vadd.f32 0.0, %v4648
        %v4650 = vpop.f32.mrf.mxu0
        %v4651 = vpop.f32.mrf.mxu0
        %v4652 = vadd.f32 0.0, %v4651
        %v4653 = vpop.f32.mrf.mxu0
        %4654 = vmatprep.mubr.bf16.mxu0 0
        %4655 = vmatmul.mubr.bf16.gmra.mxu0 %v4564
        %v4656 = vpop.f32.mrf.mxu0
        %v4657 = vadd.f32 0.0, %v4656
        %v4658 = vpop.f32.mrf.mxu0
        %v4659 = vpop.f32.mrf.mxu0
        %v4660 = vadd.f32 0.0, %v4659
        %v4661 = vpop.f32.mrf.mxu0
        %4662 = vdwg.mxu0
        %v4663 = vadd.f32 %v4473, %v4601
        %v4664 = vadd.f32 %v4474, %v4604
        %v4665 = vadd.f32 %v4475, %v4609
        %v4666 = vadd.f32 %v4476, %v4612
        %v4667 = vadd.f32 %v4477, %v4617
        %v4668 = vadd.f32 %v4478, %v4620
        %v4669 = vadd.f32 %v4479, %v4625
        %v4670 = vadd.f32 %v4480, %v4628
        %v4671 = vadd.f32 %v4481, %v4633
        %v4672 = vadd.f32 %v4482, %v4636
        %v4673 = vadd.f32 %v4483, %v4641
        %v4674 = vadd.f32 %v4484, %v4644
        %v4675 = vadd.f32 %v4485, %v4649
        %v4676 = vadd.f32 %v4486, %v4652
        %v4677 = vadd.f32 %v4487, %v4657
        %v4678 = vadd.f32 %v4488, %v4660
        %v4679 = vld [vmem:[%s1 + $0x100] sm:$0xf]
        %v4680 = vld [vmem:[%s1 + $0x104] sm:$0xf]
        %v4681 = vld [vmem:[%s1 + $0x108] sm:$0xf]
        %v4682 = vld [vmem:[%s1 + $0x10c] sm:$0xf]
        %v4683 = vld [vmem:[%s1 + $0x110] sm:$0xf]
        %v4684 = vld [vmem:[%s1 + $0x114] sm:$0xf]
        %v4685 = vld [vmem:[%s1 + $0x118] sm:$0xf]
        %v4686 = vld [vmem:[%s1 + $0x11c] sm:$0xf]
        %v4687 = vld [vmem:[%s238 + $0x98] sm:$0x3]
        %v4689 = vunpack.c.l.b16 %v4687
        %v4690 = vpack.c.b16 %v4689, %v4689
        %v4692 = vshrl.u32 %v4500, 16
        %v4694 = vrot.slane %v4692, 1
        %v4695 = vshll.u32 %v4500, 16
        %v4697 = vrot.slane %v4695, 2
        %v4698 = vor.u32 %v4694, %v4697
        %v4699 = vrot.slane %v4272, 1
        %v4700 = vrot.slane %v4268, 2
        %v4701 = vor.u32 %v4699, %v4700
        %v4702 = vsel %vm2233, %v4698, %v4701
        %v4703 = vrot.slane %v4280, 1
        %v4704 = vrot.slane %v4276, 2
        %v4705 = vor.u32 %v4703, %v4704
        %v4706 = vsel %vm2233, %v4701, %v4705
        %v4707 = vrot.slane %v4288, 1
        %v4708 = vrot.slane %v4284, 2
        %v4709 = vor.u32 %v4707, %v4708
        %v4710 = vsel %vm2233, %v4705, %v4709
        %v4711 = vrot.slane %v4296, 1
        %v4712 = vrot.slane %v4292, 2
        %v4713 = vor.u32 %v4711, %v4712
        %v4714 = vsel %vm2233, %v4709, %v4713
        %v4715 = vrot.slane %v4304, 1
        %v4716 = vrot.slane %v4300, 2
        %v4717 = vor.u32 %v4715, %v4716
        %v4718 = vsel %vm2233, %v4713, %v4717
        %v4719 = vrot.slane %v4312, 1
        %v4720 = vrot.slane %v4308, 2
        %v4721 = vor.u32 %v4719, %v4720
        %v4722 = vsel %vm2233, %v4717, %v4721
        %v4723 = vrot.slane %v4320, 1
        %v4724 = vrot.slane %v4316, 2
        %v4725 = vor.u32 %v4723, %v4724
        %v4726 = vsel %vm2233, %v4721, %v4725
        %v4728 = vshrl.u32 %v4690, 16
        %v4730 = vrot.slane %v4728, 1
        %v4731 = vshll.u32 %v4690, 16
        %v4733 = vrot.slane %v4731, 2
        %v4734 = vor.u32 %v4730, %v4733
        %v4735 = vsel %vm2233, %v4725, %v4734
        %v4744 = vunpack.c.l.b16 %v4679
        %v4745 = vunpack.c.l.b16 %v4680
        %v4746 = vunpack.c.l.b16 %v4681
        %v4747 = vunpack.c.l.b16 %v4682
        %v4748 = vunpack.c.l.b16 %v4683
        %v4749 = vunpack.c.l.b16 %v4684
        %v4750 = vunpack.c.l.b16 %v4685
        %v4751 = vunpack.c.l.b16 %v4686
        %v4752 = vpack.c.b16 %v4745, %v4744
        %v4753 = vpack.c.b16 %v4747, %v4746
        %v4754 = vpack.c.b16 %v4749, %v4748
        %v4755 = vpack.c.b16 %v4751, %v4750
        %v4761 = vsel %vm379, %v4702, 0
        %v4764 = vsel %vm379, %v4706, 0
        %v4767 = vsel %vm379, %v4710, 0
        %v4770 = vsel %vm379, %v4714, 0
        %v4773 = vsel %vm379, %v4718, 0
        %v4776 = vsel %vm379, %v4722, 0
        %v4779 = vsel %vm379, %v4726, 0
        %v4782 = vsel %vm379, %v4735, 0
        %4784 = vmatprep.subr.bf16.mxu0 0
        %4785 = vmatpush1.bf16.msra.mxu0 0
        %4786 = vmatprep.subr.bf16.mxu0 0
        %4787 = vmatpush1.bf16.msra.mxu0 0
        %4788 = vmatprep.subr.bf16.mxu0 0
        %4789 = vmatpush1.bf16.msra.mxu0 0
        %4790 = vmatprep.subr.bf16.mxu0 0
        %4791 = vmatpush1.bf16.msra.mxu0 0
        %4792 = vmatprep.subr.bf16.mxu0 0
        %4793 = vmatpush1.bf16.msra.mxu0 %v4755
        %4794 = vmatprep.subr.bf16.mxu0 0
        %4795 = vmatpush1.bf16.msra.mxu0 %v4754
        %4796 = vmatprep.subr.bf16.mxu0 0
        %4797 = vmatpush1.bf16.msra.mxu0 %v4753
        %4798 = vmatprep.subr.bf16.mxu0 0
        %4799 = vmatpush1.bf16.msra.mxu0 %v4752
        %4800 = vmatprep.subr.bf16.mxu0 0
        %4801 = vmatpush2.bf16.msra.mxu0 0
        %4802 = vmatprep.subr.bf16.mxu0 0
        %4803 = vmatpush2.bf16.msra.mxu0 0
        %4804 = vmatprep.subr.bf16.mxu0 0
        %4805 = vmatpush2.bf16.msra.mxu0 0
        %4806 = vmatprep.subr.bf16.mxu0 0
        %4807 = vmatpush2.bf16.msra.mxu0 0
        %4808 = vmatprep.subr.bf16.mxu0 0
        %4809 = vmatpush2.bf16.msra.mxu0 0
        %4810 = vmatprep.subr.bf16.mxu0 0
        %4811 = vmatpush2.bf16.msra.mxu0 0
        %4812 = vmatprep.subr.bf16.mxu0 0
        %4813 = vmatpush2.bf16.msra.mxu0 0
        %4814 = vmatprep.subr.bf16.mxu0 0
        %4815 = vmatpush2.bf16.msra.mxu0 0
        %4816 = vmatprep.mubr.bf16.mxu0 0
        %4817 = vmatmul.mubr.bf16.gmra.mxu0 %v4761
        %v4818 = vpop.f32.mrf.mxu0
        %v4819 = vadd.f32 0.0, %v4818
        %v4820 = vpop.f32.mrf.mxu0
        %v4821 = vpop.f32.mrf.mxu0
        %v4822 = vadd.f32 0.0, %v4821
        %v4823 = vpop.f32.mrf.mxu0
        %4824 = vmatprep.mubr.bf16.mxu0 0
        %4825 = vmatmul.mubr.bf16.gmra.mxu0 %v4764
        %v4826 = vpop.f32.mrf.mxu0
        %v4827 = vadd.f32 0.0, %v4826
        %v4828 = vpop.f32.mrf.mxu0
        %v4829 = vpop.f32.mrf.mxu0
        %v4830 = vadd.f32 0.0, %v4829
        %v4831 = vpop.f32.mrf.mxu0
        %4832 = vmatprep.mubr.bf16.mxu0 0
        %4833 = vmatmul.mubr.bf16.gmra.mxu0 %v4767
        %v4834 = vpop.f32.mrf.mxu0
        %v4835 = vadd.f32 0.0, %v4834
        %v4836 = vpop.f32.mrf.mxu0
        %v4837 = vpop.f32.mrf.mxu0
        %v4838 = vadd.f32 0.0, %v4837
        %v4839 = vpop.f32.mrf.mxu0
        %4840 = vmatprep.mubr.bf16.mxu0 0
        %4841 = vmatmul.mubr.bf16.gmra.mxu0 %v4770
        %v4842 = vpop.f32.mrf.mxu0
        %v4843 = vadd.f32 0.0, %v4842
        %v4844 = vpop.f32.mrf.mxu0
        %v4845 = vpop.f32.mrf.mxu0
        %v4846 = vadd.f32 0.0, %v4845
        %v4847 = vpop.f32.mrf.mxu0
        %4848 = vmatprep.mubr.bf16.mxu0 0
        %4849 = vmatmul.mubr.bf16.gmra.mxu0 %v4773
        %v4850 = vpop.f32.mrf.mxu0
        %v4851 = vadd.f32 0.0, %v4850
        %v4852 = vpop.f32.mrf.mxu0
        %v4853 = vpop.f32.mrf.mxu0
        %v4854 = vadd.f32 0.0, %v4853
        %v4855 = vpop.f32.mrf.mxu0
        %4856 = vmatprep.mubr.bf16.mxu0 0
        %4857 = vmatmul.mubr.bf16.gmra.mxu0 %v4776
        %v4858 = vpop.f32.mrf.mxu0
        %v4859 = vadd.f32 0.0, %v4858
        %v4860 = vpop.f32.mrf.mxu0
        %v4861 = vpop.f32.mrf.mxu0
        %v4862 = vadd.f32 0.0, %v4861
        %v4863 = vpop.f32.mrf.mxu0
        %4864 = vmatprep.mubr.bf16.mxu0 0
        %4865 = vmatmul.mubr.bf16.gmra.mxu0 %v4779
        %v4866 = vpop.f32.mrf.mxu0
        %v4867 = vadd.f32 0.0, %v4866
        %v4868 = vpop.f32.mrf.mxu0
        %v4869 = vpop.f32.mrf.mxu0
        %v4870 = vadd.f32 0.0, %v4869
        %v4871 = vpop.f32.mrf.mxu0
        %4872 = vmatprep.mubr.bf16.mxu0 0
        %4873 = vmatmul.mubr.bf16.gmra.mxu0 %v4782
        %v4874 = vpop.f32.mrf.mxu0
        %v4875 = vadd.f32 0.0, %v4874
        %v4876 = vpop.f32.mrf.mxu0
        %v4877 = vpop.f32.mrf.mxu0
        %v4878 = vadd.f32 0.0, %v4877
        %v4879 = vpop.f32.mrf.mxu0
        %4880 = vdwg.mxu0
        %v4881 = vadd.f32 %v4663, %v4819
        %v4882 = vadd.f32 %v4664, %v4822
        %v4883 = vadd.f32 %v4665, %v4827
        %v4884 = vadd.f32 %v4666, %v4830
        %v4885 = vadd.f32 %v4667, %v4835
        %v4886 = vadd.f32 %v4668, %v4838
        %v4887 = vadd.f32 %v4669, %v4843
        %v4888 = vadd.f32 %v4670, %v4846
        %v4889 = vadd.f32 %v4671, %v4851
        %v4890 = vadd.f32 %v4672, %v4854
        %v4891 = vadd.f32 %v4673, %v4859
        %v4892 = vadd.f32 %v4674, %v4862
        %v4893 = vadd.f32 %v4675, %v4867
        %v4894 = vadd.f32 %v4676, %v4870
        %v4895 = vadd.f32 %v4677, %v4875
        %v4896 = vadd.f32 %v4678, %v4878
        %v4897 = vld [vmem:[%s2 + $0xa0] sm:$0xff]
        %v4898 = vld [vmem:[%s2 + $0xa8] sm:$0xff]
        %v4899 = vld [vmem:[%s2 + $0xb0] sm:$0xff]
        %v4900 = vld [vmem:[%s2 + $0xb8] sm:$0xff]
        %v4901 = vld [vmem:[%s2 + $0xc0] sm:$0xff]
        %v4902 = vld [vmem:[%s2 + $0xc8] sm:$0xff]
        %v4903 = vld [vmem:[%s2 + $0xd0] sm:$0xff]
        %v4904 = vld [vmem:[%s2 + $0xd8] sm:$0xff]
        %v4905 = vld [vmem:[%s2 + $0xe0] sm:$0xff]
        %v4906 = vld [vmem:[%s2 + $0xe8] sm:$0xff]
        %v4907 = vld [vmem:[%s2 + $0xf0] sm:$0xff]
        %v4908 = vld [vmem:[%s2 + $0xf8] sm:$0xff]
        %v4909 = vld [vmem:[%s2 + $0x100] sm:$0xff]
        %v4910 = vld [vmem:[%s2 + $0x108] sm:$0xff]
        %v4911 = vld [vmem:[%s2 + $0x110] sm:$0xff]
        %v4912 = vld [vmem:[%s2 + $0x118] sm:$0xff]
        %4914 = vset.pattern.permute.xlu0 0
        %4915 = vperm.xlu0 %4914, %v4897
        %v4916 = vpop.permute.xlu0 %4915
        %4919 = vset.pattern.permute.xlu0 0
        %4920 = vperm.xlu0 %4919, %v4898
        %v4921 = vpop.permute.xlu0 %4920
        %4924 = vset.pattern.permute.xlu0 0
        %4925 = vperm.xlu0 %4924, %v4899
        %v4926 = vpop.permute.xlu0 %4925
        %4929 = vset.pattern.permute.xlu0 0
        %4930 = vperm.xlu0 %4929, %v4900
        %v4931 = vpop.permute.xlu0 %4930
        %4934 = vset.pattern.permute.xlu0 0
        %4935 = vperm.xlu0 %4934, %v4901
        %v4936 = vpop.permute.xlu0 %4935
        %4939 = vset.pattern.permute.xlu0 0
        %4940 = vperm.xlu0 %4939, %v4902
        %v4941 = vpop.permute.xlu0 %4940
        %4944 = vset.pattern.permute.xlu0 0
        %4945 = vperm.xlu0 %4944, %v4903
        %v4946 = vpop.permute.xlu0 %4945
        %4949 = vset.pattern.permute.xlu0 0
        %4950 = vperm.xlu0 %4949, %v4904
        %v4951 = vpop.permute.xlu0 %4950
        %4954 = vset.pattern.permute.xlu0 0
        %4955 = vperm.xlu0 %4954, %v4905
        %v4956 = vpop.permute.xlu0 %4955
        %4959 = vset.pattern.permute.xlu0 0
        %4960 = vperm.xlu0 %4959, %v4906
        %v4961 = vpop.permute.xlu0 %4960
        %4964 = vset.pattern.permute.xlu0 0
        %4965 = vperm.xlu0 %4964, %v4907
        %v4966 = vpop.permute.xlu0 %4965
        %4969 = vset.pattern.permute.xlu0 0
        %4970 = vperm.xlu0 %4969, %v4908
        %v4971 = vpop.permute.xlu0 %4970
        %4974 = vset.pattern.permute.xlu0 0
        %4975 = vperm.xlu0 %4974, %v4909
        %v4976 = vpop.permute.xlu0 %4975
        %4979 = vset.pattern.permute.xlu0 0
        %4980 = vperm.xlu0 %4979, %v4910
        %v4981 = vpop.permute.xlu0 %4980
        %4984 = vset.pattern.permute.xlu0 0
        %4985 = vperm.xlu0 %4984, %v4911
        %v4986 = vpop.permute.xlu0 %4985
        %4989 = vset.pattern.permute.xlu0 0
        %4990 = vperm.xlu0 %4989, %v4912
        %v4991 = vpop.permute.xlu0 %4990
        %v4993 = vmul.f32 %v4881, %v4916
        %v4994 = vmul.f32 %v4882, %v4921
        %v4995 = vmul.f32 %v4883, %v4926
        %v4996 = vmul.f32 %v4884, %v4931
        %v4997 = vmul.f32 %v4885, %v4936
        %v4998 = vmul.f32 %v4886, %v4941
        %v4999 = vmul.f32 %v4887, %v4946
        %v5000 = vmul.f32 %v4888, %v4951
        %v5001 = vmul.f32 %v4889, %v4956
        %v5002 = vmul.f32 %v4890, %v4961
        %v5003 = vmul.f32 %v4891, %v4966
        %v5004 = vmul.f32 %v4892, %v4971
        %v5005 = vmul.f32 %v4893, %v4976
        %v5006 = vmul.f32 %v4894, %v4981
        %v5007 = vmul.f32 %v4895, %v4986
        %v5008 = vmul.f32 %v4896, %v4991
        %v5009 = vsel %vm379, %v4993, 0.0
        %v5010 = vsel %vm379, %v4994, 0.0
        %v5011 = vadd.f32 %v5009, %v5010
        %v5012 = vsel %vm379, %v4995, 0.0
        %v5013 = vadd.f32 %v5011, %v5012
        %v5014 = vsel %vm379, %v4996, 0.0
        %v5015 = vadd.f32 %v5013, %v5014
        %v5016 = vsel %vm379, %v4997, 0.0
        %v5017 = vadd.f32 %v5015, %v5016
        %v5018 = vsel %vm379, %v4998, 0.0
        %v5019 = vadd.f32 %v5017, %v5018
        %v5020 = vsel %vm379, %v4999, 0.0
        %v5021 = vadd.f32 %v5019, %v5020
        %v5022 = vsel %vm379, %v5000, 0.0
        %v5023 = vadd.f32 %v5021, %v5022
        %v5024 = vsel %vm379, %v5001, 0.0
        %v5025 = vadd.f32 %v5023, %v5024
        %v5026 = vsel %vm379, %v5002, 0.0
        %v5027 = vadd.f32 %v5025, %v5026
        %v5028 = vsel %vm379, %v5003, 0.0
        %v5029 = vadd.f32 %v5027, %v5028
        %v5030 = vsel %vm379, %v5004, 0.0
        %v5031 = vadd.f32 %v5029, %v5030
        %v5032 = vsel %vm379, %v5005, 0.0
        %v5033 = vadd.f32 %v5031, %v5032
        %v5034 = vsel %vm379, %v5006, 0.0
        %v5035 = vadd.f32 %v5033, %v5034
        %v5036 = vsel %vm379, %v5007, 0.0
        %v5037 = vadd.f32 %v5035, %v5036
        %v5038 = vsel %vm379, %v5008, 0.0
        %v5039 = vadd.f32 %v5037, %v5038
        %v5040 = vrot.slane %v5039, 4
        %v5041 = vadd.f32 %v5039, %v5040
        %v5042 = vrot.slane %v5041, 2
        %v5043 = vadd.f32 %v5041, %v5042
        %v5044 = vrot.slane %v5043, 1
        %v5045 = vadd.f32 %v5043, %v5044
        %v5046 = vadd.f32 %v2589, %v5045
        %v5047 = vmul.f32 %v4993, %v4993
        %v5048 = vmul.f32 %v4994, %v4994
        %v5049 = vmul.f32 %v4995, %v4995
        %v5050 = vmul.f32 %v4996, %v4996
        %v5051 = vmul.f32 %v4997, %v4997
        %v5052 = vmul.f32 %v4998, %v4998
        %v5053 = vmul.f32 %v4999, %v4999
        %v5054 = vmul.f32 %v5000, %v5000
        %v5055 = vmul.f32 %v5001, %v5001
        %v5056 = vmul.f32 %v5002, %v5002
        %v5057 = vmul.f32 %v5003, %v5003
        %v5058 = vmul.f32 %v5004, %v5004
        %v5059 = vmul.f32 %v5005, %v5005
        %v5060 = vmul.f32 %v5006, %v5006
        %v5061 = vmul.f32 %v5007, %v5007
        %v5062 = vmul.f32 %v5008, %v5008
        %v5063 = vsel %vm379, %v5047, 0.0
        %v5064 = vsel %vm379, %v5048, 0.0
        %v5065 = vadd.f32 %v5063, %v5064
        %v5066 = vsel %vm379, %v5049, 0.0
        %v5067 = vadd.f32 %v5065, %v5066
        %v5068 = vsel %vm379, %v5050, 0.0
        %v5069 = vadd.f32 %v5067, %v5068
        %v5070 = vsel %vm379, %v5051, 0.0
        %v5071 = vadd.f32 %v5069, %v5070
        %v5072 = vsel %vm379, %v5052, 0.0
        %v5073 = vadd.f32 %v5071, %v5072
        %v5074 = vsel %vm379, %v5053, 0.0
        %v5075 = vadd.f32 %v5073, %v5074
        %v5076 = vsel %vm379, %v5054, 0.0
        %v5077 = vadd.f32 %v5075, %v5076
        %v5078 = vsel %vm379, %v5055, 0.0
        %v5079 = vadd.f32 %v5077, %v5078
        %v5080 = vsel %vm379, %v5056, 0.0
        %v5081 = vadd.f32 %v5079, %v5080
        %v5082 = vsel %vm379, %v5057, 0.0
        %v5083 = vadd.f32 %v5081, %v5082
        %v5084 = vsel %vm379, %v5058, 0.0
        %v5085 = vadd.f32 %v5083, %v5084
        %v5086 = vsel %vm379, %v5059, 0.0
        %v5087 = vadd.f32 %v5085, %v5086
        %v5088 = vsel %vm379, %v5060, 0.0
        %v5089 = vadd.f32 %v5087, %v5088
        %v5090 = vsel %vm379, %v5061, 0.0
        %v5091 = vadd.f32 %v5089, %v5090
        %v5092 = vsel %vm379, %v5062, 0.0
        %v5093 = vadd.f32 %v5091, %v5092
        %v5094 = vrot.slane %v5093, 4
        %v5095 = vadd.f32 %v5093, %v5094
        %v5096 = vrot.slane %v5095, 2
        %v5097 = vadd.f32 %v5095, %v5096
        %v5098 = vrot.slane %v5097, 1
        %v5099 = vadd.f32 %v5097, %v5098
        %v5100 = vadd.f32 %v2643, %v5099
        %v5101 = vpack.c.bf16 %v4994, %v4993
        %v5102 = vpack.c.bf16 %v4996, %v4995
        %v5103 = vpack.c.bf16 %v4998, %v4997
        %v5104 = vpack.c.bf16 %v5000, %v4999
        %v5105 = vpack.c.bf16 %v5002, %v5001
        %v5106 = vpack.c.bf16 %v5004, %v5003
        %v5107 = vpack.c.bf16 %v5006, %v5005
        %v5108 = vpack.c.bf16 %v5008, %v5007
        %v5117 = vunpack.c.l.b16 %v5101
        %v5118 = vunpack.c.h.b16 %v5101
        %v5119 = vunpack.c.l.b16 %v5102
        %v5120 = vunpack.c.h.b16 %v5102
        %v5121 = vunpack.c.l.b16 %v5103
        %v5122 = vunpack.c.h.b16 %v5103
        %v5123 = vunpack.c.l.b16 %v5104
        %v5124 = vunpack.c.h.b16 %v5104
        %v5125 = vunpack.c.l.b16 %v5105
        %v5126 = vunpack.c.h.b16 %v5105
        %v5127 = vunpack.c.l.b16 %v5106
        %v5128 = vunpack.c.h.b16 %v5106
        %v5129 = vunpack.c.l.b16 %v5107
        %v5130 = vunpack.c.h.b16 %v5107
        %v5131 = vunpack.c.l.b16 %v5108
        %v5132 = vunpack.c.h.b16 %v5108
        %v5133 = vpack.c.b16 %v5117, %v5117
        %v5134 = vpack.c.b16 %v5118, %v5118
        %v5135 = vpack.c.b16 %v5119, %v5119
        %v5136 = vpack.c.b16 %v5120, %v5120
        %v5137 = vpack.c.b16 %v5121, %v5121
        %v5138 = vpack.c.b16 %v5122, %v5122
        %v5139 = vpack.c.b16 %v5123, %v5123
        %v5140 = vpack.c.b16 %v5124, %v5124
        %v5141 = vpack.c.b16 %v5125, %v5125
        %v5142 = vpack.c.b16 %v5126, %v5126
        %v5143 = vpack.c.b16 %v5127, %v5127
        %v5144 = vpack.c.b16 %v5128, %v5128
        %v5145 = vpack.c.b16 %v5129, %v5129
        %v5146 = vpack.c.b16 %v5130, %v5130
        %v5147 = vpack.c.b16 %v5131, %v5131
        %v5148 = vpack.c.b16 %v5132, %v5132
        %5165 = vst.msk [vmem:[%s243 + $0x50] sm:$0xf] %vm245, %v5133
        %5166 = vst.msk [vmem:[%s243 + $0x54] sm:$0xf] %vm245, %v5134
        %5167 = vst.msk [vmem:[%s243 + $0x58] sm:$0xf] %vm245, %v5135
        %5168 = vst.msk [vmem:[%s243 + $0x5c] sm:$0xf] %vm245, %v5136
        %5169 = vst.msk [vmem:[%s243 + $0x60] sm:$0xf] %vm245, %v5137
        %5170 = vst.msk [vmem:[%s243 + $0x64] sm:$0xf] %vm245, %v5138
        %5171 = vst.msk [vmem:[%s243 + $0x68] sm:$0xf] %vm245, %v5139
        %5172 = vst.msk [vmem:[%s243 + $0x6c] sm:$0xf] %vm245, %v5140
        %5173 = vst.msk [vmem:[%s243 + $0x70] sm:$0xf] %vm245, %v5141
        %5174 = vst.msk [vmem:[%s243 + $0x74] sm:$0xf] %vm245, %v5142
        %5175 = vst.msk [vmem:[%s243 + $0x78] sm:$0xf] %vm245, %v5143
        %5176 = vst.msk [vmem:[%s243 + $0x7c] sm:$0xf] %vm245, %v5144
        %5177 = vst.msk [vmem:[%s243 + $0x80] sm:$0xf] %vm245, %v5145
        %5178 = vst.msk [vmem:[%s243 + $0x84] sm:$0xf] %vm245, %v5146
        %5179 = vst.msk [vmem:[%s243 + $0x88] sm:$0xf] %vm245, %v5147
        %5180 = vst.msk [vmem:[%s243 + $0x8c] sm:$0xf] %vm245, %v5148
        %v5181 = vld [vmem:[%s1] sm:$0xf]
        %v5182 = vld [vmem:[%s1 + $0x4] sm:$0xf]
        %v5183 = vld [vmem:[%s1 + $0x8] sm:$0xf]
        %v5184 = vld [vmem:[%s1 + $0xc] sm:$0xf]
        %v5185 = vld [vmem:[%s1 + $0x10] sm:$0xf]
        %v5186 = vld [vmem:[%s1 + $0x14] sm:$0xf]
        %v5187 = vld [vmem:[%s1 + $0x18] sm:$0xf]
        %v5188 = vld [vmem:[%s1 + $0x1c] sm:$0xf]
        %v5189 = vld [vmem:[%s238 + $0x84] sm:$0xc]
        %v5190 = vld [vmem:[%s238 + $0x88] sm:$0xf]
        %v5191 = vld [vmem:[%s238 + $0x8c] sm:$0xf]
        %v5192 = vld [vmem:[%s238 + $0x90] sm:$0xf]
        %v5193 = vld [vmem:[%s238 + $0x94] sm:$0x7]
        %v5194 = vld [vmem:[%s1 + $0x20] sm:$0xf]
        %v5195 = vld [vmem:[%s1 + $0x24] sm:$0xf]
        %v5196 = vld [vmem:[%s1 + $0x28] sm:$0xf]
        %v5197 = vld [vmem:[%s1 + $0x2c] sm:$0xf]
        %v5198 = vld [vmem:[%s1 + $0x30] sm:$0xf]
        %v5199 = vld [vmem:[%s1 + $0x34] sm:$0xf]
        %v5200 = vld [vmem:[%s1 + $0x38] sm:$0xf]
        %v5201 = vld [vmem:[%s1 + $0x3c] sm:$0xf]
        %v5202 = vld [vmem:[%s238 + $0x84] sm:$0x8]
        %v5208 = vunpack.c.l.b16 %v5202
        %v5209 = vunpack.c.l.b16 %v5190
        %v5210 = vunpack.c.l.b16 %v5191
        %v5211 = vunpack.c.l.b16 %v5192
        %v5212 = vunpack.c.l.b16 %v5193
        %v5213 = vpack.c.b16 %v5209, %v5208
        %v5214 = vpack.c.b16 %v5211, %v5210
        %v5215 = vpack.c.b16 %v5212, %v5212
        %v5216 = vrot.slane %v5213, 3
        %v5217 = vrot.slane %v5214, 3
        %v5218 = vsel %vm337, %v5216, %v5217
        %v5219 = vrot.slane %v5215, 3
        %v5220 = vsel %vm337, %v5217, %v5219
        %v5229 = vunpack.c.l.b16 %v5194
        %v5230 = vunpack.c.l.b16 %v5195
        %v5231 = vunpack.c.l.b16 %v5196
        %v5232 = vunpack.c.l.b16 %v5197
        %v5233 = vunpack.c.l.b16 %v5198
        %v5234 = vunpack.c.l.b16 %v5199
        %v5235 = vunpack.c.l.b16 %v5200
        %v5236 = vunpack.c.l.b16 %v5201
        %v5237 = vpack.c.b16 %v5230, %v5229
        %v5238 = vpack.c.b16 %v5232, %v5231
        %v5239 = vpack.c.b16 %v5234, %v5233
        %v5240 = vpack.c.b16 %v5236, %v5235
        %v5246 = vsel %vm379, %v5218, 0
        %v5249 = vsel %vm379, %v5220, 0
        %5251 = vmatprep.subr.bf16.mxu0 0
        %5252 = vmatpush1.bf16.msra.mxu0 0
        %5253 = vmatprep.subr.bf16.mxu0 0
        %5254 = vmatpush1.bf16.msra.mxu0 0
        %5255 = vmatprep.subr.bf16.mxu0 0
        %5256 = vmatpush1.bf16.msra.mxu0 0
        %5257 = vmatprep.subr.bf16.mxu0 0
        %5258 = vmatpush1.bf16.msra.mxu0 0
        %5259 = vmatprep.subr.bf16.mxu0 0
        %5260 = vmatpush1.bf16.msra.mxu0 %v5240
        %5261 = vmatprep.subr.bf16.mxu0 0
        %5262 = vmatpush1.bf16.msra.mxu0 %v5239
        %5263 = vmatprep.subr.bf16.mxu0 0
        %5264 = vmatpush1.bf16.msra.mxu0 %v5238
        %5265 = vmatprep.subr.bf16.mxu0 0
        %5266 = vmatpush1.bf16.msra.mxu0 %v5237
        %5267 = vmatprep.subr.bf16.mxu0 0
        %5268 = vmatpush2.bf16.msra.mxu0 0
        %5269 = vmatprep.subr.bf16.mxu0 0
        %5270 = vmatpush2.bf16.msra.mxu0 0
        %5271 = vmatprep.subr.bf16.mxu0 0
        %5272 = vmatpush2.bf16.msra.mxu0 0
        %5273 = vmatprep.subr.bf16.mxu0 0
        %5274 = vmatpush2.bf16.msra.mxu0 0
        %5275 = vmatprep.subr.bf16.mxu0 0
        %5276 = vmatpush2.bf16.msra.mxu0 0
        %5277 = vmatprep.subr.bf16.mxu0 0
        %5278 = vmatpush2.bf16.msra.mxu0 0
        %5279 = vmatprep.subr.bf16.mxu0 0
        %5280 = vmatpush2.bf16.msra.mxu0 0
        %5281 = vmatprep.subr.bf16.mxu0 0
        %5282 = vmatpush2.bf16.msra.mxu0 0
        %5283 = vmatprep.mubr.bf16.mxu0 0
        %5284 = vmatmul.mubr.bf16.gmra.mxu0 %v5246
        %v5285 = vpop.f32.mrf.mxu0
        %v5286 = vadd.f32 0.0, %v5285
        %v5287 = vpop.f32.mrf.mxu0
        %v5288 = vpop.f32.mrf.mxu0
        %v5289 = vadd.f32 0.0, %v5288
        %v5290 = vpop.f32.mrf.mxu0
        %5291 = vmatprep.mubr.bf16.mxu0 0
        %5292 = vmatmul.mubr.bf16.gmra.mxu0 %v5249
        %v5293 = vpop.f32.mrf.mxu0
        %v5294 = vadd.f32 0.0, %v5293
        %v5295 = vpop.f32.mrf.mxu0
        %v5296 = vpop.f32.mrf.mxu0
        %v5297 = vadd.f32 0.0, %v5296
        %v5298 = vpop.f32.mrf.mxu0
        %5299 = vdwg.mxu0
        %v5301 = vunpack.c.l.b16 %v5189
        %v5302 = vpack.c.b16 %v5209, %v5301
        %v5304 = vshrl.u32 %v5302, 16
        %v5306 = vrot.slane %v5304, 2
        %v5307 = vshll.u32 %v5302, 16
        %v5309 = vrot.slane %v5307, 3
        %v5310 = vor.u32 %v5306, %v5309
        %v5312 = vshrl.u32 %v5214, 16
        %v5314 = vrot.slane %v5312, 2
        %v5315 = vshll.u32 %v5214, 16
        %v5317 = vrot.slane %v5315, 3
        %v5318 = vor.u32 %v5314, %v5317
        %v5319 = vsel %vm504, %v5310, %v5318
        %v5321 = vshrl.u32 %v5215, 16
        %v5323 = vrot.slane %v5321, 2
        %v5324 = vshll.u32 %v5215, 16
        %v5326 = vrot.slane %v5324, 3
        %v5327 = vor.u32 %v5323, %v5326
        %v5328 = vsel %vm504, %v5318, %v5327
        %v5337 = vunpack.c.l.b16 %v5181
        %v5338 = vunpack.c.l.b16 %v5182
        %v5339 = vunpack.c.l.b16 %v5183
        %v5340 = vunpack.c.l.b16 %v5184
        %v5341 = vunpack.c.l.b16 %v5185
        %v5342 = vunpack.c.l.b16 %v5186
        %v5343 = vunpack.c.l.b16 %v5187
        %v5344 = vunpack.c.l.b16 %v5188
        %v5345 = vpack.c.b16 %v5338, %v5337
        %v5346 = vpack.c.b16 %v5340, %v5339
        %v5347 = vpack.c.b16 %v5342, %v5341
        %v5348 = vpack.c.b16 %v5344, %v5343
        %v5354 = vsel %vm379, %v5319, 0
        %v5357 = vsel %vm379, %v5328, 0
        %5359 = vmatprep.subr.bf16.mxu0 0
        %5360 = vmatpush1.bf16.msra.mxu0 0
        %5361 = vmatprep.subr.bf16.mxu0 0
        %5362 = vmatpush1.bf16.msra.mxu0 0
        %5363 = vmatprep.subr.bf16.mxu0 0
        %5364 = vmatpush1.bf16.msra.mxu0 0
        %5365 = vmatprep.subr.bf16.mxu0 0
        %5366 = vmatpush1.bf16.msra.mxu0 0
        %5367 = vmatprep.subr.bf16.mxu0 0
        %5368 = vmatpush1.bf16.msra.mxu0 %v5348
        %5369 = vmatprep.subr.bf16.mxu0 0
        %5370 = vmatpush1.bf16.msra.mxu0 %v5347
        %5371 = vmatprep.subr.bf16.mxu0 0
        %5372 = vmatpush1.bf16.msra.mxu0 %v5346
        %5373 = vmatprep.subr.bf16.mxu0 0
        %5374 = vmatpush1.bf16.msra.mxu0 %v5345
        %5375 = vmatprep.subr.bf16.mxu0 0
        %5376 = vmatpush2.bf16.msra.mxu0 0
        %5377 = vmatprep.subr.bf16.mxu0 0
        %5378 = vmatpush2.bf16.msra.mxu0 0
        %5379 = vmatprep.subr.bf16.mxu0 0
        %5380 = vmatpush2.bf16.msra.mxu0 0
        %5381 = vmatprep.subr.bf16.mxu0 0
        %5382 = vmatpush2.bf16.msra.mxu0 0
        %5383 = vmatprep.subr.bf16.mxu0 0
        %5384 = vmatpush2.bf16.msra.mxu0 0
        %5385 = vmatprep.subr.bf16.mxu0 0
        %5386 = vmatpush2.bf16.msra.mxu0 0
        %5387 = vmatprep.subr.bf16.mxu0 0
        %5388 = vmatpush2.bf16.msra.mxu0 0
        %5389 = vmatprep.subr.bf16.mxu0 0
        %5390 = vmatpush2.bf16.msra.mxu0 0
        %5391 = vmatprep.mubr.bf16.mxu0 0
        %5392 = vmatmul.mubr.bf16.gmra.mxu0 %v5354
        %v5393 = vpop.f32.mrf.mxu0
        %v5394 = vadd.f32 %v5286, %v5393
        %v5395 = vpop.f32.mrf.mxu0
        %v5396 = vpop.f32.mrf.mxu0
        %v5397 = vadd.f32 %v5289, %v5396
        %v5398 = vpop.f32.mrf.mxu0
        %5399 = vmatprep.mubr.bf16.mxu0 0
        %5400 = vmatmul.mubr.bf16.gmra.mxu0 %v5357
        %v5401 = vpop.f32.mrf.mxu0
        %v5402 = vadd.f32 %v5294, %v5401
        %v5403 = vpop.f32.mrf.mxu0
        %v5404 = vpop.f32.mrf.mxu0
        %v5405 = vadd.f32 %v5297, %v5404
        %v5406 = vpop.f32.mrf.mxu0
        %5407 = vdwg.mxu0
        %v5408 = vld [vmem:[%s1 + $0x40] sm:$0xf]
        %v5409 = vld [vmem:[%s1 + $0x44] sm:$0xf]
        %v5410 = vld [vmem:[%s1 + $0x48] sm:$0xf]
        %v5411 = vld [vmem:[%s1 + $0x4c] sm:$0xf]
        %v5412 = vld [vmem:[%s1 + $0x50] sm:$0xf]
        %v5413 = vld [vmem:[%s1 + $0x54] sm:$0xf]
        %v5414 = vld [vmem:[%s1 + $0x58] sm:$0xf]
        %v5415 = vld [vmem:[%s1 + $0x5c] sm:$0xf]
        %v5416 = vld [vmem:[%s238 + $0x94] sm:$0xf]
        %v5418 = vunpack.c.l.b16 %v5416
        %v5419 = vpack.c.b16 %v5418, %v5418
        %v5421 = vshrl.u32 %v5213, 16
        %v5423 = vrot.slane %v5421, 3
        %v5424 = vshll.u32 %v5213, 16
        %v5426 = vrot.slane %v5424, 4
        %v5427 = vor.u32 %v5423, %v5426
        %v5428 = vrot.slane %v5312, 3
        %v5429 = vrot.slane %v5315, 4
        %v5430 = vor.u32 %v5428, %v5429
        %v5431 = vsel %vm742, %v5427, %v5430
        %v5433 = vshrl.u32 %v5419, 16
        %v5435 = vrot.slane %v5433, 3
        %v5436 = vshll.u32 %v5419, 16
        %v5438 = vrot.slane %v5436, 4
        %v5439 = vor.u32 %v5435, %v5438
        %v5440 = vsel %vm742, %v5430, %v5439
        %v5449 = vunpack.c.l.b16 %v5408
        %v5450 = vunpack.c.l.b16 %v5409
        %v5451 = vunpack.c.l.b16 %v5410
        %v5452 = vunpack.c.l.b16 %v5411
        %v5453 = vunpack.c.l.b16 %v5412
        %v5454 = vunpack.c.l.b16 %v5413
        %v5455 = vunpack.c.l.b16 %v5414
        %v5456 = vunpack.c.l.b16 %v5415
        %v5457 = vpack.c.b16 %v5450, %v5449
        %v5458 = vpack.c.b16 %v5452, %v5451
        %v5459 = vpack.c.b16 %v5454, %v5453
        %v5460 = vpack.c.b16 %v5456, %v5455
        %v5466 = vsel %vm379, %v5431, 0
        %v5469 = vsel %vm379, %v5440, 0
        %5471 = vmatprep.subr.bf16.mxu0 0
        %5472 = vmatpush1.bf16.msra.mxu0 0
        %5473 = vmatprep.subr.bf16.mxu0 0
        %5474 = vmatpush1.bf16.msra.mxu0 0
        %5475 = vmatprep.subr.bf16.mxu0 0
        %5476 = vmatpush1.bf16.msra.mxu0 0
        %5477 = vmatprep.subr.bf16.mxu0 0
        %5478 = vmatpush1.bf16.msra.mxu0 0
        %5479 = vmatprep.subr.bf16.mxu0 0
        %5480 = vmatpush1.bf16.msra.mxu0 %v5460
        %5481 = vmatprep.subr.bf16.mxu0 0
        %5482 = vmatpush1.bf16.msra.mxu0 %v5459
        %5483 = vmatprep.subr.bf16.mxu0 0
        %5484 = vmatpush1.bf16.msra.mxu0 %v5458
        %5485 = vmatprep.subr.bf16.mxu0 0
        %5486 = vmatpush1.bf16.msra.mxu0 %v5457
        %5487 = vmatprep.subr.bf16.mxu0 0
        %5488 = vmatpush2.bf16.msra.mxu0 0
        %5489 = vmatprep.subr.bf16.mxu0 0
        %5490 = vmatpush2.bf16.msra.mxu0 0
        %5491 = vmatprep.subr.bf16.mxu0 0
        %5492 = vmatpush2.bf16.msra.mxu0 0
        %5493 = vmatprep.subr.bf16.mxu0 0
        %5494 = vmatpush2.bf16.msra.mxu0 0
        %5495 = vmatprep.subr.bf16.mxu0 0
        %5496 = vmatpush2.bf16.msra.mxu0 0
        %5497 = vmatprep.subr.bf16.mxu0 0
        %5498 = vmatpush2.bf16.msra.mxu0 0
        %5499 = vmatprep.subr.bf16.mxu0 0
        %5500 = vmatpush2.bf16.msra.mxu0 0
        %5501 = vmatprep.subr.bf16.mxu0 0
        %5502 = vmatpush2.bf16.msra.mxu0 0
        %5503 = vmatprep.mubr.bf16.mxu0 0
        %5504 = vmatmul.mubr.bf16.gmra.mxu0 %v5466
        %v5505 = vpop.f32.mrf.mxu0
        %v5506 = vadd.f32 0.0, %v5505
        %v5507 = vpop.f32.mrf.mxu0
        %v5508 = vpop.f32.mrf.mxu0
        %v5509 = vadd.f32 0.0, %v5508
        %v5510 = vpop.f32.mrf.mxu0
        %5511 = vmatprep.mubr.bf16.mxu0 0
        %5512 = vmatmul.mubr.bf16.gmra.mxu0 %v5469
        %v5513 = vpop.f32.mrf.mxu0
        %v5514 = vadd.f32 0.0, %v5513
        %v5515 = vpop.f32.mrf.mxu0
        %v5516 = vpop.f32.mrf.mxu0
        %v5517 = vadd.f32 0.0, %v5516
        %v5518 = vpop.f32.mrf.mxu0
        %5519 = vdwg.mxu0
        %v5520 = vadd.f32 %v5394, %v5506
        %v5521 = vadd.f32 %v5397, %v5509
        %v5522 = vadd.f32 %v5402, %v5514
        %v5523 = vadd.f32 %v5405, %v5517
        %v5524 = vld [vmem:[%s1 + $0x60] sm:$0xf]
        %v5525 = vld [vmem:[%s1 + $0x64] sm:$0xf]
        %v5526 = vld [vmem:[%s1 + $0x68] sm:$0xf]
        %v5527 = vld [vmem:[%s1 + $0x6c] sm:$0xf]
        %v5528 = vld [vmem:[%s1 + $0x70] sm:$0xf]
        %v5529 = vld [vmem:[%s1 + $0x74] sm:$0xf]
        %v5530 = vld [vmem:[%s1 + $0x78] sm:$0xf]
        %v5531 = vld [vmem:[%s1 + $0x7c] sm:$0xf]
        %v5532 = vld [vmem:[%s238 + $0x8c] sm:$0x8]
        %v5533 = vld [vmem:[%s238 + $0x90] sm:$0xf]
        %v5534 = vld [vmem:[%s238 + $0x94] sm:$0xf]
        %v5535 = vld [vmem:[%s238 + $0x98] sm:$0xf]
        %v5536 = vld [vmem:[%s238 + $0x9c] sm:$0xf]
        %v5542 = vunpack.c.l.b16 %v5532
        %v5543 = vunpack.c.l.b16 %v5533
        %v5544 = vunpack.c.l.b16 %v5534
        %v5545 = vunpack.c.l.b16 %v5535
        %v5546 = vunpack.c.l.b16 %v5536
        %v5547 = vpack.c.b16 %v5543, %v5542
        %v5548 = vpack.c.b16 %v5545, %v5544
        %v5549 = vpack.c.b16 %v5546, %v5546
        %v5551 = vshrl.u32 %v5547, 16
        %v5553 = vrot.slane %v5551, 3
        %v5554 = vshll.u32 %v5547, 16
        %v5556 = vrot.slane %v5554, 4
        %v5557 = vor.u32 %v5553, %v5556
        %v5559 = vshrl.u32 %v5548, 16
        %v5561 = vrot.slane %v5559, 3
        %v5562 = vshll.u32 %v5548, 16
        %v5564 = vrot.slane %v5562, 4
        %v5565 = vor.u32 %v5561, %v5564
        %v5566 = vsel %vm742, %v5557, %v5565
        %v5568 = vshrl.u32 %v5549, 16
        %v5570 = vrot.slane %v5568, 3
        %v5571 = vshll.u32 %v5549, 16
        %v5573 = vrot.slane %v5571, 4
        %v5574 = vor.u32 %v5570, %v5573
        %v5575 = vsel %vm742, %v5565, %v5574
        %v5584 = vunpack.c.l.b16 %v5524
        %v5585 = vunpack.c.l.b16 %v5525
        %v5586 = vunpack.c.l.b16 %v5526
        %v5587 = vunpack.c.l.b16 %v5527
        %v5588 = vunpack.c.l.b16 %v5528
        %v5589 = vunpack.c.l.b16 %v5529
        %v5590 = vunpack.c.l.b16 %v5530
        %v5591 = vunpack.c.l.b16 %v5531
        %v5592 = vpack.c.b16 %v5585, %v5584
        %v5593 = vpack.c.b16 %v5587, %v5586
        %v5594 = vpack.c.b16 %v5589, %v5588
        %v5595 = vpack.c.b16 %v5591, %v5590
        %v5601 = vsel %vm379, %v5566, 0
        %v5604 = vsel %vm379, %v5575, 0
        %5606 = vmatprep.subr.bf16.mxu0 0
        %5607 = vmatpush1.bf16.msra.mxu0 0
        %5608 = vmatprep.subr.bf16.mxu0 0
        %5609 = vmatpush1.bf16.msra.mxu0 0
        %5610 = vmatprep.subr.bf16.mxu0 0
        %5611 = vmatpush1.bf16.msra.mxu0 0
        %5612 = vmatprep.subr.bf16.mxu0 0
        %5613 = vmatpush1.bf16.msra.mxu0 0
        %5614 = vmatprep.subr.bf16.mxu0 0
        %5615 = vmatpush1.bf16.msra.mxu0 %v5595
        %5616 = vmatprep.subr.bf16.mxu0 0
        %5617 = vmatpush1.bf16.msra.mxu0 %v5594
        %5618 = vmatprep.subr.bf16.mxu0 0
        %5619 = vmatpush1.bf16.msra.mxu0 %v5593
        %5620 = vmatprep.subr.bf16.mxu0 0
        %5621 = vmatpush1.bf16.msra.mxu0 %v5592
        %5622 = vmatprep.subr.bf16.mxu0 0
        %5623 = vmatpush2.bf16.msra.mxu0 0
        %5624 = vmatprep.subr.bf16.mxu0 0
        %5625 = vmatpush2.bf16.msra.mxu0 0
        %5626 = vmatprep.subr.bf16.mxu0 0
        %5627 = vmatpush2.bf16.msra.mxu0 0
        %5628 = vmatprep.subr.bf16.mxu0 0
        %5629 = vmatpush2.bf16.msra.mxu0 0
        %5630 = vmatprep.subr.bf16.mxu0 0
        %5631 = vmatpush2.bf16.msra.mxu0 0
        %5632 = vmatprep.subr.bf16.mxu0 0
        %5633 = vmatpush2.bf16.msra.mxu0 0
        %5634 = vmatprep.subr.bf16.mxu0 0
        %5635 = vmatpush2.bf16.msra.mxu0 0
        %5636 = vmatprep.subr.bf16.mxu0 0
        %5637 = vmatpush2.bf16.msra.mxu0 0
        %5638 = vmatprep.mubr.bf16.mxu0 0
        %5639 = vmatmul.mubr.bf16.gmra.mxu0 %v5601
        %v5640 = vpop.f32.mrf.mxu0
        %v5641 = vadd.f32 0.0, %v5640
        %v5642 = vpop.f32.mrf.mxu0
        %v5643 = vpop.f32.mrf.mxu0
        %v5644 = vadd.f32 0.0, %v5643
        %v5645 = vpop.f32.mrf.mxu0
        %5646 = vmatprep.mubr.bf16.mxu0 0
        %5647 = vmatmul.mubr.bf16.gmra.mxu0 %v5604
        %v5648 = vpop.f32.mrf.mxu0
        %v5649 = vadd.f32 0.0, %v5648
        %v5650 = vpop.f32.mrf.mxu0
        %v5651 = vpop.f32.mrf.mxu0
        %v5652 = vadd.f32 0.0, %v5651
        %v5653 = vpop.f32.mrf.mxu0
        %5654 = vdwg.mxu0
        %v5655 = vadd.f32 %v5520, %v5641
        %v5656 = vadd.f32 %v5521, %v5644
        %v5657 = vadd.f32 %v5522, %v5649
        %v5658 = vadd.f32 %v5523, %v5652
        %v5659 = vld [vmem:[%s1 + $0x80] sm:$0xf]
        %v5660 = vld [vmem:[%s1 + $0x84] sm:$0xf]
        %v5661 = vld [vmem:[%s1 + $0x88] sm:$0xf]
        %v5662 = vld [vmem:[%s1 + $0x8c] sm:$0xf]
        %v5663 = vld [vmem:[%s1 + $0x90] sm:$0xf]
        %v5664 = vld [vmem:[%s1 + $0x94] sm:$0xf]
        %v5665 = vld [vmem:[%s1 + $0x98] sm:$0xf]
        %v5666 = vld [vmem:[%s1 + $0x9c] sm:$0xf]
        %v5667 = vpack.c.b16 %v5544, %v5543
        %v5668 = vpack.c.b16 %v5546, %v5545
        %v5677 = vunpack.c.l.b16 %v5659
        %v5678 = vunpack.c.l.b16 %v5660
        %v5679 = vunpack.c.l.b16 %v5661
        %v5680 = vunpack.c.l.b16 %v5662
        %v5681 = vunpack.c.l.b16 %v5663
        %v5682 = vunpack.c.l.b16 %v5664
        %v5683 = vunpack.c.l.b16 %v5665
        %v5684 = vunpack.c.l.b16 %v5666
        %v5685 = vpack.c.b16 %v5678, %v5677
        %v5686 = vpack.c.b16 %v5680, %v5679
        %v5687 = vpack.c.b16 %v5682, %v5681
        %v5688 = vpack.c.b16 %v5684, %v5683
        %v5694 = vsel %vm379, %v5667, 0
        %v5697 = vsel %vm379, %v5668, 0
        %5699 = vmatprep.subr.bf16.mxu0 0
        %5700 = vmatpush1.bf16.msra.mxu0 0
        %5701 = vmatprep.subr.bf16.mxu0 0
        %5702 = vmatpush1.bf16.msra.mxu0 0
        %5703 = vmatprep.subr.bf16.mxu0 0
        %5704 = vmatpush1.bf16.msra.mxu0 0
        %5705 = vmatprep.subr.bf16.mxu0 0
        %5706 = vmatpush1.bf16.msra.mxu0 0
        %5707 = vmatprep.subr.bf16.mxu0 0
        %5708 = vmatpush1.bf16.msra.mxu0 %v5688
        %5709 = vmatprep.subr.bf16.mxu0 0
        %5710 = vmatpush1.bf16.msra.mxu0 %v5687
        %5711 = vmatprep.subr.bf16.mxu0 0
        %5712 = vmatpush1.bf16.msra.mxu0 %v5686
        %5713 = vmatprep.subr.bf16.mxu0 0
        %5714 = vmatpush1.bf16.msra.mxu0 %v5685
        %5715 = vmatprep.subr.bf16.mxu0 0
        %5716 = vmatpush2.bf16.msra.mxu0 0
        %5717 = vmatprep.subr.bf16.mxu0 0
        %5718 = vmatpush2.bf16.msra.mxu0 0
        %5719 = vmatprep.subr.bf16.mxu0 0
        %5720 = vmatpush2.bf16.msra.mxu0 0
        %5721 = vmatprep.subr.bf16.mxu0 0
        %5722 = vmatpush2.bf16.msra.mxu0 0
        %5723 = vmatprep.subr.bf16.mxu0 0
        %5724 = vmatpush2.bf16.msra.mxu0 0
        %5725 = vmatprep.subr.bf16.mxu0 0
        %5726 = vmatpush2.bf16.msra.mxu0 0
        %5727 = vmatprep.subr.bf16.mxu0 0
        %5728 = vmatpush2.bf16.msra.mxu0 0
        %5729 = vmatprep.subr.bf16.mxu0 0
        %5730 = vmatpush2.bf16.msra.mxu0 0
        %5731 = vmatprep.mubr.bf16.mxu0 0
        %5732 = vmatmul.mubr.bf16.gmra.mxu0 %v5694
        %v5733 = vpop.f32.mrf.mxu0
        %v5734 = vadd.f32 0.0, %v5733
        %v5735 = vpop.f32.mrf.mxu0
        %v5736 = vpop.f32.mrf.mxu0
        %v5737 = vadd.f32 0.0, %v5736
        %v5738 = vpop.f32.mrf.mxu0
        %5739 = vmatprep.mubr.bf16.mxu0 0
        %5740 = vmatmul.mubr.bf16.gmra.mxu0 %v5697
        %v5741 = vpop.f32.mrf.mxu0
        %v5742 = vadd.f32 0.0, %v5741
        %v5743 = vpop.f32.mrf.mxu0
        %v5744 = vpop.f32.mrf.mxu0
        %v5745 = vadd.f32 0.0, %v5744
        %v5746 = vpop.f32.mrf.mxu0
        %5747 = vdwg.mxu0
        %v5748 = vadd.f32 %v5655, %v5734
        %v5749 = vadd.f32 %v5656, %v5737
        %v5750 = vadd.f32 %v5657, %v5742
        %v5751 = vadd.f32 %v5658, %v5745
        %v5752 = vld [vmem:[%s1 + $0xa0] sm:$0xf]
        %v5753 = vld [vmem:[%s1 + $0xa4] sm:$0xf]
        %v5754 = vld [vmem:[%s1 + $0xa8] sm:$0xf]
        %v5755 = vld [vmem:[%s1 + $0xac] sm:$0xf]
        %v5756 = vld [vmem:[%s1 + $0xb0] sm:$0xf]
        %v5757 = vld [vmem:[%s1 + $0xb4] sm:$0xf]
        %v5758 = vld [vmem:[%s1 + $0xb8] sm:$0xf]
        %v5759 = vld [vmem:[%s1 + $0xbc] sm:$0xf]
        %v5760 = vld [vmem:[%s238 + $0x90] sm:$0xf]
        %v5761 = vld [vmem:[%s238 + $0x94] sm:$0xf]
        %v5762 = vld [vmem:[%s238 + $0x98] sm:$0xf]
        %v5763 = vld [vmem:[%s238 + $0x9c] sm:$0xf]
        %v5764 = vld [vmem:[%s238 + $0xa0] sm:$0x1]
        %v5770 = vunpack.c.l.b16 %v5760
        %v5771 = vunpack.c.l.b16 %v5761
        %v5772 = vunpack.c.l.b16 %v5762
        %v5773 = vunpack.c.l.b16 %v5763
        %v5774 = vunpack.c.l.b16 %v5764
        %v5775 = vpack.c.b16 %v5771, %v5770
        %v5776 = vpack.c.b16 %v5773, %v5772
        %v5777 = vpack.c.b16 %v5774, %v5774
        %v5779 = vshrl.u32 %v5775, 16
        %v5781 = vshll.u32 %v5775, 16
        %v5783 = vrot.slane %v5781, 1
        %v5784 = vor.u32 %v5779, %v5783
        %v5786 = vshll.u32 %v5776, 16
        %v5788 = vrot.slane %v5786, 1
        %v5789 = vsel %vm1503, %v5784, %v5788
        %v5790 = vshrl.u32 %v5776, 16
        %v5792 = vor.u32 %v5790, %v5788
        %v5794 = vshll.u32 %v5777, 16
        %v5796 = vrot.slane %v5794, 1
        %v5797 = vsel %vm1503, %v5792, %v5796
        %v5806 = vunpack.c.l.b16 %v5752
        %v5807 = vunpack.c.l.b16 %v5753
        %v5808 = vunpack.c.l.b16 %v5754
        %v5809 = vunpack.c.l.b16 %v5755
        %v5810 = vunpack.c.l.b16 %v5756
        %v5811 = vunpack.c.l.b16 %v5757
        %v5812 = vunpack.c.l.b16 %v5758
        %v5813 = vunpack.c.l.b16 %v5759
        %v5814 = vpack.c.b16 %v5807, %v5806
        %v5815 = vpack.c.b16 %v5809, %v5808
        %v5816 = vpack.c.b16 %v5811, %v5810
        %v5817 = vpack.c.b16 %v5813, %v5812
        %v5823 = vsel %vm379, %v5789, 0
        %v5826 = vsel %vm379, %v5797, 0
        %5828 = vmatprep.subr.bf16.mxu0 0
        %5829 = vmatpush1.bf16.msra.mxu0 0
        %5830 = vmatprep.subr.bf16.mxu0 0
        %5831 = vmatpush1.bf16.msra.mxu0 0
        %5832 = vmatprep.subr.bf16.mxu0 0
        %5833 = vmatpush1.bf16.msra.mxu0 0
        %5834 = vmatprep.subr.bf16.mxu0 0
        %5835 = vmatpush1.bf16.msra.mxu0 0
        %5836 = vmatprep.subr.bf16.mxu0 0
        %5837 = vmatpush1.bf16.msra.mxu0 %v5817
        %5838 = vmatprep.subr.bf16.mxu0 0
        %5839 = vmatpush1.bf16.msra.mxu0 %v5816
        %5840 = vmatprep.subr.bf16.mxu0 0
        %5841 = vmatpush1.bf16.msra.mxu0 %v5815
        %5842 = vmatprep.subr.bf16.mxu0 0
        %5843 = vmatpush1.bf16.msra.mxu0 %v5814
        %5844 = vmatprep.subr.bf16.mxu0 0
        %5845 = vmatpush2.bf16.msra.mxu0 0
        %5846 = vmatprep.subr.bf16.mxu0 0
        %5847 = vmatpush2.bf16.msra.mxu0 0
        %5848 = vmatprep.subr.bf16.mxu0 0
        %5849 = vmatpush2.bf16.msra.mxu0 0
        %5850 = vmatprep.subr.bf16.mxu0 0
        %5851 = vmatpush2.bf16.msra.mxu0 0
        %5852 = vmatprep.subr.bf16.mxu0 0
        %5853 = vmatpush2.bf16.msra.mxu0 0
        %5854 = vmatprep.subr.bf16.mxu0 0
        %5855 = vmatpush2.bf16.msra.mxu0 0
        %5856 = vmatprep.subr.bf16.mxu0 0
        %5857 = vmatpush2.bf16.msra.mxu0 0
        %5858 = vmatprep.subr.bf16.mxu0 0
        %5859 = vmatpush2.bf16.msra.mxu0 0
        %5860 = vmatprep.mubr.bf16.mxu0 0
        %5861 = vmatmul.mubr.bf16.gmra.mxu0 %v5823
        %v5862 = vpop.f32.mrf.mxu0
        %v5863 = vadd.f32 0.0, %v5862
        %v5864 = vpop.f32.mrf.mxu0
        %v5865 = vpop.f32.mrf.mxu0
        %v5866 = vadd.f32 0.0, %v5865
        %v5867 = vpop.f32.mrf.mxu0
        %5868 = vmatprep.mubr.bf16.mxu0 0
        %5869 = vmatmul.mubr.bf16.gmra.mxu0 %v5826
        %v5870 = vpop.f32.mrf.mxu0
        %v5871 = vadd.f32 0.0, %v5870
        %v5872 = vpop.f32.mrf.mxu0
        %v5873 = vpop.f32.mrf.mxu0
        %v5874 = vadd.f32 0.0, %v5873
        %v5875 = vpop.f32.mrf.mxu0
        %5876 = vdwg.mxu0
        %v5877 = vadd.f32 %v5748, %v5863
        %v5878 = vadd.f32 %v5749, %v5866
        %v5879 = vadd.f32 %v5750, %v5871
        %v5880 = vadd.f32 %v5751, %v5874
        %v5881 = vld [vmem:[%s1 + $0xc0] sm:$0xf]
        %v5882 = vld [vmem:[%s1 + $0xc4] sm:$0xf]
        %v5883 = vld [vmem:[%s1 + $0xc8] sm:$0xf]
        %v5884 = vld [vmem:[%s1 + $0xcc] sm:$0xf]
        %v5885 = vld [vmem:[%s1 + $0xd0] sm:$0xf]
        %v5886 = vld [vmem:[%s1 + $0xd4] sm:$0xf]
        %v5887 = vld [vmem:[%s1 + $0xd8] sm:$0xf]
        %v5888 = vld [vmem:[%s1 + $0xdc] sm:$0xf]
        %v5889 = vld [vmem:[%s238 + $0x98] sm:$0xf]
        %v5890 = vld [vmem:[%s238 + $0x9c] sm:$0xf]
        %v5891 = vld [vmem:[%s238 + $0xa0] sm:$0xf]
        %v5892 = vld [vmem:[%s238 + $0xa4] sm:$0xf]
        %v5893 = vld [vmem:[%s238 + $0xa8] sm:$0x1]
        %v5899 = vunpack.c.l.b16 %v5889
        %v5900 = vunpack.c.l.b16 %v5890
        %v5901 = vunpack.c.l.b16 %v5891
        %v5902 = vunpack.c.l.b16 %v5892
        %v5903 = vunpack.c.l.b16 %v5893
        %v5904 = vpack.c.b16 %v5900, %v5899
        %v5905 = vpack.c.b16 %v5902, %v5901
        %v5906 = vpack.c.b16 %v5903, %v5903
        %v5908 = vshrl.u32 %v5904, 16
        %v5910 = vshll.u32 %v5904, 16
        %v5912 = vrot.slane %v5910, 1
        %v5913 = vor.u32 %v5908, %v5912
        %v5915 = vshll.u32 %v5905, 16
        %v5917 = vrot.slane %v5915, 1
        %v5918 = vsel %vm1503, %v5913, %v5917
        %v5919 = vshrl.u32 %v5905, 16
        %v5921 = vor.u32 %v5919, %v5917
        %v5923 = vshll.u32 %v5906, 16
        %v5925 = vrot.slane %v5923, 1
        %v5926 = vsel %vm1503, %v5921, %v5925
        %v5935 = vunpack.c.l.b16 %v5881
        %v5936 = vunpack.c.l.b16 %v5882
        %v5937 = vunpack.c.l.b16 %v5883
        %v5938 = vunpack.c.l.b16 %v5884
        %v5939 = vunpack.c.l.b16 %v5885
        %v5940 = vunpack.c.l.b16 %v5886
        %v5941 = vunpack.c.l.b16 %v5887
        %v5942 = vunpack.c.l.b16 %v5888
        %v5943 = vpack.c.b16 %v5936, %v5935
        %v5944 = vpack.c.b16 %v5938, %v5937
        %v5945 = vpack.c.b16 %v5940, %v5939
        %v5946 = vpack.c.b16 %v5942, %v5941
        %v5952 = vsel %vm379, %v5918, 0
        %v5955 = vsel %vm379, %v5926, 0
        %5957 = vmatprep.subr.bf16.mxu0 0
        %5958 = vmatpush1.bf16.msra.mxu0 0
        %5959 = vmatprep.subr.bf16.mxu0 0
        %5960 = vmatpush1.bf16.msra.mxu0 0
        %5961 = vmatprep.subr.bf16.mxu0 0
        %5962 = vmatpush1.bf16.msra.mxu0 0
        %5963 = vmatprep.subr.bf16.mxu0 0
        %5964 = vmatpush1.bf16.msra.mxu0 0
        %5965 = vmatprep.subr.bf16.mxu0 0
        %5966 = vmatpush1.bf16.msra.mxu0 %v5946
        %5967 = vmatprep.subr.bf16.mxu0 0
        %5968 = vmatpush1.bf16.msra.mxu0 %v5945
        %5969 = vmatprep.subr.bf16.mxu0 0
        %5970 = vmatpush1.bf16.msra.mxu0 %v5944
        %5971 = vmatprep.subr.bf16.mxu0 0
        %5972 = vmatpush1.bf16.msra.mxu0 %v5943
        %5973 = vmatprep.subr.bf16.mxu0 0
        %5974 = vmatpush2.bf16.msra.mxu0 0
        %5975 = vmatprep.subr.bf16.mxu0 0
        %5976 = vmatpush2.bf16.msra.mxu0 0
        %5977 = vmatprep.subr.bf16.mxu0 0
        %5978 = vmatpush2.bf16.msra.mxu0 0
        %5979 = vmatprep.subr.bf16.mxu0 0
        %5980 = vmatpush2.bf16.msra.mxu0 0
        %5981 = vmatprep.subr.bf16.mxu0 0
        %5982 = vmatpush2.bf16.msra.mxu0 0
        %5983 = vmatprep.subr.bf16.mxu0 0
        %5984 = vmatpush2.bf16.msra.mxu0 0
        %5985 = vmatprep.subr.bf16.mxu0 0
        %5986 = vmatpush2.bf16.msra.mxu0 0
        %5987 = vmatprep.subr.bf16.mxu0 0
        %5988 = vmatpush2.bf16.msra.mxu0 0
        %5989 = vmatprep.mubr.bf16.mxu0 0
        %5990 = vmatmul.mubr.bf16.gmra.mxu0 %v5952
        %v5991 = vpop.f32.mrf.mxu0
        %v5992 = vadd.f32 0.0, %v5991
        %v5993 = vpop.f32.mrf.mxu0
        %v5994 = vpop.f32.mrf.mxu0
        %v5995 = vadd.f32 0.0, %v5994
        %v5996 = vpop.f32.mrf.mxu0
        %5997 = vmatprep.mubr.bf16.mxu0 0
        %5998 = vmatmul.mubr.bf16.gmra.mxu0 %v5955
        %v5999 = vpop.f32.mrf.mxu0
        %v6000 = vadd.f32 0.0, %v5999
        %v6001 = vpop.f32.mrf.mxu0
        %v6002 = vpop.f32.mrf.mxu0
        %v6003 = vadd.f32 0.0, %v6002
        %v6004 = vpop.f32.mrf.mxu0
        %6005 = vdwg.mxu0
        %v6006 = vadd.f32 %v5877, %v5992
        %v6007 = vadd.f32 %v5878, %v5995
        %v6008 = vadd.f32 %v5879, %v6000
        %v6009 = vadd.f32 %v5880, %v6003
        %v6010 = vld [vmem:[%s1 + $0xe0] sm:$0xf]
        %v6011 = vld [vmem:[%s1 + $0xe4] sm:$0xf]
        %v6012 = vld [vmem:[%s1 + $0xe8] sm:$0xf]
        %v6013 = vld [vmem:[%s1 + $0xec] sm:$0xf]
        %v6014 = vld [vmem:[%s1 + $0xf0] sm:$0xf]
        %v6015 = vld [vmem:[%s1 + $0xf4] sm:$0xf]
        %v6016 = vld [vmem:[%s1 + $0xf8] sm:$0xf]
        %v6017 = vld [vmem:[%s1 + $0xfc] sm:$0xf]
        %v6018 = vld [vmem:[%s238 + $0x98] sm:$0xe]
        %v6020 = vunpack.c.l.b16 %v6018
        %v6021 = vpack.c.b16 %v5900, %v6020
        %v6022 = vrot.slane %v6021, 1
        %v6023 = vrot.slane %v5905, 1
        %v6024 = vsel %vm2042, %v6022, %v6023
        %v6025 = vrot.slane %v5906, 1
        %v6026 = vsel %vm2042, %v6023, %v6025
        %v6035 = vunpack.c.l.b16 %v6010
        %v6036 = vunpack.c.l.b16 %v6011
        %v6037 = vunpack.c.l.b16 %v6012
        %v6038 = vunpack.c.l.b16 %v6013
        %v6039 = vunpack.c.l.b16 %v6014
        %v6040 = vunpack.c.l.b16 %v6015
        %v6041 = vunpack.c.l.b16 %v6016
        %v6042 = vunpack.c.l.b16 %v6017
        %v6043 = vpack.c.b16 %v6036, %v6035
        %v6044 = vpack.c.b16 %v6038, %v6037
        %v6045 = vpack.c.b16 %v6040, %v6039
        %v6046 = vpack.c.b16 %v6042, %v6041
        %v6052 = vsel %vm379, %v6024, 0
        %v6055 = vsel %vm379, %v6026, 0
        %6057 = vmatprep.subr.bf16.mxu0 0
        %6058 = vmatpush1.bf16.msra.mxu0 0
        %6059 = vmatprep.subr.bf16.mxu0 0
        %6060 = vmatpush1.bf16.msra.mxu0 0
        %6061 = vmatprep.subr.bf16.mxu0 0
        %6062 = vmatpush1.bf16.msra.mxu0 0
        %6063 = vmatprep.subr.bf16.mxu0 0
        %6064 = vmatpush1.bf16.msra.mxu0 0
        %6065 = vmatprep.subr.bf16.mxu0 0
        %6066 = vmatpush1.bf16.msra.mxu0 %v6046
        %6067 = vmatprep.subr.bf16.mxu0 0
        %6068 = vmatpush1.bf16.msra.mxu0 %v6045
        %6069 = vmatprep.subr.bf16.mxu0 0
        %6070 = vmatpush1.bf16.msra.mxu0 %v6044
        %6071 = vmatprep.subr.bf16.mxu0 0
        %6072 = vmatpush1.bf16.msra.mxu0 %v6043
        %6073 = vmatprep.subr.bf16.mxu0 0
        %6074 = vmatpush2.bf16.msra.mxu0 0
        %6075 = vmatprep.subr.bf16.mxu0 0
        %6076 = vmatpush2.bf16.msra.mxu0 0
        %6077 = vmatprep.subr.bf16.mxu0 0
        %6078 = vmatpush2.bf16.msra.mxu0 0
        %6079 = vmatprep.subr.bf16.mxu0 0
        %6080 = vmatpush2.bf16.msra.mxu0 0
        %6081 = vmatprep.subr.bf16.mxu0 0
        %6082 = vmatpush2.bf16.msra.mxu0 0
        %6083 = vmatprep.subr.bf16.mxu0 0
        %6084 = vmatpush2.bf16.msra.mxu0 0
        %6085 = vmatprep.subr.bf16.mxu0 0
        %6086 = vmatpush2.bf16.msra.mxu0 0
        %6087 = vmatprep.subr.bf16.mxu0 0
        %6088 = vmatpush2.bf16.msra.mxu0 0
        %6089 = vmatprep.mubr.bf16.mxu0 0
        %6090 = vmatmul.mubr.bf16.gmra.mxu0 %v6052
        %v6091 = vpop.f32.mrf.mxu0
        %v6092 = vadd.f32 0.0, %v6091
        %v6093 = vpop.f32.mrf.mxu0
        %v6094 = vpop.f32.mrf.mxu0
        %v6095 = vadd.f32 0.0, %v6094
        %v6096 = vpop.f32.mrf.mxu0
        %6097 = vmatprep.mubr.bf16.mxu0 0
        %6098 = vmatmul.mubr.bf16.gmra.mxu0 %v6055
        %v6099 = vpop.f32.mrf.mxu0
        %v6100 = vadd.f32 0.0, %v6099
        %v6101 = vpop.f32.mrf.mxu0
        %v6102 = vpop.f32.mrf.mxu0
        %v6103 = vadd.f32 0.0, %v6102
        %v6104 = vpop.f32.mrf.mxu0
        %6105 = vdwg.mxu0
        %v6106 = vadd.f32 %v6006, %v6092
        %v6107 = vadd.f32 %v6007, %v6095
        %v6108 = vadd.f32 %v6008, %v6100
        %v6109 = vadd.f32 %v6009, %v6103
        %v6110 = vld [vmem:[%s1 + $0x100] sm:$0xf]
        %v6111 = vld [vmem:[%s1 + $0x104] sm:$0xf]
        %v6112 = vld [vmem:[%s1 + $0x108] sm:$0xf]
        %v6113 = vld [vmem:[%s1 + $0x10c] sm:$0xf]
        %v6114 = vld [vmem:[%s1 + $0x110] sm:$0xf]
        %v6115 = vld [vmem:[%s1 + $0x114] sm:$0xf]
        %v6116 = vld [vmem:[%s1 + $0x118] sm:$0xf]
        %v6117 = vld [vmem:[%s1 + $0x11c] sm:$0xf]
        %v6118 = vld [vmem:[%s238 + $0xa8] sm:$0x3]
        %v6120 = vunpack.c.l.b16 %v6118
        %v6121 = vpack.c.b16 %v6120, %v6120
        %v6123 = vshrl.u32 %v6021, 16
        %v6125 = vrot.slane %v6123, 1
        %v6126 = vshll.u32 %v6021, 16
        %v6128 = vrot.slane %v6126, 2
        %v6129 = vor.u32 %v6125, %v6128
        %v6130 = vrot.slane %v5919, 1
        %v6131 = vrot.slane %v5915, 2
        %v6132 = vor.u32 %v6130, %v6131
        %v6133 = vsel %vm2233, %v6129, %v6132
        %v6135 = vshrl.u32 %v6121, 16
        %v6137 = vrot.slane %v6135, 1
        %v6138 = vshll.u32 %v6121, 16
        %v6140 = vrot.slane %v6138, 2
        %v6141 = vor.u32 %v6137, %v6140
        %v6142 = vsel %vm2233, %v6132, %v6141
        %v6151 = vunpack.c.l.b16 %v6110
        %v6152 = vunpack.c.l.b16 %v6111
        %v6153 = vunpack.c.l.b16 %v6112
        %v6154 = vunpack.c.l.b16 %v6113
        %v6155 = vunpack.c.l.b16 %v6114
        %v6156 = vunpack.c.l.b16 %v6115
        %v6157 = vunpack.c.l.b16 %v6116
        %v6158 = vunpack.c.l.b16 %v6117
        %v6159 = vpack.c.b16 %v6152, %v6151
        %v6160 = vpack.c.b16 %v6154, %v6153
        %v6161 = vpack.c.b16 %v6156, %v6155
        %v6162 = vpack.c.b16 %v6158, %v6157
        %v6168 = vsel %vm379, %v6133, 0
        %v6171 = vsel %vm379, %v6142, 0
        %6173 = vmatprep.subr.bf16.mxu0 0
        %6174 = vmatpush1.bf16.msra.mxu0 0
        %6175 = vmatprep.subr.bf16.mxu0 0
        %6176 = vmatpush1.bf16.msra.mxu0 0
        %6177 = vmatprep.subr.bf16.mxu0 0
        %6178 = vmatpush1.bf16.msra.mxu0 0
        %6179 = vmatprep.subr.bf16.mxu0 0
        %6180 = vmatpush1.bf16.msra.mxu0 0
        %6181 = vmatprep.subr.bf16.mxu0 0
        %6182 = vmatpush1.bf16.msra.mxu0 %v6162
        %6183 = vmatprep.subr.bf16.mxu0 0
        %6184 = vmatpush1.bf16.msra.mxu0 %v6161
        %6185 = vmatprep.subr.bf16.mxu0 0
        %6186 = vmatpush1.bf16.msra.mxu0 %v6160
        %6187 = vmatprep.subr.bf16.mxu0 0
        %6188 = vmatpush1.bf16.msra.mxu0 %v6159
        %6189 = vmatprep.subr.bf16.mxu0 0
        %6190 = vmatpush2.bf16.msra.mxu0 0
        %6191 = vmatprep.subr.bf16.mxu0 0
        %6192 = vmatpush2.bf16.msra.mxu0 0
        %6193 = vmatprep.subr.bf16.mxu0 0
        %6194 = vmatpush2.bf16.msra.mxu0 0
        %6195 = vmatprep.subr.bf16.mxu0 0
        %6196 = vmatpush2.bf16.msra.mxu0 0
        %6197 = vmatprep.subr.bf16.mxu0 0
        %6198 = vmatpush2.bf16.msra.mxu0 0
        %6199 = vmatprep.subr.bf16.mxu0 0
        %6200 = vmatpush2.bf16.msra.mxu0 0
        %6201 = vmatprep.subr.bf16.mxu0 0
        %6202 = vmatpush2.bf16.msra.mxu0 0
        %6203 = vmatprep.subr.bf16.mxu0 0
        %6204 = vmatpush2.bf16.msra.mxu0 0
        %6205 = vmatprep.mubr.bf16.mxu0 0
        %6206 = vmatmul.mubr.bf16.gmra.mxu0 %v6168
        %v6207 = vpop.f32.mrf.mxu0
        %v6208 = vadd.f32 0.0, %v6207
        %v6209 = vpop.f32.mrf.mxu0
        %v6210 = vpop.f32.mrf.mxu0
        %v6211 = vadd.f32 0.0, %v6210
        %v6212 = vpop.f32.mrf.mxu0
        %6213 = vmatprep.mubr.bf16.mxu0 0
        %6214 = vmatmul.mubr.bf16.gmra.mxu0 %v6171
        %v6215 = vpop.f32.mrf.mxu0
        %v6216 = vadd.f32 0.0, %v6215
        %v6217 = vpop.f32.mrf.mxu0
        %v6218 = vpop.f32.mrf.mxu0
        %v6219 = vadd.f32 0.0, %v6218
        %v6220 = vpop.f32.mrf.mxu0
        %6221 = vdwg.mxu0
        %v6222 = vadd.f32 %v6106, %v6208
        %v6223 = vadd.f32 %v6107, %v6211
        %v6224 = vadd.f32 %v6108, %v6216
        %v6225 = vadd.f32 %v6109, %v6219
        %v6226 = vld [vmem:[%s2 + $0x120] sm:$0xff]
        %v6227 = vld [vmem:[%s2 + $0x128] sm:$0xff]
        %v6228 = vld [vmem:[%s2 + $0x130] sm:$0xff]
        %v6229 = vld [vmem:[%s2 + $0x138] sm:$0xff]
        %6231 = vset.pattern.permute.xlu0 0
        %6232 = vperm.xlu0 %6231, %v6226
        %v6233 = vpop.permute.xlu0 %6232
        %6236 = vset.pattern.permute.xlu0 0
        %6237 = vperm.xlu0 %6236, %v6227
        %v6238 = vpop.permute.xlu0 %6237
        %6241 = vset.pattern.permute.xlu0 0
        %6242 = vperm.xlu0 %6241, %v6228
        %v6243 = vpop.permute.xlu0 %6242
        %6246 = vset.pattern.permute.xlu0 0
        %6247 = vperm.xlu0 %6246, %v6229
        %v6248 = vpop.permute.xlu0 %6247
        %v6250 = vmul.f32 %v6222, %v6233
        %v6251 = vmul.f32 %v6223, %v6238
        %v6252 = vmul.f32 %v6224, %v6243
        %v6253 = vmul.f32 %v6225, %v6248
        %v6254 = vsel %vm379, %v6250, 0.0
        %v6255 = vsel %vm379, %v6251, 0.0
        %v6256 = vadd.f32 %v6254, %v6255
        %v6257 = vsel %vm379, %v6252, 0.0
        %v6258 = vadd.f32 %v6256, %v6257
        %v6259 = vsel %vm379, %v6253, 0.0
        %v6260 = vadd.f32 %v6258, %v6259
        %v6261 = vrot.slane %v6260, 4
        %v6262 = vadd.f32 %v6260, %v6261
        %v6263 = vrot.slane %v6262, 2
        %v6264 = vadd.f32 %v6262, %v6263
        %v6265 = vrot.slane %v6264, 1
        %v6266 = vadd.f32 %v6264, %v6265
        %v6267 = vadd.f32 %v5046, %v6266
        %v6268 = vmul.f32 %v6250, %v6250
        %v6269 = vmul.f32 %v6251, %v6251
        %v6270 = vmul.f32 %v6252, %v6252
        %v6271 = vmul.f32 %v6253, %v6253
        %v6272 = vsel %vm379, %v6268, 0.0
        %v6273 = vsel %vm379, %v6269, 0.0
        %v6274 = vadd.f32 %v6272, %v6273
        %v6275 = vsel %vm379, %v6270, 0.0
        %v6276 = vadd.f32 %v6274, %v6275
        %v6277 = vsel %vm379, %v6271, 0.0
        %v6278 = vadd.f32 %v6276, %v6277
        %v6279 = vrot.slane %v6278, 4
        %v6280 = vadd.f32 %v6278, %v6279
        %v6281 = vrot.slane %v6280, 2
        %v6282 = vadd.f32 %v6280, %v6281
        %v6283 = vrot.slane %v6282, 1
        %v6284 = vadd.f32 %v6282, %v6283
        %v6285 = vadd.f32 %v5100, %v6284
        %v6286 = vpack.c.bf16 %v6251, %v6250
        %v6287 = vpack.c.bf16 %v6253, %v6252
        %v6290 = vunpack.c.l.b16 %v6286
        %v6291 = vunpack.c.h.b16 %v6286
        %v6292 = vunpack.c.l.b16 %v6287
        %v6293 = vunpack.c.h.b16 %v6287
        %v6294 = vpack.c.b16 %v6290, %v6290
        %v6295 = vpack.c.b16 %v6291, %v6291
        %v6296 = vpack.c.b16 %v6292, %v6292
        %v6297 = vpack.c.b16 %v6293, %v6293
        %6302 = vst.msk [vmem:[%s243 + $0x90] sm:$0xf] %vm245, %v6294
        %6303 = vst.msk [vmem:[%s243 + $0x94] sm:$0xf] %vm245, %v6295
        %6304 = vst.msk [vmem:[%s243 + $0x98] sm:$0xf] %vm245, %v6296
        %6305 = vst.msk [vmem:[%s243 + $0x9c] sm:$0xf] %vm245, %v6297
        %vm6306 = vcmask 516096
        %6307 = vst.msk [vmem:[%s227] sm:$0x1] %vm6306, %v6267
        %6308 = vst.msk [vmem:[%s233] sm:$0x1] %vm6306, %v6285
        %p6309 = scmp.lt.s32.totalorder %s23, 1
        %s6310 = scalar_select %p6309, %s23, 1
        %s6311 = smul.addr %s6310, 45
        %s6312 = smul.addr %s6311, 4
        %s6313 = scalar_lea.vmem %s3, %s6312
        %s6314 = sand.u32 %s125, 1
        %s6315 = scalar_lea.sflag [#allocation3], %s6314
        %s6316 = sand.u32 %s125, 1
        %s6317 = scalar_lea.vmem [#allocation2], %s6316
        %s6318 = sand.u32 %s151, 1
        %s6319 = scalar_lea.sflag [#allocation5], %s6318
        %s6320 = sand.u32 %s151, 1
        %s6321 = scalar_lea.vmem [#allocation4], %s6320
        // Predicated region
        $region33: #{tpu_custom_call.1} parent=31 // pred_check
          %p6322 = pneg %p109
        $region34: #{tpu_custom_call.1} parent=31 // pred_check_branch
          %6324 = sbr.rel (%p6322) target = $region36
        $region35: #{tpu_custom_call.1} parent=31 // pred_region
          _
        $region36: #{tpu_custom_call.1} parent=31 // pred_fallthru
          _
        // Predicated region
        $region37: #{tpu_custom_call.1} parent=31 // pred_check
          %p6325 = pneg %p135
        $region38: #{tpu_custom_call.1} parent=31 // pred_check_branch
          %6327 = sbr.rel (%p6325) target = $region40
        $region39: #{tpu_custom_call.1} parent=31 // pred_region
          %s6329 = ssub.s32 16, 16
          %6330 = vsyncadd %s6315, %s6329
          %s6331 = smul.addr %s23, 16
          %s6332 = scalar_lea.hbm %s4, %s6331
          %s6334 = sshll.u32 %s6317, 4
          %s6335 = int_to_ptr.vmem [resolvable:$true] %s6334
          %6337 = dma.vmem_to_hbm [thread:$0]  %s6335, 16, %s6332, %s6315
        $region40: #{tpu_custom_call.1} parent=31 // pred_fallthru
          _
        // Predicated region
        $region41: #{tpu_custom_call.1} parent=31 // pred_check
          %p6338 = pneg %p161
        $region42: #{tpu_custom_call.1} parent=31 // pred_check_branch
          %6340 = sbr.rel (%p6338) target = $region44
        $region43: #{tpu_custom_call.1} parent=31 // pred_region
          %s6342 = ssub.s32 16, 16
          %6343 = vsyncadd %s6319, %s6342
          %s6344 = smul.addr %s23, 16
          %s6345 = scalar_lea.hbm %s5, %s6344
          %s6347 = sshll.u32 %s6321, 4
          %s6348 = int_to_ptr.vmem [resolvable:$true] %s6347
          %6350 = dma.vmem_to_hbm [thread:$0]  %s6348, 16, %s6345, %s6319
        $region44: #{tpu_custom_call.1} parent=31 // pred_fallthru
          _
      $region32: #{tpu_custom_call.1} parent=5 // pred_fallthru
        _
      %p6351 = scmp.le.s32.totalorder 2, %s18
      // Predicated region
      $region45: #{tpu_custom_call.1} parent=5 // pred_check
        %p6352 = pneg %p6351
      $region46: #{tpu_custom_call.1} parent=5 // pred_check_branch
        %6354 = sbr.rel (%p6352) target = $region48
      $region47: #{tpu_custom_call.1} parent=5 // pred_region
        %s6355 = ssub.s32 %s18, 2
        // Predicated region
        $region49: #{tpu_custom_call.1} parent=47 // pred_check
          %p6356 = pneg %p115
        $region50: #{tpu_custom_call.1} parent=47 // pred_check_branch
          %6358 = sbr.rel (%p6356) target = $region52
        $region51: #{tpu_custom_call.1} parent=47 // pred_region
          %p6359 = scmp.lt.s32.totalorder %s24, 1
          %s6360 = scalar_select %p6359, %s24, 1
          %s6361 = smul.addr %s6360, 45
          %s6362 = smul.addr %s6361, 4
          %s6363 = scalar_lea.vmem %s3, %s6362
        $region52: #{tpu_custom_call.1} parent=47 // pred_fallthru
          _
        // Predicated region
        $region53: #{tpu_custom_call.1} parent=47 // pred_check
          %p6364 = pneg %p141
        $region54: #{tpu_custom_call.1} parent=47 // pred_check_branch
          %6366 = sbr.rel (%p6364) target = $region56
        $region55: #{tpu_custom_call.1} parent=47 // pred_region
          %s6367 = sand.u32 %s126, 1
          %s6368 = scalar_lea.sflag [#allocation3], %s6367
          %s6369 = sand.u32 %s126, 1
          %s6370 = scalar_lea.vmem [#allocation2], %s6369
          %6371 = dma.done %s6368, 16
        $region56: #{tpu_custom_call.1} parent=47 // pred_fallthru
          _
        // Predicated region
        $region57: #{tpu_custom_call.1} parent=47 // pred_check
          %p6372 = pneg %p167
        $region58: #{tpu_custom_call.1} parent=47 // pred_check_branch
          %6374 = sbr.rel (%p6372) target = $region60
        $region59: #{tpu_custom_call.1} parent=47 // pred_region
          %s6375 = sand.u32 %s152, 1
          %s6376 = scalar_lea.sflag [#allocation5], %s6375
          %s6377 = sand.u32 %s152, 1
          %s6378 = scalar_lea.vmem [#allocation4], %s6377
          %6379 = dma.done %s6376, 16
        $region60: #{tpu_custom_call.1} parent=47 // pred_fallthru
          _
      $region48: #{tpu_custom_call.1} parent=5 // pred_fallthru
        _
    $region6: #{tpu_custom_call.1} parent=1 // loop_footer
      %s22 = sadd.s32 1, %s18
    $region7: #{tpu_custom_call.1} parent=1 // loop_footer_branch
      %17 = sbr.rel target = $region3
    $region8: #{tpu_custom_call.1} parent=1 // loop_exit
      _
    %6380 = vsyncpa [#allocation3], 1
    %s6381 = scalar_lea.sflag [#allocation3], 1
    %6382 = vsyncpa %s6381, 1
    %6383 = vsyncpa [#allocation5], 1
    %s6384 = scalar_lea.sflag [#allocation5], 1
    %6385 = vsyncpa %s6384, 1

</llo_original>
